<compile_context>
chip_gen: v6e
topology: v6e:2x2x1
jax: 0.10.0
libtpu: 0.0.40
codegen_flags: <defaults>
</compile_context>

<pallas_src>
import numpy as np
import jax
import jax.numpy as jnp
from jax import lax
from jax.experimental import pallas as pl
from jax.experimental.pallas import tpu as pltpu

NUM_CLASS = 10
OUT_LANES = 128          # lane-dense output slab; first NUM_CLASS lanes are real


def _round_up(x, m):
    return (x + m - 1) // m * m


# ----------------------------- Pallas kernel --------------------------------
def model_m1_kernel(x_ref, w1_ref, b1_ref, w2_ref, b2_ref,
                    wf1_ref, bf1_ref, wf2_ref, bf2_ref, wf3_ref, bf3_ref,
                    out_ref):
    # x_ref:   (24, B, 288) f32  conv1 im2row LHS: rows=(out_row i, image b),
    #                            lanes = 32*kh + input_col
    # w1_ref:  (288, 768)  bf16  fused conv1 banded weights, pool-permuted cols
    # b1_ref:  (1, 768)    f32
    # w2_ref:  (9, 384, 128) bf16 conv2 banded weights over the compacted pool1
    # b2_ref:  (1, 128)    f32
    # wf1_ref: (2, 96, 64) bf16  fc1 weights, one slab per pooled row h
    # wf2_ref: (64, 96) bf16  wf3_ref: (96, 128) bf16 (zero-padded past class 10)
    # out_ref: (B, 128) f32
    B = x_ref.shape[1]
    f32 = jnp.float32
    bf16 = jnp.bfloat16

    # ---- Conv1 (1 -> 32, 9x9, VALID): single fused K=288 MXU matmul --------
    lhs1 = x_ref[...].reshape(24 * B, 288).astype(bf16)
    acc1 = jnp.dot(lhs1, w1_ref[...], preferred_element_type=f32)
    h1 = jnp.maximum(acc1 + b1_ref[...], 0.0)                    # (24B, 768)

    # ---- MaxPool1 2x2 -------------------------------------------------------
    # row pool: sublane halves (8-aligned slices)
    h1r = h1.reshape(12, 2 * B, 768)
    a1 = jnp.maximum(h1r[:, :B, :], h1r[:, B:, :]).reshape(12 * B, 768)
    # column pool: even/odd output cols live in 128-aligned lane halves, so the
    # pool is a pure VALU max and the result is already the compact 384-lane
    # pooled layout (lane = 32*pooled_col + channel).
    p1 = jnp.maximum(a1[:, :384], a1[:, 384:])                   # (12B, 384)

    # ---- Conv2 (32 -> 32, 9x9, VALID): 9 banded MXU taps, K = 384 ----------
    # (4B, 128) f32 accumulator stays register-resident across the taps.
    acc2 = jnp.dot(p1[0:4 * B, :].astype(bf16), w2_ref[0],
                   preferred_element_type=f32)
    for kh in range(1, 9):
        acc2 = acc2 + jnp.dot(p1[kh * B:(kh + 4) * B, :].astype(bf16),
                              w2_ref[kh], preferred_element_type=f32)
    h2 = jnp.maximum(acc2 + b2_ref[...], 0.0)                    # (4B, 128)

    # ---- MaxPool2 2x2 (tiny tensor; 32-lane shifted max is negligible) -----
    h2r = h2.reshape(2, 2 * B, 128)
    a2 = jnp.maximum(h2r[:, :B, :], h2r[:, B:, :]).reshape(2 * B, 128)
    p2 = jnp.maximum(a2[:, :96], a2[:, 32:])                     # (2B, 96)

    # ---- fc1 / fc2 / fc3 (torch CHW flatten order folded into wf1) ---------
    y = (jnp.dot(p2[:B, :].astype(bf16), wf1_ref[0], preferred_element_type=f32)
         + jnp.dot(p2[B:, :].astype(bf16), wf1_ref[1], preferred_element_type=f32)
         + bf1_ref[...])                                         # (B, 64)
    y = jnp.dot(y.astype(bf16), wf2_ref[...],
                preferred_element_type=f32) + bf2_ref[...]       # (B, 96)
    y = jnp.dot(y.astype(bf16), wf3_ref[...],
                preferred_element_type=f32) + bf3_ref[...]       # (B, 128)
    out_ref[...] = y.astype(out_ref.dtype)


# --------------------- host-side parameter re-packing ------------------------
def _pack_params(params):
    """PyTorch-layout params -> fused/banded, lane-dense, bf16 kernel layouts."""
    w1 = np.asarray(params["w1"], np.float32)    # (32, 1, 9, 9)  [cout,cin,kh,kw]
    b1 = np.asarray(params["b1"], np.float32)
    w2 = np.asarray(params["w2"], np.float32)    # (32, 32, 9, 9) [cout,cin,kh,kw]
    b2 = np.asarray(params["b2"], np.float32)
    wf1 = np.asarray(params["wf1"], np.float32)  # (64, 128)
    bf1 = np.asarray(params["bf1"], np.float32)
    wf2 = np.asarray(params["wf2"], np.float32)  # (96, 64)
    bf2 = np.asarray(params["bf2"], np.float32)
    wf3 = np.asarray(params["wf3"], np.float32)  # (10, 96)
    bf3 = np.asarray(params["bf3"], np.float32)

    # conv1 fused banded weights:
    #   LHS row index      = 32*kh + input_col
    #   output lane (j,co) = 384*(j % 2) + 32*(j // 2) + co   (pool-friendly)
    w1t = np.zeros((288, 768), np.float32)
    for kh in range(9):
        for kw in range(9):
            for j in range(24):
                lane0 = 384 * (j % 2) + 32 * (j // 2)
                w1t[32 * kh + j + kw, lane0:lane0 + 32] = w1[:, 0, kh, kw]
    b1t = np.tile(b1, 24)[None, :]                               # (1, 768)

    # conv2 banded weights over the compacted pooled layout:
    #   input lane  = 32*(j2 + kw) + ci,  output lane = 32*j2 + co
    w2t = np.zeros((9, 384, 128), np.float32)
    for kh in range(9):
        for kw in range(9):
            for j2 in range(4):
                w2t[kh, 32 * (j2 + kw):32 * (j2 + kw) + 32,
                    32 * j2:32 * (j2 + 1)] = w2[:, :, kh, kw].T
    b2t = np.tile(b2, 4)[None, :]                                # (1, 128)

    # fc1: kernel input lane l = 64*w + co for pooled row h; torch flatten
    # index of (C=32,H=2,W=2) is co*4 + h*2 + w.
    wf1t = np.zeros((2, 96, 64), np.float32)
    for h in range(2):
        for w in range(2):
            for co in range(32):
                wf1t[h, 64 * w + co, :] = wf1[:, co * 4 + h * 2 + w]
    bf1t = bf1[None, :]                                          # (1, 64)

    wf2t = wf2.T                                                 # (64, 96)
    bf2t = bf2[None, :]                                          # (1, 96)

    wf3t = np.zeros((96, OUT_LANES), np.float32)                 # lane-dense out
    wf3t[:, :NUM_CLASS] = wf3.T
    bf3t = np.zeros((1, OUT_LANES), np.float32)
    bf3t[0, :NUM_CLASS] = bf3

    bf = jnp.bfloat16
    f32 = jnp.float32
    return (jnp.asarray(w1t, bf), jnp.asarray(b1t, f32),
            jnp.asarray(w2t, bf), jnp.asarray(b2t, f32),
            jnp.asarray(wf1t, bf), jnp.asarray(bf1t, f32),
            jnp.asarray(wf2t, bf), jnp.asarray(bf2t, f32),
            jnp.asarray(wf3t, bf), jnp.asarray(bf3t, f32))


# ------------------------------- wrapper -------------------------------------
def model_m1_forward(x_nchw, params, *, block_b=64):
    """x_nchw: (N, 1, 32, 32) f32.  Returns (N, NUM_CLASS) f32 logits."""
    N = x_nchw.shape[0]
    # Cap block size at 64 images (keeps intermediates comfortable inside the
    # v7x 64 MiB VMEM); always a multiple of 8 (sublane / BlockSpec rule).
    block_b = _round_up(min(max(int(block_b), 8), 64), 8)
    # Pick the number of grid steps first (>=2 when possible so both v7x
    # TensorCores get work), then the smallest 8-aligned B that covers N:
    # minimizes batch padding (e.g. N=70 -> B=40/24 instead of padding to 128).
    n_steps = max(pl.cdiv(N, block_b), 2 if N > 8 else 1)
    B = _round_up(pl.cdiv(N, n_steps), 8)
    Np = B * n_steps

    x = x_nchw[:, 0, :, :].astype(jnp.float32)                   # (N, 32, 32)
    if Np != N:
        x = jnp.pad(x, ((0, Np - N), (0, 0), (0, 0)))
    # batch on the sublane axis: (image_row, image, image_col)
    x_t = jnp.transpose(x, (1, 0, 2))                            # (32, Np, 32)
    # conv1 im2row: stack the 9 kh-shifted row windows along the lane axis so
    # the kernel can do conv1 as ONE K=288 matmul.
    xim = jnp.concatenate([x_t[kh:kh + 24] for kh in range(9)], axis=-1)  # (24,Np,288)

    packed = _pack_params(params)

    const2 = lambda n: (0, 0)
    const3 = lambda n: (0, 0, 0)
    out = pl.pallas_call(
        model_m1_kernel,
        out_shape=jax.ShapeDtypeStruct((Np, OUT_LANES), jnp.float32),
        grid=(n_steps,),
        in_specs=[
            pl.BlockSpec((24, B, 288), lambda n: (0, n, 0)),     # im2row images
            pl.BlockSpec((288, 768), const2),                    # conv1 w (fused)
            pl.BlockSpec((1, 768), const2),                      # conv1 b (tiled)
            pl.BlockSpec((9, 384, 128), const3),                 # conv2 w (banded)
            pl.BlockSpec((1, 128), const2),                      # conv2 b (tiled)
            pl.BlockSpec((2, 96, 64), const3),                   # fc1 w
            pl.BlockSpec((1, 64), const2),                       # fc1 b
            pl.BlockSpec((64, 96), const2),                      # fc2 w
            pl.BlockSpec((1, 96), const2),                       # fc2 b
            pl.BlockSpec((96, OUT_LANES), const2),               # fc3 w (padded)
            pl.BlockSpec((1, OUT_LANES), const2),                # fc3 b (padded)
        ],
        out_specs=pl.BlockSpec((B, OUT_LANES), lambda n: (n, 0)),
        compiler_params=pltpu.CompilerParams(
            dimension_semantics=("parallel",),
            vmem_limit_bytes=32 * 1024 * 1024),
    )(xim, *packed)
    return out[:N, :NUM_CLASS]


# -------------------------- params / reference -------------------------------
def init_params(key):
    """Deterministic synthetic init, PyTorch-style layouts/shapes."""
    ks = jax.random.split(key, 10)

    def u(k, shape, fan_in):
        b = 1.0 / np.sqrt(fan_in)
        return jax.random.uniform(k, shape, jnp.float32, -b, b)

    return dict(
        w1=u(ks[0], (32, 1, 9, 9), 1 * 9 * 9),   b1=u(ks[1], (32,), 1 * 9 * 9),
        w2=u(ks[2], (32, 32, 9, 9), 32 * 9 * 9), b2=u(ks[3], (32,), 32 * 9 * 9),
        wf1=u(ks[4], (64, 128), 128),            bf1=u(ks[5], (64,), 128),
        wf2=u(ks[6], (96, 64), 64),              bf2=u(ks[7], (96,), 64),
        wf3=u(ks[8], (NUM_CLASS, 96), 96),       bf3=u(ks[9], (NUM_CLASS,), 96),
    )


def ref_forward(x_nchw, p):
    """Pure-JAX emulation of the PyTorch forward (NCHW), used as ground truth."""
    dn = ("NCHW", "OIHW", "NCHW")
    prec = lax.Precision.HIGHEST
    y = lax.conv_general_dilated(x_nchw, p["w1"], (1, 1), "VALID",
                                 dimension_numbers=dn, precision=prec)
    y = jnp.maximum(y + p["b1"][None, :, None, None], 0.0)
    n, c, h, w = y.shape
    y = y.reshape(n, c, h // 2, 2, w // 2, 2).max(axis=(3, 5))
    y = lax.conv_general_dilated(y, p["w2"], (1, 1), "VALID",
                                 dimension_numbers=dn, precision=prec)
    y = jnp.maximum(y + p["b2"][None, :, None, None], 0.0)
    n, c, h, w = y.shape
    y = y.reshape(n, c, h // 2, 2, w // 2, 2).max(axis=(3, 5))
    y = y.reshape(n, -1)                                    # torch flatten: (C,H,W)
    y = jnp.dot(y, p["wf1"].T, precision=prec) + p["bf1"]
    y = jnp.dot(y, p["wf2"].T, precision=prec) + p["bf2"]
    y = jnp.dot(y, p["wf3"].T, precision=prec) + p["bf3"]
    return y


if __name__ == "__main__":
    key = jax.random.PRNGKey(0)
    kx, kp = jax.random.split(key)
    params = init_params(kp)

    # Small but representative: exercises the divisor-aware block choice
    # (70 images -> 3 blocks of 24, only 2 padded rows) and a multi-step grid.
    x = jax.random.normal(kx, (70, 1, 32, 32), jnp.float32)

    out = jax.block_until_ready(model_m1_forward(x, params, block_b=32))
    ref = jax.block_until_ready(ref_forward(x, params))
    # bf16 matmul inputs (f32 accumulation): relax tolerance accordingly.
    np.testing.assert_allclose(np.asarray(out), np.asarray(ref),
                               rtol=1e-2, atol=1e-2)
    print("KERNEL_OK")
</pallas_src>

<mosaic_0001>
module attributes {stable_mosaic.version = 11 : i64} {
  func.func @model_m1_kernel(%arg0: i32, %arg1: memref<24x24x288xf32, #tpu.memory_space<vmem>>, %arg2: memref<288x768xbf16, #tpu.memory_space<vmem>>, %arg3: memref<1x768xf32, #tpu.memory_space<vmem>>, %arg4: memref<9x384x128xbf16, #tpu.memory_space<vmem>>, %arg5: memref<1x128xf32, #tpu.memory_space<vmem>>, %arg6: memref<2x96x64xbf16, #tpu.memory_space<vmem>>, %arg7: memref<1x64xf32, #tpu.memory_space<vmem>>, %arg8: memref<64x96xbf16, #tpu.memory_space<vmem>>, %arg9: memref<1x96xf32, #tpu.memory_space<vmem>>, %arg10: memref<96x128xbf16, #tpu.memory_space<vmem>>, %arg11: memref<1x128xf32, #tpu.memory_space<vmem>>, %arg12: memref<24x128xf32, #tpu.memory_space<vmem>>) attributes {dimension_semantics = [#tpu.dimension_semantics<parallel>], iteration_bounds = array<i64: 3>, scalar_prefetch = 0 : i64, scratch_operands = 0 : i64, tpu.core_type = #tpu.core_type<tc>, window_params = [{transform_indices = @transform_0, window_bounds = array<i64: 24, 24, 288>}, {pipeline_mode = #tpu.pipeline_mode<synchronous>, transform_indices = @transform_1, window_bounds = array<i64: 288, 768>}, {pipeline_mode = #tpu.pipeline_mode<synchronous>, transform_indices = @transform_2, window_bounds = array<i64: 1, 768>}, {pipeline_mode = #tpu.pipeline_mode<synchronous>, transform_indices = @transform_3, window_bounds = array<i64: 9, 384, 128>}, {pipeline_mode = #tpu.pipeline_mode<synchronous>, transform_indices = @transform_4, window_bounds = array<i64: 1, 128>}, {pipeline_mode = #tpu.pipeline_mode<synchronous>, transform_indices = @transform_5, window_bounds = array<i64: 2, 96, 64>}, {pipeline_mode = #tpu.pipeline_mode<synchronous>, transform_indices = @transform_6, window_bounds = array<i64: 1, 64>}, {pipeline_mode = #tpu.pipeline_mode<synchronous>, transform_indices = @transform_7, window_bounds = array<i64: 64, 96>}, {pipeline_mode = #tpu.pipeline_mode<synchronous>, transform_indices = @transform_8, window_bounds = array<i64: 1, 96>}, {pipeline_mode = #tpu.pipeline_mode<synchronous>, transform_indices = @transform_9, window_bounds = array<i64: 96, 128>}, {pipeline_mode = #tpu.pipeline_mode<synchronous>, transform_indices = @transform_10, window_bounds = array<i64: 1, 128>}, {transform_indices = @transform_11, window_bounds = array<i64: 24, 128>}]} {
    %c0 = arith.constant 0 : index
    %c0_0 = arith.constant 0 : index
    %c0_1 = arith.constant 0 : index
    %0 = vector.load %arg1[%c0, %c0_0, %c0_1] : memref<24x24x288xf32, #tpu.memory_space<vmem>>, vector<24x24x288xf32>
    %1 = vector.shape_cast %0 : vector<24x24x288xf32> to vector<576x288xf32>
    %2 = arith.truncf %1 : vector<576x288xf32> to vector<576x288xbf16>
    %c0_2 = arith.constant 0 : index
    %c0_3 = arith.constant 0 : index
    %3 = vector.load %arg2[%c0_2, %c0_3] : memref<288x768xbf16, #tpu.memory_space<vmem>>, vector<288x768xbf16>
    %cst = arith.constant dense<0.000000e+00> : vector<576x768xf32>
    %4 = tpu.matmul %2, %3, %cst {dimension_numbers = #tpu.dot_dimension_numbers<[1], [0], [0], [1], [0, 0, 1, 1], [], []>} : vector<576x288xbf16>, vector<288x768xbf16>, vector<576x768xf32> -> vector<576x768xf32>
    %c0_4 = arith.constant 0 : index
    %c0_5 = arith.constant 0 : index
    %5 = vector.load %arg3[%c0_4, %c0_5] : memref<1x768xf32, #tpu.memory_space<vmem>>, vector<1x768xf32>
    %6 = vector.broadcast %5 : vector<1x768xf32> to vector<576x768xf32>
    %7 = arith.addf %4, %6 : vector<576x768xf32>
    %cst_6 = arith.constant 0.000000e+00 : f32
    %8 = vector.broadcast %cst_6 : f32 to vector<576x768xf32>
    %9 = arith.maximumf %7, %8 : vector<576x768xf32>
    %10 = vector.shape_cast %9 : vector<576x768xf32> to vector<12x48x768xf32>
    %11 = vector.extract_strided_slice %10 {offsets = [0, 0, 0], sizes = [12, 24, 768], strides = [1, 1, 1]} : vector<12x48x768xf32> to vector<12x24x768xf32>
    %12 = vector.extract_strided_slice %10 {offsets = [0, 24, 0], sizes = [12, 24, 768], strides = [1, 1, 1]} : vector<12x48x768xf32> to vector<12x24x768xf32>
    %13 = arith.maximumf %11, %12 : vector<12x24x768xf32>
    %14 = vector.shape_cast %13 : vector<12x24x768xf32> to vector<288x768xf32>
    %15 = vector.extract_strided_slice %14 {offsets = [0, 0], sizes = [288, 384], strides = [1, 1]} : vector<288x768xf32> to vector<288x384xf32>
    %16 = vector.extract_strided_slice %14 {offsets = [0, 384], sizes = [288, 384], strides = [1, 1]} : vector<288x768xf32> to vector<288x384xf32>
    %17 = arith.maximumf %15, %16 : vector<288x384xf32>
    %18 = vector.extract_strided_slice %17 {offsets = [0, 0], sizes = [96, 384], strides = [1, 1]} : vector<288x384xf32> to vector<96x384xf32>
    %19 = arith.truncf %18 : vector<96x384xf32> to vector<96x384xbf16>
    %c0_7 = arith.constant 0 : index
    %c0_8 = arith.constant 0 : index
    %c0_9 = arith.constant 0 : index
    %20 = vector.load %arg4[%c0_7, %c0_8, %c0_9] : memref<9x384x128xbf16, #tpu.memory_space<vmem>>, vector<1x384x128xbf16>
    %21 = vector.shape_cast %20 : vector<1x384x128xbf16> to vector<384x128xbf16>
    %cst_10 = arith.constant dense<0.000000e+00> : vector<96x128xf32>
    %22 = tpu.matmul %19, %21, %cst_10 {dimension_numbers = #tpu.dot_dimension_numbers<[1], [0], [0], [1], [0, 0, 1, 1], [], []>} : vector<96x384xbf16>, vector<384x128xbf16>, vector<96x128xf32> -> vector<96x128xf32>
    %23 = vector.extract_strided_slice %17 {offsets = [24, 0], sizes = [96, 384], strides = [1, 1]} : vector<288x384xf32> to vector<96x384xf32>
    %24 = arith.truncf %23 : vector<96x384xf32> to vector<96x384xbf16>
    %c1 = arith.constant 1 : index
    %c0_11 = arith.constant 0 : index
    %c0_12 = arith.constant 0 : index
    %25 = vector.load %arg4[%c1, %c0_11, %c0_12] : memref<9x384x128xbf16, #tpu.memory_space<vmem>>, vector<1x384x128xbf16>
    %26 = vector.shape_cast %25 : vector<1x384x128xbf16> to vector<384x128xbf16>
    %cst_13 = arith.constant dense<0.000000e+00> : vector<96x128xf32>
    %27 = tpu.matmul %24, %26, %cst_13 {dimension_numbers = #tpu.dot_dimension_numbers<[1], [0], [0], [1], [0, 0, 1, 1], [], []>} : vector<96x384xbf16>, vector<384x128xbf16>, vector<96x128xf32> -> vector<96x128xf32>
    %28 = arith.addf %22, %27 : vector<96x128xf32>
    %29 = vector.extract_strided_slice %17 {offsets = [48, 0], sizes = [96, 384], strides = [1, 1]} : vector<288x384xf32> to vector<96x384xf32>
    %30 = arith.truncf %29 : vector<96x384xf32> to vector<96x384xbf16>
    %c2 = arith.constant 2 : index
    %c0_14 = arith.constant 0 : index
    %c0_15 = arith.constant 0 : index
    %31 = vector.load %arg4[%c2, %c0_14, %c0_15] : memref<9x384x128xbf16, #tpu.memory_space<vmem>>, vector<1x384x128xbf16>
    %32 = vector.shape_cast %31 : vector<1x384x128xbf16> to vector<384x128xbf16>
    %cst_16 = arith.constant dense<0.000000e+00> : vector<96x128xf32>
    %33 = tpu.matmul %30, %32, %cst_16 {dimension_numbers = #tpu.dot_dimension_numbers<[1], [0], [0], [1], [0, 0, 1, 1], [], []>} : vector<96x384xbf16>, vector<384x128xbf16>, vector<96x128xf32> -> vector<96x128xf32>
    %34 = arith.addf %28, %33 : vector<96x128xf32>
    %35 = vector.extract_strided_slice %17 {offsets = [72, 0], sizes = [96, 384], strides = [1, 1]} : vector<288x384xf32> to vector<96x384xf32>
    %36 = arith.truncf %35 : vector<96x384xf32> to vector<96x384xbf16>
    %c3 = arith.constant 3 : index
    %c0_17 = arith.constant 0 : index
    %c0_18 = arith.constant 0 : index
    %37 = vector.load %arg4[%c3, %c0_17, %c0_18] : memref<9x384x128xbf16, #tpu.memory_space<vmem>>, vector<1x384x128xbf16>
    %38 = vector.shape_cast %37 : vector<1x384x128xbf16> to vector<384x128xbf16>
    %cst_19 = arith.constant dense<0.000000e+00> : vector<96x128xf32>
    %39 = tpu.matmul %36, %38, %cst_19 {dimension_numbers = #tpu.dot_dimension_numbers<[1], [0], [0], [1], [0, 0, 1, 1], [], []>} : vector<96x384xbf16>, vector<384x128xbf16>, vector<96x128xf32> -> vector<96x128xf32>
    %40 = arith.addf %34, %39 : vector<96x128xf32>
    %41 = vector.extract_strided_slice %17 {offsets = [96, 0], sizes = [96, 384], strides = [1, 1]} : vector<288x384xf32> to vector<96x384xf32>
    %42 = arith.truncf %41 : vector<96x384xf32> to vector<96x384xbf16>
    %c4 = arith.constant 4 : index
    %c0_20 = arith.constant 0 : index
    %c0_21 = arith.constant 0 : index
    %43 = vector.load %arg4[%c4, %c0_20, %c0_21] : memref<9x384x128xbf16, #tpu.memory_space<vmem>>, vector<1x384x128xbf16>
    %44 = vector.shape_cast %43 : vector<1x384x128xbf16> to vector<384x128xbf16>
    %cst_22 = arith.constant dense<0.000000e+00> : vector<96x128xf32>
    %45 = tpu.matmul %42, %44, %cst_22 {dimension_numbers = #tpu.dot_dimension_numbers<[1], [0], [0], [1], [0, 0, 1, 1], [], []>} : vector<96x384xbf16>, vector<384x128xbf16>, vector<96x128xf32> -> vector<96x128xf32>
    %46 = arith.addf %40, %45 : vector<96x128xf32>
    %47 = vector.extract_strided_slice %17 {offsets = [120, 0], sizes = [96, 384], strides = [1, 1]} : vector<288x384xf32> to vector<96x384xf32>
    %48 = arith.truncf %47 : vector<96x384xf32> to vector<96x384xbf16>
    %c5 = arith.constant 5 : index
    %c0_23 = arith.constant 0 : index
    %c0_24 = arith.constant 0 : index
    %49 = vector.load %arg4[%c5, %c0_23, %c0_24] : memref<9x384x128xbf16, #tpu.memory_space<vmem>>, vector<1x384x128xbf16>
    %50 = vector.shape_cast %49 : vector<1x384x128xbf16> to vector<384x128xbf16>
    %cst_25 = arith.constant dense<0.000000e+00> : vector<96x128xf32>
    %51 = tpu.matmul %48, %50, %cst_25 {dimension_numbers = #tpu.dot_dimension_numbers<[1], [0], [0], [1], [0, 0, 1, 1], [], []>} : vector<96x384xbf16>, vector<384x128xbf16>, vector<96x128xf32> -> vector<96x128xf32>
    %52 = arith.addf %46, %51 : vector<96x128xf32>
    %53 = vector.extract_strided_slice %17 {offsets = [144, 0], sizes = [96, 384], strides = [1, 1]} : vector<288x384xf32> to vector<96x384xf32>
    %54 = arith.truncf %53 : vector<96x384xf32> to vector<96x384xbf16>
    %c6 = arith.constant 6 : index
    %c0_26 = arith.constant 0 : index
    %c0_27 = arith.constant 0 : index
    %55 = vector.load %arg4[%c6, %c0_26, %c0_27] : memref<9x384x128xbf16, #tpu.memory_space<vmem>>, vector<1x384x128xbf16>
    %56 = vector.shape_cast %55 : vector<1x384x128xbf16> to vector<384x128xbf16>
    %cst_28 = arith.constant dense<0.000000e+00> : vector<96x128xf32>
    %57 = tpu.matmul %54, %56, %cst_28 {dimension_numbers = #tpu.dot_dimension_numbers<[1], [0], [0], [1], [0, 0, 1, 1], [], []>} : vector<96x384xbf16>, vector<384x128xbf16>, vector<96x128xf32> -> vector<96x128xf32>
    %58 = arith.addf %52, %57 : vector<96x128xf32>
    %59 = vector.extract_strided_slice %17 {offsets = [168, 0], sizes = [96, 384], strides = [1, 1]} : vector<288x384xf32> to vector<96x384xf32>
    %60 = arith.truncf %59 : vector<96x384xf32> to vector<96x384xbf16>
    %c7 = arith.constant 7 : index
    %c0_29 = arith.constant 0 : index
    %c0_30 = arith.constant 0 : index
    %61 = vector.load %arg4[%c7, %c0_29, %c0_30] : memref<9x384x128xbf16, #tpu.memory_space<vmem>>, vector<1x384x128xbf16>
    %62 = vector.shape_cast %61 : vector<1x384x128xbf16> to vector<384x128xbf16>
    %cst_31 = arith.constant dense<0.000000e+00> : vector<96x128xf32>
    %63 = tpu.matmul %60, %62, %cst_31 {dimension_numbers = #tpu.dot_dimension_numbers<[1], [0], [0], [1], [0, 0, 1, 1], [], []>} : vector<96x384xbf16>, vector<384x128xbf16>, vector<96x128xf32> -> vector<96x128xf32>
    %64 = arith.addf %58, %63 : vector<96x128xf32>
    %65 = vector.extract_strided_slice %17 {offsets = [192, 0], sizes = [96, 384], strides = [1, 1]} : vector<288x384xf32> to vector<96x384xf32>
    %66 = arith.truncf %65 : vector<96x384xf32> to vector<96x384xbf16>
    %c8 = arith.constant 8 : index
    %c0_32 = arith.constant 0 : index
    %c0_33 = arith.constant 0 : index
    %67 = vector.load %arg4[%c8, %c0_32, %c0_33] : memref<9x384x128xbf16, #tpu.memory_space<vmem>>, vector<1x384x128xbf16>
    %68 = vector.shape_cast %67 : vector<1x384x128xbf16> to vector<384x128xbf16>
    %cst_34 = arith.constant dense<0.000000e+00> : vector<96x128xf32>
    %69 = tpu.matmul %66, %68, %cst_34 {dimension_numbers = #tpu.dot_dimension_numbers<[1], [0], [0], [1], [0, 0, 1, 1], [], []>} : vector<96x384xbf16>, vector<384x128xbf16>, vector<96x128xf32> -> vector<96x128xf32>
    %70 = arith.addf %64, %69 : vector<96x128xf32>
    %c0_35 = arith.constant 0 : index
    %c0_36 = arith.constant 0 : index
    %71 = vector.load %arg5[%c0_35, %c0_36] : memref<1x128xf32, #tpu.memory_space<vmem>>, vector<1x128xf32>
    %72 = vector.broadcast %71 : vector<1x128xf32> to vector<96x128xf32>
    %73 = arith.addf %70, %72 : vector<96x128xf32>
    %cst_37 = arith.constant 0.000000e+00 : f32
    %74 = vector.broadcast %cst_37 : f32 to vector<96x128xf32>
    %75 = arith.maximumf %73, %74 : vector<96x128xf32>
    %76 = vector.shape_cast %75 : vector<96x128xf32> to vector<2x48x128xf32>
    %77 = vector.extract_strided_slice %76 {offsets = [0, 0, 0], sizes = [2, 24, 128], strides = [1, 1, 1]} : vector<2x48x128xf32> to vector<2x24x128xf32>
    %78 = vector.extract_strided_slice %76 {offsets = [0, 24, 0], sizes = [2, 24, 128], strides = [1, 1, 1]} : vector<2x48x128xf32> to vector<2x24x128xf32>
    %79 = arith.maximumf %77, %78 : vector<2x24x128xf32>
    %80 = vector.shape_cast %79 : vector<2x24x128xf32> to vector<48x128xf32>
    %81 = vector.extract_strided_slice %80 {offsets = [0, 0], sizes = [48, 96], strides = [1, 1]} : vector<48x128xf32> to vector<48x96xf32>
    %82 = vector.extract_strided_slice %80 {offsets = [0, 32], sizes = [48, 96], strides = [1, 1]} : vector<48x128xf32> to vector<48x96xf32>
    %83 = arith.maximumf %81, %82 : vector<48x96xf32>
    %84 = vector.extract_strided_slice %83 {offsets = [0, 0], sizes = [24, 96], strides = [1, 1]} : vector<48x96xf32> to vector<24x96xf32>
    %85 = arith.truncf %84 : vector<24x96xf32> to vector<24x96xbf16>
    %c0_38 = arith.constant 0 : index
    %c0_39 = arith.constant 0 : index
    %c0_40 = arith.constant 0 : index
    %86 = vector.load %arg6[%c0_38, %c0_39, %c0_40] : memref<2x96x64xbf16, #tpu.memory_space<vmem>>, vector<1x96x64xbf16>
    %87 = vector.shape_cast %86 : vector<1x96x64xbf16> to vector<96x64xbf16>
    %cst_41 = arith.constant dense<0.000000e+00> : vector<24x64xf32>
    %88 = tpu.matmul %85, %87, %cst_41 {dimension_numbers = #tpu.dot_dimension_numbers<[1], [0], [0], [1], [0, 0, 1, 1], [], []>} : vector<24x96xbf16>, vector<96x64xbf16>, vector<24x64xf32> -> vector<24x64xf32>
    %89 = vector.extract_strided_slice %83 {offsets = [24, 0], sizes = [24, 96], strides = [1, 1]} : vector<48x96xf32> to vector<24x96xf32>
    %90 = arith.truncf %89 : vector<24x96xf32> to vector<24x96xbf16>
    %c1_42 = arith.constant 1 : index
    %c0_43 = arith.constant 0 : index
    %c0_44 = arith.constant 0 : index
    %91 = vector.load %arg6[%c1_42, %c0_43, %c0_44] : memref<2x96x64xbf16, #tpu.memory_space<vmem>>, vector<1x96x64xbf16>
    %92 = vector.shape_cast %91 : vector<1x96x64xbf16> to vector<96x64xbf16>
    %cst_45 = arith.constant dense<0.000000e+00> : vector<24x64xf32>
    %93 = tpu.matmul %90, %92, %cst_45 {dimension_numbers = #tpu.dot_dimension_numbers<[1], [0], [0], [1], [0, 0, 1, 1], [], []>} : vector<24x96xbf16>, vector<96x64xbf16>, vector<24x64xf32> -> vector<24x64xf32>
    %94 = arith.addf %88, %93 : vector<24x64xf32>
    %c0_46 = arith.constant 0 : index
    %c0_47 = arith.constant 0 : index
    %95 = vector.load %arg7[%c0_46, %c0_47] : memref<1x64xf32, #tpu.memory_space<vmem>>, vector<1x64xf32>
    %96 = vector.broadcast %95 : vector<1x64xf32> to vector<24x64xf32>
    %97 = arith.addf %94, %96 : vector<24x64xf32>
    %98 = arith.truncf %97 : vector<24x64xf32> to vector<24x64xbf16>
    %c0_48 = arith.constant 0 : index
    %c0_49 = arith.constant 0 : index
    %99 = vector.load %arg8[%c0_48, %c0_49] : memref<64x96xbf16, #tpu.memory_space<vmem>>, vector<64x96xbf16>
    %cst_50 = arith.constant dense<0.000000e+00> : vector<24x96xf32>
    %100 = tpu.matmul %98, %99, %cst_50 {dimension_numbers = #tpu.dot_dimension_numbers<[1], [0], [0], [1], [0, 0, 1, 1], [], []>} : vector<24x64xbf16>, vector<64x96xbf16>, vector<24x96xf32> -> vector<24x96xf32>
    %c0_51 = arith.constant 0 : index
    %c0_52 = arith.constant 0 : index
    %101 = vector.load %arg9[%c0_51, %c0_52] : memref<1x96xf32, #tpu.memory_space<vmem>>, vector<1x96xf32>
    %102 = vector.broadcast %101 : vector<1x96xf32> to vector<24x96xf32>
    %103 = arith.addf %100, %102 : vector<24x96xf32>
    %104 = arith.truncf %103 : vector<24x96xf32> to vector<24x96xbf16>
    %c0_53 = arith.constant 0 : index
    %c0_54 = arith.constant 0 : index
    %105 = vector.load %arg10[%c0_53, %c0_54] : memref<96x128xbf16, #tpu.memory_space<vmem>>, vector<96x128xbf16>
    %cst_55 = arith.constant dense<0.000000e+00> : vector<24x128xf32>
    %106 = tpu.matmul %104, %105, %cst_55 {dimension_numbers = #tpu.dot_dimension_numbers<[1], [0], [0], [1], [0, 0, 1, 1], [], []>} : vector<24x96xbf16>, vector<96x128xbf16>, vector<24x128xf32> -> vector<24x128xf32>
    %c0_56 = arith.constant 0 : index
    %c0_57 = arith.constant 0 : index
    %107 = vector.load %arg11[%c0_56, %c0_57] : memref<1x128xf32, #tpu.memory_space<vmem>>, vector<1x128xf32>
    %108 = vector.broadcast %107 : vector<1x128xf32> to vector<24x128xf32>
    %109 = arith.addf %106, %108 : vector<24x128xf32>
    %c0_58 = arith.constant 0 : index
    %c0_59 = arith.constant 0 : index
    %110 = vector.load %arg12[%c0_58, %c0_59] : memref<24x128xf32, #tpu.memory_space<vmem>>, vector<24x128xf32>
    tpu.vector_store %arg12[%c0_58, %c0_59], %109 {strides = array<i32>} : memref<24x128xf32, #tpu.memory_space<vmem>>, vector<24x128xf32>,
    return
  }
  func.func @transform_0(%arg0: i32) -> (i32, i32, i32) {
    %c0_i32 = arith.constant 0 : i32
    %c0_i32_0 = arith.constant 0 : i32
    %c0_i32_1 = arith.constant 0 : i32
    return %c0_i32, %arg0, %c0_i32_0 : i32, i32, i32
  }
  func.func @transform_1(%arg0: i32) -> (i32, i32) {
    %c0_i32 = arith.constant 0 : i32
    %c0_i32_0 = arith.constant 0 : i32
    %c0_i32_1 = arith.constant 0 : i32
    return %c0_i32, %c0_i32_0 : i32, i32
  }
  func.func @transform_2(%arg0: i32) -> (i32, i32) {
    %c0_i32 = arith.constant 0 : i32
    %c0_i32_0 = arith.constant 0 : i32
    %c0_i32_1 = arith.constant 0 : i32
    return %c0_i32, %c0_i32_0 : i32, i32
  }
  func.func @transform_3(%arg0: i32) -> (i32, i32, i32) {
    %c0_i32 = arith.constant 0 : i32
    %c0_i32_0 = arith.constant 0 : i32
    %c0_i32_1 = arith.constant 0 : i32
    %c0_i32_2 = arith.constant 0 : i32
    return %c0_i32, %c0_i32_0, %c0_i32_1 : i32, i32, i32
  }
  func.func @transform_4(%arg0: i32) -> (i32, i32) {
    %c0_i32 = arith.constant 0 : i32
    %c0_i32_0 = arith.constant 0 : i32
    %c0_i32_1 = arith.constant 0 : i32
    return %c0_i32, %c0_i32_0 : i32, i32
  }
  func.func @transform_5(%arg0: i32) -> (i32, i32, i32) {
    %c0_i32 = arith.constant 0 : i32
    %c0_i32_0 = arith.constant 0 : i32
    %c0_i32_1 = arith.constant 0 : i32
    %c0_i32_2 = arith.constant 0 : i32
    return %c0_i32, %c0_i32_0, %c0_i32_1 : i32, i32, i32
  }
  func.func @transform_6(%arg0: i32) -> (i32, i32) {
    %c0_i32 = arith.constant 0 : i32
    %c0_i32_0 = arith.constant 0 : i32
    %c0_i32_1 = arith.constant 0 : i32
    return %c0_i32, %c0_i32_0 : i32, i32
  }
  func.func @transform_7(%arg0: i32) -> (i32, i32) {
    %c0_i32 = arith.constant 0 : i32
    %c0_i32_0 = arith.constant 0 : i32
    %c0_i32_1 = arith.constant 0 : i32
    return %c0_i32, %c0_i32_0 : i32, i32
  }
  func.func @transform_8(%arg0: i32) -> (i32, i32) {
    %c0_i32 = arith.constant 0 : i32
    %c0_i32_0 = arith.constant 0 : i32
    %c0_i32_1 = arith.constant 0 : i32
    return %c0_i32, %c0_i32_0 : i32, i32
  }
  func.func @transform_9(%arg0: i32) -> (i32, i32) {
    %c0_i32 = arith.constant 0 : i32
    %c0_i32_0 = arith.constant 0 : i32
    %c0_i32_1 = arith.constant 0 : i32
    return %c0_i32, %c0_i32_0 : i32, i32
  }
  func.func @transform_10(%arg0: i32) -> (i32, i32) {
    %c0_i32 = arith.constant 0 : i32
    %c0_i32_0 = arith.constant 0 : i32
    %c0_i32_1 = arith.constant 0 : i32
    return %c0_i32, %c0_i32_0 : i32, i32
  }
  func.func @transform_11(%arg0: i32) -> (i32, i32) {
    %c0_i32 = arith.constant 0 : i32
    %c0_i32_0 = arith.constant 0 : i32
    return %arg0, %c0_i32 : i32, i32
  }
}

</mosaic_0001>

<llo_original>
// kernel: tpu_custom_call.1
$region0: #{tpu_custom_call.1}
  #allocation0 [shape = 'u32[]', space=smem, size = 0x4, offset = 0x4, fixed_abs, tag = 'smem constant byte address 0x4 - core index']
  #allocation1 [shape = 'u32[144,128]{1,0:T(1,128)}', space=vmem, size = 0x12000, scoped, tag = 'internal scratch']
  #allocation20 [shape = 's32[]', space=sflag, size = 0x4, offset = 0, fixed_abs, tag = 'sflag constant byte address 0x0 - dummy sync flag']
  %s0 = inlined_call_operand.hbm [shape: f32[24,72,288], index: 0, kind: input, shape index: {}]
  %s1 = inlined_call_operand.hbm [shape: bf16[288,768], index: 1, kind: input, shape index: {}]
  %s2 = inlined_call_operand.hbm [shape: f32[1,768], index: 2, kind: input, shape index: {}]
  %s3 = inlined_call_operand.hbm [shape: bf16[9,384,128], index: 3, kind: input, shape index: {}]
  %s4 = inlined_call_operand.hbm [shape: f32[1,128], index: 4, kind: input, shape index: {}]
  %s5 = inlined_call_operand.vmem [shape: bf16[2,96,64], index: 5, kind: input, shape index: {}]
  %s6 = inlined_call_operand.hbm [shape: f32[1,64], index: 6, kind: input, shape index: {}]
  %s7 = inlined_call_operand.hbm [shape: bf16[64,96], index: 7, kind: input, shape index: {}]
  %s8 = inlined_call_operand.hbm [shape: f32[1,96], index: 8, kind: input, shape index: {}]
  %s9 = inlined_call_operand.hbm [shape: bf16[96,128], index: 9, kind: input, shape index: {}]
  %s10 = inlined_call_operand.hbm [shape: f32[1,128], index: 10, kind: input, shape index: {}]
  %s11 = inlined_call_operand.hbm [shape: f32[72,128], index: 11, kind: output, shape index: {}]
  %s12 = sld [smem:[#allocation0]]
  $region117: #{tpu_custom_call.1} parent=0
    _
  %s14 = ssub.s32 1, %s12
  %s15 = scalar_select 0, %s14, %s12
  $region1: #{tpu_custom_call.1} parent=0
    #allocation2 [shape = 'u8[1769472]{0}', space=vmem, size = 0x1b0000, scoped, tag = 'input window, operand 0']
    #allocation3 [shape = 's32[2]{0}', space=sflag, size = 0x8, scoped, tag = 'scoped memory for tpu_custom_call.1']
    #allocation4 [shape = 's32[2]{0}', space=sflag, size = 0x8, scoped, tag = 'scoped memory for tpu_custom_call.1']
    #allocation5 [shape = 'u8[442368]{0}', space=vmem, size = 0x6c000, scoped, tag = 'input window, operand 1, single buffered']
    #allocation6 [shape = 's32[1]{0}', space=sflag, size = 0x4, scoped, tag = 'scoped memory for tpu_custom_call.1']
    #allocation7 [shape = 'u8[3072]{0}', space=vmem, size = 0xc00, scoped, tag = 'input window, operand 2, single buffered']
    #allocation8 [shape = 'u8[884736]{0}', space=vmem, size = 0xd8000, scoped, tag = 'input window, operand 3, single buffered']
    #allocation9 [shape = 's32[1]{0}', space=sflag, size = 0x4, scoped, tag = 'scoped memory for tpu_custom_call.1']
    #allocation10 [shape = 'u8[512]{0}', space=vmem, size = 0x400, scoped, tag = 'input window, operand 4, single buffered']
    #allocation11 [shape = 'u8[512]{0}', space=vmem, size = 0x400, scoped, tag = 'input window, operand 6, single buffered']
    #allocation12 [shape = 's32[1]{0}', space=sflag, size = 0x4, scoped, tag = 'scoped memory for tpu_custom_call.1']
    #allocation13 [shape = 'u8[16384]{0}', space=vmem, size = 0x4000, scoped, tag = 'input window, operand 7, single buffered']
    #allocation14 [shape = 'u8[512]{0}', space=vmem, size = 0x400, scoped, tag = 'input window, operand 8, single buffered']
    #allocation15 [shape = 's32[1]{0}', space=sflag, size = 0x4, scoped, tag = 'scoped memory for tpu_custom_call.1']
    #allocation16 [shape = 'u8[24576]{0}', space=vmem, size = 0x6000, scoped, tag = 'input window, operand 9, single buffered']
    #allocation17 [shape = 'u8[512]{0}', space=vmem, size = 0x400, scoped, tag = 'input window, operand 10, single buffered']
    #allocation18 [shape = 's32[1]{0}', space=sflag, size = 0x4, scoped, tag = 'scoped memory for tpu_custom_call.1']
    #allocation19 [shape = 'u8[24576]{0}', space=vmem, size = 0x6000, scoped, tag = 'output window, operand 0']
    %16 = vsyncpa [#allocation3], 0
    %s17 = scalar_lea.sflag [#allocation3], 1
    %18 = vsyncpa %s17, 0
    %19 = vsyncpa [#allocation6], 0
    %20 = vsyncpa [#allocation9], 0
    %21 = vsyncpa [#allocation12], 0
    %22 = vsyncpa [#allocation15], 0
    %23 = vsyncpa [#allocation18], 0
    %24 = vsyncpa [#allocation4], 0
    %s25 = scalar_lea.sflag [#allocation4], 1
    %26 = vsyncpa %s25, 0
    loop: start=0, step=1, limit=5
    $region2: #{tpu_custom_call.1} parent=1 // loop_pre_header
      _
    $region3: #{tpu_custom_call.1} parent=1 // loop_header
      %s28 = sphi 0, %s32
      %p29 = scmp.ge.s32.totalorder %s28, 5
      %s38 = sphi 0, %s40
      %s41 = sphi 0, %s38
      %s42 = sphi 0, %s41
      %s58 = sphi 0, %s42
      %s62 = sphi 0, %s62
      %s64 = sphi 0, %s62
      %s65 = sphi 0, %s64
      %s79 = sphi 0, %s65
      %s83 = sphi 0, %s83
      %s85 = sphi 0, %s83
      %s86 = sphi 0, %s85
      %s100 = sphi 0, %s86
      %s104 = sphi 0, %s104
      %s106 = sphi 0, %s104
      %s107 = sphi 0, %s106
      %s121 = sphi 0, %s107
      %s125 = sphi 0, %s125
      %s127 = sphi 0, %s125
      %s128 = sphi 0, %s127
      %s142 = sphi 0, %s128
      %s146 = sphi 0, %s146
      %s148 = sphi 0, %s146
      %s149 = sphi 0, %s148
      %s163 = sphi 0, %s149
      %s167 = sphi 0, %s167
      %s169 = sphi 0, %s167
      %s170 = sphi 0, %s169
      %s184 = sphi 0, %s170
      %s188 = sphi 0, %s188
      %s190 = sphi 0, %s188
      %s191 = sphi 0, %s190
      %s205 = sphi 0, %s191
      %s209 = sphi 0, %s209
      %s211 = sphi 0, %s209
      %s212 = sphi 0, %s211
      %s226 = sphi 0, %s212
      %s230 = sphi 0, %s230
      %s232 = sphi 0, %s230
      %s233 = sphi 0, %s232
      %s247 = sphi 0, %s233
      %s251 = sphi 0, %s251
      %s253 = sphi 0, %s251
      %s254 = sphi 0, %s253
      %s268 = sphi 0, %s254
      %s274 = sphi 0, %s276
      %s277 = sphi 0, %s274
      %s278 = sphi 0, %s277
      %s294 = sphi 0, %s278
    $region4: #{tpu_custom_call.1} parent=1 // loop_header_branch
      %31 = sbr.rel (%p29) target = $region8
    $region5: #{tpu_custom_call.1} parent=1 // loop_body
      %s33 = ssub.s32 %s28, 1
      %s34 = ssub.s32 %s28, 2
      %s35 = sadd.s32 %s28, 1
      %s36 = ssub.s32 %s28, %s35
      %p37 = scmp.eq.s32.totalorder %s36, 0
      %s39 = sadd.s32 %s38, 1
      %s40 = scalar_select %p37, %s38, %s39
      %p43 = pneg %p37
      %p44 = scmp.eq.s32.totalorder %s28, 2
      %p45 = por %p43, %p44
      %p46 = scmp.ne.s32.totalorder %s38, %s41
      %p47 = scmp.eq.s32.totalorder %s28, 0
      %p48 = por %p46, %p47
      %p49 = scmp.ne.s32.totalorder %s38, %s41
      %p50 = scmp.eq.s32.totalorder %s33, 2
      %p51 = por %p49, %p50
      %p52 = scmp.ne.s32.totalorder %s41, %s42
      %p53 = scmp.eq.s32.totalorder %s33, 0
      %p54 = por %p52, %p53
      %p55 = scmp.ne.s32.totalorder %s41, %s42
      %p56 = scmp.eq.s32.totalorder %s34, 2
      %p57 = por %p55, %p56
      %p59 = scmp.ne.s32.totalorder %s42, %s58
      %p60 = scmp.eq.s32.totalorder %s34, 0
      %p61 = por %p59, %p60
      %s63 = sadd.s32 %s62, 1
      %p66 = scmp.eq.s32.totalorder %s28, 2
      %p67 = scmp.ne.s32.totalorder %s62, %s64
      %p68 = scmp.eq.s32.totalorder %s28, 0
      %p69 = por %p67, %p68
      %p70 = scmp.ne.s32.totalorder %s62, %s64
      %p71 = scmp.eq.s32.totalorder %s33, 2
      %p72 = por %p70, %p71
      %p73 = scmp.ne.s32.totalorder %s64, %s65
      %p74 = scmp.eq.s32.totalorder %s33, 0
      %p75 = por %p73, %p74
      %p76 = scmp.ne.s32.totalorder %s64, %s65
      %p77 = scmp.eq.s32.totalorder %s34, 2
      %p78 = por %p76, %p77
      %p80 = scmp.ne.s32.totalorder %s65, %s79
      %p81 = scmp.eq.s32.totalorder %s34, 0
      %p82 = por %p80, %p81
      %s84 = sadd.s32 %s83, 1
      %p87 = scmp.eq.s32.totalorder %s28, 2
      %p88 = scmp.ne.s32.totalorder %s83, %s85
      %p89 = scmp.eq.s32.totalorder %s28, 0
      %p90 = por %p88, %p89
      %p91 = scmp.ne.s32.totalorder %s83, %s85
      %p92 = scmp.eq.s32.totalorder %s33, 2
      %p93 = por %p91, %p92
      %p94 = scmp.ne.s32.totalorder %s85, %s86
      %p95 = scmp.eq.s32.totalorder %s33, 0
      %p96 = por %p94, %p95
      %p97 = scmp.ne.s32.totalorder %s85, %s86
      %p98 = scmp.eq.s32.totalorder %s34, 2
      %p99 = por %p97, %p98
      %p101 = scmp.ne.s32.totalorder %s86, %s100
      %p102 = scmp.eq.s32.totalorder %s34, 0
      %p103 = por %p101, %p102
      %s105 = sadd.s32 %s104, 1
      %p108 = scmp.eq.s32.totalorder %s28, 2
      %p109 = scmp.ne.s32.totalorder %s104, %s106
      %p110 = scmp.eq.s32.totalorder %s28, 0
      %p111 = por %p109, %p110
      %p112 = scmp.ne.s32.totalorder %s104, %s106
      %p113 = scmp.eq.s32.totalorder %s33, 2
      %p114 = por %p112, %p113
      %p115 = scmp.ne.s32.totalorder %s106, %s107
      %p116 = scmp.eq.s32.totalorder %s33, 0
      %p117 = por %p115, %p116
      %p118 = scmp.ne.s32.totalorder %s106, %s107
      %p119 = scmp.eq.s32.totalorder %s34, 2
      %p120 = por %p118, %p119
      %p122 = scmp.ne.s32.totalorder %s107, %s121
      %p123 = scmp.eq.s32.totalorder %s34, 0
      %p124 = por %p122, %p123
      %s126 = sadd.s32 %s125, 1
      %p129 = scmp.eq.s32.totalorder %s28, 2
      %p130 = scmp.ne.s32.totalorder %s125, %s127
      %p131 = scmp.eq.s32.totalorder %s28, 0
      %p132 = por %p130, %p131
      %p133 = scmp.ne.s32.totalorder %s125, %s127
      %p134 = scmp.eq.s32.totalorder %s33, 2
      %p135 = por %p133, %p134
      %p136 = scmp.ne.s32.totalorder %s127, %s128
      %p137 = scmp.eq.s32.totalorder %s33, 0
      %p138 = por %p136, %p137
      %p139 = scmp.ne.s32.totalorder %s127, %s128
      %p140 = scmp.eq.s32.totalorder %s34, 2
      %p141 = por %p139, %p140
      %p143 = scmp.ne.s32.totalorder %s128, %s142
      %p144 = scmp.eq.s32.totalorder %s34, 0
      %p145 = por %p143, %p144
      %s147 = sadd.s32 %s146, 1
      %p150 = scmp.eq.s32.totalorder %s28, 2
      %p151 = scmp.ne.s32.totalorder %s146, %s148
      %p152 = scmp.eq.s32.totalorder %s28, 0
      %p153 = por %p151, %p152
      %p154 = scmp.ne.s32.totalorder %s146, %s148
      %p155 = scmp.eq.s32.totalorder %s33, 2
      %p156 = por %p154, %p155
      %p157 = scmp.ne.s32.totalorder %s148, %s149
      %p158 = scmp.eq.s32.totalorder %s33, 0
      %p159 = por %p157, %p158
      %p160 = scmp.ne.s32.totalorder %s148, %s149
      %p161 = scmp.eq.s32.totalorder %s34, 2
      %p162 = por %p160, %p161
      %p164 = scmp.ne.s32.totalorder %s149, %s163
      %p165 = scmp.eq.s32.totalorder %s34, 0
      %p166 = por %p164, %p165
      %s168 = sadd.s32 %s167, 1
      %p171 = scmp.eq.s32.totalorder %s28, 2
      %p172 = scmp.ne.s32.totalorder %s167, %s169
      %p173 = scmp.eq.s32.totalorder %s28, 0
      %p174 = por %p172, %p173
      %p175 = scmp.ne.s32.totalorder %s167, %s169
      %p176 = scmp.eq.s32.totalorder %s33, 2
      %p177 = por %p175, %p176
      %p178 = scmp.ne.s32.totalorder %s169, %s170
      %p179 = scmp.eq.s32.totalorder %s33, 0
      %p180 = por %p178, %p179
      %p181 = scmp.ne.s32.totalorder %s169, %s170
      %p182 = scmp.eq.s32.totalorder %s34, 2
      %p183 = por %p181, %p182
      %p185 = scmp.ne.s32.totalorder %s170, %s184
      %p186 = scmp.eq.s32.totalorder %s34, 0
      %p187 = por %p185, %p186
      %s189 = sadd.s32 %s188, 1
      %p192 = scmp.eq.s32.totalorder %s28, 2
      %p193 = scmp.ne.s32.totalorder %s188, %s190
      %p194 = scmp.eq.s32.totalorder %s28, 0
      %p195 = por %p193, %p194
      %p196 = scmp.ne.s32.totalorder %s188, %s190
      %p197 = scmp.eq.s32.totalorder %s33, 2
      %p198 = por %p196, %p197
      %p199 = scmp.ne.s32.totalorder %s190, %s191
      %p200 = scmp.eq.s32.totalorder %s33, 0
      %p201 = por %p199, %p200
      %p202 = scmp.ne.s32.totalorder %s190, %s191
      %p203 = scmp.eq.s32.totalorder %s34, 2
      %p204 = por %p202, %p203
      %p206 = scmp.ne.s32.totalorder %s191, %s205
      %p207 = scmp.eq.s32.totalorder %s34, 0
      %p208 = por %p206, %p207
      %s210 = sadd.s32 %s209, 1
      %p213 = scmp.eq.s32.totalorder %s28, 2
      %p214 = scmp.ne.s32.totalorder %s209, %s211
      %p215 = scmp.eq.s32.totalorder %s28, 0
      %p216 = por %p214, %p215
      %p217 = scmp.ne.s32.totalorder %s209, %s211
      %p218 = scmp.eq.s32.totalorder %s33, 2
      %p219 = por %p217, %p218
      %p220 = scmp.ne.s32.totalorder %s211, %s212
      %p221 = scmp.eq.s32.totalorder %s33, 0
      %p222 = por %p220, %p221
      %p223 = scmp.ne.s32.totalorder %s211, %s212
      %p224 = scmp.eq.s32.totalorder %s34, 2
      %p225 = por %p223, %p224
      %p227 = scmp.ne.s32.totalorder %s212, %s226
      %p228 = scmp.eq.s32.totalorder %s34, 0
      %p229 = por %p227, %p228
      %s231 = sadd.s32 %s230, 1
      %p234 = scmp.eq.s32.totalorder %s28, 2
      %p235 = scmp.ne.s32.totalorder %s230, %s232
      %p236 = scmp.eq.s32.totalorder %s28, 0
      %p237 = por %p235, %p236
      %p238 = scmp.ne.s32.totalorder %s230, %s232
      %p239 = scmp.eq.s32.totalorder %s33, 2
      %p240 = por %p238, %p239
      %p241 = scmp.ne.s32.totalorder %s232, %s233
      %p242 = scmp.eq.s32.totalorder %s33, 0
      %p243 = por %p241, %p242
      %p244 = scmp.ne.s32.totalorder %s232, %s233
      %p245 = scmp.eq.s32.totalorder %s34, 2
      %p246 = por %p244, %p245
      %p248 = scmp.ne.s32.totalorder %s233, %s247
      %p249 = scmp.eq.s32.totalorder %s34, 0
      %p250 = por %p248, %p249
      %s252 = sadd.s32 %s251, 1
      %p255 = scmp.eq.s32.totalorder %s28, 2
      %p256 = scmp.ne.s32.totalorder %s251, %s253
      %p257 = scmp.eq.s32.totalorder %s28, 0
      %p258 = por %p256, %p257
      %p259 = scmp.ne.s32.totalorder %s251, %s253
      %p260 = scmp.eq.s32.totalorder %s33, 2
      %p261 = por %p259, %p260
      %p262 = scmp.ne.s32.totalorder %s253, %s254
      %p263 = scmp.eq.s32.totalorder %s33, 0
      %p264 = por %p262, %p263
      %p265 = scmp.ne.s32.totalorder %s253, %s254
      %p266 = scmp.eq.s32.totalorder %s34, 2
      %p267 = por %p265, %p266
      %p269 = scmp.ne.s32.totalorder %s254, %s268
      %p270 = scmp.eq.s32.totalorder %s34, 0
      %p271 = por %p269, %p270
      %s272 = ssub.s32 %s28, %s35
      %p273 = scmp.eq.s32.totalorder %s272, 0
      %s275 = sadd.s32 %s274, 1
      %s276 = scalar_select %p273, %s274, %s275
      %p279 = pneg %p273
      %p280 = scmp.eq.s32.totalorder %s28, 2
      %p281 = por %p279, %p280
      %p282 = scmp.ne.s32.totalorder %s274, %s277
      %p283 = scmp.eq.s32.totalorder %s28, 0
      %p284 = por %p282, %p283
      %p285 = scmp.ne.s32.totalorder %s274, %s277
      %p286 = scmp.eq.s32.totalorder %s33, 2
      %p287 = por %p285, %p286
      %p288 = scmp.ne.s32.totalorder %s277, %s278
      %p289 = scmp.eq.s32.totalorder %s33, 0
      %p290 = por %p288, %p289
      %p291 = scmp.ne.s32.totalorder %s277, %s278
      %p292 = scmp.eq.s32.totalorder %s34, 2
      %p293 = por %p291, %p292
      %p295 = scmp.ne.s32.totalorder %s278, %s294
      %p296 = scmp.eq.s32.totalorder %s34, 0
      %p297 = por %p295, %p296
      %p298 = scmp.le.s32.totalorder 1, %s28
      %p299 = scmp.lt.s32.totalorder %s28, 4
      %p300 = pnand %p298, %p299
      %p301 = pneg %p300
      // Predicated region
      $region9: #{tpu_custom_call.1} parent=5 // pred_check
        _
      $region10: #{tpu_custom_call.1} parent=5 // pred_check_branch
        %303 = sbr.rel (%p300) target = $region12
      $region11: #{tpu_custom_call.1} parent=5 // pred_region
        %s304 = ssub.s32 %s28, 1
        // Predicated region
        $region13: #{tpu_custom_call.1} parent=11 // pred_check
          %p305 = pneg %p75
        $region14: #{tpu_custom_call.1} parent=11 // pred_check_branch
          %307 = sbr.rel (%p305) target = $region16
        $region15: #{tpu_custom_call.1} parent=11 // pred_region
          %s309 = ssub.s32 13824, 13824
          %310 = vsyncadd [#allocation6], %s309
          %s311 = sshll.u32 [#allocation5], 4
          %s312 = int_to_ptr.vmem [resolvable:$true] %s311
          %317 = dma.hbm_to_vmem [thread:$0]  %s1, 13824, %s312, [#allocation6], 384, 384, 24
        $region16: #{tpu_custom_call.1} parent=11 // pred_fallthru
          _
        // Predicated region
        $region17: #{tpu_custom_call.1} parent=11 // pred_check
          %p318 = pneg %p96
        $region18: #{tpu_custom_call.1} parent=11 // pred_check_branch
          %320 = sbr.rel (%p318) target = $region20
        $region19: #{tpu_custom_call.1} parent=11 // pred_region
          %s322 = ssub.s32 96, 96
          %323 = vsyncadd [#allocation6], %s322
          %s325 = sshll.u32 [#allocation7], 4
          %s326 = int_to_ptr.vmem [resolvable:$true] %s325
          %328 = dma.hbm_to_vmem [thread:$0]  %s2, 96, %s326, [#allocation6]
        $region20: #{tpu_custom_call.1} parent=11 // pred_fallthru
          _
        // Predicated region
        $region21: #{tpu_custom_call.1} parent=11 // pred_check
          %p329 = pneg %p117
        $region22: #{tpu_custom_call.1} parent=11 // pred_check_branch
          %331 = sbr.rel (%p329) target = $region24
        $region23: #{tpu_custom_call.1} parent=11 // pred_region
          %s333 = ssub.s32 27648, 27648
          %334 = vsyncadd [#allocation9], %s333
          %s335 = sshll.u32 [#allocation8], 4
          %s336 = int_to_ptr.vmem [resolvable:$true] %s335
          %341 = dma.hbm_to_vmem [thread:$0]  %s3, 27648, %s336, [#allocation9], 64, 64, 4
        $region24: #{tpu_custom_call.1} parent=11 // pred_fallthru
          _
        // Predicated region
        $region25: #{tpu_custom_call.1} parent=11 // pred_check
          %p342 = pneg %p138
        $region26: #{tpu_custom_call.1} parent=11 // pred_check_branch
          %344 = sbr.rel (%p342) target = $region28
        $region27: #{tpu_custom_call.1} parent=11 // pred_region
          %s346 = ssub.s32 16, 16
          %347 = vsyncadd [#allocation9], %s346
          %s349 = sshll.u32 [#allocation10], 4
          %s350 = int_to_ptr.vmem [resolvable:$true] %s349
          %352 = dma.hbm_to_vmem [thread:$0]  %s4, 16, %s350, [#allocation9]
        $region28: #{tpu_custom_call.1} parent=11 // pred_fallthru
          _
        // Predicated region
        $region29: #{tpu_custom_call.1} parent=11 // pred_check
          %p353 = pneg %p159
        $region30: #{tpu_custom_call.1} parent=11 // pred_check_branch
          %355 = sbr.rel (%p353) target = $region32
        $region31: #{tpu_custom_call.1} parent=11 // pred_region
          _
        $region32: #{tpu_custom_call.1} parent=11 // pred_fallthru
          _
        // Predicated region
        $region33: #{tpu_custom_call.1} parent=11 // pred_check
          %p356 = pneg %p180
        $region34: #{tpu_custom_call.1} parent=11 // pred_check_branch
          %358 = sbr.rel (%p356) target = $region36
        $region35: #{tpu_custom_call.1} parent=11 // pred_region
          %s360 = ssub.s32 16, 16
          %361 = vsyncadd [#allocation12], %s360
          %s363 = sshll.u32 [#allocation11], 4
          %s364 = int_to_ptr.vmem [resolvable:$true] %s363
          %366 = dma.hbm_to_vmem [thread:$0]  %s6, 16, %s364, [#allocation12]
        $region36: #{tpu_custom_call.1} parent=11 // pred_fallthru
          _
        // Predicated region
        $region37: #{tpu_custom_call.1} parent=11 // pred_check
          %p367 = pneg %p201
        $region38: #{tpu_custom_call.1} parent=11 // pred_check_branch
          %369 = sbr.rel (%p367) target = $region40
        $region39: #{tpu_custom_call.1} parent=11 // pred_region
          %s371 = ssub.s32 512, 512
          %372 = vsyncadd [#allocation12], %s371
          %s373 = sshll.u32 [#allocation13], 4
          %s374 = int_to_ptr.vmem [resolvable:$true] %s373
          %379 = dma.hbm_to_vmem [thread:$0]  %s7, 512, %s374, [#allocation12], 64, 64, 4
        $region40: #{tpu_custom_call.1} parent=11 // pred_fallthru
          _
        // Predicated region
        $region41: #{tpu_custom_call.1} parent=11 // pred_check
          %p380 = pneg %p222
        $region42: #{tpu_custom_call.1} parent=11 // pred_check_branch
          %382 = sbr.rel (%p380) target = $region44
        $region43: #{tpu_custom_call.1} parent=11 // pred_region
          %s384 = ssub.s32 16, 16
          %385 = vsyncadd [#allocation15], %s384
          %s387 = sshll.u32 [#allocation14], 4
          %s388 = int_to_ptr.vmem [resolvable:$true] %s387
          %390 = dma.hbm_to_vmem [thread:$0]  %s8, 16, %s388, [#allocation15]
        $region44: #{tpu_custom_call.1} parent=11 // pred_fallthru
          _
        // Predicated region
        $region45: #{tpu_custom_call.1} parent=11 // pred_check
          %p391 = pneg %p243
        $region46: #{tpu_custom_call.1} parent=11 // pred_check_branch
          %393 = sbr.rel (%p391) target = $region48
        $region47: #{tpu_custom_call.1} parent=11 // pred_region
          %s395 = ssub.s32 768, 768
          %396 = vsyncadd [#allocation15], %s395
          %s397 = sshll.u32 [#allocation16], 4
          %s398 = int_to_ptr.vmem [resolvable:$true] %s397
          %403 = dma.hbm_to_vmem [thread:$0]  %s9, 768, %s398, [#allocation15], 64, 64, 4
        $region48: #{tpu_custom_call.1} parent=11 // pred_fallthru
          _
        // Predicated region
        $region49: #{tpu_custom_call.1} parent=11 // pred_check
          %p404 = pneg %p264
        $region50: #{tpu_custom_call.1} parent=11 // pred_check_branch
          %406 = sbr.rel (%p404) target = $region52
        $region51: #{tpu_custom_call.1} parent=11 // pred_region
          %s408 = ssub.s32 16, 16
          %409 = vsyncadd [#allocation18], %s408
          %s411 = sshll.u32 [#allocation17], 4
          %s412 = int_to_ptr.vmem [resolvable:$true] %s411
          %414 = dma.hbm_to_vmem [thread:$0]  %s10, 16, %s412, [#allocation18]
        $region52: #{tpu_custom_call.1} parent=11 // pred_fallthru
          _
      $region12: #{tpu_custom_call.1} parent=5 // pred_fallthru
        _
      %p415 = scmp.lt.s32.totalorder %s28, 3
      // Predicated region
      $region53: #{tpu_custom_call.1} parent=5 // pred_check
        %p416 = pneg %p415
      $region54: #{tpu_custom_call.1} parent=5 // pred_check_branch
        %418 = sbr.rel (%p416) target = $region56
      $region55: #{tpu_custom_call.1} parent=5 // pred_region
        // Predicated region
        $region57: #{tpu_custom_call.1} parent=55 // pred_check
          %p419 = pneg %p48
        $region58: #{tpu_custom_call.1} parent=55 // pred_check_branch
          %421 = sbr.rel (%p419) target = $region60
        $region59: #{tpu_custom_call.1} parent=55 // pred_region
          #allocation21 [shape = 'u32[6]{0}', space=smem, size = 0x18, scoped, tag = 'DMA stride descriptor']
          %s422 = sand.u32 %s38, 1
          %s423 = scalar_lea.sflag [#allocation3], %s422
          %s424 = sand.u32 %s38, 1
          %s425 = smul.addr %s424, 1728
          %s426 = scalar_lea.vmem [#allocation2], %s425
          %s427 = smul.u32 3, %s28
          %s429 = ssub.s32 27648, 27648
          %430 = vsyncadd %s423, %s429
          %s431 = smul.addr %s427, 3
          %s432 = smul.addr %s431, 128
          %s433 = scalar_lea.hbm %s0, %s432
          %s435 = sshll.u32 1, 14
          %s436 = sxor.u32 4294967295, %s435
          %s438 = sld [smem:[#allocation0]]
          %s439 = sadd.s32 2, %s438
          %s441 = sshll.u32 7, 26
          %s442 = sxor.u32 4294967295, %s441
          %s443 = sand.u32 0, %s442
          %s444 = sshll.u32 %s439, 26
          %s445 = sor.u32 %s443, %s444
          %s446 = sshll.u32 %s426, 4
          %s447 = int_to_ptr.vmem [resolvable:$true] %s446
          %453 = sst [smem:[#allocation21]] 3456
          %s454 = scalar_lea.smem [#allocation21], 1
          %455 = sst [smem:[%s454]] 1152
          %s456 = scalar_lea.smem [#allocation21], 2
          %457 = sst [smem:[%s456]] 3
          %s458 = scalar_lea.smem [#allocation21], 3
          %459 = sst [smem:[%s458]] 384
          %s460 = scalar_lea.smem [#allocation21], 4
          %461 = sst [smem:[%s460]] 384
          %s462 = scalar_lea.smem [#allocation21], 5
          %463 = sst [smem:[%s462]] 24
          %465 = dma.general %s433, 27648, %s447, %s423, 131072, [#allocation21], %s445, 0
        $region60: #{tpu_custom_call.1} parent=55 // pred_fallthru
          _
      $region56: #{tpu_custom_call.1} parent=5 // pred_fallthru
        _
      %p466 = scmp.le.s32.totalorder 1, %s28
      %p467 = scmp.lt.s32.totalorder %s28, 4
      %p468 = pnand %p466, %p467
      %p469 = pneg %p468
      // Predicated region
      $region61: #{tpu_custom_call.1} parent=5 // pred_check
        _
      $region62: #{tpu_custom_call.1} parent=5 // pred_check_branch
        %471 = sbr.rel (%p468) target = $region64
      $region63: #{tpu_custom_call.1} parent=5 // pred_region
        %s472 = ssub.s32 %s28, 1
        %s473 = sand.u32 %s41, 1
        %s474 = scalar_lea.sflag [#allocation3], %s473
        %s475 = sand.u32 %s41, 1
        %s476 = smul.addr %s475, 1728
        %s477 = scalar_lea.vmem [#allocation2], %s476
        // Predicated region
        $region65: #{tpu_custom_call.1} parent=63 // pred_check
          %p478 = pneg %p54
        $region66: #{tpu_custom_call.1} parent=63 // pred_check_branch
          %480 = sbr.rel (%p478) target = $region68
        $region67: #{tpu_custom_call.1} parent=63 // pred_region
          %481 = dma.done %s474, 27648
        $region68: #{tpu_custom_call.1} parent=63 // pred_fallthru
          _
        // Predicated region
        $region69: #{tpu_custom_call.1} parent=63 // pred_check
          %p482 = pneg %p75
        $region70: #{tpu_custom_call.1} parent=63 // pred_check_branch
          %484 = sbr.rel (%p482) target = $region72
        $region71: #{tpu_custom_call.1} parent=63 // pred_region
          %485 = dma.done [#allocation6], 13824
        $region72: #{tpu_custom_call.1} parent=63 // pred_fallthru
          _
        // Predicated region
        $region73: #{tpu_custom_call.1} parent=63 // pred_check
          %p486 = pneg %p96
        $region74: #{tpu_custom_call.1} parent=63 // pred_check_branch
          %488 = sbr.rel (%p486) target = $region76
        $region75: #{tpu_custom_call.1} parent=63 // pred_region
          %489 = dma.done [#allocation6], 96
        $region76: #{tpu_custom_call.1} parent=63 // pred_fallthru
          _
        // Predicated region
        $region77: #{tpu_custom_call.1} parent=63 // pred_check
          %p490 = pneg %p117
        $region78: #{tpu_custom_call.1} parent=63 // pred_check_branch
          %492 = sbr.rel (%p490) target = $region80
        $region79: #{tpu_custom_call.1} parent=63 // pred_region
          %493 = dma.done [#allocation9], 27648
        $region80: #{tpu_custom_call.1} parent=63 // pred_fallthru
          _
        // Predicated region
        $region81: #{tpu_custom_call.1} parent=63 // pred_check
          %p494 = pneg %p138
        $region82: #{tpu_custom_call.1} parent=63 // pred_check_branch
          %496 = sbr.rel (%p494) target = $region84
        $region83: #{tpu_custom_call.1} parent=63 // pred_region
          %497 = dma.done [#allocation9], 16
        $region84: #{tpu_custom_call.1} parent=63 // pred_fallthru
          _
        // Predicated region
        $region85: #{tpu_custom_call.1} parent=63 // pred_check
          %p498 = pneg %p180
        $region86: #{tpu_custom_call.1} parent=63 // pred_check_branch
          %500 = sbr.rel (%p498) target = $region88
        $region87: #{tpu_custom_call.1} parent=63 // pred_region
          %501 = dma.done [#allocation12], 16
        $region88: #{tpu_custom_call.1} parent=63 // pred_fallthru
          _
        // Predicated region
        $region89: #{tpu_custom_call.1} parent=63 // pred_check
          %p502 = pneg %p201
        $region90: #{tpu_custom_call.1} parent=63 // pred_check_branch
          %504 = sbr.rel (%p502) target = $region92
        $region91: #{tpu_custom_call.1} parent=63 // pred_region
          %505 = dma.done [#allocation12], 512
        $region92: #{tpu_custom_call.1} parent=63 // pred_fallthru
          _
        // Predicated region
        $region93: #{tpu_custom_call.1} parent=63 // pred_check
          %p506 = pneg %p222
        $region94: #{tpu_custom_call.1} parent=63 // pred_check_branch
          %508 = sbr.rel (%p506) target = $region96
        $region95: #{tpu_custom_call.1} parent=63 // pred_region
          %509 = dma.done [#allocation15], 16
        $region96: #{tpu_custom_call.1} parent=63 // pred_fallthru
          _
        // Predicated region
        $region97: #{tpu_custom_call.1} parent=63 // pred_check
          %p510 = pneg %p243
        $region98: #{tpu_custom_call.1} parent=63 // pred_check_branch
          %512 = sbr.rel (%p510) target = $region100
        $region99: #{tpu_custom_call.1} parent=63 // pred_region
          %513 = dma.done [#allocation15], 768
        $region100: #{tpu_custom_call.1} parent=63 // pred_fallthru
          _
        // Predicated region
        $region101: #{tpu_custom_call.1} parent=63 // pred_check
          %p514 = pneg %p264
        $region102: #{tpu_custom_call.1} parent=63 // pred_check_branch
          %516 = sbr.rel (%p514) target = $region104
        $region103: #{tpu_custom_call.1} parent=63 // pred_region
          %517 = dma.done [#allocation18], 16
        $region104: #{tpu_custom_call.1} parent=63 // pred_fallthru
          _
        %s518 = sand.u32 %s41, 1
        %s519 = scalar_lea.sflag [#allocation3], %s518
        %s520 = sand.u32 %s41, 1
        %s521 = smul.addr %s520, 1728
        %s522 = scalar_lea.vmem [#allocation2], %s521
        %p523 = pneg %p54
        %p524 = pneg %p51
        %p525 = pneg %p75
        %p526 = pneg %p72
        %p527 = pneg %p96
        %p528 = pneg %p93
        %p529 = pneg %p117
        %p530 = pneg %p114
        %p531 = pneg %p138
        %p532 = pneg %p135
        %p533 = pneg %p159
        %p534 = pneg %p156
        %p535 = pneg %p180
        %p536 = pneg %p177
        %p537 = pneg %p201
        %p538 = pneg %p198
        %p539 = pneg %p222
        %p540 = pneg %p219
        %p541 = pneg %p243
        %p542 = pneg %p240
        %p543 = pneg %p264
        %p544 = pneg %p261
        %p545 = pneg %p290
        %p546 = pneg %p287
        %s547 = sand.u32 %s277, 1
        %s548 = scalar_lea.sflag [#allocation4], %s547
        %s549 = sand.u32 %s277, 1
        %s550 = smul.addr %s549, 24
        %s551 = scalar_lea.vmem [#allocation19], %s550
        %s552 = smul.u32 3, %s33
        %s553 = smul.u32 3, %s33
        %v555 = vld [vmem:[%s477] sm:$0xff]
        %v556 = vld [vmem:[%s477 + $0x8] sm:$0xff]
        %v557 = vld [vmem:[%s477 + $0x10] sm:$0xff]
        %v558 = vld [vmem:[%s477 + $0x18] sm:$0xff]
        %v559 = vld [vmem:[%s477 + $0x20] sm:$0xff]
        %v560 = vld [vmem:[%s477 + $0x28] sm:$0xff]
        %v561 = vld [vmem:[%s477 + $0x30] sm:$0xff]
        %v562 = vld [vmem:[%s477 + $0x38] sm:$0xff]
        %v563 = vld [vmem:[%s477 + $0x40] sm:$0xff]
        %v564 = vld [vmem:[%s477 + $0x48] sm:$0xff]
        %v565 = vld [vmem:[%s477 + $0x50] sm:$0xff]
        %v566 = vld [vmem:[%s477 + $0x58] sm:$0xff]
        %v567 = vld [vmem:[%s477 + $0x60] sm:$0xff]
        %v568 = vld [vmem:[%s477 + $0x68] sm:$0xff]
        %v569 = vld [vmem:[%s477 + $0x70] sm:$0xff]
        %v570 = vld [vmem:[%s477 + $0x78] sm:$0xff]
        %v571 = vld [vmem:[%s477 + $0x80] sm:$0xff]
        %v572 = vld [vmem:[%s477 + $0x88] sm:$0xff]
        %v573 = vld [vmem:[%s477 + $0x90] sm:$0xff]
        %v574 = vld [vmem:[%s477 + $0x98] sm:$0xff]
        %v575 = vld [vmem:[%s477 + $0xa0] sm:$0xff]
        %v576 = vld [vmem:[%s477 + $0xa8] sm:$0xff]
        %v577 = vld [vmem:[%s477 + $0xb0] sm:$0xff]
        %v578 = vld [vmem:[%s477 + $0xb8] sm:$0xff]
        %v579 = vld [vmem:[%s477 + $0xc0] sm:$0xff]
        %v580 = vld [vmem:[%s477 + $0xc8] sm:$0xff]
        %v581 = vld [vmem:[%s477 + $0xd0] sm:$0xff]
        %v582 = vld [vmem:[%s477 + $0xd8] sm:$0xff]
        %v583 = vld [vmem:[%s477 + $0xe0] sm:$0xff]
        %v584 = vld [vmem:[%s477 + $0xe8] sm:$0xff]
        %v585 = vld [vmem:[%s477 + $0xf0] sm:$0xff]
        %v586 = vld [vmem:[%s477 + $0xf8] sm:$0xff]
        %v587 = vld [vmem:[%s477 + $0x100] sm:$0xff]
        %v588 = vld [vmem:[%s477 + $0x108] sm:$0xff]
        %v589 = vld [vmem:[%s477 + $0x110] sm:$0xff]
        %v590 = vld [vmem:[%s477 + $0x118] sm:$0xff]
        %v591 = vld [vmem:[%s477 + $0x120] sm:$0xff]
        %v592 = vld [vmem:[%s477 + $0x128] sm:$0xff]
        %v593 = vld [vmem:[%s477 + $0x130] sm:$0xff]
        %v594 = vld [vmem:[%s477 + $0x138] sm:$0xff]
        %v595 = vld [vmem:[%s477 + $0x140] sm:$0xff]
        %v596 = vld [vmem:[%s477 + $0x148] sm:$0xff]
        %v597 = vld [vmem:[%s477 + $0x150] sm:$0xff]
        %v598 = vld [vmem:[%s477 + $0x158] sm:$0xff]
        %v599 = vld [vmem:[%s477 + $0x160] sm:$0xff]
        %v600 = vld [vmem:[%s477 + $0x168] sm:$0xff]
        %v601 = vld [vmem:[%s477 + $0x170] sm:$0xff]
        %v602 = vld [vmem:[%s477 + $0x178] sm:$0xff]
        %v603 = vld [vmem:[%s477 + $0x180] sm:$0xff]
        %v604 = vld [vmem:[%s477 + $0x188] sm:$0xff]
        %v605 = vld [vmem:[%s477 + $0x190] sm:$0xff]
        %v606 = vld [vmem:[%s477 + $0x198] sm:$0xff]
        %v607 = vld [vmem:[%s477 + $0x1a0] sm:$0xff]
        %v608 = vld [vmem:[%s477 + $0x1a8] sm:$0xff]
        %v609 = vld [vmem:[%s477 + $0x1b0] sm:$0xff]
        %v610 = vld [vmem:[%s477 + $0x1b8] sm:$0xff]
        %v611 = vld [vmem:[%s477 + $0x1c0] sm:$0xff]
        %v612 = vld [vmem:[%s477 + $0x1c8] sm:$0xff]
        %v613 = vld [vmem:[%s477 + $0x1d0] sm:$0xff]
        %v614 = vld [vmem:[%s477 + $0x1d8] sm:$0xff]
        %v615 = vld [vmem:[%s477 + $0x1e0] sm:$0xff]
        %v616 = vld [vmem:[%s477 + $0x1e8] sm:$0xff]
        %v617 = vld [vmem:[%s477 + $0x1f0] sm:$0xff]
        %v618 = vld [vmem:[%s477 + $0x1f8] sm:$0xff]
        %v619 = vld [vmem:[%s477 + $0x200] sm:$0xff]
        %v620 = vld [vmem:[%s477 + $0x208] sm:$0xff]
        %v621 = vld [vmem:[%s477 + $0x210] sm:$0xff]
        %v622 = vld [vmem:[%s477 + $0x218] sm:$0xff]
        %v623 = vld [vmem:[%s477 + $0x220] sm:$0xff]
        %v624 = vld [vmem:[%s477 + $0x228] sm:$0xff]
        %v625 = vld [vmem:[%s477 + $0x230] sm:$0xff]
        %v626 = vld [vmem:[%s477 + $0x238] sm:$0xff]
        %v627 = vld [vmem:[%s477 + $0x240] sm:$0xff]
        %v628 = vld [vmem:[%s477 + $0x248] sm:$0xff]
        %v629 = vld [vmem:[%s477 + $0x250] sm:$0xff]
        %v630 = vld [vmem:[%s477 + $0x258] sm:$0xff]
        %v631 = vld [vmem:[%s477 + $0x260] sm:$0xff]
        %v632 = vld [vmem:[%s477 + $0x268] sm:$0xff]
        %v633 = vld [vmem:[%s477 + $0x270] sm:$0xff]
        %v634 = vld [vmem:[%s477 + $0x278] sm:$0xff]
        %v635 = vld [vmem:[%s477 + $0x280] sm:$0xff]
        %v636 = vld [vmem:[%s477 + $0x288] sm:$0xff]
        %v637 = vld [vmem:[%s477 + $0x290] sm:$0xff]
        %v638 = vld [vmem:[%s477 + $0x298] sm:$0xff]
        %v639 = vld [vmem:[%s477 + $0x2a0] sm:$0xff]
        %v640 = vld [vmem:[%s477 + $0x2a8] sm:$0xff]
        %v641 = vld [vmem:[%s477 + $0x2b0] sm:$0xff]
        %v642 = vld [vmem:[%s477 + $0x2b8] sm:$0xff]
        %v643 = vld [vmem:[%s477 + $0x2c0] sm:$0xff]
        %v644 = vld [vmem:[%s477 + $0x2c8] sm:$0xff]
        %v645 = vld [vmem:[%s477 + $0x2d0] sm:$0xff]
        %v646 = vld [vmem:[%s477 + $0x2d8] sm:$0xff]
        %v647 = vld [vmem:[%s477 + $0x2e0] sm:$0xff]
        %v648 = vld [vmem:[%s477 + $0x2e8] sm:$0xff]
        %v649 = vld [vmem:[%s477 + $0x2f0] sm:$0xff]
        %v650 = vld [vmem:[%s477 + $0x2f8] sm:$0xff]
        %v651 = vld [vmem:[%s477 + $0x300] sm:$0xff]
        %v652 = vld [vmem:[%s477 + $0x308] sm:$0xff]
        %v653 = vld [vmem:[%s477 + $0x310] sm:$0xff]
        %v654 = vld [vmem:[%s477 + $0x318] sm:$0xff]
        %v655 = vld [vmem:[%s477 + $0x320] sm:$0xff]
        %v656 = vld [vmem:[%s477 + $0x328] sm:$0xff]
        %v657 = vld [vmem:[%s477 + $0x330] sm:$0xff]
        %v658 = vld [vmem:[%s477 + $0x338] sm:$0xff]
        %v659 = vld [vmem:[%s477 + $0x340] sm:$0xff]
        %v660 = vld [vmem:[%s477 + $0x348] sm:$0xff]
        %v661 = vld [vmem:[%s477 + $0x350] sm:$0xff]
        %v662 = vld [vmem:[%s477 + $0x358] sm:$0xff]
        %v663 = vld [vmem:[%s477 + $0x360] sm:$0xff]
        %v664 = vld [vmem:[%s477 + $0x368] sm:$0xff]
        %v665 = vld [vmem:[%s477 + $0x370] sm:$0xff]
        %v666 = vld [vmem:[%s477 + $0x378] sm:$0xff]
        %v667 = vld [vmem:[%s477 + $0x380] sm:$0xff]
        %v668 = vld [vmem:[%s477 + $0x388] sm:$0xff]
        %v669 = vld [vmem:[%s477 + $0x390] sm:$0xff]
        %v670 = vld [vmem:[%s477 + $0x398] sm:$0xff]
        %v671 = vld [vmem:[%s477 + $0x3a0] sm:$0xff]
        %v672 = vld [vmem:[%s477 + $0x3a8] sm:$0xff]
        %v673 = vld [vmem:[%s477 + $0x3b0] sm:$0xff]
        %v674 = vld [vmem:[%s477 + $0x3b8] sm:$0xff]
        %v675 = vld [vmem:[%s477 + $0x3c0] sm:$0xff]
        %v676 = vld [vmem:[%s477 + $0x3c8] sm:$0xff]
        %v677 = vld [vmem:[%s477 + $0x3d0] sm:$0xff]
        %v678 = vld [vmem:[%s477 + $0x3d8] sm:$0xff]
        %v679 = vld [vmem:[%s477 + $0x3e0] sm:$0xff]
        %v680 = vld [vmem:[%s477 + $0x3e8] sm:$0xff]
        %v681 = vld [vmem:[%s477 + $0x3f0] sm:$0xff]
        %v682 = vld [vmem:[%s477 + $0x3f8] sm:$0xff]
        %v683 = vld [vmem:[%s477 + $0x400] sm:$0xff]
        %v684 = vld [vmem:[%s477 + $0x408] sm:$0xff]
        %v685 = vld [vmem:[%s477 + $0x410] sm:$0xff]
        %v686 = vld [vmem:[%s477 + $0x418] sm:$0xff]
        %v687 = vld [vmem:[%s477 + $0x420] sm:$0xff]
        %v688 = vld [vmem:[%s477 + $0x428] sm:$0xff]
        %v689 = vld [vmem:[%s477 + $0x430] sm:$0xff]
        %v690 = vld [vmem:[%s477 + $0x438] sm:$0xff]
        %v691 = vld [vmem:[%s477 + $0x440] sm:$0xff]
        %v692 = vld [vmem:[%s477 + $0x448] sm:$0xff]
        %v693 = vld [vmem:[%s477 + $0x450] sm:$0xff]
        %v694 = vld [vmem:[%s477 + $0x458] sm:$0xff]
        %v695 = vld [vmem:[%s477 + $0x460] sm:$0xff]
        %v696 = vld [vmem:[%s477 + $0x468] sm:$0xff]
        %v697 = vld [vmem:[%s477 + $0x470] sm:$0xff]
        %v698 = vld [vmem:[%s477 + $0x478] sm:$0xff]
        %v699 = vld [vmem:[%s477 + $0x480] sm:$0xff]
        %v700 = vld [vmem:[%s477 + $0x488] sm:$0xff]
        %v701 = vld [vmem:[%s477 + $0x490] sm:$0xff]
        %v702 = vld [vmem:[%s477 + $0x498] sm:$0xff]
        %v703 = vld [vmem:[%s477 + $0x4a0] sm:$0xff]
        %v704 = vld [vmem:[%s477 + $0x4a8] sm:$0xff]
        %v705 = vld [vmem:[%s477 + $0x4b0] sm:$0xff]
        %v706 = vld [vmem:[%s477 + $0x4b8] sm:$0xff]
        %v707 = vld [vmem:[%s477 + $0x4c0] sm:$0xff]
        %v708 = vld [vmem:[%s477 + $0x4c8] sm:$0xff]
        %v709 = vld [vmem:[%s477 + $0x4d0] sm:$0xff]
        %v710 = vld [vmem:[%s477 + $0x4d8] sm:$0xff]
        %v711 = vld [vmem:[%s477 + $0x4e0] sm:$0xff]
        %v712 = vld [vmem:[%s477 + $0x4e8] sm:$0xff]
        %v713 = vld [vmem:[%s477 + $0x4f0] sm:$0xff]
        %v714 = vld [vmem:[%s477 + $0x4f8] sm:$0xff]
        %v715 = vld [vmem:[%s477 + $0x500] sm:$0xff]
        %v716 = vld [vmem:[%s477 + $0x508] sm:$0xff]
        %v717 = vld [vmem:[%s477 + $0x510] sm:$0xff]
        %v718 = vld [vmem:[%s477 + $0x518] sm:$0xff]
        %v719 = vld [vmem:[%s477 + $0x520] sm:$0xff]
        %v720 = vld [vmem:[%s477 + $0x528] sm:$0xff]
        %v721 = vld [vmem:[%s477 + $0x530] sm:$0xff]
        %v722 = vld [vmem:[%s477 + $0x538] sm:$0xff]
        %v723 = vld [vmem:[%s477 + $0x540] sm:$0xff]
        %v724 = vld [vmem:[%s477 + $0x548] sm:$0xff]
        %v725 = vld [vmem:[%s477 + $0x550] sm:$0xff]
        %v726 = vld [vmem:[%s477 + $0x558] sm:$0xff]
        %v727 = vld [vmem:[%s477 + $0x560] sm:$0xff]
        %v728 = vld [vmem:[%s477 + $0x568] sm:$0xff]
        %v729 = vld [vmem:[%s477 + $0x570] sm:$0xff]
        %v730 = vld [vmem:[%s477 + $0x578] sm:$0xff]
        %v731 = vld [vmem:[%s477 + $0x580] sm:$0xff]
        %v732 = vld [vmem:[%s477 + $0x588] sm:$0xff]
        %v733 = vld [vmem:[%s477 + $0x590] sm:$0xff]
        %v734 = vld [vmem:[%s477 + $0x598] sm:$0xff]
        %v735 = vld [vmem:[%s477 + $0x5a0] sm:$0xff]
        %v736 = vld [vmem:[%s477 + $0x5a8] sm:$0xff]
        %v737 = vld [vmem:[%s477 + $0x5b0] sm:$0xff]
        %v738 = vld [vmem:[%s477 + $0x5b8] sm:$0xff]
        %v739 = vld [vmem:[%s477 + $0x5c0] sm:$0xff]
        %v740 = vld [vmem:[%s477 + $0x5c8] sm:$0xff]
        %v741 = vld [vmem:[%s477 + $0x5d0] sm:$0xff]
        %v742 = vld [vmem:[%s477 + $0x5d8] sm:$0xff]
        %v743 = vld [vmem:[%s477 + $0x5e0] sm:$0xff]
        %v744 = vld [vmem:[%s477 + $0x5e8] sm:$0xff]
        %v745 = vld [vmem:[%s477 + $0x5f0] sm:$0xff]
        %v746 = vld [vmem:[%s477 + $0x5f8] sm:$0xff]
        %v747 = vld [vmem:[%s477 + $0x600] sm:$0xff]
        %v748 = vld [vmem:[%s477 + $0x608] sm:$0xff]
        %v749 = vld [vmem:[%s477 + $0x610] sm:$0xff]
        %v750 = vld [vmem:[%s477 + $0x618] sm:$0xff]
        %v751 = vld [vmem:[%s477 + $0x620] sm:$0xff]
        %v752 = vld [vmem:[%s477 + $0x628] sm:$0xff]
        %v753 = vld [vmem:[%s477 + $0x630] sm:$0xff]
        %v754 = vld [vmem:[%s477 + $0x638] sm:$0xff]
        %v755 = vld [vmem:[%s477 + $0x640] sm:$0xff]
        %v756 = vld [vmem:[%s477 + $0x648] sm:$0xff]
        %v757 = vld [vmem:[%s477 + $0x650] sm:$0xff]
        %v758 = vld [vmem:[%s477 + $0x658] sm:$0xff]
        %v759 = vld [vmem:[%s477 + $0x660] sm:$0xff]
        %v760 = vld [vmem:[%s477 + $0x668] sm:$0xff]
        %v761 = vld [vmem:[%s477 + $0x670] sm:$0xff]
        %v762 = vld [vmem:[%s477 + $0x678] sm:$0xff]
        %v763 = vld [vmem:[%s477 + $0x680] sm:$0xff]
        %v764 = vld [vmem:[%s477 + $0x688] sm:$0xff]
        %v765 = vld [vmem:[%s477 + $0x690] sm:$0xff]
        %v766 = vld [vmem:[%s477 + $0x698] sm:$0xff]
        %v767 = vld [vmem:[%s477 + $0x6a0] sm:$0xff]
        %v768 = vld [vmem:[%s477 + $0x6a8] sm:$0xff]
        %v769 = vld [vmem:[%s477 + $0x6b0] sm:$0xff]
        %v770 = vld [vmem:[%s477 + $0x6b8] sm:$0xff]
        %v771 = vpack.c.bf16 %v558, %v555
        %v772 = vpack.c.bf16 %v559, %v556
        %v773 = vpack.c.bf16 %v560, %v557
        %v774 = vpack.c.bf16 %v564, %v561
        %v775 = vpack.c.bf16 %v565, %v562
        %v776 = vpack.c.bf16 %v566, %v563
        %v777 = vpack.c.bf16 %v570, %v567
        %v778 = vpack.c.bf16 %v571, %v568
        %v779 = vpack.c.bf16 %v572, %v569
        %v780 = vpack.c.bf16 %v576, %v573
        %v781 = vpack.c.bf16 %v577, %v574
        %v782 = vpack.c.bf16 %v578, %v575
        %v783 = vpack.c.bf16 %v582, %v579
        %v784 = vpack.c.bf16 %v583, %v580
        %v785 = vpack.c.bf16 %v584, %v581
        %v786 = vpack.c.bf16 %v588, %v585
        %v787 = vpack.c.bf16 %v589, %v586
        %v788 = vpack.c.bf16 %v590, %v587
        %v789 = vpack.c.bf16 %v594, %v591
        %v790 = vpack.c.bf16 %v595, %v592
        %v791 = vpack.c.bf16 %v596, %v593
        %v792 = vpack.c.bf16 %v600, %v597
        %v793 = vpack.c.bf16 %v601, %v598
        %v794 = vpack.c.bf16 %v602, %v599
        %v795 = vpack.c.bf16 %v606, %v603
        %v796 = vpack.c.bf16 %v607, %v604
        %v797 = vpack.c.bf16 %v608, %v605
        %v798 = vpack.c.bf16 %v612, %v609
        %v799 = vpack.c.bf16 %v613, %v610
        %v800 = vpack.c.bf16 %v614, %v611
        %v801 = vpack.c.bf16 %v618, %v615
        %v802 = vpack.c.bf16 %v619, %v616
        %v803 = vpack.c.bf16 %v620, %v617
        %v804 = vpack.c.bf16 %v624, %v621
        %v805 = vpack.c.bf16 %v625, %v622
        %v806 = vpack.c.bf16 %v626, %v623
        %v807 = vpack.c.bf16 %v630, %v627
        %v808 = vpack.c.bf16 %v631, %v628
        %v809 = vpack.c.bf16 %v632, %v629
        %v810 = vpack.c.bf16 %v636, %v633
        %v811 = vpack.c.bf16 %v637, %v634
        %v812 = vpack.c.bf16 %v638, %v635
        %v813 = vpack.c.bf16 %v642, %v639
        %v814 = vpack.c.bf16 %v643, %v640
        %v815 = vpack.c.bf16 %v644, %v641
        %v816 = vpack.c.bf16 %v648, %v645
        %v817 = vpack.c.bf16 %v649, %v646
        %v818 = vpack.c.bf16 %v650, %v647
        %v819 = vpack.c.bf16 %v654, %v651
        %v820 = vpack.c.bf16 %v655, %v652
        %v821 = vpack.c.bf16 %v656, %v653
        %v822 = vpack.c.bf16 %v660, %v657
        %v823 = vpack.c.bf16 %v661, %v658
        %v824 = vpack.c.bf16 %v662, %v659
        %v825 = vpack.c.bf16 %v666, %v663
        %v826 = vpack.c.bf16 %v667, %v664
        %v827 = vpack.c.bf16 %v668, %v665
        %v828 = vpack.c.bf16 %v672, %v669
        %v829 = vpack.c.bf16 %v673, %v670
        %v830 = vpack.c.bf16 %v674, %v671
        %v831 = vpack.c.bf16 %v678, %v675
        %v832 = vpack.c.bf16 %v679, %v676
        %v833 = vpack.c.bf16 %v680, %v677
        %v834 = vpack.c.bf16 %v684, %v681
        %v835 = vpack.c.bf16 %v685, %v682
        %v836 = vpack.c.bf16 %v686, %v683
        %v837 = vpack.c.bf16 %v690, %v687
        %v838 = vpack.c.bf16 %v691, %v688
        %v839 = vpack.c.bf16 %v692, %v689
        %v840 = vpack.c.bf16 %v696, %v693
        %v841 = vpack.c.bf16 %v697, %v694
        %v842 = vpack.c.bf16 %v698, %v695
        %v843 = vpack.c.bf16 %v702, %v699
        %v844 = vpack.c.bf16 %v703, %v700
        %v845 = vpack.c.bf16 %v704, %v701
        %v846 = vpack.c.bf16 %v708, %v705
        %v847 = vpack.c.bf16 %v709, %v706
        %v848 = vpack.c.bf16 %v710, %v707
        %v849 = vpack.c.bf16 %v714, %v711
        %v850 = vpack.c.bf16 %v715, %v712
        %v851 = vpack.c.bf16 %v716, %v713
        %v852 = vpack.c.bf16 %v720, %v717
        %v853 = vpack.c.bf16 %v721, %v718
        %v854 = vpack.c.bf16 %v722, %v719
        %v855 = vpack.c.bf16 %v726, %v723
        %v856 = vpack.c.bf16 %v727, %v724
        %v857 = vpack.c.bf16 %v728, %v725
        %v858 = vpack.c.bf16 %v732, %v729
        %v859 = vpack.c.bf16 %v733, %v730
        %v860 = vpack.c.bf16 %v734, %v731
        %v861 = vpack.c.bf16 %v738, %v735
        %v862 = vpack.c.bf16 %v739, %v736
        %v863 = vpack.c.bf16 %v740, %v737
        %v864 = vpack.c.bf16 %v744, %v741
        %v865 = vpack.c.bf16 %v745, %v742
        %v866 = vpack.c.bf16 %v746, %v743
        %v867 = vpack.c.bf16 %v750, %v747
        %v868 = vpack.c.bf16 %v751, %v748
        %v869 = vpack.c.bf16 %v752, %v749
        %v870 = vpack.c.bf16 %v756, %v753
        %v871 = vpack.c.bf16 %v757, %v754
        %v872 = vpack.c.bf16 %v758, %v755
        %v873 = vpack.c.bf16 %v762, %v759
        %v874 = vpack.c.bf16 %v763, %v760
        %v875 = vpack.c.bf16 %v764, %v761
        %v876 = vpack.c.bf16 %v768, %v765
        %v877 = vpack.c.bf16 %v769, %v766
        %v878 = vpack.c.bf16 %v770, %v767
        %v879 = vld [vmem:[#allocation5] sm:$0xff]
        %v880 = vld [vmem:[#allocation5 + $0x8] sm:$0xff]
        %v881 = vld [vmem:[#allocation5 + $0x10] sm:$0xff]
        %v882 = vld [vmem:[#allocation5 + $0x18] sm:$0xff]
        %v883 = vld [vmem:[#allocation5 + $0x20] sm:$0xff]
        %v884 = vld [vmem:[#allocation5 + $0x28] sm:$0xff]
        %v885 = vld [vmem:[#allocation5 + $0x30] sm:$0xff]
        %v886 = vld [vmem:[#allocation5 + $0x38] sm:$0xff]
        %v887 = vld [vmem:[#allocation5 + $0x40] sm:$0xff]
        %v888 = vld [vmem:[#allocation5 + $0x48] sm:$0xff]
        %v889 = vld [vmem:[#allocation5 + $0x50] sm:$0xff]
        %v890 = vld [vmem:[#allocation5 + $0x58] sm:$0xff]
        %v891 = vld [vmem:[#allocation5 + $0x60] sm:$0xff]
        %v892 = vld [vmem:[#allocation5 + $0x68] sm:$0xff]
        %v893 = vld [vmem:[#allocation5 + $0x70] sm:$0xff]
        %v894 = vld [vmem:[#allocation5 + $0x78] sm:$0xff]
        %v895 = vld [vmem:[#allocation5 + $0x80] sm:$0xff]
        %v896 = vld [vmem:[#allocation5 + $0x88] sm:$0xff]
        %v897 = vld [vmem:[#allocation5 + $0x90] sm:$0xff]
        %v898 = vld [vmem:[#allocation5 + $0x98] sm:$0xff]
        %v899 = vld [vmem:[#allocation5 + $0xa0] sm:$0xff]
        %v900 = vld [vmem:[#allocation5 + $0xa8] sm:$0xff]
        %v901 = vld [vmem:[#allocation5 + $0xb0] sm:$0xff]
        %v902 = vld [vmem:[#allocation5 + $0xb8] sm:$0xff]
        %v903 = vld [vmem:[#allocation5 + $0xc0] sm:$0xff]
        %v904 = vld [vmem:[#allocation5 + $0xc8] sm:$0xff]
        %v905 = vld [vmem:[#allocation5 + $0xd0] sm:$0xff]
        %v906 = vld [vmem:[#allocation5 + $0xd8] sm:$0xff]
        %v907 = vld [vmem:[#allocation5 + $0xe0] sm:$0xff]
        %v908 = vld [vmem:[#allocation5 + $0xe8] sm:$0xff]
        %v909 = vld [vmem:[#allocation5 + $0xf0] sm:$0xff]
        %v910 = vld [vmem:[#allocation5 + $0xf8] sm:$0xff]
        %v911 = vld [vmem:[#allocation5 + $0x100] sm:$0xff]
        %v912 = vld [vmem:[#allocation5 + $0x108] sm:$0xff]
        %v913 = vld [vmem:[#allocation5 + $0x110] sm:$0xff]
        %v914 = vld [vmem:[#allocation5 + $0x118] sm:$0xff]
        %v915 = vld [vmem:[#allocation5 + $0x120] sm:$0xff]
        %v916 = vld [vmem:[#allocation5 + $0x128] sm:$0xff]
        %v917 = vld [vmem:[#allocation5 + $0x130] sm:$0xff]
        %v918 = vld [vmem:[#allocation5 + $0x138] sm:$0xff]
        %v919 = vld [vmem:[#allocation5 + $0x140] sm:$0xff]
        %v920 = vld [vmem:[#allocation5 + $0x148] sm:$0xff]
        %v921 = vld [vmem:[#allocation5 + $0x150] sm:$0xff]
        %v922 = vld [vmem:[#allocation5 + $0x158] sm:$0xff]
        %v923 = vld [vmem:[#allocation5 + $0x160] sm:$0xff]
        %v924 = vld [vmem:[#allocation5 + $0x168] sm:$0xff]
        %v925 = vld [vmem:[#allocation5 + $0x170] sm:$0xff]
        %v926 = vld [vmem:[#allocation5 + $0x178] sm:$0xff]
        %v927 = vld [vmem:[#allocation5 + $0x180] sm:$0xff]
        %v928 = vld [vmem:[#allocation5 + $0x188] sm:$0xff]
        %v929 = vld [vmem:[#allocation5 + $0x190] sm:$0xff]
        %v930 = vld [vmem:[#allocation5 + $0x198] sm:$0xff]
        %v931 = vld [vmem:[#allocation5 + $0x1a0] sm:$0xff]
        %v932 = vld [vmem:[#allocation5 + $0x1a8] sm:$0xff]
        %v933 = vld [vmem:[#allocation5 + $0x1b0] sm:$0xff]
        %v934 = vld [vmem:[#allocation5 + $0x1b8] sm:$0xff]
        %v935 = vld [vmem:[#allocation5 + $0x1c0] sm:$0xff]
        %v936 = vld [vmem:[#allocation5 + $0x1c8] sm:$0xff]
        %v937 = vld [vmem:[#allocation5 + $0x1d0] sm:$0xff]
        %v938 = vld [vmem:[#allocation5 + $0x1d8] sm:$0xff]
        %v939 = vld [vmem:[#allocation5 + $0x1e0] sm:$0xff]
        %v940 = vld [vmem:[#allocation5 + $0x1e8] sm:$0xff]
        %v941 = vld [vmem:[#allocation5 + $0x1f0] sm:$0xff]
        %v942 = vld [vmem:[#allocation5 + $0x1f8] sm:$0xff]
        %v943 = vld [vmem:[#allocation5 + $0x200] sm:$0xff]
        %v944 = vld [vmem:[#allocation5 + $0x208] sm:$0xff]
        %v945 = vld [vmem:[#allocation5 + $0x210] sm:$0xff]
        %v946 = vld [vmem:[#allocation5 + $0x218] sm:$0xff]
        %v947 = vld [vmem:[#allocation5 + $0x220] sm:$0xff]
        %v948 = vld [vmem:[#allocation5 + $0x228] sm:$0xff]
        %v949 = vld [vmem:[#allocation5 + $0x230] sm:$0xff]
        %v950 = vld [vmem:[#allocation5 + $0x238] sm:$0xff]
        %v951 = vld [vmem:[#allocation5 + $0x240] sm:$0xff]
        %v952 = vld [vmem:[#allocation5 + $0x248] sm:$0xff]
        %v953 = vld [vmem:[#allocation5 + $0x250] sm:$0xff]
        %v954 = vld [vmem:[#allocation5 + $0x258] sm:$0xff]
        %v955 = vld [vmem:[#allocation5 + $0x260] sm:$0xff]
        %v956 = vld [vmem:[#allocation5 + $0x268] sm:$0xff]
        %v957 = vld [vmem:[#allocation5 + $0x270] sm:$0xff]
        %v958 = vld [vmem:[#allocation5 + $0x278] sm:$0xff]
        %v959 = vld [vmem:[#allocation5 + $0x280] sm:$0xff]
        %v960 = vld [vmem:[#allocation5 + $0x288] sm:$0xff]
        %v961 = vld [vmem:[#allocation5 + $0x290] sm:$0xff]
        %v962 = vld [vmem:[#allocation5 + $0x298] sm:$0xff]
        %v963 = vld [vmem:[#allocation5 + $0x2a0] sm:$0xff]
        %v964 = vld [vmem:[#allocation5 + $0x2a8] sm:$0xff]
        %v965 = vld [vmem:[#allocation5 + $0x2b0] sm:$0xff]
        %v966 = vld [vmem:[#allocation5 + $0x2b8] sm:$0xff]
        %v967 = vld [vmem:[#allocation5 + $0x2c0] sm:$0xff]
        %v968 = vld [vmem:[#allocation5 + $0x2c8] sm:$0xff]
        %v969 = vld [vmem:[#allocation5 + $0x2d0] sm:$0xff]
        %v970 = vld [vmem:[#allocation5 + $0x2d8] sm:$0xff]
        %v971 = vld [vmem:[#allocation5 + $0x2e0] sm:$0xff]
        %v972 = vld [vmem:[#allocation5 + $0x2e8] sm:$0xff]
        %v973 = vld [vmem:[#allocation5 + $0x2f0] sm:$0xff]
        %v974 = vld [vmem:[#allocation5 + $0x2f8] sm:$0xff]
        %v975 = vld [vmem:[#allocation5 + $0x300] sm:$0xff]
        %v976 = vld [vmem:[#allocation5 + $0x308] sm:$0xff]
        %v977 = vld [vmem:[#allocation5 + $0x310] sm:$0xff]
        %v978 = vld [vmem:[#allocation5 + $0x318] sm:$0xff]
        %v979 = vld [vmem:[#allocation5 + $0x320] sm:$0xff]
        %v980 = vld [vmem:[#allocation5 + $0x328] sm:$0xff]
        %v981 = vld [vmem:[#allocation5 + $0x330] sm:$0xff]
        %v982 = vld [vmem:[#allocation5 + $0x338] sm:$0xff]
        %v983 = vld [vmem:[#allocation5 + $0x340] sm:$0xff]
        %v984 = vld [vmem:[#allocation5 + $0x348] sm:$0xff]
        %v985 = vld [vmem:[#allocation5 + $0x350] sm:$0xff]
        %v986 = vld [vmem:[#allocation5 + $0x358] sm:$0xff]
        %v987 = vld [vmem:[#allocation7] sm:$0x3f]
        %v989 = vlaneseq
        %v990 = vshrl.u32 %v989, 7
        %v991 = vsub.s32 0, %v990
        %v992 = vrot.slane %v987, %v991
        %v993 = vlaneseq
        %v994 = vshrl.u32 %v993, 7
        %v995 = vsub.s32 1, %v994
        %v996 = vrot.slane %v987, %v995
        %v997 = vlaneseq
        %v998 = vshrl.u32 %v997, 7
        %v999 = vsub.s32 2, %v998
        %v1000 = vrot.slane %v987, %v999
        %v1001 = vlaneseq
        %v1002 = vshrl.u32 %v1001, 7
        %v1003 = vsub.s32 3, %v1002
        %v1004 = vrot.slane %v987, %v1003
        %v1005 = vlaneseq
        %v1006 = vshrl.u32 %v1005, 7
        %v1007 = vsub.s32 4, %v1006
        %v1008 = vrot.slane %v987, %v1007
        %v1009 = vlaneseq
        %v1010 = vshrl.u32 %v1009, 7
        %v1011 = vsub.s32 5, %v1010
        %v1012 = vrot.slane %v987, %v1011
        %v1127 = vunpack.c.l.b16 %v879
        %v1128 = vunpack.c.h.b16 %v879
        %v1129 = vunpack.c.l.b16 %v880
        %v1130 = vunpack.c.h.b16 %v880
        %v1131 = vunpack.c.l.b16 %v881
        %v1132 = vunpack.c.h.b16 %v881
        %v1133 = vunpack.c.l.b16 %v882
        %v1134 = vunpack.c.h.b16 %v882
        %v1135 = vunpack.c.l.b16 %v883
        %v1136 = vunpack.c.h.b16 %v883
        %v1137 = vunpack.c.l.b16 %v884
        %v1138 = vunpack.c.h.b16 %v884
        %v1139 = vunpack.c.l.b16 %v885
        %v1140 = vunpack.c.h.b16 %v885
        %v1141 = vunpack.c.l.b16 %v886
        %v1142 = vunpack.c.h.b16 %v886
        %v1143 = vunpack.c.l.b16 %v887
        %v1144 = vunpack.c.h.b16 %v887
        %v1145 = vunpack.c.l.b16 %v888
        %v1146 = vunpack.c.h.b16 %v888
        %v1147 = vunpack.c.l.b16 %v889
        %v1148 = vunpack.c.h.b16 %v889
        %v1149 = vunpack.c.l.b16 %v890
        %v1150 = vunpack.c.h.b16 %v890
        %v1151 = vunpack.c.l.b16 %v891
        %v1152 = vunpack.c.h.b16 %v891
        %v1153 = vunpack.c.l.b16 %v892
        %v1154 = vunpack.c.h.b16 %v892
        %v1155 = vunpack.c.l.b16 %v893
        %v1156 = vunpack.c.h.b16 %v893
        %v1157 = vunpack.c.l.b16 %v894
        %v1158 = vunpack.c.h.b16 %v894
        %v1159 = vunpack.c.l.b16 %v895
        %v1160 = vunpack.c.h.b16 %v895
        %v1161 = vunpack.c.l.b16 %v896
        %v1162 = vunpack.c.h.b16 %v896
        %v1163 = vunpack.c.l.b16 %v897
        %v1164 = vunpack.c.h.b16 %v897
        %v1165 = vunpack.c.l.b16 %v898
        %v1166 = vunpack.c.h.b16 %v898
        %v1167 = vunpack.c.l.b16 %v899
        %v1168 = vunpack.c.h.b16 %v899
        %v1169 = vunpack.c.l.b16 %v900
        %v1170 = vunpack.c.h.b16 %v900
        %v1171 = vunpack.c.l.b16 %v901
        %v1172 = vunpack.c.h.b16 %v901
        %v1173 = vunpack.c.l.b16 %v902
        %v1174 = vunpack.c.h.b16 %v902
        %v1175 = vunpack.c.l.b16 %v903
        %v1176 = vunpack.c.h.b16 %v903
        %v1177 = vunpack.c.l.b16 %v904
        %v1178 = vunpack.c.h.b16 %v904
        %v1179 = vunpack.c.l.b16 %v905
        %v1180 = vunpack.c.h.b16 %v905
        %v1181 = vunpack.c.l.b16 %v906
        %v1182 = vunpack.c.h.b16 %v906
        %v1183 = vunpack.c.l.b16 %v907
        %v1184 = vunpack.c.h.b16 %v907
        %v1185 = vunpack.c.l.b16 %v908
        %v1186 = vunpack.c.h.b16 %v908
        %v1187 = vunpack.c.l.b16 %v909
        %v1188 = vunpack.c.h.b16 %v909
        %v1189 = vunpack.c.l.b16 %v910
        %v1190 = vunpack.c.h.b16 %v910
        %v1191 = vunpack.c.l.b16 %v911
        %v1192 = vunpack.c.h.b16 %v911
        %v1193 = vunpack.c.l.b16 %v912
        %v1194 = vunpack.c.h.b16 %v912
        %v1195 = vunpack.c.l.b16 %v913
        %v1196 = vunpack.c.h.b16 %v913
        %v1197 = vunpack.c.l.b16 %v914
        %v1198 = vunpack.c.h.b16 %v914
        %v1199 = vunpack.c.l.b16 %v915
        %v1200 = vunpack.c.h.b16 %v915
        %v1201 = vunpack.c.l.b16 %v916
        %v1202 = vunpack.c.h.b16 %v916
        %v1203 = vunpack.c.l.b16 %v917
        %v1204 = vunpack.c.h.b16 %v917
        %v1205 = vunpack.c.l.b16 %v918
        %v1206 = vunpack.c.h.b16 %v918
        %v1207 = vunpack.c.l.b16 %v919
        %v1208 = vunpack.c.h.b16 %v919
        %v1209 = vunpack.c.l.b16 %v920
        %v1210 = vunpack.c.h.b16 %v920
        %v1211 = vunpack.c.l.b16 %v921
        %v1212 = vunpack.c.h.b16 %v921
        %v1213 = vunpack.c.l.b16 %v922
        %v1214 = vunpack.c.h.b16 %v922
        %v1215 = vunpack.c.l.b16 %v923
        %v1216 = vunpack.c.h.b16 %v923
        %v1217 = vunpack.c.l.b16 %v924
        %v1218 = vunpack.c.h.b16 %v924
        %v1219 = vunpack.c.l.b16 %v925
        %v1220 = vunpack.c.h.b16 %v925
        %v1221 = vunpack.c.l.b16 %v926
        %v1222 = vunpack.c.h.b16 %v926
        %v1223 = vunpack.c.l.b16 %v927
        %v1224 = vunpack.c.h.b16 %v927
        %v1225 = vunpack.c.l.b16 %v928
        %v1226 = vunpack.c.h.b16 %v928
        %v1227 = vunpack.c.l.b16 %v929
        %v1228 = vunpack.c.h.b16 %v929
        %v1229 = vunpack.c.l.b16 %v930
        %v1230 = vunpack.c.h.b16 %v930
        %v1231 = vunpack.c.l.b16 %v931
        %v1232 = vunpack.c.h.b16 %v931
        %v1233 = vunpack.c.l.b16 %v932
        %v1234 = vunpack.c.h.b16 %v932
        %v1235 = vunpack.c.l.b16 %v933
        %v1236 = vunpack.c.h.b16 %v933
        %v1237 = vunpack.c.l.b16 %v934
        %v1238 = vunpack.c.h.b16 %v934
        %v1239 = vunpack.c.l.b16 %v935
        %v1240 = vunpack.c.h.b16 %v935
        %v1241 = vunpack.c.l.b16 %v936
        %v1242 = vunpack.c.h.b16 %v936
        %v1243 = vunpack.c.l.b16 %v937
        %v1244 = vunpack.c.h.b16 %v937
        %v1245 = vunpack.c.l.b16 %v938
        %v1246 = vunpack.c.h.b16 %v938
        %v1247 = vunpack.c.l.b16 %v939
        %v1248 = vunpack.c.h.b16 %v939
        %v1249 = vunpack.c.l.b16 %v940
        %v1250 = vunpack.c.h.b16 %v940
        %v1251 = vunpack.c.l.b16 %v941
        %v1252 = vunpack.c.h.b16 %v941
        %v1253 = vunpack.c.l.b16 %v942
        %v1254 = vunpack.c.h.b16 %v942
        %v1255 = vunpack.c.l.b16 %v943
        %v1256 = vunpack.c.h.b16 %v943
        %v1257 = vunpack.c.l.b16 %v944
        %v1258 = vunpack.c.h.b16 %v944
        %v1259 = vunpack.c.l.b16 %v945
        %v1260 = vunpack.c.h.b16 %v945
        %v1261 = vunpack.c.l.b16 %v946
        %v1262 = vunpack.c.h.b16 %v946
        %v1263 = vunpack.c.l.b16 %v947
        %v1264 = vunpack.c.h.b16 %v947
        %v1265 = vunpack.c.l.b16 %v948
        %v1266 = vunpack.c.h.b16 %v948
        %v1267 = vunpack.c.l.b16 %v949
        %v1268 = vunpack.c.h.b16 %v949
        %v1269 = vunpack.c.l.b16 %v950
        %v1270 = vunpack.c.h.b16 %v950
        %v1271 = vunpack.c.l.b16 %v951
        %v1272 = vunpack.c.h.b16 %v951
        %v1273 = vunpack.c.l.b16 %v952
        %v1274 = vunpack.c.h.b16 %v952
        %v1275 = vunpack.c.l.b16 %v953
        %v1276 = vunpack.c.h.b16 %v953
        %v1277 = vunpack.c.l.b16 %v954
        %v1278 = vunpack.c.h.b16 %v954
        %v1279 = vunpack.c.l.b16 %v955
        %v1280 = vunpack.c.h.b16 %v955
        %v1281 = vunpack.c.l.b16 %v956
        %v1282 = vunpack.c.h.b16 %v956
        %v1283 = vunpack.c.l.b16 %v957
        %v1284 = vunpack.c.h.b16 %v957
        %v1285 = vunpack.c.l.b16 %v958
        %v1286 = vunpack.c.h.b16 %v958
        %v1287 = vunpack.c.l.b16 %v959
        %v1288 = vunpack.c.h.b16 %v959
        %v1289 = vunpack.c.l.b16 %v960
        %v1290 = vunpack.c.h.b16 %v960
        %v1291 = vunpack.c.l.b16 %v961
        %v1292 = vunpack.c.h.b16 %v961
        %v1293 = vunpack.c.l.b16 %v962
        %v1294 = vunpack.c.h.b16 %v962
        %v1295 = vunpack.c.l.b16 %v963
        %v1296 = vunpack.c.h.b16 %v963
        %v1297 = vunpack.c.l.b16 %v964
        %v1298 = vunpack.c.h.b16 %v964
        %v1299 = vunpack.c.l.b16 %v965
        %v1300 = vunpack.c.h.b16 %v965
        %v1301 = vunpack.c.l.b16 %v966
        %v1302 = vunpack.c.h.b16 %v966
        %v1303 = vunpack.c.l.b16 %v967
        %v1304 = vunpack.c.h.b16 %v967
        %v1305 = vunpack.c.l.b16 %v968
        %v1306 = vunpack.c.h.b16 %v968
        %v1307 = vunpack.c.l.b16 %v969
        %v1308 = vunpack.c.h.b16 %v969
        %v1309 = vunpack.c.l.b16 %v970
        %v1310 = vunpack.c.h.b16 %v970
        %v1311 = vunpack.c.l.b16 %v971
        %v1312 = vunpack.c.h.b16 %v971
        %v1313 = vunpack.c.l.b16 %v972
        %v1314 = vunpack.c.h.b16 %v972
        %v1315 = vunpack.c.l.b16 %v973
        %v1316 = vunpack.c.h.b16 %v973
        %v1317 = vunpack.c.l.b16 %v974
        %v1318 = vunpack.c.h.b16 %v974
        %v1319 = vunpack.c.l.b16 %v975
        %v1320 = vunpack.c.h.b16 %v975
        %v1321 = vunpack.c.l.b16 %v976
        %v1322 = vunpack.c.h.b16 %v976
        %v1323 = vunpack.c.l.b16 %v977
        %v1324 = vunpack.c.h.b16 %v977
        %v1325 = vunpack.c.l.b16 %v978
        %v1326 = vunpack.c.h.b16 %v978
        %v1327 = vunpack.c.l.b16 %v979
        %v1328 = vunpack.c.h.b16 %v979
        %v1329 = vunpack.c.l.b16 %v980
        %v1330 = vunpack.c.h.b16 %v980
        %v1331 = vunpack.c.l.b16 %v981
        %v1332 = vunpack.c.h.b16 %v981
        %v1333 = vunpack.c.l.b16 %v982
        %v1334 = vunpack.c.h.b16 %v982
        %v1335 = vunpack.c.l.b16 %v983
        %v1336 = vunpack.c.h.b16 %v983
        %v1337 = vunpack.c.l.b16 %v984
        %v1338 = vunpack.c.h.b16 %v984
        %v1339 = vunpack.c.l.b16 %v985
        %v1340 = vunpack.c.h.b16 %v985
        %v1341 = vunpack.c.l.b16 %v986
        %v1342 = vunpack.c.h.b16 %v986
        %v1343 = vpack.c.b16 %v1133, %v1127
        %v1344 = vpack.c.b16 %v1134, %v1128
        %v1345 = vpack.c.b16 %v1135, %v1129
        %v1346 = vpack.c.b16 %v1136, %v1130
        %v1347 = vpack.c.b16 %v1137, %v1131
        %v1348 = vpack.c.b16 %v1138, %v1132
        %v1349 = vpack.c.b16 %v1145, %v1139
        %v1350 = vpack.c.b16 %v1146, %v1140
        %v1351 = vpack.c.b16 %v1147, %v1141
        %v1352 = vpack.c.b16 %v1148, %v1142
        %v1353 = vpack.c.b16 %v1149, %v1143
        %v1354 = vpack.c.b16 %v1150, %v1144
        %v1355 = vpack.c.b16 %v1157, %v1151
        %v1356 = vpack.c.b16 %v1158, %v1152
        %v1357 = vpack.c.b16 %v1159, %v1153
        %v1358 = vpack.c.b16 %v1160, %v1154
        %v1359 = vpack.c.b16 %v1161, %v1155
        %v1360 = vpack.c.b16 %v1162, %v1156
        %v1361 = vpack.c.b16 %v1169, %v1163
        %v1362 = vpack.c.b16 %v1170, %v1164
        %v1363 = vpack.c.b16 %v1171, %v1165
        %v1364 = vpack.c.b16 %v1172, %v1166
        %v1365 = vpack.c.b16 %v1173, %v1167
        %v1366 = vpack.c.b16 %v1174, %v1168
        %v1367 = vpack.c.b16 %v1181, %v1175
        %v1368 = vpack.c.b16 %v1182, %v1176
        %v1369 = vpack.c.b16 %v1183, %v1177
        %v1370 = vpack.c.b16 %v1184, %v1178
        %v1371 = vpack.c.b16 %v1185, %v1179
        %v1372 = vpack.c.b16 %v1186, %v1180
        %v1373 = vpack.c.b16 %v1193, %v1187
        %v1374 = vpack.c.b16 %v1194, %v1188
        %v1375 = vpack.c.b16 %v1195, %v1189
        %v1376 = vpack.c.b16 %v1196, %v1190
        %v1377 = vpack.c.b16 %v1197, %v1191
        %v1378 = vpack.c.b16 %v1198, %v1192
        %v1379 = vpack.c.b16 %v1205, %v1199
        %v1380 = vpack.c.b16 %v1206, %v1200
        %v1381 = vpack.c.b16 %v1207, %v1201
        %v1382 = vpack.c.b16 %v1208, %v1202
        %v1383 = vpack.c.b16 %v1209, %v1203
        %v1384 = vpack.c.b16 %v1210, %v1204
        %v1385 = vpack.c.b16 %v1217, %v1211
        %v1386 = vpack.c.b16 %v1218, %v1212
        %v1387 = vpack.c.b16 %v1219, %v1213
        %v1388 = vpack.c.b16 %v1220, %v1214
        %v1389 = vpack.c.b16 %v1221, %v1215
        %v1390 = vpack.c.b16 %v1222, %v1216
        %v1391 = vpack.c.b16 %v1229, %v1223
        %v1392 = vpack.c.b16 %v1230, %v1224
        %v1393 = vpack.c.b16 %v1231, %v1225
        %v1394 = vpack.c.b16 %v1232, %v1226
        %v1395 = vpack.c.b16 %v1233, %v1227
        %v1396 = vpack.c.b16 %v1234, %v1228
        %v1397 = vpack.c.b16 %v1241, %v1235
        %v1398 = vpack.c.b16 %v1242, %v1236
        %v1399 = vpack.c.b16 %v1243, %v1237
        %v1400 = vpack.c.b16 %v1244, %v1238
        %v1401 = vpack.c.b16 %v1245, %v1239
        %v1402 = vpack.c.b16 %v1246, %v1240
        %v1403 = vpack.c.b16 %v1253, %v1247
        %v1404 = vpack.c.b16 %v1254, %v1248
        %v1405 = vpack.c.b16 %v1255, %v1249
        %v1406 = vpack.c.b16 %v1256, %v1250
        %v1407 = vpack.c.b16 %v1257, %v1251
        %v1408 = vpack.c.b16 %v1258, %v1252
        %v1409 = vpack.c.b16 %v1265, %v1259
        %v1410 = vpack.c.b16 %v1266, %v1260
        %v1411 = vpack.c.b16 %v1267, %v1261
        %v1412 = vpack.c.b16 %v1268, %v1262
        %v1413 = vpack.c.b16 %v1269, %v1263
        %v1414 = vpack.c.b16 %v1270, %v1264
        %v1415 = vpack.c.b16 %v1277, %v1271
        %v1416 = vpack.c.b16 %v1278, %v1272
        %v1417 = vpack.c.b16 %v1279, %v1273
        %v1418 = vpack.c.b16 %v1280, %v1274
        %v1419 = vpack.c.b16 %v1281, %v1275
        %v1420 = vpack.c.b16 %v1282, %v1276
        %v1421 = vpack.c.b16 %v1289, %v1283
        %v1422 = vpack.c.b16 %v1290, %v1284
        %v1423 = vpack.c.b16 %v1291, %v1285
        %v1424 = vpack.c.b16 %v1292, %v1286
        %v1425 = vpack.c.b16 %v1293, %v1287
        %v1426 = vpack.c.b16 %v1294, %v1288
        %v1427 = vpack.c.b16 %v1301, %v1295
        %v1428 = vpack.c.b16 %v1302, %v1296
        %v1429 = vpack.c.b16 %v1303, %v1297
        %v1430 = vpack.c.b16 %v1304, %v1298
        %v1431 = vpack.c.b16 %v1305, %v1299
        %v1432 = vpack.c.b16 %v1306, %v1300
        %v1433 = vpack.c.b16 %v1313, %v1307
        %v1434 = vpack.c.b16 %v1314, %v1308
        %v1435 = vpack.c.b16 %v1315, %v1309
        %v1436 = vpack.c.b16 %v1316, %v1310
        %v1437 = vpack.c.b16 %v1317, %v1311
        %v1438 = vpack.c.b16 %v1318, %v1312
        %v1439 = vpack.c.b16 %v1325, %v1319
        %v1440 = vpack.c.b16 %v1326, %v1320
        %v1441 = vpack.c.b16 %v1327, %v1321
        %v1442 = vpack.c.b16 %v1328, %v1322
        %v1443 = vpack.c.b16 %v1329, %v1323
        %v1444 = vpack.c.b16 %v1330, %v1324
        %v1445 = vpack.c.b16 %v1337, %v1331
        %v1446 = vpack.c.b16 %v1338, %v1332
        %v1447 = vpack.c.b16 %v1339, %v1333
        %v1448 = vpack.c.b16 %v1340, %v1334
        %v1449 = vpack.c.b16 %v1341, %v1335
        %v1450 = vpack.c.b16 %v1342, %v1336
        %vm1559 = vcmask 261120
        %v1561 = vsel %vm1559, %v773, 0
        %v1564 = vsel %vm1559, %v776, 0
        %v1567 = vsel %vm1559, %v779, 0
        %v1570 = vsel %vm1559, %v782, 0
        %v1573 = vsel %vm1559, %v785, 0
        %v1576 = vsel %vm1559, %v788, 0
        %v1579 = vsel %vm1559, %v791, 0
        %v1582 = vsel %vm1559, %v794, 0
        %v1585 = vsel %vm1559, %v797, 0
        %v1588 = vsel %vm1559, %v800, 0
        %v1591 = vsel %vm1559, %v803, 0
        %v1594 = vsel %vm1559, %v806, 0
        %v1597 = vsel %vm1559, %v809, 0
        %v1600 = vsel %vm1559, %v812, 0
        %v1603 = vsel %vm1559, %v815, 0
        %v1606 = vsel %vm1559, %v818, 0
        %v1609 = vsel %vm1559, %v821, 0
        %v1612 = vsel %vm1559, %v824, 0
        %v1615 = vsel %vm1559, %v827, 0
        %v1618 = vsel %vm1559, %v830, 0
        %v1621 = vsel %vm1559, %v833, 0
        %v1624 = vsel %vm1559, %v836, 0
        %v1627 = vsel %vm1559, %v839, 0
        %v1630 = vsel %vm1559, %v842, 0
        %v1633 = vsel %vm1559, %v845, 0
        %v1636 = vsel %vm1559, %v848, 0
        %v1639 = vsel %vm1559, %v851, 0
        %v1642 = vsel %vm1559, %v854, 0
        %v1645 = vsel %vm1559, %v857, 0
        %v1648 = vsel %vm1559, %v860, 0
        %v1651 = vsel %vm1559, %v863, 0
        %v1654 = vsel %vm1559, %v866, 0
        %v1657 = vsel %vm1559, %v869, 0
        %v1660 = vsel %vm1559, %v872, 0
        %v1663 = vsel %vm1559, %v875, 0
        %v1666 = vsel %vm1559, %v878, 0
        %1668 = vmatprep.subr.bf16.mxu0 %v1386
        %1669 = vmatpush1.bf16.msra.mxu0 %v1385
        %1670 = vmatprep.subr.bf16.mxu0 %v1380
        %1671 = vmatpush1.bf16.msra.mxu0 %v1379
        %1672 = vmatprep.subr.bf16.mxu0 %v1374
        %1673 = vmatpush1.bf16.msra.mxu0 %v1373
        %1674 = vmatprep.subr.bf16.mxu0 %v1368
        %1675 = vmatpush1.bf16.msra.mxu0 %v1367
        %1676 = vmatprep.subr.bf16.mxu0 %v1362
        %1677 = vmatpush1.bf16.msra.mxu0 %v1361
        %1678 = vmatprep.subr.bf16.mxu0 %v1356
        %1679 = vmatpush1.bf16.msra.mxu0 %v1355
        %1680 = vmatprep.subr.bf16.mxu0 %v1350
        %1681 = vmatpush1.bf16.msra.mxu0 %v1349
        %1682 = vmatprep.subr.bf16.mxu0 %v1344
        %1683 = vmatpush1.bf16.msra.mxu0 %v1343
        %1684 = vmatprep.subr.bf16.mxu0 %v1434
        %1685 = vmatpush2.bf16.msra.mxu0 %v1433
        %1686 = vmatprep.subr.bf16.mxu0 %v1428
        %1687 = vmatpush2.bf16.msra.mxu0 %v1427
        %1688 = vmatprep.subr.bf16.mxu0 %v1422
        %1689 = vmatpush2.bf16.msra.mxu0 %v1421
        %1690 = vmatprep.subr.bf16.mxu0 %v1416
        %1691 = vmatpush2.bf16.msra.mxu0 %v1415
        %1692 = vmatprep.subr.bf16.mxu0 %v1410
        %1693 = vmatpush2.bf16.msra.mxu0 %v1409
        %1694 = vmatprep.subr.bf16.mxu0 %v1404
        %1695 = vmatpush2.bf16.msra.mxu0 %v1403
        %1696 = vmatprep.subr.bf16.mxu0 %v1398
        %1697 = vmatpush2.bf16.msra.mxu0 %v1397
        %1698 = vmatprep.subr.bf16.mxu0 %v1392
        %1699 = vmatpush2.bf16.msra.mxu0 %v1391
        %1700 = vmatprep.mubr.bf16.mxu0 %v772
        %1701 = vmatmul.mubr.bf16.gmra.mxu0 %v771
        %v1702 = vpop.f32.mrf.mxu0
        %v1703 = vadd.f32 %v992, %v1702
        %v1704 = vpop.f32.mrf.mxu0
        %v1705 = vadd.f32 %v996, %v1704
        %v1706 = vpop.f32.mrf.mxu0
        %v1707 = vadd.f32 %v992, %v1706
        %v1708 = vpop.f32.mrf.mxu0
        %v1709 = vadd.f32 %v996, %v1708
        %1710 = vmatprep.mubr.bf16.mxu0 %v775
        %1711 = vmatmul.mubr.bf16.gmra.mxu0 %v774
        %v1712 = vpop.f32.mrf.mxu0
        %v1713 = vadd.f32 %v992, %v1712
        %v1714 = vpop.f32.mrf.mxu0
        %v1715 = vadd.f32 %v996, %v1714
        %v1716 = vpop.f32.mrf.mxu0
        %v1717 = vadd.f32 %v992, %v1716
        %v1718 = vpop.f32.mrf.mxu0
        %v1719 = vadd.f32 %v996, %v1718
        %1720 = vmatprep.mubr.bf16.mxu0 %v778
        %1721 = vmatmul.mubr.bf16.gmra.mxu0 %v777
        %v1722 = vpop.f32.mrf.mxu0
        %v1723 = vadd.f32 %v992, %v1722
        %v1724 = vpop.f32.mrf.mxu0
        %v1725 = vadd.f32 %v996, %v1724
        %v1726 = vpop.f32.mrf.mxu0
        %v1727 = vadd.f32 %v992, %v1726
        %v1728 = vpop.f32.mrf.mxu0
        %v1729 = vadd.f32 %v996, %v1728
        %1730 = vmatprep.mubr.bf16.mxu0 %v781
        %1731 = vmatmul.mubr.bf16.gmra.mxu0 %v780
        %v1732 = vpop.f32.mrf.mxu0
        %v1733 = vadd.f32 %v992, %v1732
        %v1734 = vpop.f32.mrf.mxu0
        %v1735 = vadd.f32 %v996, %v1734
        %v1736 = vpop.f32.mrf.mxu0
        %v1737 = vadd.f32 %v992, %v1736
        %v1738 = vpop.f32.mrf.mxu0
        %v1739 = vadd.f32 %v996, %v1738
        %1740 = vmatprep.mubr.bf16.mxu0 %v784
        %1741 = vmatmul.mubr.bf16.gmra.mxu0 %v783
        %v1742 = vpop.f32.mrf.mxu0
        %v1743 = vadd.f32 %v992, %v1742
        %v1744 = vpop.f32.mrf.mxu0
        %v1745 = vadd.f32 %v996, %v1744
        %v1746 = vpop.f32.mrf.mxu0
        %v1747 = vadd.f32 %v992, %v1746
        %v1748 = vpop.f32.mrf.mxu0
        %v1749 = vadd.f32 %v996, %v1748
        %1750 = vmatprep.mubr.bf16.mxu0 %v787
        %1751 = vmatmul.mubr.bf16.gmra.mxu0 %v786
        %v1752 = vpop.f32.mrf.mxu0
        %v1753 = vadd.f32 %v992, %v1752
        %v1754 = vpop.f32.mrf.mxu0
        %v1755 = vadd.f32 %v996, %v1754
        %v1756 = vpop.f32.mrf.mxu0
        %v1757 = vadd.f32 %v992, %v1756
        %v1758 = vpop.f32.mrf.mxu0
        %v1759 = vadd.f32 %v996, %v1758
        %1760 = vmatprep.mubr.bf16.mxu0 %v790
        %1761 = vmatmul.mubr.bf16.gmra.mxu0 %v789
        %v1762 = vpop.f32.mrf.mxu0
        %v1763 = vadd.f32 %v992, %v1762
        %v1764 = vpop.f32.mrf.mxu0
        %v1765 = vadd.f32 %v996, %v1764
        %v1766 = vpop.f32.mrf.mxu0
        %v1767 = vadd.f32 %v992, %v1766
        %v1768 = vpop.f32.mrf.mxu0
        %v1769 = vadd.f32 %v996, %v1768
        %1770 = vmatprep.mubr.bf16.mxu0 %v793
        %1771 = vmatmul.mubr.bf16.gmra.mxu0 %v792
        %v1772 = vpop.f32.mrf.mxu0
        %v1773 = vadd.f32 %v992, %v1772
        %v1774 = vpop.f32.mrf.mxu0
        %v1775 = vadd.f32 %v996, %v1774
        %v1776 = vpop.f32.mrf.mxu0
        %v1777 = vadd.f32 %v992, %v1776
        %v1778 = vpop.f32.mrf.mxu0
        %v1779 = vadd.f32 %v996, %v1778
        %1780 = vmatprep.mubr.bf16.mxu0 %v796
        %1781 = vmatmul.mubr.bf16.gmra.mxu0 %v795
        %v1782 = vpop.f32.mrf.mxu0
        %v1783 = vadd.f32 %v992, %v1782
        %v1784 = vpop.f32.mrf.mxu0
        %v1785 = vadd.f32 %v996, %v1784
        %v1786 = vpop.f32.mrf.mxu0
        %v1787 = vadd.f32 %v992, %v1786
        %v1788 = vpop.f32.mrf.mxu0
        %v1789 = vadd.f32 %v996, %v1788
        %1790 = vmatprep.mubr.bf16.mxu0 %v799
        %1791 = vmatmul.mubr.bf16.gmra.mxu0 %v798
        %v1792 = vpop.f32.mrf.mxu0
        %v1793 = vadd.f32 %v992, %v1792
        %v1794 = vpop.f32.mrf.mxu0
        %v1795 = vadd.f32 %v996, %v1794
        %v1796 = vpop.f32.mrf.mxu0
        %v1797 = vadd.f32 %v992, %v1796
        %v1798 = vpop.f32.mrf.mxu0
        %v1799 = vadd.f32 %v996, %v1798
        %1800 = vmatprep.mubr.bf16.mxu0 %v802
        %1801 = vmatmul.mubr.bf16.gmra.mxu0 %v801
        %v1802 = vpop.f32.mrf.mxu0
        %v1803 = vadd.f32 %v992, %v1802
        %v1804 = vpop.f32.mrf.mxu0
        %v1805 = vadd.f32 %v996, %v1804
        %v1806 = vpop.f32.mrf.mxu0
        %v1807 = vadd.f32 %v992, %v1806
        %v1808 = vpop.f32.mrf.mxu0
        %v1809 = vadd.f32 %v996, %v1808
        %1810 = vmatprep.mubr.bf16.mxu0 %v805
        %1811 = vmatmul.mubr.bf16.gmra.mxu0 %v804
        %v1812 = vpop.f32.mrf.mxu0
        %v1813 = vadd.f32 %v992, %v1812
        %v1814 = vpop.f32.mrf.mxu0
        %v1815 = vadd.f32 %v996, %v1814
        %v1816 = vpop.f32.mrf.mxu0
        %v1817 = vadd.f32 %v992, %v1816
        %v1818 = vpop.f32.mrf.mxu0
        %v1819 = vadd.f32 %v996, %v1818
        %1820 = vmatprep.mubr.bf16.mxu0 %v808
        %1821 = vmatmul.mubr.bf16.gmra.mxu0 %v807
        %v1822 = vpop.f32.mrf.mxu0
        %v1823 = vadd.f32 %v992, %v1822
        %v1824 = vpop.f32.mrf.mxu0
        %v1825 = vadd.f32 %v996, %v1824
        %v1826 = vpop.f32.mrf.mxu0
        %v1827 = vadd.f32 %v992, %v1826
        %v1828 = vpop.f32.mrf.mxu0
        %v1829 = vadd.f32 %v996, %v1828
        %1830 = vmatprep.mubr.bf16.mxu0 %v811
        %1831 = vmatmul.mubr.bf16.gmra.mxu0 %v810
        %v1832 = vpop.f32.mrf.mxu0
        %v1833 = vadd.f32 %v992, %v1832
        %v1834 = vpop.f32.mrf.mxu0
        %v1835 = vadd.f32 %v996, %v1834
        %v1836 = vpop.f32.mrf.mxu0
        %v1837 = vadd.f32 %v992, %v1836
        %v1838 = vpop.f32.mrf.mxu0
        %v1839 = vadd.f32 %v996, %v1838
        %1840 = vmatprep.mubr.bf16.mxu0 %v814
        %1841 = vmatmul.mubr.bf16.gmra.mxu0 %v813
        %v1842 = vpop.f32.mrf.mxu0
        %v1843 = vadd.f32 %v992, %v1842
        %v1844 = vpop.f32.mrf.mxu0
        %v1845 = vadd.f32 %v996, %v1844
        %v1846 = vpop.f32.mrf.mxu0
        %v1847 = vadd.f32 %v992, %v1846
        %v1848 = vpop.f32.mrf.mxu0
        %v1849 = vadd.f32 %v996, %v1848
        %1850 = vmatprep.mubr.bf16.mxu0 %v817
        %1851 = vmatmul.mubr.bf16.gmra.mxu0 %v816
        %v1852 = vpop.f32.mrf.mxu0
        %v1853 = vadd.f32 %v992, %v1852
        %v1854 = vpop.f32.mrf.mxu0
        %v1855 = vadd.f32 %v996, %v1854
        %v1856 = vpop.f32.mrf.mxu0
        %v1857 = vadd.f32 %v992, %v1856
        %v1858 = vpop.f32.mrf.mxu0
        %v1859 = vadd.f32 %v996, %v1858
        %1860 = vmatprep.mubr.bf16.mxu0 %v820
        %1861 = vmatmul.mubr.bf16.gmra.mxu0 %v819
        %v1862 = vpop.f32.mrf.mxu0
        %v1863 = vadd.f32 %v992, %v1862
        %v1864 = vpop.f32.mrf.mxu0
        %v1865 = vadd.f32 %v996, %v1864
        %v1866 = vpop.f32.mrf.mxu0
        %v1867 = vadd.f32 %v992, %v1866
        %v1868 = vpop.f32.mrf.mxu0
        %v1869 = vadd.f32 %v996, %v1868
        %1870 = vmatprep.mubr.bf16.mxu0 %v823
        %1871 = vmatmul.mubr.bf16.gmra.mxu0 %v822
        %v1872 = vpop.f32.mrf.mxu0
        %v1873 = vadd.f32 %v992, %v1872
        %v1874 = vpop.f32.mrf.mxu0
        %v1875 = vadd.f32 %v996, %v1874
        %v1876 = vpop.f32.mrf.mxu0
        %v1877 = vadd.f32 %v992, %v1876
        %v1878 = vpop.f32.mrf.mxu0
        %v1879 = vadd.f32 %v996, %v1878
        %1880 = vmatprep.mubr.bf16.mxu0 %v826
        %1881 = vmatmul.mubr.bf16.gmra.mxu0 %v825
        %v1882 = vpop.f32.mrf.mxu0
        %v1883 = vadd.f32 %v992, %v1882
        %v1884 = vpop.f32.mrf.mxu0
        %v1885 = vadd.f32 %v996, %v1884
        %v1886 = vpop.f32.mrf.mxu0
        %v1887 = vadd.f32 %v992, %v1886
        %v1888 = vpop.f32.mrf.mxu0
        %v1889 = vadd.f32 %v996, %v1888
        %1890 = vmatprep.mubr.bf16.mxu0 %v829
        %1891 = vmatmul.mubr.bf16.gmra.mxu0 %v828
        %v1892 = vpop.f32.mrf.mxu0
        %v1893 = vadd.f32 %v992, %v1892
        %v1894 = vpop.f32.mrf.mxu0
        %v1895 = vadd.f32 %v996, %v1894
        %v1896 = vpop.f32.mrf.mxu0
        %v1897 = vadd.f32 %v992, %v1896
        %v1898 = vpop.f32.mrf.mxu0
        %v1899 = vadd.f32 %v996, %v1898
        %1900 = vmatprep.mubr.bf16.mxu0 %v832
        %1901 = vmatmul.mubr.bf16.gmra.mxu0 %v831
        %v1902 = vpop.f32.mrf.mxu0
        %v1903 = vadd.f32 %v992, %v1902
        %v1904 = vpop.f32.mrf.mxu0
        %v1905 = vadd.f32 %v996, %v1904
        %v1906 = vpop.f32.mrf.mxu0
        %v1907 = vadd.f32 %v992, %v1906
        %v1908 = vpop.f32.mrf.mxu0
        %v1909 = vadd.f32 %v996, %v1908
        %1910 = vmatprep.mubr.bf16.mxu0 %v835
        %1911 = vmatmul.mubr.bf16.gmra.mxu0 %v834
        %v1912 = vpop.f32.mrf.mxu0
        %v1913 = vadd.f32 %v992, %v1912
        %v1914 = vpop.f32.mrf.mxu0
        %v1915 = vadd.f32 %v996, %v1914
        %v1916 = vpop.f32.mrf.mxu0
        %v1917 = vadd.f32 %v992, %v1916
        %v1918 = vpop.f32.mrf.mxu0
        %v1919 = vadd.f32 %v996, %v1918
        %1920 = vmatprep.mubr.bf16.mxu0 %v838
        %1921 = vmatmul.mubr.bf16.gmra.mxu0 %v837
        %v1922 = vpop.f32.mrf.mxu0
        %v1923 = vadd.f32 %v992, %v1922
        %v1924 = vpop.f32.mrf.mxu0
        %v1925 = vadd.f32 %v996, %v1924
        %v1926 = vpop.f32.mrf.mxu0
        %v1927 = vadd.f32 %v992, %v1926
        %v1928 = vpop.f32.mrf.mxu0
        %v1929 = vadd.f32 %v996, %v1928
        %1930 = vmatprep.mubr.bf16.mxu0 %v841
        %1931 = vmatmul.mubr.bf16.gmra.mxu0 %v840
        %v1932 = vpop.f32.mrf.mxu0
        %v1933 = vadd.f32 %v992, %v1932
        %v1934 = vpop.f32.mrf.mxu0
        %v1935 = vadd.f32 %v996, %v1934
        %v1936 = vpop.f32.mrf.mxu0
        %v1937 = vadd.f32 %v992, %v1936
        %v1938 = vpop.f32.mrf.mxu0
        %v1939 = vadd.f32 %v996, %v1938
        %1940 = vmatprep.mubr.bf16.mxu0 %v844
        %1941 = vmatmul.mubr.bf16.gmra.mxu0 %v843
        %v1942 = vpop.f32.mrf.mxu0
        %v1943 = vadd.f32 %v992, %v1942
        %v1944 = vpop.f32.mrf.mxu0
        %v1945 = vadd.f32 %v996, %v1944
        %v1946 = vpop.f32.mrf.mxu0
        %v1947 = vadd.f32 %v992, %v1946
        %v1948 = vpop.f32.mrf.mxu0
        %v1949 = vadd.f32 %v996, %v1948
        %1950 = vmatprep.mubr.bf16.mxu0 %v847
        %1951 = vmatmul.mubr.bf16.gmra.mxu0 %v846
        %v1952 = vpop.f32.mrf.mxu0
        %v1953 = vadd.f32 %v992, %v1952
        %v1954 = vpop.f32.mrf.mxu0
        %v1955 = vadd.f32 %v996, %v1954
        %v1956 = vpop.f32.mrf.mxu0
        %v1957 = vadd.f32 %v992, %v1956
        %v1958 = vpop.f32.mrf.mxu0
        %v1959 = vadd.f32 %v996, %v1958
        %1960 = vmatprep.mubr.bf16.mxu0 %v850
        %1961 = vmatmul.mubr.bf16.gmra.mxu0 %v849
        %v1962 = vpop.f32.mrf.mxu0
        %v1963 = vadd.f32 %v992, %v1962
        %v1964 = vpop.f32.mrf.mxu0
        %v1965 = vadd.f32 %v996, %v1964
        %v1966 = vpop.f32.mrf.mxu0
        %v1967 = vadd.f32 %v992, %v1966
        %v1968 = vpop.f32.mrf.mxu0
        %v1969 = vadd.f32 %v996, %v1968
        %1970 = vmatprep.mubr.bf16.mxu0 %v853
        %1971 = vmatmul.mubr.bf16.gmra.mxu0 %v852
        %v1972 = vpop.f32.mrf.mxu0
        %v1973 = vadd.f32 %v992, %v1972
        %v1974 = vpop.f32.mrf.mxu0
        %v1975 = vadd.f32 %v996, %v1974
        %v1976 = vpop.f32.mrf.mxu0
        %v1977 = vadd.f32 %v992, %v1976
        %v1978 = vpop.f32.mrf.mxu0
        %v1979 = vadd.f32 %v996, %v1978
        %1980 = vmatprep.mubr.bf16.mxu0 %v856
        %1981 = vmatmul.mubr.bf16.gmra.mxu0 %v855
        %v1982 = vpop.f32.mrf.mxu0
        %v1983 = vadd.f32 %v992, %v1982
        %v1984 = vpop.f32.mrf.mxu0
        %v1985 = vadd.f32 %v996, %v1984
        %v1986 = vpop.f32.mrf.mxu0
        %v1987 = vadd.f32 %v992, %v1986
        %v1988 = vpop.f32.mrf.mxu0
        %v1989 = vadd.f32 %v996, %v1988
        %1990 = vmatprep.mubr.bf16.mxu0 %v859
        %1991 = vmatmul.mubr.bf16.gmra.mxu0 %v858
        %v1992 = vpop.f32.mrf.mxu0
        %v1993 = vadd.f32 %v992, %v1992
        %v1994 = vpop.f32.mrf.mxu0
        %v1995 = vadd.f32 %v996, %v1994
        %v1996 = vpop.f32.mrf.mxu0
        %v1997 = vadd.f32 %v992, %v1996
        %v1998 = vpop.f32.mrf.mxu0
        %v1999 = vadd.f32 %v996, %v1998
        %2000 = vmatprep.mubr.bf16.mxu0 %v862
        %2001 = vmatmul.mubr.bf16.gmra.mxu0 %v861
        %v2002 = vpop.f32.mrf.mxu0
        %v2003 = vadd.f32 %v992, %v2002
        %v2004 = vpop.f32.mrf.mxu0
        %v2005 = vadd.f32 %v996, %v2004
        %v2006 = vpop.f32.mrf.mxu0
        %v2007 = vadd.f32 %v992, %v2006
        %v2008 = vpop.f32.mrf.mxu0
        %v2009 = vadd.f32 %v996, %v2008
        %2010 = vmatprep.mubr.bf16.mxu0 %v865
        %2011 = vmatmul.mubr.bf16.gmra.mxu0 %v864
        %v2012 = vpop.f32.mrf.mxu0
        %v2013 = vadd.f32 %v992, %v2012
        %v2014 = vpop.f32.mrf.mxu0
        %v2015 = vadd.f32 %v996, %v2014
        %v2016 = vpop.f32.mrf.mxu0
        %v2017 = vadd.f32 %v992, %v2016
        %v2018 = vpop.f32.mrf.mxu0
        %v2019 = vadd.f32 %v996, %v2018
        %2020 = vmatprep.mubr.bf16.mxu0 %v868
        %2021 = vmatmul.mubr.bf16.gmra.mxu0 %v867
        %v2022 = vpop.f32.mrf.mxu0
        %v2023 = vadd.f32 %v992, %v2022
        %v2024 = vpop.f32.mrf.mxu0
        %v2025 = vadd.f32 %v996, %v2024
        %v2026 = vpop.f32.mrf.mxu0
        %v2027 = vadd.f32 %v992, %v2026
        %v2028 = vpop.f32.mrf.mxu0
        %v2029 = vadd.f32 %v996, %v2028
        %2030 = vmatprep.mubr.bf16.mxu0 %v871
        %2031 = vmatmul.mubr.bf16.gmra.mxu0 %v870
        %v2032 = vpop.f32.mrf.mxu0
        %v2033 = vadd.f32 %v992, %v2032
        %v2034 = vpop.f32.mrf.mxu0
        %v2035 = vadd.f32 %v996, %v2034
        %v2036 = vpop.f32.mrf.mxu0
        %v2037 = vadd.f32 %v992, %v2036
        %v2038 = vpop.f32.mrf.mxu0
        %v2039 = vadd.f32 %v996, %v2038
        %2040 = vmatprep.mubr.bf16.mxu0 %v874
        %2041 = vmatmul.mubr.bf16.gmra.mxu0 %v873
        %v2042 = vpop.f32.mrf.mxu0
        %v2043 = vadd.f32 %v992, %v2042
        %v2044 = vpop.f32.mrf.mxu0
        %v2045 = vadd.f32 %v996, %v2044
        %v2046 = vpop.f32.mrf.mxu0
        %v2047 = vadd.f32 %v992, %v2046
        %v2048 = vpop.f32.mrf.mxu0
        %v2049 = vadd.f32 %v996, %v2048
        %2050 = vmatprep.mubr.bf16.mxu0 %v877
        %2051 = vmatmul.mubr.bf16.gmra.mxu0 %v876
        %v2052 = vpop.f32.mrf.mxu0
        %v2053 = vadd.f32 %v992, %v2052
        %v2054 = vpop.f32.mrf.mxu0
        %v2055 = vadd.f32 %v996, %v2054
        %v2056 = vpop.f32.mrf.mxu0
        %v2057 = vadd.f32 %v992, %v2056
        %v2058 = vpop.f32.mrf.mxu0
        %v2059 = vadd.f32 %v996, %v2058
        %2060 = vdwg.mxu0
        %2061 = vmatprep.subr.bf16.mxu0 0
        %2062 = vmatpush1.bf16.msra.mxu0 0
        %2063 = vmatprep.subr.bf16.mxu0 0
        %2064 = vmatpush1.bf16.msra.mxu0 0
        %2065 = vmatprep.subr.bf16.mxu0 0
        %2066 = vmatpush1.bf16.msra.mxu0 0
        %2067 = vmatprep.subr.bf16.mxu0 0
        %2068 = vmatpush1.bf16.msra.mxu0 0
        %2069 = vmatprep.subr.bf16.mxu0 0
        %2070 = vmatpush1.bf16.msra.mxu0 0
        %2071 = vmatprep.subr.bf16.mxu0 0
        %2072 = vmatpush1.bf16.msra.mxu0 0
        %2073 = vmatprep.subr.bf16.mxu0 %v1446
        %2074 = vmatpush1.bf16.msra.mxu0 %v1445
        %2075 = vmatprep.subr.bf16.mxu0 %v1440
        %2076 = vmatpush1.bf16.msra.mxu0 %v1439
        %2077 = vmatprep.subr.bf16.mxu0 0
        %2078 = vmatpush2.bf16.msra.mxu0 0
        %2079 = vmatprep.subr.bf16.mxu0 0
        %2080 = vmatpush2.bf16.msra.mxu0 0
        %2081 = vmatprep.subr.bf16.mxu0 0
        %2082 = vmatpush2.bf16.msra.mxu0 0
        %2083 = vmatprep.subr.bf16.mxu0 0
        %2084 = vmatpush2.bf16.msra.mxu0 0
        %2085 = vmatprep.subr.bf16.mxu0 0
        %2086 = vmatpush2.bf16.msra.mxu0 0
        %2087 = vmatprep.subr.bf16.mxu0 0
        %2088 = vmatpush2.bf16.msra.mxu0 0
        %2089 = vmatprep.subr.bf16.mxu0 0
        %2090 = vmatpush2.bf16.msra.mxu0 0
        %2091 = vmatprep.subr.bf16.mxu0 0
        %2092 = vmatpush2.bf16.msra.mxu0 0
        %2093 = vmatprep.mubr.bf16.mxu0 0
        %2094 = vmatmul.mubr.bf16.gmra.mxu0 %v1561
        %v2095 = vpop.f32.mrf.mxu0
        %v2096 = vadd.f32 %v1703, %v2095
        %v2097 = vpop.f32.mrf.mxu0
        %v2098 = vadd.f32 %v1705, %v2097
        %v2099 = vpop.f32.mrf.mxu0
        %v2100 = vadd.f32 %v1707, %v2099
        %v2101 = vpop.f32.mrf.mxu0
        %v2102 = vadd.f32 %v1709, %v2101
        %2103 = vmatprep.mubr.bf16.mxu0 0
        %2104 = vmatmul.mubr.bf16.gmra.mxu0 %v1564
        %v2105 = vpop.f32.mrf.mxu0
        %v2106 = vadd.f32 %v1713, %v2105
        %v2107 = vpop.f32.mrf.mxu0
        %v2108 = vadd.f32 %v1715, %v2107
        %v2109 = vpop.f32.mrf.mxu0
        %v2110 = vadd.f32 %v1717, %v2109
        %v2111 = vpop.f32.mrf.mxu0
        %v2112 = vadd.f32 %v1719, %v2111
        %2113 = vmatprep.mubr.bf16.mxu0 0
        %2114 = vmatmul.mubr.bf16.gmra.mxu0 %v1567
        %v2115 = vpop.f32.mrf.mxu0
        %v2116 = vadd.f32 %v1723, %v2115
        %v2117 = vpop.f32.mrf.mxu0
        %v2118 = vadd.f32 %v1725, %v2117
        %v2119 = vpop.f32.mrf.mxu0
        %v2120 = vadd.f32 %v1727, %v2119
        %v2121 = vpop.f32.mrf.mxu0
        %v2122 = vadd.f32 %v1729, %v2121
        %2123 = vmatprep.mubr.bf16.mxu0 0
        %2124 = vmatmul.mubr.bf16.gmra.mxu0 %v1570
        %v2125 = vpop.f32.mrf.mxu0
        %v2126 = vadd.f32 %v1733, %v2125
        %v2127 = vpop.f32.mrf.mxu0
        %v2128 = vadd.f32 %v1735, %v2127
        %v2129 = vpop.f32.mrf.mxu0
        %v2130 = vadd.f32 %v1737, %v2129
        %v2131 = vpop.f32.mrf.mxu0
        %v2132 = vadd.f32 %v1739, %v2131
        %2133 = vmatprep.mubr.bf16.mxu0 0
        %2134 = vmatmul.mubr.bf16.gmra.mxu0 %v1573
        %v2135 = vpop.f32.mrf.mxu0
        %v2136 = vadd.f32 %v1743, %v2135
        %v2137 = vpop.f32.mrf.mxu0
        %v2138 = vadd.f32 %v1745, %v2137
        %v2139 = vpop.f32.mrf.mxu0
        %v2140 = vadd.f32 %v1747, %v2139
        %v2141 = vpop.f32.mrf.mxu0
        %v2142 = vadd.f32 %v1749, %v2141
        %2143 = vmatprep.mubr.bf16.mxu0 0
        %2144 = vmatmul.mubr.bf16.gmra.mxu0 %v1576
        %v2145 = vpop.f32.mrf.mxu0
        %v2146 = vadd.f32 %v1753, %v2145
        %v2147 = vpop.f32.mrf.mxu0
        %v2148 = vadd.f32 %v1755, %v2147
        %v2149 = vpop.f32.mrf.mxu0
        %v2150 = vadd.f32 %v1757, %v2149
        %v2151 = vpop.f32.mrf.mxu0
        %v2152 = vadd.f32 %v1759, %v2151
        %2153 = vmatprep.mubr.bf16.mxu0 0
        %2154 = vmatmul.mubr.bf16.gmra.mxu0 %v1579
        %v2155 = vpop.f32.mrf.mxu0
        %v2156 = vadd.f32 %v1763, %v2155
        %v2157 = vpop.f32.mrf.mxu0
        %v2158 = vadd.f32 %v1765, %v2157
        %v2159 = vpop.f32.mrf.mxu0
        %v2160 = vadd.f32 %v1767, %v2159
        %v2161 = vpop.f32.mrf.mxu0
        %v2162 = vadd.f32 %v1769, %v2161
        %2163 = vmatprep.mubr.bf16.mxu0 0
        %2164 = vmatmul.mubr.bf16.gmra.mxu0 %v1582
        %v2165 = vpop.f32.mrf.mxu0
        %v2166 = vadd.f32 %v1773, %v2165
        %v2167 = vpop.f32.mrf.mxu0
        %v2168 = vadd.f32 %v1775, %v2167
        %v2169 = vpop.f32.mrf.mxu0
        %v2170 = vadd.f32 %v1777, %v2169
        %v2171 = vpop.f32.mrf.mxu0
        %v2172 = vadd.f32 %v1779, %v2171
        %2173 = vmatprep.mubr.bf16.mxu0 0
        %2174 = vmatmul.mubr.bf16.gmra.mxu0 %v1585
        %v2175 = vpop.f32.mrf.mxu0
        %v2176 = vadd.f32 %v1783, %v2175
        %v2177 = vpop.f32.mrf.mxu0
        %v2178 = vadd.f32 %v1785, %v2177
        %v2179 = vpop.f32.mrf.mxu0
        %v2180 = vadd.f32 %v1787, %v2179
        %v2181 = vpop.f32.mrf.mxu0
        %v2182 = vadd.f32 %v1789, %v2181
        %2183 = vmatprep.mubr.bf16.mxu0 0
        %2184 = vmatmul.mubr.bf16.gmra.mxu0 %v1588
        %v2185 = vpop.f32.mrf.mxu0
        %v2186 = vadd.f32 %v1793, %v2185
        %v2187 = vpop.f32.mrf.mxu0
        %v2188 = vadd.f32 %v1795, %v2187
        %v2189 = vpop.f32.mrf.mxu0
        %v2190 = vadd.f32 %v1797, %v2189
        %v2191 = vpop.f32.mrf.mxu0
        %v2192 = vadd.f32 %v1799, %v2191
        %2193 = vmatprep.mubr.bf16.mxu0 0
        %2194 = vmatmul.mubr.bf16.gmra.mxu0 %v1591
        %v2195 = vpop.f32.mrf.mxu0
        %v2196 = vadd.f32 %v1803, %v2195
        %v2197 = vpop.f32.mrf.mxu0
        %v2198 = vadd.f32 %v1805, %v2197
        %v2199 = vpop.f32.mrf.mxu0
        %v2200 = vadd.f32 %v1807, %v2199
        %v2201 = vpop.f32.mrf.mxu0
        %v2202 = vadd.f32 %v1809, %v2201
        %2203 = vmatprep.mubr.bf16.mxu0 0
        %2204 = vmatmul.mubr.bf16.gmra.mxu0 %v1594
        %v2205 = vpop.f32.mrf.mxu0
        %v2206 = vadd.f32 %v1813, %v2205
        %v2207 = vpop.f32.mrf.mxu0
        %v2208 = vadd.f32 %v1815, %v2207
        %v2209 = vpop.f32.mrf.mxu0
        %v2210 = vadd.f32 %v1817, %v2209
        %v2211 = vpop.f32.mrf.mxu0
        %v2212 = vadd.f32 %v1819, %v2211
        %2213 = vmatprep.mubr.bf16.mxu0 0
        %2214 = vmatmul.mubr.bf16.gmra.mxu0 %v1597
        %v2215 = vpop.f32.mrf.mxu0
        %v2216 = vadd.f32 %v1823, %v2215
        %v2217 = vpop.f32.mrf.mxu0
        %v2218 = vadd.f32 %v1825, %v2217
        %v2219 = vpop.f32.mrf.mxu0
        %v2220 = vadd.f32 %v1827, %v2219
        %v2221 = vpop.f32.mrf.mxu0
        %v2222 = vadd.f32 %v1829, %v2221
        %2223 = vmatprep.mubr.bf16.mxu0 0
        %2224 = vmatmul.mubr.bf16.gmra.mxu0 %v1600
        %v2225 = vpop.f32.mrf.mxu0
        %v2226 = vadd.f32 %v1833, %v2225
        %v2227 = vpop.f32.mrf.mxu0
        %v2228 = vadd.f32 %v1835, %v2227
        %v2229 = vpop.f32.mrf.mxu0
        %v2230 = vadd.f32 %v1837, %v2229
        %v2231 = vpop.f32.mrf.mxu0
        %v2232 = vadd.f32 %v1839, %v2231
        %2233 = vmatprep.mubr.bf16.mxu0 0
        %2234 = vmatmul.mubr.bf16.gmra.mxu0 %v1603
        %v2235 = vpop.f32.mrf.mxu0
        %v2236 = vadd.f32 %v1843, %v2235
        %v2237 = vpop.f32.mrf.mxu0
        %v2238 = vadd.f32 %v1845, %v2237
        %v2239 = vpop.f32.mrf.mxu0
        %v2240 = vadd.f32 %v1847, %v2239
        %v2241 = vpop.f32.mrf.mxu0
        %v2242 = vadd.f32 %v1849, %v2241
        %2243 = vmatprep.mubr.bf16.mxu0 0
        %2244 = vmatmul.mubr.bf16.gmra.mxu0 %v1606
        %v2245 = vpop.f32.mrf.mxu0
        %v2246 = vadd.f32 %v1853, %v2245
        %v2247 = vpop.f32.mrf.mxu0
        %v2248 = vadd.f32 %v1855, %v2247
        %v2249 = vpop.f32.mrf.mxu0
        %v2250 = vadd.f32 %v1857, %v2249
        %v2251 = vpop.f32.mrf.mxu0
        %v2252 = vadd.f32 %v1859, %v2251
        %2253 = vmatprep.mubr.bf16.mxu0 0
        %2254 = vmatmul.mubr.bf16.gmra.mxu0 %v1609
        %v2255 = vpop.f32.mrf.mxu0
        %v2256 = vadd.f32 %v1863, %v2255
        %v2257 = vpop.f32.mrf.mxu0
        %v2258 = vadd.f32 %v1865, %v2257
        %v2259 = vpop.f32.mrf.mxu0
        %v2260 = vadd.f32 %v1867, %v2259
        %v2261 = vpop.f32.mrf.mxu0
        %v2262 = vadd.f32 %v1869, %v2261
        %2263 = vmatprep.mubr.bf16.mxu0 0
        %2264 = vmatmul.mubr.bf16.gmra.mxu0 %v1612
        %v2265 = vpop.f32.mrf.mxu0
        %v2266 = vadd.f32 %v1873, %v2265
        %v2267 = vpop.f32.mrf.mxu0
        %v2268 = vadd.f32 %v1875, %v2267
        %v2269 = vpop.f32.mrf.mxu0
        %v2270 = vadd.f32 %v1877, %v2269
        %v2271 = vpop.f32.mrf.mxu0
        %v2272 = vadd.f32 %v1879, %v2271
        %2273 = vmatprep.mubr.bf16.mxu0 0
        %2274 = vmatmul.mubr.bf16.gmra.mxu0 %v1615
        %v2275 = vpop.f32.mrf.mxu0
        %v2276 = vadd.f32 %v1883, %v2275
        %v2277 = vpop.f32.mrf.mxu0
        %v2278 = vadd.f32 %v1885, %v2277
        %v2279 = vpop.f32.mrf.mxu0
        %v2280 = vadd.f32 %v1887, %v2279
        %v2281 = vpop.f32.mrf.mxu0
        %v2282 = vadd.f32 %v1889, %v2281
        %2283 = vmatprep.mubr.bf16.mxu0 0
        %2284 = vmatmul.mubr.bf16.gmra.mxu0 %v1618
        %v2285 = vpop.f32.mrf.mxu0
        %v2286 = vadd.f32 %v1893, %v2285
        %v2287 = vpop.f32.mrf.mxu0
        %v2288 = vadd.f32 %v1895, %v2287
        %v2289 = vpop.f32.mrf.mxu0
        %v2290 = vadd.f32 %v1897, %v2289
        %v2291 = vpop.f32.mrf.mxu0
        %v2292 = vadd.f32 %v1899, %v2291
        %2293 = vmatprep.mubr.bf16.mxu0 0
        %2294 = vmatmul.mubr.bf16.gmra.mxu0 %v1621
        %v2295 = vpop.f32.mrf.mxu0
        %v2296 = vadd.f32 %v1903, %v2295
        %v2297 = vpop.f32.mrf.mxu0
        %v2298 = vadd.f32 %v1905, %v2297
        %v2299 = vpop.f32.mrf.mxu0
        %v2300 = vadd.f32 %v1907, %v2299
        %v2301 = vpop.f32.mrf.mxu0
        %v2302 = vadd.f32 %v1909, %v2301
        %2303 = vmatprep.mubr.bf16.mxu0 0
        %2304 = vmatmul.mubr.bf16.gmra.mxu0 %v1624
        %v2305 = vpop.f32.mrf.mxu0
        %v2306 = vadd.f32 %v1913, %v2305
        %v2307 = vpop.f32.mrf.mxu0
        %v2308 = vadd.f32 %v1915, %v2307
        %v2309 = vpop.f32.mrf.mxu0
        %v2310 = vadd.f32 %v1917, %v2309
        %v2311 = vpop.f32.mrf.mxu0
        %v2312 = vadd.f32 %v1919, %v2311
        %2313 = vmatprep.mubr.bf16.mxu0 0
        %2314 = vmatmul.mubr.bf16.gmra.mxu0 %v1627
        %v2315 = vpop.f32.mrf.mxu0
        %v2316 = vadd.f32 %v1923, %v2315
        %v2317 = vpop.f32.mrf.mxu0
        %v2318 = vadd.f32 %v1925, %v2317
        %v2319 = vpop.f32.mrf.mxu0
        %v2320 = vadd.f32 %v1927, %v2319
        %v2321 = vpop.f32.mrf.mxu0
        %v2322 = vadd.f32 %v1929, %v2321
        %2323 = vmatprep.mubr.bf16.mxu0 0
        %2324 = vmatmul.mubr.bf16.gmra.mxu0 %v1630
        %v2325 = vpop.f32.mrf.mxu0
        %v2326 = vadd.f32 %v1933, %v2325
        %v2327 = vpop.f32.mrf.mxu0
        %v2328 = vadd.f32 %v1935, %v2327
        %v2329 = vpop.f32.mrf.mxu0
        %v2330 = vadd.f32 %v1937, %v2329
        %v2331 = vpop.f32.mrf.mxu0
        %v2332 = vadd.f32 %v1939, %v2331
        %2333 = vmatprep.mubr.bf16.mxu0 0
        %2334 = vmatmul.mubr.bf16.gmra.mxu0 %v1633
        %v2335 = vpop.f32.mrf.mxu0
        %v2336 = vadd.f32 %v1943, %v2335
        %v2337 = vpop.f32.mrf.mxu0
        %v2338 = vadd.f32 %v1945, %v2337
        %v2339 = vpop.f32.mrf.mxu0
        %v2340 = vadd.f32 %v1947, %v2339
        %v2341 = vpop.f32.mrf.mxu0
        %v2342 = vadd.f32 %v1949, %v2341
        %2343 = vmatprep.mubr.bf16.mxu0 0
        %2344 = vmatmul.mubr.bf16.gmra.mxu0 %v1636
        %v2345 = vpop.f32.mrf.mxu0
        %v2346 = vadd.f32 %v1953, %v2345
        %v2347 = vpop.f32.mrf.mxu0
        %v2348 = vadd.f32 %v1955, %v2347
        %v2349 = vpop.f32.mrf.mxu0
        %v2350 = vadd.f32 %v1957, %v2349
        %v2351 = vpop.f32.mrf.mxu0
        %v2352 = vadd.f32 %v1959, %v2351
        %2353 = vmatprep.mubr.bf16.mxu0 0
        %2354 = vmatmul.mubr.bf16.gmra.mxu0 %v1639
        %v2355 = vpop.f32.mrf.mxu0
        %v2356 = vadd.f32 %v1963, %v2355
        %v2357 = vpop.f32.mrf.mxu0
        %v2358 = vadd.f32 %v1965, %v2357
        %v2359 = vpop.f32.mrf.mxu0
        %v2360 = vadd.f32 %v1967, %v2359
        %v2361 = vpop.f32.mrf.mxu0
        %v2362 = vadd.f32 %v1969, %v2361
        %2363 = vmatprep.mubr.bf16.mxu0 0
        %2364 = vmatmul.mubr.bf16.gmra.mxu0 %v1642
        %v2365 = vpop.f32.mrf.mxu0
        %v2366 = vadd.f32 %v1973, %v2365
        %v2367 = vpop.f32.mrf.mxu0
        %v2368 = vadd.f32 %v1975, %v2367
        %v2369 = vpop.f32.mrf.mxu0
        %v2370 = vadd.f32 %v1977, %v2369
        %v2371 = vpop.f32.mrf.mxu0
        %v2372 = vadd.f32 %v1979, %v2371
        %2373 = vmatprep.mubr.bf16.mxu0 0
        %2374 = vmatmul.mubr.bf16.gmra.mxu0 %v1645
        %v2375 = vpop.f32.mrf.mxu0
        %v2376 = vadd.f32 %v1983, %v2375
        %v2377 = vpop.f32.mrf.mxu0
        %v2378 = vadd.f32 %v1985, %v2377
        %v2379 = vpop.f32.mrf.mxu0
        %v2380 = vadd.f32 %v1987, %v2379
        %v2381 = vpop.f32.mrf.mxu0
        %v2382 = vadd.f32 %v1989, %v2381
        %2383 = vmatprep.mubr.bf16.mxu0 0
        %2384 = vmatmul.mubr.bf16.gmra.mxu0 %v1648
        %v2385 = vpop.f32.mrf.mxu0
        %v2386 = vadd.f32 %v1993, %v2385
        %v2387 = vpop.f32.mrf.mxu0
        %v2388 = vadd.f32 %v1995, %v2387
        %v2389 = vpop.f32.mrf.mxu0
        %v2390 = vadd.f32 %v1997, %v2389
        %v2391 = vpop.f32.mrf.mxu0
        %v2392 = vadd.f32 %v1999, %v2391
        %2393 = vmatprep.mubr.bf16.mxu0 0
        %2394 = vmatmul.mubr.bf16.gmra.mxu0 %v1651
        %v2395 = vpop.f32.mrf.mxu0
        %v2396 = vadd.f32 %v2003, %v2395
        %v2397 = vpop.f32.mrf.mxu0
        %v2398 = vadd.f32 %v2005, %v2397
        %v2399 = vpop.f32.mrf.mxu0
        %v2400 = vadd.f32 %v2007, %v2399
        %v2401 = vpop.f32.mrf.mxu0
        %v2402 = vadd.f32 %v2009, %v2401
        %2403 = vmatprep.mubr.bf16.mxu0 0
        %2404 = vmatmul.mubr.bf16.gmra.mxu0 %v1654
        %v2405 = vpop.f32.mrf.mxu0
        %v2406 = vadd.f32 %v2013, %v2405
        %v2407 = vpop.f32.mrf.mxu0
        %v2408 = vadd.f32 %v2015, %v2407
        %v2409 = vpop.f32.mrf.mxu0
        %v2410 = vadd.f32 %v2017, %v2409
        %v2411 = vpop.f32.mrf.mxu0
        %v2412 = vadd.f32 %v2019, %v2411
        %2413 = vmatprep.mubr.bf16.mxu0 0
        %2414 = vmatmul.mubr.bf16.gmra.mxu0 %v1657
        %v2415 = vpop.f32.mrf.mxu0
        %v2416 = vadd.f32 %v2023, %v2415
        %v2417 = vpop.f32.mrf.mxu0
        %v2418 = vadd.f32 %v2025, %v2417
        %v2419 = vpop.f32.mrf.mxu0
        %v2420 = vadd.f32 %v2027, %v2419
        %v2421 = vpop.f32.mrf.mxu0
        %v2422 = vadd.f32 %v2029, %v2421
        %2423 = vmatprep.mubr.bf16.mxu0 0
        %2424 = vmatmul.mubr.bf16.gmra.mxu0 %v1660
        %v2425 = vpop.f32.mrf.mxu0
        %v2426 = vadd.f32 %v2033, %v2425
        %v2427 = vpop.f32.mrf.mxu0
        %v2428 = vadd.f32 %v2035, %v2427
        %v2429 = vpop.f32.mrf.mxu0
        %v2430 = vadd.f32 %v2037, %v2429
        %v2431 = vpop.f32.mrf.mxu0
        %v2432 = vadd.f32 %v2039, %v2431
        %2433 = vmatprep.mubr.bf16.mxu0 0
        %2434 = vmatmul.mubr.bf16.gmra.mxu0 %v1663
        %v2435 = vpop.f32.mrf.mxu0
        %v2436 = vadd.f32 %v2043, %v2435
        %v2437 = vpop.f32.mrf.mxu0
        %v2438 = vadd.f32 %v2045, %v2437
        %v2439 = vpop.f32.mrf.mxu0
        %v2440 = vadd.f32 %v2047, %v2439
        %v2441 = vpop.f32.mrf.mxu0
        %v2442 = vadd.f32 %v2049, %v2441
        %2443 = vmatprep.mubr.bf16.mxu0 0
        %2444 = vmatmul.mubr.bf16.gmra.mxu0 %v1666
        %v2445 = vpop.f32.mrf.mxu0
        %v2446 = vadd.f32 %v2053, %v2445
        %v2447 = vpop.f32.mrf.mxu0
        %v2448 = vadd.f32 %v2055, %v2447
        %v2449 = vpop.f32.mrf.mxu0
        %v2450 = vadd.f32 %v2057, %v2449
        %v2451 = vpop.f32.mrf.mxu0
        %v2452 = vadd.f32 %v2059, %v2451
        %2453 = vdwg.mxu0
        %2454 = vmatprep.subr.bf16.mxu0 %v1388
        %2455 = vmatpush1.bf16.msra.mxu0 %v1387
        %2456 = vmatprep.subr.bf16.mxu0 %v1382
        %2457 = vmatpush1.bf16.msra.mxu0 %v1381
        %2458 = vmatprep.subr.bf16.mxu0 %v1376
        %2459 = vmatpush1.bf16.msra.mxu0 %v1375
        %2460 = vmatprep.subr.bf16.mxu0 %v1370
        %2461 = vmatpush1.bf16.msra.mxu0 %v1369
        %2462 = vmatprep.subr.bf16.mxu0 %v1364
        %2463 = vmatpush1.bf16.msra.mxu0 %v1363
        %2464 = vmatprep.subr.bf16.mxu0 %v1358
        %2465 = vmatpush1.bf16.msra.mxu0 %v1357
        %2466 = vmatprep.subr.bf16.mxu0 %v1352
        %2467 = vmatpush1.bf16.msra.mxu0 %v1351
        %2468 = vmatprep.subr.bf16.mxu0 %v1346
        %2469 = vmatpush1.bf16.msra.mxu0 %v1345
        %2470 = vmatprep.subr.bf16.mxu0 %v1436
        %2471 = vmatpush2.bf16.msra.mxu0 %v1435
        %2472 = vmatprep.subr.bf16.mxu0 %v1430
        %2473 = vmatpush2.bf16.msra.mxu0 %v1429
        %2474 = vmatprep.subr.bf16.mxu0 %v1424
        %2475 = vmatpush2.bf16.msra.mxu0 %v1423
        %2476 = vmatprep.subr.bf16.mxu0 %v1418
        %2477 = vmatpush2.bf16.msra.mxu0 %v1417
        %2478 = vmatprep.subr.bf16.mxu0 %v1412
        %2479 = vmatpush2.bf16.msra.mxu0 %v1411
        %2480 = vmatprep.subr.bf16.mxu0 %v1406
        %2481 = vmatpush2.bf16.msra.mxu0 %v1405
        %2482 = vmatprep.subr.bf16.mxu0 %v1400
        %2483 = vmatpush2.bf16.msra.mxu0 %v1399
        %2484 = vmatprep.subr.bf16.mxu0 %v1394
        %2485 = vmatpush2.bf16.msra.mxu0 %v1393
        %2486 = vmatprep.mubr.bf16.mxu0 %v772
        %2487 = vmatmul.mubr.bf16.gmra.mxu0 %v771
        %v2488 = vpop.f32.mrf.mxu0
        %v2489 = vadd.f32 %v1000, %v2488
        %v2490 = vpop.f32.mrf.mxu0
        %v2491 = vadd.f32 %v1004, %v2490
        %v2492 = vpop.f32.mrf.mxu0
        %v2493 = vadd.f32 %v1000, %v2492
        %v2494 = vpop.f32.mrf.mxu0
        %v2495 = vadd.f32 %v1004, %v2494
        %2496 = vmatprep.mubr.bf16.mxu0 %v775
        %2497 = vmatmul.mubr.bf16.gmra.mxu0 %v774
        %v2498 = vpop.f32.mrf.mxu0
        %v2499 = vadd.f32 %v1000, %v2498
        %v2500 = vpop.f32.mrf.mxu0
        %v2501 = vadd.f32 %v1004, %v2500
        %v2502 = vpop.f32.mrf.mxu0
        %v2503 = vadd.f32 %v1000, %v2502
        %v2504 = vpop.f32.mrf.mxu0
        %v2505 = vadd.f32 %v1004, %v2504
        %2506 = vmatprep.mubr.bf16.mxu0 %v778
        %2507 = vmatmul.mubr.bf16.gmra.mxu0 %v777
        %v2508 = vpop.f32.mrf.mxu0
        %v2509 = vadd.f32 %v1000, %v2508
        %v2510 = vpop.f32.mrf.mxu0
        %v2511 = vadd.f32 %v1004, %v2510
        %v2512 = vpop.f32.mrf.mxu0
        %v2513 = vadd.f32 %v1000, %v2512
        %v2514 = vpop.f32.mrf.mxu0
        %v2515 = vadd.f32 %v1004, %v2514
        %2516 = vmatprep.mubr.bf16.mxu0 %v781
        %2517 = vmatmul.mubr.bf16.gmra.mxu0 %v780
        %v2518 = vpop.f32.mrf.mxu0
        %v2519 = vadd.f32 %v1000, %v2518
        %v2520 = vpop.f32.mrf.mxu0
        %v2521 = vadd.f32 %v1004, %v2520
        %v2522 = vpop.f32.mrf.mxu0
        %v2523 = vadd.f32 %v1000, %v2522
        %v2524 = vpop.f32.mrf.mxu0
        %v2525 = vadd.f32 %v1004, %v2524
        %2526 = vmatprep.mubr.bf16.mxu0 %v784
        %2527 = vmatmul.mubr.bf16.gmra.mxu0 %v783
        %v2528 = vpop.f32.mrf.mxu0
        %v2529 = vadd.f32 %v1000, %v2528
        %v2530 = vpop.f32.mrf.mxu0
        %v2531 = vadd.f32 %v1004, %v2530
        %v2532 = vpop.f32.mrf.mxu0
        %v2533 = vadd.f32 %v1000, %v2532
        %v2534 = vpop.f32.mrf.mxu0
        %v2535 = vadd.f32 %v1004, %v2534
        %2536 = vmatprep.mubr.bf16.mxu0 %v787
        %2537 = vmatmul.mubr.bf16.gmra.mxu0 %v786
        %v2538 = vpop.f32.mrf.mxu0
        %v2539 = vadd.f32 %v1000, %v2538
        %v2540 = vpop.f32.mrf.mxu0
        %v2541 = vadd.f32 %v1004, %v2540
        %v2542 = vpop.f32.mrf.mxu0
        %v2543 = vadd.f32 %v1000, %v2542
        %v2544 = vpop.f32.mrf.mxu0
        %v2545 = vadd.f32 %v1004, %v2544
        %2546 = vmatprep.mubr.bf16.mxu0 %v790
        %2547 = vmatmul.mubr.bf16.gmra.mxu0 %v789
        %v2548 = vpop.f32.mrf.mxu0
        %v2549 = vadd.f32 %v1000, %v2548
        %v2550 = vpop.f32.mrf.mxu0
        %v2551 = vadd.f32 %v1004, %v2550
        %v2552 = vpop.f32.mrf.mxu0
        %v2553 = vadd.f32 %v1000, %v2552
        %v2554 = vpop.f32.mrf.mxu0
        %v2555 = vadd.f32 %v1004, %v2554
        %2556 = vmatprep.mubr.bf16.mxu0 %v793
        %2557 = vmatmul.mubr.bf16.gmra.mxu0 %v792
        %v2558 = vpop.f32.mrf.mxu0
        %v2559 = vadd.f32 %v1000, %v2558
        %v2560 = vpop.f32.mrf.mxu0
        %v2561 = vadd.f32 %v1004, %v2560
        %v2562 = vpop.f32.mrf.mxu0
        %v2563 = vadd.f32 %v1000, %v2562
        %v2564 = vpop.f32.mrf.mxu0
        %v2565 = vadd.f32 %v1004, %v2564
        %2566 = vmatprep.mubr.bf16.mxu0 %v796
        %2567 = vmatmul.mubr.bf16.gmra.mxu0 %v795
        %v2568 = vpop.f32.mrf.mxu0
        %v2569 = vadd.f32 %v1000, %v2568
        %v2570 = vpop.f32.mrf.mxu0
        %v2571 = vadd.f32 %v1004, %v2570
        %v2572 = vpop.f32.mrf.mxu0
        %v2573 = vadd.f32 %v1000, %v2572
        %v2574 = vpop.f32.mrf.mxu0
        %v2575 = vadd.f32 %v1004, %v2574
        %2576 = vmatprep.mubr.bf16.mxu0 %v799
        %2577 = vmatmul.mubr.bf16.gmra.mxu0 %v798
        %v2578 = vpop.f32.mrf.mxu0
        %v2579 = vadd.f32 %v1000, %v2578
        %v2580 = vpop.f32.mrf.mxu0
        %v2581 = vadd.f32 %v1004, %v2580
        %v2582 = vpop.f32.mrf.mxu0
        %v2583 = vadd.f32 %v1000, %v2582
        %v2584 = vpop.f32.mrf.mxu0
        %v2585 = vadd.f32 %v1004, %v2584
        %2586 = vmatprep.mubr.bf16.mxu0 %v802
        %2587 = vmatmul.mubr.bf16.gmra.mxu0 %v801
        %v2588 = vpop.f32.mrf.mxu0
        %v2589 = vadd.f32 %v1000, %v2588
        %v2590 = vpop.f32.mrf.mxu0
        %v2591 = vadd.f32 %v1004, %v2590
        %v2592 = vpop.f32.mrf.mxu0
        %v2593 = vadd.f32 %v1000, %v2592
        %v2594 = vpop.f32.mrf.mxu0
        %v2595 = vadd.f32 %v1004, %v2594
        %2596 = vmatprep.mubr.bf16.mxu0 %v805
        %2597 = vmatmul.mubr.bf16.gmra.mxu0 %v804
        %v2598 = vpop.f32.mrf.mxu0
        %v2599 = vadd.f32 %v1000, %v2598
        %v2600 = vpop.f32.mrf.mxu0
        %v2601 = vadd.f32 %v1004, %v2600
        %v2602 = vpop.f32.mrf.mxu0
        %v2603 = vadd.f32 %v1000, %v2602
        %v2604 = vpop.f32.mrf.mxu0
        %v2605 = vadd.f32 %v1004, %v2604
        %2606 = vmatprep.mubr.bf16.mxu0 %v808
        %2607 = vmatmul.mubr.bf16.gmra.mxu0 %v807
        %v2608 = vpop.f32.mrf.mxu0
        %v2609 = vadd.f32 %v1000, %v2608
        %v2610 = vpop.f32.mrf.mxu0
        %v2611 = vadd.f32 %v1004, %v2610
        %v2612 = vpop.f32.mrf.mxu0
        %v2613 = vadd.f32 %v1000, %v2612
        %v2614 = vpop.f32.mrf.mxu0
        %v2615 = vadd.f32 %v1004, %v2614
        %2616 = vmatprep.mubr.bf16.mxu0 %v811
        %2617 = vmatmul.mubr.bf16.gmra.mxu0 %v810
        %v2618 = vpop.f32.mrf.mxu0
        %v2619 = vadd.f32 %v1000, %v2618
        %v2620 = vpop.f32.mrf.mxu0
        %v2621 = vadd.f32 %v1004, %v2620
        %v2622 = vpop.f32.mrf.mxu0
        %v2623 = vadd.f32 %v1000, %v2622
        %v2624 = vpop.f32.mrf.mxu0
        %v2625 = vadd.f32 %v1004, %v2624
        %2626 = vmatprep.mubr.bf16.mxu0 %v814
        %2627 = vmatmul.mubr.bf16.gmra.mxu0 %v813
        %v2628 = vpop.f32.mrf.mxu0
        %v2629 = vadd.f32 %v1000, %v2628
        %v2630 = vpop.f32.mrf.mxu0
        %v2631 = vadd.f32 %v1004, %v2630
        %v2632 = vpop.f32.mrf.mxu0
        %v2633 = vadd.f32 %v1000, %v2632
        %v2634 = vpop.f32.mrf.mxu0
        %v2635 = vadd.f32 %v1004, %v2634
        %2636 = vmatprep.mubr.bf16.mxu0 %v817
        %2637 = vmatmul.mubr.bf16.gmra.mxu0 %v816
        %v2638 = vpop.f32.mrf.mxu0
        %v2639 = vadd.f32 %v1000, %v2638
        %v2640 = vpop.f32.mrf.mxu0
        %v2641 = vadd.f32 %v1004, %v2640
        %v2642 = vpop.f32.mrf.mxu0
        %v2643 = vadd.f32 %v1000, %v2642
        %v2644 = vpop.f32.mrf.mxu0
        %v2645 = vadd.f32 %v1004, %v2644
        %2646 = vmatprep.mubr.bf16.mxu0 %v820
        %2647 = vmatmul.mubr.bf16.gmra.mxu0 %v819
        %v2648 = vpop.f32.mrf.mxu0
        %v2649 = vadd.f32 %v1000, %v2648
        %v2650 = vpop.f32.mrf.mxu0
        %v2651 = vadd.f32 %v1004, %v2650
        %v2652 = vpop.f32.mrf.mxu0
        %v2653 = vadd.f32 %v1000, %v2652
        %v2654 = vpop.f32.mrf.mxu0
        %v2655 = vadd.f32 %v1004, %v2654
        %2656 = vmatprep.mubr.bf16.mxu0 %v823
        %2657 = vmatmul.mubr.bf16.gmra.mxu0 %v822
        %v2658 = vpop.f32.mrf.mxu0
        %v2659 = vadd.f32 %v1000, %v2658
        %v2660 = vpop.f32.mrf.mxu0
        %v2661 = vadd.f32 %v1004, %v2660
        %v2662 = vpop.f32.mrf.mxu0
        %v2663 = vadd.f32 %v1000, %v2662
        %v2664 = vpop.f32.mrf.mxu0
        %v2665 = vadd.f32 %v1004, %v2664
        %2666 = vmatprep.mubr.bf16.mxu0 %v826
        %2667 = vmatmul.mubr.bf16.gmra.mxu0 %v825
        %v2668 = vpop.f32.mrf.mxu0
        %v2669 = vadd.f32 %v1000, %v2668
        %v2670 = vpop.f32.mrf.mxu0
        %v2671 = vadd.f32 %v1004, %v2670
        %v2672 = vpop.f32.mrf.mxu0
        %v2673 = vadd.f32 %v1000, %v2672
        %v2674 = vpop.f32.mrf.mxu0
        %v2675 = vadd.f32 %v1004, %v2674
        %2676 = vmatprep.mubr.bf16.mxu0 %v829
        %2677 = vmatmul.mubr.bf16.gmra.mxu0 %v828
        %v2678 = vpop.f32.mrf.mxu0
        %v2679 = vadd.f32 %v1000, %v2678
        %v2680 = vpop.f32.mrf.mxu0
        %v2681 = vadd.f32 %v1004, %v2680
        %v2682 = vpop.f32.mrf.mxu0
        %v2683 = vadd.f32 %v1000, %v2682
        %v2684 = vpop.f32.mrf.mxu0
        %v2685 = vadd.f32 %v1004, %v2684
        %2686 = vmatprep.mubr.bf16.mxu0 %v832
        %2687 = vmatmul.mubr.bf16.gmra.mxu0 %v831
        %v2688 = vpop.f32.mrf.mxu0
        %v2689 = vadd.f32 %v1000, %v2688
        %v2690 = vpop.f32.mrf.mxu0
        %v2691 = vadd.f32 %v1004, %v2690
        %v2692 = vpop.f32.mrf.mxu0
        %v2693 = vadd.f32 %v1000, %v2692
        %v2694 = vpop.f32.mrf.mxu0
        %v2695 = vadd.f32 %v1004, %v2694
        %2696 = vmatprep.mubr.bf16.mxu0 %v835
        %2697 = vmatmul.mubr.bf16.gmra.mxu0 %v834
        %v2698 = vpop.f32.mrf.mxu0
        %v2699 = vadd.f32 %v1000, %v2698
        %v2700 = vpop.f32.mrf.mxu0
        %v2701 = vadd.f32 %v1004, %v2700
        %v2702 = vpop.f32.mrf.mxu0
        %v2703 = vadd.f32 %v1000, %v2702
        %v2704 = vpop.f32.mrf.mxu0
        %v2705 = vadd.f32 %v1004, %v2704
        %2706 = vmatprep.mubr.bf16.mxu0 %v838
        %2707 = vmatmul.mubr.bf16.gmra.mxu0 %v837
        %v2708 = vpop.f32.mrf.mxu0
        %v2709 = vadd.f32 %v1000, %v2708
        %v2710 = vpop.f32.mrf.mxu0
        %v2711 = vadd.f32 %v1004, %v2710
        %v2712 = vpop.f32.mrf.mxu0
        %v2713 = vadd.f32 %v1000, %v2712
        %v2714 = vpop.f32.mrf.mxu0
        %v2715 = vadd.f32 %v1004, %v2714
        %2716 = vmatprep.mubr.bf16.mxu0 %v841
        %2717 = vmatmul.mubr.bf16.gmra.mxu0 %v840
        %v2718 = vpop.f32.mrf.mxu0
        %v2719 = vadd.f32 %v1000, %v2718
        %v2720 = vpop.f32.mrf.mxu0
        %v2721 = vadd.f32 %v1004, %v2720
        %v2722 = vpop.f32.mrf.mxu0
        %v2723 = vadd.f32 %v1000, %v2722
        %v2724 = vpop.f32.mrf.mxu0
        %v2725 = vadd.f32 %v1004, %v2724
        %2726 = vmatprep.mubr.bf16.mxu0 %v844
        %2727 = vmatmul.mubr.bf16.gmra.mxu0 %v843
        %v2728 = vpop.f32.mrf.mxu0
        %v2729 = vadd.f32 %v1000, %v2728
        %v2730 = vpop.f32.mrf.mxu0
        %v2731 = vadd.f32 %v1004, %v2730
        %v2732 = vpop.f32.mrf.mxu0
        %v2733 = vadd.f32 %v1000, %v2732
        %v2734 = vpop.f32.mrf.mxu0
        %v2735 = vadd.f32 %v1004, %v2734
        %2736 = vmatprep.mubr.bf16.mxu0 %v847
        %2737 = vmatmul.mubr.bf16.gmra.mxu0 %v846
        %v2738 = vpop.f32.mrf.mxu0
        %v2739 = vadd.f32 %v1000, %v2738
        %v2740 = vpop.f32.mrf.mxu0
        %v2741 = vadd.f32 %v1004, %v2740
        %v2742 = vpop.f32.mrf.mxu0
        %v2743 = vadd.f32 %v1000, %v2742
        %v2744 = vpop.f32.mrf.mxu0
        %v2745 = vadd.f32 %v1004, %v2744
        %2746 = vmatprep.mubr.bf16.mxu0 %v850
        %2747 = vmatmul.mubr.bf16.gmra.mxu0 %v849
        %v2748 = vpop.f32.mrf.mxu0
        %v2749 = vadd.f32 %v1000, %v2748
        %v2750 = vpop.f32.mrf.mxu0
        %v2751 = vadd.f32 %v1004, %v2750
        %v2752 = vpop.f32.mrf.mxu0
        %v2753 = vadd.f32 %v1000, %v2752
        %v2754 = vpop.f32.mrf.mxu0
        %v2755 = vadd.f32 %v1004, %v2754
        %2756 = vmatprep.mubr.bf16.mxu0 %v853
        %2757 = vmatmul.mubr.bf16.gmra.mxu0 %v852
        %v2758 = vpop.f32.mrf.mxu0
        %v2759 = vadd.f32 %v1000, %v2758
        %v2760 = vpop.f32.mrf.mxu0
        %v2761 = vadd.f32 %v1004, %v2760
        %v2762 = vpop.f32.mrf.mxu0
        %v2763 = vadd.f32 %v1000, %v2762
        %v2764 = vpop.f32.mrf.mxu0
        %v2765 = vadd.f32 %v1004, %v2764
        %2766 = vmatprep.mubr.bf16.mxu0 %v856
        %2767 = vmatmul.mubr.bf16.gmra.mxu0 %v855
        %v2768 = vpop.f32.mrf.mxu0
        %v2769 = vadd.f32 %v1000, %v2768
        %v2770 = vpop.f32.mrf.mxu0
        %v2771 = vadd.f32 %v1004, %v2770
        %v2772 = vpop.f32.mrf.mxu0
        %v2773 = vadd.f32 %v1000, %v2772
        %v2774 = vpop.f32.mrf.mxu0
        %v2775 = vadd.f32 %v1004, %v2774
        %2776 = vmatprep.mubr.bf16.mxu0 %v859
        %2777 = vmatmul.mubr.bf16.gmra.mxu0 %v858
        %v2778 = vpop.f32.mrf.mxu0
        %v2779 = vadd.f32 %v1000, %v2778
        %v2780 = vpop.f32.mrf.mxu0
        %v2781 = vadd.f32 %v1004, %v2780
        %v2782 = vpop.f32.mrf.mxu0
        %v2783 = vadd.f32 %v1000, %v2782
        %v2784 = vpop.f32.mrf.mxu0
        %v2785 = vadd.f32 %v1004, %v2784
        %2786 = vmatprep.mubr.bf16.mxu0 %v862
        %2787 = vmatmul.mubr.bf16.gmra.mxu0 %v861
        %v2788 = vpop.f32.mrf.mxu0
        %v2789 = vadd.f32 %v1000, %v2788
        %v2790 = vpop.f32.mrf.mxu0
        %v2791 = vadd.f32 %v1004, %v2790
        %v2792 = vpop.f32.mrf.mxu0
        %v2793 = vadd.f32 %v1000, %v2792
        %v2794 = vpop.f32.mrf.mxu0
        %v2795 = vadd.f32 %v1004, %v2794
        %2796 = vmatprep.mubr.bf16.mxu0 %v865
        %2797 = vmatmul.mubr.bf16.gmra.mxu0 %v864
        %v2798 = vpop.f32.mrf.mxu0
        %v2799 = vadd.f32 %v1000, %v2798
        %v2800 = vpop.f32.mrf.mxu0
        %v2801 = vadd.f32 %v1004, %v2800
        %v2802 = vpop.f32.mrf.mxu0
        %v2803 = vadd.f32 %v1000, %v2802
        %v2804 = vpop.f32.mrf.mxu0
        %v2805 = vadd.f32 %v1004, %v2804
        %2806 = vmatprep.mubr.bf16.mxu0 %v868
        %2807 = vmatmul.mubr.bf16.gmra.mxu0 %v867
        %v2808 = vpop.f32.mrf.mxu0
        %v2809 = vadd.f32 %v1000, %v2808
        %v2810 = vpop.f32.mrf.mxu0
        %v2811 = vadd.f32 %v1004, %v2810
        %v2812 = vpop.f32.mrf.mxu0
        %v2813 = vadd.f32 %v1000, %v2812
        %v2814 = vpop.f32.mrf.mxu0
        %v2815 = vadd.f32 %v1004, %v2814
        %2816 = vmatprep.mubr.bf16.mxu0 %v871
        %2817 = vmatmul.mubr.bf16.gmra.mxu0 %v870
        %v2818 = vpop.f32.mrf.mxu0
        %v2819 = vadd.f32 %v1000, %v2818
        %v2820 = vpop.f32.mrf.mxu0
        %v2821 = vadd.f32 %v1004, %v2820
        %v2822 = vpop.f32.mrf.mxu0
        %v2823 = vadd.f32 %v1000, %v2822
        %v2824 = vpop.f32.mrf.mxu0
        %v2825 = vadd.f32 %v1004, %v2824
        %2826 = vmatprep.mubr.bf16.mxu0 %v874
        %2827 = vmatmul.mubr.bf16.gmra.mxu0 %v873
        %v2828 = vpop.f32.mrf.mxu0
        %v2829 = vadd.f32 %v1000, %v2828
        %v2830 = vpop.f32.mrf.mxu0
        %v2831 = vadd.f32 %v1004, %v2830
        %v2832 = vpop.f32.mrf.mxu0
        %v2833 = vadd.f32 %v1000, %v2832
        %v2834 = vpop.f32.mrf.mxu0
        %v2835 = vadd.f32 %v1004, %v2834
        %2836 = vmatprep.mubr.bf16.mxu0 %v877
        %2837 = vmatmul.mubr.bf16.gmra.mxu0 %v876
        %v2838 = vpop.f32.mrf.mxu0
        %v2839 = vadd.f32 %v1000, %v2838
        %v2840 = vpop.f32.mrf.mxu0
        %v2841 = vadd.f32 %v1004, %v2840
        %v2842 = vpop.f32.mrf.mxu0
        %v2843 = vadd.f32 %v1000, %v2842
        %v2844 = vpop.f32.mrf.mxu0
        %v2845 = vadd.f32 %v1004, %v2844
        %2846 = vdwg.mxu0
        %2847 = vmatprep.subr.bf16.mxu0 0
        %2848 = vmatpush1.bf16.msra.mxu0 0
        %2849 = vmatprep.subr.bf16.mxu0 0
        %2850 = vmatpush1.bf16.msra.mxu0 0
        %2851 = vmatprep.subr.bf16.mxu0 0
        %2852 = vmatpush1.bf16.msra.mxu0 0
        %2853 = vmatprep.subr.bf16.mxu0 0
        %2854 = vmatpush1.bf16.msra.mxu0 0
        %2855 = vmatprep.subr.bf16.mxu0 0
        %2856 = vmatpush1.bf16.msra.mxu0 0
        %2857 = vmatprep.subr.bf16.mxu0 0
        %2858 = vmatpush1.bf16.msra.mxu0 0
        %2859 = vmatprep.subr.bf16.mxu0 %v1448
        %2860 = vmatpush1.bf16.msra.mxu0 %v1447
        %2861 = vmatprep.subr.bf16.mxu0 %v1442
        %2862 = vmatpush1.bf16.msra.mxu0 %v1441
        %2863 = vmatprep.subr.bf16.mxu0 0
        %2864 = vmatpush2.bf16.msra.mxu0 0
        %2865 = vmatprep.subr.bf16.mxu0 0
        %2866 = vmatpush2.bf16.msra.mxu0 0
        %2867 = vmatprep.subr.bf16.mxu0 0
        %2868 = vmatpush2.bf16.msra.mxu0 0
        %2869 = vmatprep.subr.bf16.mxu0 0
        %2870 = vmatpush2.bf16.msra.mxu0 0
        %2871 = vmatprep.subr.bf16.mxu0 0
        %2872 = vmatpush2.bf16.msra.mxu0 0
        %2873 = vmatprep.subr.bf16.mxu0 0
        %2874 = vmatpush2.bf16.msra.mxu0 0
        %2875 = vmatprep.subr.bf16.mxu0 0
        %2876 = vmatpush2.bf16.msra.mxu0 0
        %2877 = vmatprep.subr.bf16.mxu0 0
        %2878 = vmatpush2.bf16.msra.mxu0 0
        %2879 = vmatprep.mubr.bf16.mxu0 0
        %2880 = vmatmul.mubr.bf16.gmra.mxu0 %v1561
        %v2881 = vpop.f32.mrf.mxu0
        %v2882 = vadd.f32 %v2489, %v2881
        %v2883 = vpop.f32.mrf.mxu0
        %v2884 = vadd.f32 %v2491, %v2883
        %v2885 = vpop.f32.mrf.mxu0
        %v2886 = vadd.f32 %v2493, %v2885
        %v2887 = vpop.f32.mrf.mxu0
        %v2888 = vadd.f32 %v2495, %v2887
        %2889 = vmatprep.mubr.bf16.mxu0 0
        %2890 = vmatmul.mubr.bf16.gmra.mxu0 %v1564
        %v2891 = vpop.f32.mrf.mxu0
        %v2892 = vadd.f32 %v2499, %v2891
        %v2893 = vpop.f32.mrf.mxu0
        %v2894 = vadd.f32 %v2501, %v2893
        %v2895 = vpop.f32.mrf.mxu0
        %v2896 = vadd.f32 %v2503, %v2895
        %v2897 = vpop.f32.mrf.mxu0
        %v2898 = vadd.f32 %v2505, %v2897
        %2899 = vmatprep.mubr.bf16.mxu0 0
        %2900 = vmatmul.mubr.bf16.gmra.mxu0 %v1567
        %v2901 = vpop.f32.mrf.mxu0
        %v2902 = vadd.f32 %v2509, %v2901
        %v2903 = vpop.f32.mrf.mxu0
        %v2904 = vadd.f32 %v2511, %v2903
        %v2905 = vpop.f32.mrf.mxu0
        %v2906 = vadd.f32 %v2513, %v2905
        %v2907 = vpop.f32.mrf.mxu0
        %v2908 = vadd.f32 %v2515, %v2907
        %2909 = vmatprep.mubr.bf16.mxu0 0
        %2910 = vmatmul.mubr.bf16.gmra.mxu0 %v1570
        %v2911 = vpop.f32.mrf.mxu0
        %v2912 = vadd.f32 %v2519, %v2911
        %v2913 = vpop.f32.mrf.mxu0
        %v2914 = vadd.f32 %v2521, %v2913
        %v2915 = vpop.f32.mrf.mxu0
        %v2916 = vadd.f32 %v2523, %v2915
        %v2917 = vpop.f32.mrf.mxu0
        %v2918 = vadd.f32 %v2525, %v2917
        %2919 = vmatprep.mubr.bf16.mxu0 0
        %2920 = vmatmul.mubr.bf16.gmra.mxu0 %v1573
        %v2921 = vpop.f32.mrf.mxu0
        %v2922 = vadd.f32 %v2529, %v2921
        %v2923 = vpop.f32.mrf.mxu0
        %v2924 = vadd.f32 %v2531, %v2923
        %v2925 = vpop.f32.mrf.mxu0
        %v2926 = vadd.f32 %v2533, %v2925
        %v2927 = vpop.f32.mrf.mxu0
        %v2928 = vadd.f32 %v2535, %v2927
        %2929 = vmatprep.mubr.bf16.mxu0 0
        %2930 = vmatmul.mubr.bf16.gmra.mxu0 %v1576
        %v2931 = vpop.f32.mrf.mxu0
        %v2932 = vadd.f32 %v2539, %v2931
        %v2933 = vpop.f32.mrf.mxu0
        %v2934 = vadd.f32 %v2541, %v2933
        %v2935 = vpop.f32.mrf.mxu0
        %v2936 = vadd.f32 %v2543, %v2935
        %v2937 = vpop.f32.mrf.mxu0
        %v2938 = vadd.f32 %v2545, %v2937
        %2939 = vmatprep.mubr.bf16.mxu0 0
        %2940 = vmatmul.mubr.bf16.gmra.mxu0 %v1579
        %v2941 = vpop.f32.mrf.mxu0
        %v2942 = vadd.f32 %v2549, %v2941
        %v2943 = vpop.f32.mrf.mxu0
        %v2944 = vadd.f32 %v2551, %v2943
        %v2945 = vpop.f32.mrf.mxu0
        %v2946 = vadd.f32 %v2553, %v2945
        %v2947 = vpop.f32.mrf.mxu0
        %v2948 = vadd.f32 %v2555, %v2947
        %2949 = vmatprep.mubr.bf16.mxu0 0
        %2950 = vmatmul.mubr.bf16.gmra.mxu0 %v1582
        %v2951 = vpop.f32.mrf.mxu0
        %v2952 = vadd.f32 %v2559, %v2951
        %v2953 = vpop.f32.mrf.mxu0
        %v2954 = vadd.f32 %v2561, %v2953
        %v2955 = vpop.f32.mrf.mxu0
        %v2956 = vadd.f32 %v2563, %v2955
        %v2957 = vpop.f32.mrf.mxu0
        %v2958 = vadd.f32 %v2565, %v2957
        %2959 = vmatprep.mubr.bf16.mxu0 0
        %2960 = vmatmul.mubr.bf16.gmra.mxu0 %v1585
        %v2961 = vpop.f32.mrf.mxu0
        %v2962 = vadd.f32 %v2569, %v2961
        %v2963 = vpop.f32.mrf.mxu0
        %v2964 = vadd.f32 %v2571, %v2963
        %v2965 = vpop.f32.mrf.mxu0
        %v2966 = vadd.f32 %v2573, %v2965
        %v2967 = vpop.f32.mrf.mxu0
        %v2968 = vadd.f32 %v2575, %v2967
        %2969 = vmatprep.mubr.bf16.mxu0 0
        %2970 = vmatmul.mubr.bf16.gmra.mxu0 %v1588
        %v2971 = vpop.f32.mrf.mxu0
        %v2972 = vadd.f32 %v2579, %v2971
        %v2973 = vpop.f32.mrf.mxu0
        %v2974 = vadd.f32 %v2581, %v2973
        %v2975 = vpop.f32.mrf.mxu0
        %v2976 = vadd.f32 %v2583, %v2975
        %v2977 = vpop.f32.mrf.mxu0
        %v2978 = vadd.f32 %v2585, %v2977
        %2979 = vmatprep.mubr.bf16.mxu0 0
        %2980 = vmatmul.mubr.bf16.gmra.mxu0 %v1591
        %v2981 = vpop.f32.mrf.mxu0
        %v2982 = vadd.f32 %v2589, %v2981
        %v2983 = vpop.f32.mrf.mxu0
        %v2984 = vadd.f32 %v2591, %v2983
        %v2985 = vpop.f32.mrf.mxu0
        %v2986 = vadd.f32 %v2593, %v2985
        %v2987 = vpop.f32.mrf.mxu0
        %v2988 = vadd.f32 %v2595, %v2987
        %2989 = vmatprep.mubr.bf16.mxu0 0
        %2990 = vmatmul.mubr.bf16.gmra.mxu0 %v1594
        %v2991 = vpop.f32.mrf.mxu0
        %v2992 = vadd.f32 %v2599, %v2991
        %v2993 = vpop.f32.mrf.mxu0
        %v2994 = vadd.f32 %v2601, %v2993
        %v2995 = vpop.f32.mrf.mxu0
        %v2996 = vadd.f32 %v2603, %v2995
        %v2997 = vpop.f32.mrf.mxu0
        %v2998 = vadd.f32 %v2605, %v2997
        %2999 = vmatprep.mubr.bf16.mxu0 0
        %3000 = vmatmul.mubr.bf16.gmra.mxu0 %v1597
        %v3001 = vpop.f32.mrf.mxu0
        %v3002 = vadd.f32 %v2609, %v3001
        %v3003 = vpop.f32.mrf.mxu0
        %v3004 = vadd.f32 %v2611, %v3003
        %v3005 = vpop.f32.mrf.mxu0
        %v3006 = vadd.f32 %v2613, %v3005
        %v3007 = vpop.f32.mrf.mxu0
        %v3008 = vadd.f32 %v2615, %v3007
        %3009 = vmatprep.mubr.bf16.mxu0 0
        %3010 = vmatmul.mubr.bf16.gmra.mxu0 %v1600
        %v3011 = vpop.f32.mrf.mxu0
        %v3012 = vadd.f32 %v2619, %v3011
        %v3013 = vpop.f32.mrf.mxu0
        %v3014 = vadd.f32 %v2621, %v3013
        %v3015 = vpop.f32.mrf.mxu0
        %v3016 = vadd.f32 %v2623, %v3015
        %v3017 = vpop.f32.mrf.mxu0
        %v3018 = vadd.f32 %v2625, %v3017
        %3019 = vmatprep.mubr.bf16.mxu0 0
        %3020 = vmatmul.mubr.bf16.gmra.mxu0 %v1603
        %v3021 = vpop.f32.mrf.mxu0
        %v3022 = vadd.f32 %v2629, %v3021
        %v3023 = vpop.f32.mrf.mxu0
        %v3024 = vadd.f32 %v2631, %v3023
        %v3025 = vpop.f32.mrf.mxu0
        %v3026 = vadd.f32 %v2633, %v3025
        %v3027 = vpop.f32.mrf.mxu0
        %v3028 = vadd.f32 %v2635, %v3027
        %3029 = vmatprep.mubr.bf16.mxu0 0
        %3030 = vmatmul.mubr.bf16.gmra.mxu0 %v1606
        %v3031 = vpop.f32.mrf.mxu0
        %v3032 = vadd.f32 %v2639, %v3031
        %v3033 = vpop.f32.mrf.mxu0
        %v3034 = vadd.f32 %v2641, %v3033
        %v3035 = vpop.f32.mrf.mxu0
        %v3036 = vadd.f32 %v2643, %v3035
        %v3037 = vpop.f32.mrf.mxu0
        %v3038 = vadd.f32 %v2645, %v3037
        %3039 = vmatprep.mubr.bf16.mxu0 0
        %3040 = vmatmul.mubr.bf16.gmra.mxu0 %v1609
        %v3041 = vpop.f32.mrf.mxu0
        %v3042 = vadd.f32 %v2649, %v3041
        %v3043 = vpop.f32.mrf.mxu0
        %v3044 = vadd.f32 %v2651, %v3043
        %v3045 = vpop.f32.mrf.mxu0
        %v3046 = vadd.f32 %v2653, %v3045
        %v3047 = vpop.f32.mrf.mxu0
        %v3048 = vadd.f32 %v2655, %v3047
        %3049 = vmatprep.mubr.bf16.mxu0 0
        %3050 = vmatmul.mubr.bf16.gmra.mxu0 %v1612
        %v3051 = vpop.f32.mrf.mxu0
        %v3052 = vadd.f32 %v2659, %v3051
        %v3053 = vpop.f32.mrf.mxu0
        %v3054 = vadd.f32 %v2661, %v3053
        %v3055 = vpop.f32.mrf.mxu0
        %v3056 = vadd.f32 %v2663, %v3055
        %v3057 = vpop.f32.mrf.mxu0
        %v3058 = vadd.f32 %v2665, %v3057
        %3059 = vmatprep.mubr.bf16.mxu0 0
        %3060 = vmatmul.mubr.bf16.gmra.mxu0 %v1615
        %v3061 = vpop.f32.mrf.mxu0
        %v3062 = vadd.f32 %v2669, %v3061
        %v3063 = vpop.f32.mrf.mxu0
        %v3064 = vadd.f32 %v2671, %v3063
        %v3065 = vpop.f32.mrf.mxu0
        %v3066 = vadd.f32 %v2673, %v3065
        %v3067 = vpop.f32.mrf.mxu0
        %v3068 = vadd.f32 %v2675, %v3067
        %3069 = vmatprep.mubr.bf16.mxu0 0
        %3070 = vmatmul.mubr.bf16.gmra.mxu0 %v1618
        %v3071 = vpop.f32.mrf.mxu0
        %v3072 = vadd.f32 %v2679, %v3071
        %v3073 = vpop.f32.mrf.mxu0
        %v3074 = vadd.f32 %v2681, %v3073
        %v3075 = vpop.f32.mrf.mxu0
        %v3076 = vadd.f32 %v2683, %v3075
        %v3077 = vpop.f32.mrf.mxu0
        %v3078 = vadd.f32 %v2685, %v3077
        %3079 = vmatprep.mubr.bf16.mxu0 0
        %3080 = vmatmul.mubr.bf16.gmra.mxu0 %v1621
        %v3081 = vpop.f32.mrf.mxu0
        %v3082 = vadd.f32 %v2689, %v3081
        %v3083 = vpop.f32.mrf.mxu0
        %v3084 = vadd.f32 %v2691, %v3083
        %v3085 = vpop.f32.mrf.mxu0
        %v3086 = vadd.f32 %v2693, %v3085
        %v3087 = vpop.f32.mrf.mxu0
        %v3088 = vadd.f32 %v2695, %v3087
        %3089 = vmatprep.mubr.bf16.mxu0 0
        %3090 = vmatmul.mubr.bf16.gmra.mxu0 %v1624
        %v3091 = vpop.f32.mrf.mxu0
        %v3092 = vadd.f32 %v2699, %v3091
        %v3093 = vpop.f32.mrf.mxu0
        %v3094 = vadd.f32 %v2701, %v3093
        %v3095 = vpop.f32.mrf.mxu0
        %v3096 = vadd.f32 %v2703, %v3095
        %v3097 = vpop.f32.mrf.mxu0
        %v3098 = vadd.f32 %v2705, %v3097
        %3099 = vmatprep.mubr.bf16.mxu0 0
        %3100 = vmatmul.mubr.bf16.gmra.mxu0 %v1627
        %v3101 = vpop.f32.mrf.mxu0
        %v3102 = vadd.f32 %v2709, %v3101
        %v3103 = vpop.f32.mrf.mxu0
        %v3104 = vadd.f32 %v2711, %v3103
        %v3105 = vpop.f32.mrf.mxu0
        %v3106 = vadd.f32 %v2713, %v3105
        %v3107 = vpop.f32.mrf.mxu0
        %v3108 = vadd.f32 %v2715, %v3107
        %3109 = vmatprep.mubr.bf16.mxu0 0
        %3110 = vmatmul.mubr.bf16.gmra.mxu0 %v1630
        %v3111 = vpop.f32.mrf.mxu0
        %v3112 = vadd.f32 %v2719, %v3111
        %v3113 = vpop.f32.mrf.mxu0
        %v3114 = vadd.f32 %v2721, %v3113
        %v3115 = vpop.f32.mrf.mxu0
        %v3116 = vadd.f32 %v2723, %v3115
        %v3117 = vpop.f32.mrf.mxu0
        %v3118 = vadd.f32 %v2725, %v3117
        %3119 = vmatprep.mubr.bf16.mxu0 0
        %3120 = vmatmul.mubr.bf16.gmra.mxu0 %v1633
        %v3121 = vpop.f32.mrf.mxu0
        %v3122 = vadd.f32 %v2729, %v3121
        %v3123 = vpop.f32.mrf.mxu0
        %v3124 = vadd.f32 %v2731, %v3123
        %v3125 = vpop.f32.mrf.mxu0
        %v3126 = vadd.f32 %v2733, %v3125
        %v3127 = vpop.f32.mrf.mxu0
        %v3128 = vadd.f32 %v2735, %v3127
        %3129 = vmatprep.mubr.bf16.mxu0 0
        %3130 = vmatmul.mubr.bf16.gmra.mxu0 %v1636
        %v3131 = vpop.f32.mrf.mxu0
        %v3132 = vadd.f32 %v2739, %v3131
        %v3133 = vpop.f32.mrf.mxu0
        %v3134 = vadd.f32 %v2741, %v3133
        %v3135 = vpop.f32.mrf.mxu0
        %v3136 = vadd.f32 %v2743, %v3135
        %v3137 = vpop.f32.mrf.mxu0
        %v3138 = vadd.f32 %v2745, %v3137
        %3139 = vmatprep.mubr.bf16.mxu0 0
        %3140 = vmatmul.mubr.bf16.gmra.mxu0 %v1639
        %v3141 = vpop.f32.mrf.mxu0
        %v3142 = vadd.f32 %v2749, %v3141
        %v3143 = vpop.f32.mrf.mxu0
        %v3144 = vadd.f32 %v2751, %v3143
        %v3145 = vpop.f32.mrf.mxu0
        %v3146 = vadd.f32 %v2753, %v3145
        %v3147 = vpop.f32.mrf.mxu0
        %v3148 = vadd.f32 %v2755, %v3147
        %3149 = vmatprep.mubr.bf16.mxu0 0
        %3150 = vmatmul.mubr.bf16.gmra.mxu0 %v1642
        %v3151 = vpop.f32.mrf.mxu0
        %v3152 = vadd.f32 %v2759, %v3151
        %v3153 = vpop.f32.mrf.mxu0
        %v3154 = vadd.f32 %v2761, %v3153
        %v3155 = vpop.f32.mrf.mxu0
        %v3156 = vadd.f32 %v2763, %v3155
        %v3157 = vpop.f32.mrf.mxu0
        %v3158 = vadd.f32 %v2765, %v3157
        %3159 = vmatprep.mubr.bf16.mxu0 0
        %3160 = vmatmul.mubr.bf16.gmra.mxu0 %v1645
        %v3161 = vpop.f32.mrf.mxu0
        %v3162 = vadd.f32 %v2769, %v3161
        %v3163 = vpop.f32.mrf.mxu0
        %v3164 = vadd.f32 %v2771, %v3163
        %v3165 = vpop.f32.mrf.mxu0
        %v3166 = vadd.f32 %v2773, %v3165
        %v3167 = vpop.f32.mrf.mxu0
        %v3168 = vadd.f32 %v2775, %v3167
        %3169 = vmatprep.mubr.bf16.mxu0 0
        %3170 = vmatmul.mubr.bf16.gmra.mxu0 %v1648
        %v3171 = vpop.f32.mrf.mxu0
        %v3172 = vadd.f32 %v2779, %v3171
        %v3173 = vpop.f32.mrf.mxu0
        %v3174 = vadd.f32 %v2781, %v3173
        %v3175 = vpop.f32.mrf.mxu0
        %v3176 = vadd.f32 %v2783, %v3175
        %v3177 = vpop.f32.mrf.mxu0
        %v3178 = vadd.f32 %v2785, %v3177
        %3179 = vmatprep.mubr.bf16.mxu0 0
        %3180 = vmatmul.mubr.bf16.gmra.mxu0 %v1651
        %v3181 = vpop.f32.mrf.mxu0
        %v3182 = vadd.f32 %v2789, %v3181
        %v3183 = vpop.f32.mrf.mxu0
        %v3184 = vadd.f32 %v2791, %v3183
        %v3185 = vpop.f32.mrf.mxu0
        %v3186 = vadd.f32 %v2793, %v3185
        %v3187 = vpop.f32.mrf.mxu0
        %v3188 = vadd.f32 %v2795, %v3187
        %3189 = vmatprep.mubr.bf16.mxu0 0
        %3190 = vmatmul.mubr.bf16.gmra.mxu0 %v1654
        %v3191 = vpop.f32.mrf.mxu0
        %v3192 = vadd.f32 %v2799, %v3191
        %v3193 = vpop.f32.mrf.mxu0
        %v3194 = vadd.f32 %v2801, %v3193
        %v3195 = vpop.f32.mrf.mxu0
        %v3196 = vadd.f32 %v2803, %v3195
        %v3197 = vpop.f32.mrf.mxu0
        %v3198 = vadd.f32 %v2805, %v3197
        %3199 = vmatprep.mubr.bf16.mxu0 0
        %3200 = vmatmul.mubr.bf16.gmra.mxu0 %v1657
        %v3201 = vpop.f32.mrf.mxu0
        %v3202 = vadd.f32 %v2809, %v3201
        %v3203 = vpop.f32.mrf.mxu0
        %v3204 = vadd.f32 %v2811, %v3203
        %v3205 = vpop.f32.mrf.mxu0
        %v3206 = vadd.f32 %v2813, %v3205
        %v3207 = vpop.f32.mrf.mxu0
        %v3208 = vadd.f32 %v2815, %v3207
        %3209 = vmatprep.mubr.bf16.mxu0 0
        %3210 = vmatmul.mubr.bf16.gmra.mxu0 %v1660
        %v3211 = vpop.f32.mrf.mxu0
        %v3212 = vadd.f32 %v2819, %v3211
        %v3213 = vpop.f32.mrf.mxu0
        %v3214 = vadd.f32 %v2821, %v3213
        %v3215 = vpop.f32.mrf.mxu0
        %v3216 = vadd.f32 %v2823, %v3215
        %v3217 = vpop.f32.mrf.mxu0
        %v3218 = vadd.f32 %v2825, %v3217
        %3219 = vmatprep.mubr.bf16.mxu0 0
        %3220 = vmatmul.mubr.bf16.gmra.mxu0 %v1663
        %v3221 = vpop.f32.mrf.mxu0
        %v3222 = vadd.f32 %v2829, %v3221
        %v3223 = vpop.f32.mrf.mxu0
        %v3224 = vadd.f32 %v2831, %v3223
        %v3225 = vpop.f32.mrf.mxu0
        %v3226 = vadd.f32 %v2833, %v3225
        %v3227 = vpop.f32.mrf.mxu0
        %v3228 = vadd.f32 %v2835, %v3227
        %3229 = vmatprep.mubr.bf16.mxu0 0
        %3230 = vmatmul.mubr.bf16.gmra.mxu0 %v1666
        %v3231 = vpop.f32.mrf.mxu0
        %v3232 = vadd.f32 %v2839, %v3231
        %v3233 = vpop.f32.mrf.mxu0
        %v3234 = vadd.f32 %v2841, %v3233
        %v3235 = vpop.f32.mrf.mxu0
        %v3236 = vadd.f32 %v2843, %v3235
        %v3237 = vpop.f32.mrf.mxu0
        %v3238 = vadd.f32 %v2845, %v3237
        %3239 = vdwg.mxu0
        %3240 = vmatprep.subr.bf16.mxu0 %v1390
        %3241 = vmatpush1.bf16.msra.mxu0 %v1389
        %3242 = vmatprep.subr.bf16.mxu0 %v1384
        %3243 = vmatpush1.bf16.msra.mxu0 %v1383
        %3244 = vmatprep.subr.bf16.mxu0 %v1378
        %3245 = vmatpush1.bf16.msra.mxu0 %v1377
        %3246 = vmatprep.subr.bf16.mxu0 %v1372
        %3247 = vmatpush1.bf16.msra.mxu0 %v1371
        %3248 = vmatprep.subr.bf16.mxu0 %v1366
        %3249 = vmatpush1.bf16.msra.mxu0 %v1365
        %3250 = vmatprep.subr.bf16.mxu0 %v1360
        %3251 = vmatpush1.bf16.msra.mxu0 %v1359
        %3252 = vmatprep.subr.bf16.mxu0 %v1354
        %3253 = vmatpush1.bf16.msra.mxu0 %v1353
        %3254 = vmatprep.subr.bf16.mxu0 %v1348
        %3255 = vmatpush1.bf16.msra.mxu0 %v1347
        %3256 = vmatprep.subr.bf16.mxu0 %v1438
        %3257 = vmatpush2.bf16.msra.mxu0 %v1437
        %3258 = vmatprep.subr.bf16.mxu0 %v1432
        %3259 = vmatpush2.bf16.msra.mxu0 %v1431
        %3260 = vmatprep.subr.bf16.mxu0 %v1426
        %3261 = vmatpush2.bf16.msra.mxu0 %v1425
        %3262 = vmatprep.subr.bf16.mxu0 %v1420
        %3263 = vmatpush2.bf16.msra.mxu0 %v1419
        %3264 = vmatprep.subr.bf16.mxu0 %v1414
        %3265 = vmatpush2.bf16.msra.mxu0 %v1413
        %3266 = vmatprep.subr.bf16.mxu0 %v1408
        %3267 = vmatpush2.bf16.msra.mxu0 %v1407
        %3268 = vmatprep.subr.bf16.mxu0 %v1402
        %3269 = vmatpush2.bf16.msra.mxu0 %v1401
        %3270 = vmatprep.subr.bf16.mxu0 %v1396
        %3271 = vmatpush2.bf16.msra.mxu0 %v1395
        %3272 = vmatprep.mubr.bf16.mxu0 %v772
        %3273 = vmatmul.mubr.bf16.gmra.mxu0 %v771
        %v3274 = vpop.f32.mrf.mxu0
        %v3275 = vadd.f32 %v1008, %v3274
        %v3276 = vpop.f32.mrf.mxu0
        %v3277 = vadd.f32 %v1012, %v3276
        %v3278 = vpop.f32.mrf.mxu0
        %v3279 = vadd.f32 %v1008, %v3278
        %v3280 = vpop.f32.mrf.mxu0
        %v3281 = vadd.f32 %v1012, %v3280
        %3282 = vmatprep.mubr.bf16.mxu0 %v775
        %3283 = vmatmul.mubr.bf16.gmra.mxu0 %v774
        %v3284 = vpop.f32.mrf.mxu0
        %v3285 = vadd.f32 %v1008, %v3284
        %v3286 = vpop.f32.mrf.mxu0
        %v3287 = vadd.f32 %v1012, %v3286
        %v3288 = vpop.f32.mrf.mxu0
        %v3289 = vadd.f32 %v1008, %v3288
        %v3290 = vpop.f32.mrf.mxu0
        %v3291 = vadd.f32 %v1012, %v3290
        %3292 = vmatprep.mubr.bf16.mxu0 %v778
        %3293 = vmatmul.mubr.bf16.gmra.mxu0 %v777
        %v3294 = vpop.f32.mrf.mxu0
        %v3295 = vadd.f32 %v1008, %v3294
        %v3296 = vpop.f32.mrf.mxu0
        %v3297 = vadd.f32 %v1012, %v3296
        %v3298 = vpop.f32.mrf.mxu0
        %v3299 = vadd.f32 %v1008, %v3298
        %v3300 = vpop.f32.mrf.mxu0
        %v3301 = vadd.f32 %v1012, %v3300
        %3302 = vmatprep.mubr.bf16.mxu0 %v781
        %3303 = vmatmul.mubr.bf16.gmra.mxu0 %v780
        %v3304 = vpop.f32.mrf.mxu0
        %v3305 = vadd.f32 %v1008, %v3304
        %v3306 = vpop.f32.mrf.mxu0
        %v3307 = vadd.f32 %v1012, %v3306
        %v3308 = vpop.f32.mrf.mxu0
        %v3309 = vadd.f32 %v1008, %v3308
        %v3310 = vpop.f32.mrf.mxu0
        %v3311 = vadd.f32 %v1012, %v3310
        %3312 = vmatprep.mubr.bf16.mxu0 %v784
        %3313 = vmatmul.mubr.bf16.gmra.mxu0 %v783
        %v3314 = vpop.f32.mrf.mxu0
        %v3315 = vadd.f32 %v1008, %v3314
        %v3316 = vpop.f32.mrf.mxu0
        %v3317 = vadd.f32 %v1012, %v3316
        %v3318 = vpop.f32.mrf.mxu0
        %v3319 = vadd.f32 %v1008, %v3318
        %v3320 = vpop.f32.mrf.mxu0
        %v3321 = vadd.f32 %v1012, %v3320
        %3322 = vmatprep.mubr.bf16.mxu0 %v787
        %3323 = vmatmul.mubr.bf16.gmra.mxu0 %v786
        %v3324 = vpop.f32.mrf.mxu0
        %v3325 = vadd.f32 %v1008, %v3324
        %v3326 = vpop.f32.mrf.mxu0
        %v3327 = vadd.f32 %v1012, %v3326
        %v3328 = vpop.f32.mrf.mxu0
        %v3329 = vadd.f32 %v1008, %v3328
        %v3330 = vpop.f32.mrf.mxu0
        %v3331 = vadd.f32 %v1012, %v3330
        %3332 = vmatprep.mubr.bf16.mxu0 %v790
        %3333 = vmatmul.mubr.bf16.gmra.mxu0 %v789
        %v3334 = vpop.f32.mrf.mxu0
        %v3335 = vadd.f32 %v1008, %v3334
        %v3336 = vpop.f32.mrf.mxu0
        %v3337 = vadd.f32 %v1012, %v3336
        %v3338 = vpop.f32.mrf.mxu0
        %v3339 = vadd.f32 %v1008, %v3338
        %v3340 = vpop.f32.mrf.mxu0
        %v3341 = vadd.f32 %v1012, %v3340
        %3342 = vmatprep.mubr.bf16.mxu0 %v793
        %3343 = vmatmul.mubr.bf16.gmra.mxu0 %v792
        %v3344 = vpop.f32.mrf.mxu0
        %v3345 = vadd.f32 %v1008, %v3344
        %v3346 = vpop.f32.mrf.mxu0
        %v3347 = vadd.f32 %v1012, %v3346
        %v3348 = vpop.f32.mrf.mxu0
        %v3349 = vadd.f32 %v1008, %v3348
        %v3350 = vpop.f32.mrf.mxu0
        %v3351 = vadd.f32 %v1012, %v3350
        %3352 = vmatprep.mubr.bf16.mxu0 %v796
        %3353 = vmatmul.mubr.bf16.gmra.mxu0 %v795
        %v3354 = vpop.f32.mrf.mxu0
        %v3355 = vadd.f32 %v1008, %v3354
        %v3356 = vpop.f32.mrf.mxu0
        %v3357 = vadd.f32 %v1012, %v3356
        %v3358 = vpop.f32.mrf.mxu0
        %v3359 = vadd.f32 %v1008, %v3358
        %v3360 = vpop.f32.mrf.mxu0
        %v3361 = vadd.f32 %v1012, %v3360
        %3362 = vmatprep.mubr.bf16.mxu0 %v799
        %3363 = vmatmul.mubr.bf16.gmra.mxu0 %v798
        %v3364 = vpop.f32.mrf.mxu0
        %v3365 = vadd.f32 %v1008, %v3364
        %v3366 = vpop.f32.mrf.mxu0
        %v3367 = vadd.f32 %v1012, %v3366
        %v3368 = vpop.f32.mrf.mxu0
        %v3369 = vadd.f32 %v1008, %v3368
        %v3370 = vpop.f32.mrf.mxu0
        %v3371 = vadd.f32 %v1012, %v3370
        %3372 = vmatprep.mubr.bf16.mxu0 %v802
        %3373 = vmatmul.mubr.bf16.gmra.mxu0 %v801
        %v3374 = vpop.f32.mrf.mxu0
        %v3375 = vadd.f32 %v1008, %v3374
        %v3376 = vpop.f32.mrf.mxu0
        %v3377 = vadd.f32 %v1012, %v3376
        %v3378 = vpop.f32.mrf.mxu0
        %v3379 = vadd.f32 %v1008, %v3378
        %v3380 = vpop.f32.mrf.mxu0
        %v3381 = vadd.f32 %v1012, %v3380
        %3382 = vmatprep.mubr.bf16.mxu0 %v805
        %3383 = vmatmul.mubr.bf16.gmra.mxu0 %v804
        %v3384 = vpop.f32.mrf.mxu0
        %v3385 = vadd.f32 %v1008, %v3384
        %v3386 = vpop.f32.mrf.mxu0
        %v3387 = vadd.f32 %v1012, %v3386
        %v3388 = vpop.f32.mrf.mxu0
        %v3389 = vadd.f32 %v1008, %v3388
        %v3390 = vpop.f32.mrf.mxu0
        %v3391 = vadd.f32 %v1012, %v3390
        %3392 = vmatprep.mubr.bf16.mxu0 %v808
        %3393 = vmatmul.mubr.bf16.gmra.mxu0 %v807
        %v3394 = vpop.f32.mrf.mxu0
        %v3395 = vadd.f32 %v1008, %v3394
        %v3396 = vpop.f32.mrf.mxu0
        %v3397 = vadd.f32 %v1012, %v3396
        %v3398 = vpop.f32.mrf.mxu0
        %v3399 = vadd.f32 %v1008, %v3398
        %v3400 = vpop.f32.mrf.mxu0
        %v3401 = vadd.f32 %v1012, %v3400
        %3402 = vmatprep.mubr.bf16.mxu0 %v811
        %3403 = vmatmul.mubr.bf16.gmra.mxu0 %v810
        %v3404 = vpop.f32.mrf.mxu0
        %v3405 = vadd.f32 %v1008, %v3404
        %v3406 = vpop.f32.mrf.mxu0
        %v3407 = vadd.f32 %v1012, %v3406
        %v3408 = vpop.f32.mrf.mxu0
        %v3409 = vadd.f32 %v1008, %v3408
        %v3410 = vpop.f32.mrf.mxu0
        %v3411 = vadd.f32 %v1012, %v3410
        %3412 = vmatprep.mubr.bf16.mxu0 %v814
        %3413 = vmatmul.mubr.bf16.gmra.mxu0 %v813
        %v3414 = vpop.f32.mrf.mxu0
        %v3415 = vadd.f32 %v1008, %v3414
        %v3416 = vpop.f32.mrf.mxu0
        %v3417 = vadd.f32 %v1012, %v3416
        %v3418 = vpop.f32.mrf.mxu0
        %v3419 = vadd.f32 %v1008, %v3418
        %v3420 = vpop.f32.mrf.mxu0
        %v3421 = vadd.f32 %v1012, %v3420
        %3422 = vmatprep.mubr.bf16.mxu0 %v817
        %3423 = vmatmul.mubr.bf16.gmra.mxu0 %v816
        %v3424 = vpop.f32.mrf.mxu0
        %v3425 = vadd.f32 %v1008, %v3424
        %v3426 = vpop.f32.mrf.mxu0
        %v3427 = vadd.f32 %v1012, %v3426
        %v3428 = vpop.f32.mrf.mxu0
        %v3429 = vadd.f32 %v1008, %v3428
        %v3430 = vpop.f32.mrf.mxu0
        %v3431 = vadd.f32 %v1012, %v3430
        %3432 = vmatprep.mubr.bf16.mxu0 %v820
        %3433 = vmatmul.mubr.bf16.gmra.mxu0 %v819
        %v3434 = vpop.f32.mrf.mxu0
        %v3435 = vadd.f32 %v1008, %v3434
        %v3436 = vpop.f32.mrf.mxu0
        %v3437 = vadd.f32 %v1012, %v3436
        %v3438 = vpop.f32.mrf.mxu0
        %v3439 = vadd.f32 %v1008, %v3438
        %v3440 = vpop.f32.mrf.mxu0
        %v3441 = vadd.f32 %v1012, %v3440
        %3442 = vmatprep.mubr.bf16.mxu0 %v823
        %3443 = vmatmul.mubr.bf16.gmra.mxu0 %v822
        %v3444 = vpop.f32.mrf.mxu0
        %v3445 = vadd.f32 %v1008, %v3444
        %v3446 = vpop.f32.mrf.mxu0
        %v3447 = vadd.f32 %v1012, %v3446
        %v3448 = vpop.f32.mrf.mxu0
        %v3449 = vadd.f32 %v1008, %v3448
        %v3450 = vpop.f32.mrf.mxu0
        %v3451 = vadd.f32 %v1012, %v3450
        %3452 = vmatprep.mubr.bf16.mxu0 %v826
        %3453 = vmatmul.mubr.bf16.gmra.mxu0 %v825
        %v3454 = vpop.f32.mrf.mxu0
        %v3455 = vadd.f32 %v1008, %v3454
        %v3456 = vpop.f32.mrf.mxu0
        %v3457 = vadd.f32 %v1012, %v3456
        %v3458 = vpop.f32.mrf.mxu0
        %v3459 = vadd.f32 %v1008, %v3458
        %v3460 = vpop.f32.mrf.mxu0
        %v3461 = vadd.f32 %v1012, %v3460
        %3462 = vmatprep.mubr.bf16.mxu0 %v829
        %3463 = vmatmul.mubr.bf16.gmra.mxu0 %v828
        %v3464 = vpop.f32.mrf.mxu0
        %v3465 = vadd.f32 %v1008, %v3464
        %v3466 = vpop.f32.mrf.mxu0
        %v3467 = vadd.f32 %v1012, %v3466
        %v3468 = vpop.f32.mrf.mxu0
        %v3469 = vadd.f32 %v1008, %v3468
        %v3470 = vpop.f32.mrf.mxu0
        %v3471 = vadd.f32 %v1012, %v3470
        %3472 = vmatprep.mubr.bf16.mxu0 %v832
        %3473 = vmatmul.mubr.bf16.gmra.mxu0 %v831
        %v3474 = vpop.f32.mrf.mxu0
        %v3475 = vadd.f32 %v1008, %v3474
        %v3476 = vpop.f32.mrf.mxu0
        %v3477 = vadd.f32 %v1012, %v3476
        %v3478 = vpop.f32.mrf.mxu0
        %v3479 = vadd.f32 %v1008, %v3478
        %v3480 = vpop.f32.mrf.mxu0
        %v3481 = vadd.f32 %v1012, %v3480
        %3482 = vmatprep.mubr.bf16.mxu0 %v835
        %3483 = vmatmul.mubr.bf16.gmra.mxu0 %v834
        %v3484 = vpop.f32.mrf.mxu0
        %v3485 = vadd.f32 %v1008, %v3484
        %v3486 = vpop.f32.mrf.mxu0
        %v3487 = vadd.f32 %v1012, %v3486
        %v3488 = vpop.f32.mrf.mxu0
        %v3489 = vadd.f32 %v1008, %v3488
        %v3490 = vpop.f32.mrf.mxu0
        %v3491 = vadd.f32 %v1012, %v3490
        %3492 = vmatprep.mubr.bf16.mxu0 %v838
        %3493 = vmatmul.mubr.bf16.gmra.mxu0 %v837
        %v3494 = vpop.f32.mrf.mxu0
        %v3495 = vadd.f32 %v1008, %v3494
        %v3496 = vpop.f32.mrf.mxu0
        %v3497 = vadd.f32 %v1012, %v3496
        %v3498 = vpop.f32.mrf.mxu0
        %v3499 = vadd.f32 %v1008, %v3498
        %v3500 = vpop.f32.mrf.mxu0
        %v3501 = vadd.f32 %v1012, %v3500
        %3502 = vmatprep.mubr.bf16.mxu0 %v841
        %3503 = vmatmul.mubr.bf16.gmra.mxu0 %v840
        %v3504 = vpop.f32.mrf.mxu0
        %v3505 = vadd.f32 %v1008, %v3504
        %v3506 = vpop.f32.mrf.mxu0
        %v3507 = vadd.f32 %v1012, %v3506
        %v3508 = vpop.f32.mrf.mxu0
        %v3509 = vadd.f32 %v1008, %v3508
        %v3510 = vpop.f32.mrf.mxu0
        %v3511 = vadd.f32 %v1012, %v3510
        %3512 = vmatprep.mubr.bf16.mxu0 %v844
        %3513 = vmatmul.mubr.bf16.gmra.mxu0 %v843
        %v3514 = vpop.f32.mrf.mxu0
        %v3515 = vadd.f32 %v1008, %v3514
        %v3516 = vpop.f32.mrf.mxu0
        %v3517 = vadd.f32 %v1012, %v3516
        %v3518 = vpop.f32.mrf.mxu0
        %v3519 = vadd.f32 %v1008, %v3518
        %v3520 = vpop.f32.mrf.mxu0
        %v3521 = vadd.f32 %v1012, %v3520
        %3522 = vmatprep.mubr.bf16.mxu0 %v847
        %3523 = vmatmul.mubr.bf16.gmra.mxu0 %v846
        %v3524 = vpop.f32.mrf.mxu0
        %v3525 = vadd.f32 %v1008, %v3524
        %v3526 = vpop.f32.mrf.mxu0
        %v3527 = vadd.f32 %v1012, %v3526
        %v3528 = vpop.f32.mrf.mxu0
        %v3529 = vadd.f32 %v1008, %v3528
        %v3530 = vpop.f32.mrf.mxu0
        %v3531 = vadd.f32 %v1012, %v3530
        %3532 = vmatprep.mubr.bf16.mxu0 %v850
        %3533 = vmatmul.mubr.bf16.gmra.mxu0 %v849
        %v3534 = vpop.f32.mrf.mxu0
        %v3535 = vadd.f32 %v1008, %v3534
        %v3536 = vpop.f32.mrf.mxu0
        %v3537 = vadd.f32 %v1012, %v3536
        %v3538 = vpop.f32.mrf.mxu0
        %v3539 = vadd.f32 %v1008, %v3538
        %v3540 = vpop.f32.mrf.mxu0
        %v3541 = vadd.f32 %v1012, %v3540
        %3542 = vmatprep.mubr.bf16.mxu0 %v853
        %3543 = vmatmul.mubr.bf16.gmra.mxu0 %v852
        %v3544 = vpop.f32.mrf.mxu0
        %v3545 = vadd.f32 %v1008, %v3544
        %v3546 = vpop.f32.mrf.mxu0
        %v3547 = vadd.f32 %v1012, %v3546
        %v3548 = vpop.f32.mrf.mxu0
        %v3549 = vadd.f32 %v1008, %v3548
        %v3550 = vpop.f32.mrf.mxu0
        %v3551 = vadd.f32 %v1012, %v3550
        %3552 = vmatprep.mubr.bf16.mxu0 %v856
        %3553 = vmatmul.mubr.bf16.gmra.mxu0 %v855
        %v3554 = vpop.f32.mrf.mxu0
        %v3555 = vadd.f32 %v1008, %v3554
        %v3556 = vpop.f32.mrf.mxu0
        %v3557 = vadd.f32 %v1012, %v3556
        %v3558 = vpop.f32.mrf.mxu0
        %v3559 = vadd.f32 %v1008, %v3558
        %v3560 = vpop.f32.mrf.mxu0
        %v3561 = vadd.f32 %v1012, %v3560
        %3562 = vmatprep.mubr.bf16.mxu0 %v859
        %3563 = vmatmul.mubr.bf16.gmra.mxu0 %v858
        %v3564 = vpop.f32.mrf.mxu0
        %v3565 = vadd.f32 %v1008, %v3564
        %v3566 = vpop.f32.mrf.mxu0
        %v3567 = vadd.f32 %v1012, %v3566
        %v3568 = vpop.f32.mrf.mxu0
        %v3569 = vadd.f32 %v1008, %v3568
        %v3570 = vpop.f32.mrf.mxu0
        %v3571 = vadd.f32 %v1012, %v3570
        %3572 = vmatprep.mubr.bf16.mxu0 %v862
        %3573 = vmatmul.mubr.bf16.gmra.mxu0 %v861
        %v3574 = vpop.f32.mrf.mxu0
        %v3575 = vadd.f32 %v1008, %v3574
        %v3576 = vpop.f32.mrf.mxu0
        %v3577 = vadd.f32 %v1012, %v3576
        %v3578 = vpop.f32.mrf.mxu0
        %v3579 = vadd.f32 %v1008, %v3578
        %v3580 = vpop.f32.mrf.mxu0
        %v3581 = vadd.f32 %v1012, %v3580
        %3582 = vmatprep.mubr.bf16.mxu0 %v865
        %3583 = vmatmul.mubr.bf16.gmra.mxu0 %v864
        %v3584 = vpop.f32.mrf.mxu0
        %v3585 = vadd.f32 %v1008, %v3584
        %v3586 = vpop.f32.mrf.mxu0
        %v3587 = vadd.f32 %v1012, %v3586
        %v3588 = vpop.f32.mrf.mxu0
        %v3589 = vadd.f32 %v1008, %v3588
        %v3590 = vpop.f32.mrf.mxu0
        %v3591 = vadd.f32 %v1012, %v3590
        %3592 = vmatprep.mubr.bf16.mxu0 %v868
        %3593 = vmatmul.mubr.bf16.gmra.mxu0 %v867
        %v3594 = vpop.f32.mrf.mxu0
        %v3595 = vadd.f32 %v1008, %v3594
        %v3596 = vpop.f32.mrf.mxu0
        %v3597 = vadd.f32 %v1012, %v3596
        %v3598 = vpop.f32.mrf.mxu0
        %v3599 = vadd.f32 %v1008, %v3598
        %v3600 = vpop.f32.mrf.mxu0
        %v3601 = vadd.f32 %v1012, %v3600
        %3602 = vmatprep.mubr.bf16.mxu0 %v871
        %3603 = vmatmul.mubr.bf16.gmra.mxu0 %v870
        %v3604 = vpop.f32.mrf.mxu0
        %v3605 = vadd.f32 %v1008, %v3604
        %v3606 = vpop.f32.mrf.mxu0
        %v3607 = vadd.f32 %v1012, %v3606
        %v3608 = vpop.f32.mrf.mxu0
        %v3609 = vadd.f32 %v1008, %v3608
        %v3610 = vpop.f32.mrf.mxu0
        %v3611 = vadd.f32 %v1012, %v3610
        %3612 = vmatprep.mubr.bf16.mxu0 %v874
        %3613 = vmatmul.mubr.bf16.gmra.mxu0 %v873
        %v3614 = vpop.f32.mrf.mxu0
        %v3615 = vadd.f32 %v1008, %v3614
        %v3616 = vpop.f32.mrf.mxu0
        %v3617 = vadd.f32 %v1012, %v3616
        %v3618 = vpop.f32.mrf.mxu0
        %v3619 = vadd.f32 %v1008, %v3618
        %v3620 = vpop.f32.mrf.mxu0
        %v3621 = vadd.f32 %v1012, %v3620
        %3622 = vmatprep.mubr.bf16.mxu0 %v877
        %3623 = vmatmul.mubr.bf16.gmra.mxu0 %v876
        %v3624 = vpop.f32.mrf.mxu0
        %v3625 = vadd.f32 %v1008, %v3624
        %v3626 = vpop.f32.mrf.mxu0
        %v3627 = vadd.f32 %v1012, %v3626
        %v3628 = vpop.f32.mrf.mxu0
        %v3629 = vadd.f32 %v1008, %v3628
        %v3630 = vpop.f32.mrf.mxu0
        %v3631 = vadd.f32 %v1012, %v3630
        %3632 = vdwg.mxu0
        %3633 = vmatprep.subr.bf16.mxu0 0
        %3634 = vmatpush1.bf16.msra.mxu0 0
        %3635 = vmatprep.subr.bf16.mxu0 0
        %3636 = vmatpush1.bf16.msra.mxu0 0
        %3637 = vmatprep.subr.bf16.mxu0 0
        %3638 = vmatpush1.bf16.msra.mxu0 0
        %3639 = vmatprep.subr.bf16.mxu0 0
        %3640 = vmatpush1.bf16.msra.mxu0 0
        %3641 = vmatprep.subr.bf16.mxu0 0
        %3642 = vmatpush1.bf16.msra.mxu0 0
        %3643 = vmatprep.subr.bf16.mxu0 0
        %3644 = vmatpush1.bf16.msra.mxu0 0
        %3645 = vmatprep.subr.bf16.mxu0 %v1450
        %3646 = vmatpush1.bf16.msra.mxu0 %v1449
        %3647 = vmatprep.subr.bf16.mxu0 %v1444
        %3648 = vmatpush1.bf16.msra.mxu0 %v1443
        %3649 = vmatprep.subr.bf16.mxu0 0
        %3650 = vmatpush2.bf16.msra.mxu0 0
        %3651 = vmatprep.subr.bf16.mxu0 0
        %3652 = vmatpush2.bf16.msra.mxu0 0
        %3653 = vmatprep.subr.bf16.mxu0 0
        %3654 = vmatpush2.bf16.msra.mxu0 0
        %3655 = vmatprep.subr.bf16.mxu0 0
        %3656 = vmatpush2.bf16.msra.mxu0 0
        %3657 = vmatprep.subr.bf16.mxu0 0
        %3658 = vmatpush2.bf16.msra.mxu0 0
        %3659 = vmatprep.subr.bf16.mxu0 0
        %3660 = vmatpush2.bf16.msra.mxu0 0
        %3661 = vmatprep.subr.bf16.mxu0 0
        %3662 = vmatpush2.bf16.msra.mxu0 0
        %3663 = vmatprep.subr.bf16.mxu0 0
        %3664 = vmatpush2.bf16.msra.mxu0 0
        %3665 = vmatprep.mubr.bf16.mxu0 0
        %3666 = vmatmul.mubr.bf16.gmra.mxu0 %v1561
        %v3667 = vpop.f32.mrf.mxu0
        %v3668 = vadd.f32 %v3275, %v3667
        %v3669 = vpop.f32.mrf.mxu0
        %v3670 = vadd.f32 %v3277, %v3669
        %v3671 = vpop.f32.mrf.mxu0
        %v3672 = vadd.f32 %v3279, %v3671
        %v3673 = vpop.f32.mrf.mxu0
        %v3674 = vadd.f32 %v3281, %v3673
        %3675 = vmatprep.mubr.bf16.mxu0 0
        %3676 = vmatmul.mubr.bf16.gmra.mxu0 %v1564
        %v3677 = vpop.f32.mrf.mxu0
        %v3678 = vadd.f32 %v3285, %v3677
        %v3679 = vpop.f32.mrf.mxu0
        %v3680 = vadd.f32 %v3287, %v3679
        %v3681 = vpop.f32.mrf.mxu0
        %v3682 = vadd.f32 %v3289, %v3681
        %v3683 = vpop.f32.mrf.mxu0
        %v3684 = vadd.f32 %v3291, %v3683
        %3685 = vmatprep.mubr.bf16.mxu0 0
        %3686 = vmatmul.mubr.bf16.gmra.mxu0 %v1567
        %v3687 = vpop.f32.mrf.mxu0
        %v3688 = vadd.f32 %v3295, %v3687
        %v3689 = vpop.f32.mrf.mxu0
        %v3690 = vadd.f32 %v3297, %v3689
        %v3691 = vpop.f32.mrf.mxu0
        %v3692 = vadd.f32 %v3299, %v3691
        %v3693 = vpop.f32.mrf.mxu0
        %v3694 = vadd.f32 %v3301, %v3693
        %3695 = vmatprep.mubr.bf16.mxu0 0
        %3696 = vmatmul.mubr.bf16.gmra.mxu0 %v1570
        %v3697 = vpop.f32.mrf.mxu0
        %v3698 = vadd.f32 %v3305, %v3697
        %v3699 = vpop.f32.mrf.mxu0
        %v3700 = vadd.f32 %v3307, %v3699
        %v3701 = vpop.f32.mrf.mxu0
        %v3702 = vadd.f32 %v3309, %v3701
        %v3703 = vpop.f32.mrf.mxu0
        %v3704 = vadd.f32 %v3311, %v3703
        %3705 = vmatprep.mubr.bf16.mxu0 0
        %3706 = vmatmul.mubr.bf16.gmra.mxu0 %v1573
        %v3707 = vpop.f32.mrf.mxu0
        %v3708 = vadd.f32 %v3315, %v3707
        %v3709 = vpop.f32.mrf.mxu0
        %v3710 = vadd.f32 %v3317, %v3709
        %v3711 = vpop.f32.mrf.mxu0
        %v3712 = vadd.f32 %v3319, %v3711
        %v3713 = vpop.f32.mrf.mxu0
        %v3714 = vadd.f32 %v3321, %v3713
        %3715 = vmatprep.mubr.bf16.mxu0 0
        %3716 = vmatmul.mubr.bf16.gmra.mxu0 %v1576
        %v3717 = vpop.f32.mrf.mxu0
        %v3718 = vadd.f32 %v3325, %v3717
        %v3719 = vpop.f32.mrf.mxu0
        %v3720 = vadd.f32 %v3327, %v3719
        %v3721 = vpop.f32.mrf.mxu0
        %v3722 = vadd.f32 %v3329, %v3721
        %v3723 = vpop.f32.mrf.mxu0
        %v3724 = vadd.f32 %v3331, %v3723
        %3725 = vmatprep.mubr.bf16.mxu0 0
        %3726 = vmatmul.mubr.bf16.gmra.mxu0 %v1579
        %v3727 = vpop.f32.mrf.mxu0
        %v3728 = vadd.f32 %v3335, %v3727
        %v3729 = vpop.f32.mrf.mxu0
        %v3730 = vadd.f32 %v3337, %v3729
        %v3731 = vpop.f32.mrf.mxu0
        %v3732 = vadd.f32 %v3339, %v3731
        %v3733 = vpop.f32.mrf.mxu0
        %v3734 = vadd.f32 %v3341, %v3733
        %3735 = vmatprep.mubr.bf16.mxu0 0
        %3736 = vmatmul.mubr.bf16.gmra.mxu0 %v1582
        %v3737 = vpop.f32.mrf.mxu0
        %v3738 = vadd.f32 %v3345, %v3737
        %v3739 = vpop.f32.mrf.mxu0
        %v3740 = vadd.f32 %v3347, %v3739
        %v3741 = vpop.f32.mrf.mxu0
        %v3742 = vadd.f32 %v3349, %v3741
        %v3743 = vpop.f32.mrf.mxu0
        %v3744 = vadd.f32 %v3351, %v3743
        %3745 = vmatprep.mubr.bf16.mxu0 0
        %3746 = vmatmul.mubr.bf16.gmra.mxu0 %v1585
        %v3747 = vpop.f32.mrf.mxu0
        %v3748 = vadd.f32 %v3355, %v3747
        %v3749 = vpop.f32.mrf.mxu0
        %v3750 = vadd.f32 %v3357, %v3749
        %v3751 = vpop.f32.mrf.mxu0
        %v3752 = vadd.f32 %v3359, %v3751
        %v3753 = vpop.f32.mrf.mxu0
        %v3754 = vadd.f32 %v3361, %v3753
        %3755 = vmatprep.mubr.bf16.mxu0 0
        %3756 = vmatmul.mubr.bf16.gmra.mxu0 %v1588
        %v3757 = vpop.f32.mrf.mxu0
        %v3758 = vadd.f32 %v3365, %v3757
        %v3759 = vpop.f32.mrf.mxu0
        %v3760 = vadd.f32 %v3367, %v3759
        %v3761 = vpop.f32.mrf.mxu0
        %v3762 = vadd.f32 %v3369, %v3761
        %v3763 = vpop.f32.mrf.mxu0
        %v3764 = vadd.f32 %v3371, %v3763
        %3765 = vmatprep.mubr.bf16.mxu0 0
        %3766 = vmatmul.mubr.bf16.gmra.mxu0 %v1591
        %v3767 = vpop.f32.mrf.mxu0
        %v3768 = vadd.f32 %v3375, %v3767
        %v3769 = vpop.f32.mrf.mxu0
        %v3770 = vadd.f32 %v3377, %v3769
        %v3771 = vpop.f32.mrf.mxu0
        %v3772 = vadd.f32 %v3379, %v3771
        %v3773 = vpop.f32.mrf.mxu0
        %v3774 = vadd.f32 %v3381, %v3773
        %3775 = vmatprep.mubr.bf16.mxu0 0
        %3776 = vmatmul.mubr.bf16.gmra.mxu0 %v1594
        %v3777 = vpop.f32.mrf.mxu0
        %v3778 = vadd.f32 %v3385, %v3777
        %v3779 = vpop.f32.mrf.mxu0
        %v3780 = vadd.f32 %v3387, %v3779
        %v3781 = vpop.f32.mrf.mxu0
        %v3782 = vadd.f32 %v3389, %v3781
        %v3783 = vpop.f32.mrf.mxu0
        %v3784 = vadd.f32 %v3391, %v3783
        %3785 = vmatprep.mubr.bf16.mxu0 0
        %3786 = vmatmul.mubr.bf16.gmra.mxu0 %v1597
        %v3787 = vpop.f32.mrf.mxu0
        %v3788 = vadd.f32 %v3395, %v3787
        %v3789 = vpop.f32.mrf.mxu0
        %v3790 = vadd.f32 %v3397, %v3789
        %v3791 = vpop.f32.mrf.mxu0
        %v3792 = vadd.f32 %v3399, %v3791
        %v3793 = vpop.f32.mrf.mxu0
        %v3794 = vadd.f32 %v3401, %v3793
        %3795 = vmatprep.mubr.bf16.mxu0 0
        %3796 = vmatmul.mubr.bf16.gmra.mxu0 %v1600
        %v3797 = vpop.f32.mrf.mxu0
        %v3798 = vadd.f32 %v3405, %v3797
        %v3799 = vpop.f32.mrf.mxu0
        %v3800 = vadd.f32 %v3407, %v3799
        %v3801 = vpop.f32.mrf.mxu0
        %v3802 = vadd.f32 %v3409, %v3801
        %v3803 = vpop.f32.mrf.mxu0
        %v3804 = vadd.f32 %v3411, %v3803
        %3805 = vmatprep.mubr.bf16.mxu0 0
        %3806 = vmatmul.mubr.bf16.gmra.mxu0 %v1603
        %v3807 = vpop.f32.mrf.mxu0
        %v3808 = vadd.f32 %v3415, %v3807
        %v3809 = vpop.f32.mrf.mxu0
        %v3810 = vadd.f32 %v3417, %v3809
        %v3811 = vpop.f32.mrf.mxu0
        %v3812 = vadd.f32 %v3419, %v3811
        %v3813 = vpop.f32.mrf.mxu0
        %v3814 = vadd.f32 %v3421, %v3813
        %3815 = vmatprep.mubr.bf16.mxu0 0
        %3816 = vmatmul.mubr.bf16.gmra.mxu0 %v1606
        %v3817 = vpop.f32.mrf.mxu0
        %v3818 = vadd.f32 %v3425, %v3817
        %v3819 = vpop.f32.mrf.mxu0
        %v3820 = vadd.f32 %v3427, %v3819
        %v3821 = vpop.f32.mrf.mxu0
        %v3822 = vadd.f32 %v3429, %v3821
        %v3823 = vpop.f32.mrf.mxu0
        %v3824 = vadd.f32 %v3431, %v3823
        %3825 = vmatprep.mubr.bf16.mxu0 0
        %3826 = vmatmul.mubr.bf16.gmra.mxu0 %v1609
        %v3827 = vpop.f32.mrf.mxu0
        %v3828 = vadd.f32 %v3435, %v3827
        %v3829 = vpop.f32.mrf.mxu0
        %v3830 = vadd.f32 %v3437, %v3829
        %v3831 = vpop.f32.mrf.mxu0
        %v3832 = vadd.f32 %v3439, %v3831
        %v3833 = vpop.f32.mrf.mxu0
        %v3834 = vadd.f32 %v3441, %v3833
        %3835 = vmatprep.mubr.bf16.mxu0 0
        %3836 = vmatmul.mubr.bf16.gmra.mxu0 %v1612
        %v3837 = vpop.f32.mrf.mxu0
        %v3838 = vadd.f32 %v3445, %v3837
        %v3839 = vpop.f32.mrf.mxu0
        %v3840 = vadd.f32 %v3447, %v3839
        %v3841 = vpop.f32.mrf.mxu0
        %v3842 = vadd.f32 %v3449, %v3841
        %v3843 = vpop.f32.mrf.mxu0
        %v3844 = vadd.f32 %v3451, %v3843
        %3845 = vmatprep.mubr.bf16.mxu0 0
        %3846 = vmatmul.mubr.bf16.gmra.mxu0 %v1615
        %v3847 = vpop.f32.mrf.mxu0
        %v3848 = vadd.f32 %v3455, %v3847
        %v3849 = vpop.f32.mrf.mxu0
        %v3850 = vadd.f32 %v3457, %v3849
        %v3851 = vpop.f32.mrf.mxu0
        %v3852 = vadd.f32 %v3459, %v3851
        %v3853 = vpop.f32.mrf.mxu0
        %v3854 = vadd.f32 %v3461, %v3853
        %3855 = vmatprep.mubr.bf16.mxu0 0
        %3856 = vmatmul.mubr.bf16.gmra.mxu0 %v1618
        %v3857 = vpop.f32.mrf.mxu0
        %v3858 = vadd.f32 %v3465, %v3857
        %v3859 = vpop.f32.mrf.mxu0
        %v3860 = vadd.f32 %v3467, %v3859
        %v3861 = vpop.f32.mrf.mxu0
        %v3862 = vadd.f32 %v3469, %v3861
        %v3863 = vpop.f32.mrf.mxu0
        %v3864 = vadd.f32 %v3471, %v3863
        %3865 = vmatprep.mubr.bf16.mxu0 0
        %3866 = vmatmul.mubr.bf16.gmra.mxu0 %v1621
        %v3867 = vpop.f32.mrf.mxu0
        %v3868 = vadd.f32 %v3475, %v3867
        %v3869 = vpop.f32.mrf.mxu0
        %v3870 = vadd.f32 %v3477, %v3869
        %v3871 = vpop.f32.mrf.mxu0
        %v3872 = vadd.f32 %v3479, %v3871
        %v3873 = vpop.f32.mrf.mxu0
        %v3874 = vadd.f32 %v3481, %v3873
        %3875 = vmatprep.mubr.bf16.mxu0 0
        %3876 = vmatmul.mubr.bf16.gmra.mxu0 %v1624
        %v3877 = vpop.f32.mrf.mxu0
        %v3878 = vadd.f32 %v3485, %v3877
        %v3879 = vpop.f32.mrf.mxu0
        %v3880 = vadd.f32 %v3487, %v3879
        %v3881 = vpop.f32.mrf.mxu0
        %v3882 = vadd.f32 %v3489, %v3881
        %v3883 = vpop.f32.mrf.mxu0
        %v3884 = vadd.f32 %v3491, %v3883
        %3885 = vmatprep.mubr.bf16.mxu0 0
        %3886 = vmatmul.mubr.bf16.gmra.mxu0 %v1627
        %v3887 = vpop.f32.mrf.mxu0
        %v3888 = vadd.f32 %v3495, %v3887
        %v3889 = vpop.f32.mrf.mxu0
        %v3890 = vadd.f32 %v3497, %v3889
        %v3891 = vpop.f32.mrf.mxu0
        %v3892 = vadd.f32 %v3499, %v3891
        %v3893 = vpop.f32.mrf.mxu0
        %v3894 = vadd.f32 %v3501, %v3893
        %3895 = vmatprep.mubr.bf16.mxu0 0
        %3896 = vmatmul.mubr.bf16.gmra.mxu0 %v1630
        %v3897 = vpop.f32.mrf.mxu0
        %v3898 = vadd.f32 %v3505, %v3897
        %v3899 = vpop.f32.mrf.mxu0
        %v3900 = vadd.f32 %v3507, %v3899
        %v3901 = vpop.f32.mrf.mxu0
        %v3902 = vadd.f32 %v3509, %v3901
        %v3903 = vpop.f32.mrf.mxu0
        %v3904 = vadd.f32 %v3511, %v3903
        %3905 = vmatprep.mubr.bf16.mxu0 0
        %3906 = vmatmul.mubr.bf16.gmra.mxu0 %v1633
        %v3907 = vpop.f32.mrf.mxu0
        %v3908 = vadd.f32 %v3515, %v3907
        %v3909 = vpop.f32.mrf.mxu0
        %v3910 = vadd.f32 %v3517, %v3909
        %v3911 = vpop.f32.mrf.mxu0
        %v3912 = vadd.f32 %v3519, %v3911
        %v3913 = vpop.f32.mrf.mxu0
        %v3914 = vadd.f32 %v3521, %v3913
        %3915 = vmatprep.mubr.bf16.mxu0 0
        %3916 = vmatmul.mubr.bf16.gmra.mxu0 %v1636
        %v3917 = vpop.f32.mrf.mxu0
        %v3918 = vadd.f32 %v3525, %v3917
        %v3919 = vpop.f32.mrf.mxu0
        %v3920 = vadd.f32 %v3527, %v3919
        %v3921 = vpop.f32.mrf.mxu0
        %v3922 = vadd.f32 %v3529, %v3921
        %v3923 = vpop.f32.mrf.mxu0
        %v3924 = vadd.f32 %v3531, %v3923
        %3925 = vmatprep.mubr.bf16.mxu0 0
        %3926 = vmatmul.mubr.bf16.gmra.mxu0 %v1639
        %v3927 = vpop.f32.mrf.mxu0
        %v3928 = vadd.f32 %v3535, %v3927
        %v3929 = vpop.f32.mrf.mxu0
        %v3930 = vadd.f32 %v3537, %v3929
        %v3931 = vpop.f32.mrf.mxu0
        %v3932 = vadd.f32 %v3539, %v3931
        %v3933 = vpop.f32.mrf.mxu0
        %v3934 = vadd.f32 %v3541, %v3933
        %3935 = vmatprep.mubr.bf16.mxu0 0
        %3936 = vmatmul.mubr.bf16.gmra.mxu0 %v1642
        %v3937 = vpop.f32.mrf.mxu0
        %v3938 = vadd.f32 %v3545, %v3937
        %v3939 = vpop.f32.mrf.mxu0
        %v3940 = vadd.f32 %v3547, %v3939
        %v3941 = vpop.f32.mrf.mxu0
        %v3942 = vadd.f32 %v3549, %v3941
        %v3943 = vpop.f32.mrf.mxu0
        %v3944 = vadd.f32 %v3551, %v3943
        %3945 = vmatprep.mubr.bf16.mxu0 0
        %3946 = vmatmul.mubr.bf16.gmra.mxu0 %v1645
        %v3947 = vpop.f32.mrf.mxu0
        %v3948 = vadd.f32 %v3555, %v3947
        %v3949 = vpop.f32.mrf.mxu0
        %v3950 = vadd.f32 %v3557, %v3949
        %v3951 = vpop.f32.mrf.mxu0
        %v3952 = vadd.f32 %v3559, %v3951
        %v3953 = vpop.f32.mrf.mxu0
        %v3954 = vadd.f32 %v3561, %v3953
        %3955 = vmatprep.mubr.bf16.mxu0 0
        %3956 = vmatmul.mubr.bf16.gmra.mxu0 %v1648
        %v3957 = vpop.f32.mrf.mxu0
        %v3958 = vadd.f32 %v3565, %v3957
        %v3959 = vpop.f32.mrf.mxu0
        %v3960 = vadd.f32 %v3567, %v3959
        %v3961 = vpop.f32.mrf.mxu0
        %v3962 = vadd.f32 %v3569, %v3961
        %v3963 = vpop.f32.mrf.mxu0
        %v3964 = vadd.f32 %v3571, %v3963
        %3965 = vmatprep.mubr.bf16.mxu0 0
        %3966 = vmatmul.mubr.bf16.gmra.mxu0 %v1651
        %v3967 = vpop.f32.mrf.mxu0
        %v3968 = vadd.f32 %v3575, %v3967
        %v3969 = vpop.f32.mrf.mxu0
        %v3970 = vadd.f32 %v3577, %v3969
        %v3971 = vpop.f32.mrf.mxu0
        %v3972 = vadd.f32 %v3579, %v3971
        %v3973 = vpop.f32.mrf.mxu0
        %v3974 = vadd.f32 %v3581, %v3973
        %3975 = vmatprep.mubr.bf16.mxu0 0
        %3976 = vmatmul.mubr.bf16.gmra.mxu0 %v1654
        %v3977 = vpop.f32.mrf.mxu0
        %v3978 = vadd.f32 %v3585, %v3977
        %v3979 = vpop.f32.mrf.mxu0
        %v3980 = vadd.f32 %v3587, %v3979
        %v3981 = vpop.f32.mrf.mxu0
        %v3982 = vadd.f32 %v3589, %v3981
        %v3983 = vpop.f32.mrf.mxu0
        %v3984 = vadd.f32 %v3591, %v3983
        %3985 = vmatprep.mubr.bf16.mxu0 0
        %3986 = vmatmul.mubr.bf16.gmra.mxu0 %v1657
        %v3987 = vpop.f32.mrf.mxu0
        %v3988 = vadd.f32 %v3595, %v3987
        %v3989 = vpop.f32.mrf.mxu0
        %v3990 = vadd.f32 %v3597, %v3989
        %v3991 = vpop.f32.mrf.mxu0
        %v3992 = vadd.f32 %v3599, %v3991
        %v3993 = vpop.f32.mrf.mxu0
        %v3994 = vadd.f32 %v3601, %v3993
        %3995 = vmatprep.mubr.bf16.mxu0 0
        %3996 = vmatmul.mubr.bf16.gmra.mxu0 %v1660
        %v3997 = vpop.f32.mrf.mxu0
        %v3998 = vadd.f32 %v3605, %v3997
        %v3999 = vpop.f32.mrf.mxu0
        %v4000 = vadd.f32 %v3607, %v3999
        %v4001 = vpop.f32.mrf.mxu0
        %v4002 = vadd.f32 %v3609, %v4001
        %v4003 = vpop.f32.mrf.mxu0
        %v4004 = vadd.f32 %v3611, %v4003
        %4005 = vmatprep.mubr.bf16.mxu0 0
        %4006 = vmatmul.mubr.bf16.gmra.mxu0 %v1663
        %v4007 = vpop.f32.mrf.mxu0
        %v4008 = vadd.f32 %v3615, %v4007
        %v4009 = vpop.f32.mrf.mxu0
        %v4010 = vadd.f32 %v3617, %v4009
        %v4011 = vpop.f32.mrf.mxu0
        %v4012 = vadd.f32 %v3619, %v4011
        %v4013 = vpop.f32.mrf.mxu0
        %v4014 = vadd.f32 %v3621, %v4013
        %4015 = vmatprep.mubr.bf16.mxu0 0
        %4016 = vmatmul.mubr.bf16.gmra.mxu0 %v1666
        %v4017 = vpop.f32.mrf.mxu0
        %v4018 = vadd.f32 %v3625, %v4017
        %v4019 = vpop.f32.mrf.mxu0
        %v4020 = vadd.f32 %v3627, %v4019
        %v4021 = vpop.f32.mrf.mxu0
        %v4022 = vadd.f32 %v3629, %v4021
        %v4023 = vpop.f32.mrf.mxu0
        %v4024 = vadd.f32 %v3631, %v4023
        %4025 = vdwg.mxu0
        %v4026 = vmax.f32 %v2096, 0.0
        %v4027 = vmax.f32 %v2098, 0.0
        %v4028 = vmax.f32 %v2882, 0.0
        %v4029 = vmax.f32 %v2884, 0.0
        %v4030 = vmax.f32 %v3668, 0.0
        %v4031 = vmax.f32 %v3670, 0.0
        %v4032 = vmax.f32 %v2100, 0.0
        %v4033 = vmax.f32 %v2102, 0.0
        %v4034 = vmax.f32 %v2886, 0.0
        %v4035 = vmax.f32 %v2888, 0.0
        %v4036 = vmax.f32 %v3672, 0.0
        %v4037 = vmax.f32 %v3674, 0.0
        %v4038 = vmax.f32 %v2106, 0.0
        %v4039 = vmax.f32 %v2108, 0.0
        %v4040 = vmax.f32 %v2892, 0.0
        %v4041 = vmax.f32 %v2894, 0.0
        %v4042 = vmax.f32 %v3678, 0.0
        %v4043 = vmax.f32 %v3680, 0.0
        %v4044 = vmax.f32 %v2110, 0.0
        %v4045 = vmax.f32 %v2112, 0.0
        %v4046 = vmax.f32 %v2896, 0.0
        %v4047 = vmax.f32 %v2898, 0.0
        %v4048 = vmax.f32 %v3682, 0.0
        %v4049 = vmax.f32 %v3684, 0.0
        %v4050 = vmax.f32 %v2116, 0.0
        %v4051 = vmax.f32 %v2118, 0.0
        %v4052 = vmax.f32 %v2902, 0.0
        %v4053 = vmax.f32 %v2904, 0.0
        %v4054 = vmax.f32 %v3688, 0.0
        %v4055 = vmax.f32 %v3690, 0.0
        %v4056 = vmax.f32 %v2120, 0.0
        %v4057 = vmax.f32 %v2122, 0.0
        %v4058 = vmax.f32 %v2906, 0.0
        %v4059 = vmax.f32 %v2908, 0.0
        %v4060 = vmax.f32 %v3692, 0.0
        %v4061 = vmax.f32 %v3694, 0.0
        %v4062 = vmax.f32 %v2126, 0.0
        %v4063 = vmax.f32 %v2128, 0.0
        %v4064 = vmax.f32 %v2912, 0.0
        %v4065 = vmax.f32 %v2914, 0.0
        %v4066 = vmax.f32 %v3698, 0.0
        %v4067 = vmax.f32 %v3700, 0.0
        %v4068 = vmax.f32 %v2130, 0.0
        %v4069 = vmax.f32 %v2132, 0.0
        %v4070 = vmax.f32 %v2916, 0.0
        %v4071 = vmax.f32 %v2918, 0.0
        %v4072 = vmax.f32 %v3702, 0.0
        %v4073 = vmax.f32 %v3704, 0.0
        %v4074 = vmax.f32 %v2136, 0.0
        %v4075 = vmax.f32 %v2138, 0.0
        %v4076 = vmax.f32 %v2922, 0.0
        %v4077 = vmax.f32 %v2924, 0.0
        %v4078 = vmax.f32 %v3708, 0.0
        %v4079 = vmax.f32 %v3710, 0.0
        %v4080 = vmax.f32 %v2140, 0.0
        %v4081 = vmax.f32 %v2142, 0.0
        %v4082 = vmax.f32 %v2926, 0.0
        %v4083 = vmax.f32 %v2928, 0.0
        %v4084 = vmax.f32 %v3712, 0.0
        %v4085 = vmax.f32 %v3714, 0.0
        %v4086 = vmax.f32 %v2146, 0.0
        %v4087 = vmax.f32 %v2148, 0.0
        %v4088 = vmax.f32 %v2932, 0.0
        %v4089 = vmax.f32 %v2934, 0.0
        %v4090 = vmax.f32 %v3718, 0.0
        %v4091 = vmax.f32 %v3720, 0.0
        %v4092 = vmax.f32 %v2150, 0.0
        %v4093 = vmax.f32 %v2152, 0.0
        %v4094 = vmax.f32 %v2936, 0.0
        %v4095 = vmax.f32 %v2938, 0.0
        %v4096 = vmax.f32 %v3722, 0.0
        %v4097 = vmax.f32 %v3724, 0.0
        %v4098 = vmax.f32 %v2156, 0.0
        %v4099 = vmax.f32 %v2158, 0.0
        %v4100 = vmax.f32 %v2942, 0.0
        %v4101 = vmax.f32 %v2944, 0.0
        %v4102 = vmax.f32 %v3728, 0.0
        %v4103 = vmax.f32 %v3730, 0.0
        %v4104 = vmax.f32 %v2160, 0.0
        %v4105 = vmax.f32 %v2162, 0.0
        %v4106 = vmax.f32 %v2946, 0.0
        %v4107 = vmax.f32 %v2948, 0.0
        %v4108 = vmax.f32 %v3732, 0.0
        %v4109 = vmax.f32 %v3734, 0.0
        %v4110 = vmax.f32 %v2166, 0.0
        %v4111 = vmax.f32 %v2168, 0.0
        %v4112 = vmax.f32 %v2952, 0.0
        %v4113 = vmax.f32 %v2954, 0.0
        %v4114 = vmax.f32 %v3738, 0.0
        %v4115 = vmax.f32 %v3740, 0.0
        %v4116 = vmax.f32 %v2170, 0.0
        %v4117 = vmax.f32 %v2172, 0.0
        %v4118 = vmax.f32 %v2956, 0.0
        %v4119 = vmax.f32 %v2958, 0.0
        %v4120 = vmax.f32 %v3742, 0.0
        %v4121 = vmax.f32 %v3744, 0.0
        %v4122 = vmax.f32 %v2176, 0.0
        %v4123 = vmax.f32 %v2178, 0.0
        %v4124 = vmax.f32 %v2962, 0.0
        %v4125 = vmax.f32 %v2964, 0.0
        %v4126 = vmax.f32 %v3748, 0.0
        %v4127 = vmax.f32 %v3750, 0.0
        %v4128 = vmax.f32 %v2180, 0.0
        %v4129 = vmax.f32 %v2182, 0.0
        %v4130 = vmax.f32 %v2966, 0.0
        %v4131 = vmax.f32 %v2968, 0.0
        %v4132 = vmax.f32 %v3752, 0.0
        %v4133 = vmax.f32 %v3754, 0.0
        %v4134 = vmax.f32 %v2186, 0.0
        %v4135 = vmax.f32 %v2188, 0.0
        %v4136 = vmax.f32 %v2972, 0.0
        %v4137 = vmax.f32 %v2974, 0.0
        %v4138 = vmax.f32 %v3758, 0.0
        %v4139 = vmax.f32 %v3760, 0.0
        %v4140 = vmax.f32 %v2190, 0.0
        %v4141 = vmax.f32 %v2192, 0.0
        %v4142 = vmax.f32 %v2976, 0.0
        %v4143 = vmax.f32 %v2978, 0.0
        %v4144 = vmax.f32 %v3762, 0.0
        %v4145 = vmax.f32 %v3764, 0.0
        %v4146 = vmax.f32 %v2196, 0.0
        %v4147 = vmax.f32 %v2198, 0.0
        %v4148 = vmax.f32 %v2982, 0.0
        %v4149 = vmax.f32 %v2984, 0.0
        %v4150 = vmax.f32 %v3768, 0.0
        %v4151 = vmax.f32 %v3770, 0.0
        %v4152 = vmax.f32 %v2200, 0.0
        %v4153 = vmax.f32 %v2202, 0.0
        %v4154 = vmax.f32 %v2986, 0.0
        %v4155 = vmax.f32 %v2988, 0.0
        %v4156 = vmax.f32 %v3772, 0.0
        %v4157 = vmax.f32 %v3774, 0.0
        %v4158 = vmax.f32 %v2206, 0.0
        %v4159 = vmax.f32 %v2208, 0.0
        %v4160 = vmax.f32 %v2992, 0.0
        %v4161 = vmax.f32 %v2994, 0.0
        %v4162 = vmax.f32 %v3778, 0.0
        %v4163 = vmax.f32 %v3780, 0.0
        %v4164 = vmax.f32 %v2210, 0.0
        %v4165 = vmax.f32 %v2212, 0.0
        %v4166 = vmax.f32 %v2996, 0.0
        %v4167 = vmax.f32 %v2998, 0.0
        %v4168 = vmax.f32 %v3782, 0.0
        %v4169 = vmax.f32 %v3784, 0.0
        %v4170 = vmax.f32 %v2216, 0.0
        %v4171 = vmax.f32 %v2218, 0.0
        %v4172 = vmax.f32 %v3002, 0.0
        %v4173 = vmax.f32 %v3004, 0.0
        %v4174 = vmax.f32 %v3788, 0.0
        %v4175 = vmax.f32 %v3790, 0.0
        %v4176 = vmax.f32 %v2220, 0.0
        %v4177 = vmax.f32 %v2222, 0.0
        %v4178 = vmax.f32 %v3006, 0.0
        %v4179 = vmax.f32 %v3008, 0.0
        %v4180 = vmax.f32 %v3792, 0.0
        %v4181 = vmax.f32 %v3794, 0.0
        %v4182 = vmax.f32 %v2226, 0.0
        %v4183 = vmax.f32 %v2228, 0.0
        %v4184 = vmax.f32 %v3012, 0.0
        %v4185 = vmax.f32 %v3014, 0.0
        %v4186 = vmax.f32 %v3798, 0.0
        %v4187 = vmax.f32 %v3800, 0.0
        %v4188 = vmax.f32 %v2230, 0.0
        %v4189 = vmax.f32 %v2232, 0.0
        %v4190 = vmax.f32 %v3016, 0.0
        %v4191 = vmax.f32 %v3018, 0.0
        %v4192 = vmax.f32 %v3802, 0.0
        %v4193 = vmax.f32 %v3804, 0.0
        %v4194 = vmax.f32 %v2236, 0.0
        %v4195 = vmax.f32 %v2238, 0.0
        %v4196 = vmax.f32 %v3022, 0.0
        %v4197 = vmax.f32 %v3024, 0.0
        %v4198 = vmax.f32 %v3808, 0.0
        %v4199 = vmax.f32 %v3810, 0.0
        %v4200 = vmax.f32 %v2240, 0.0
        %v4201 = vmax.f32 %v2242, 0.0
        %v4202 = vmax.f32 %v3026, 0.0
        %v4203 = vmax.f32 %v3028, 0.0
        %v4204 = vmax.f32 %v3812, 0.0
        %v4205 = vmax.f32 %v3814, 0.0
        %v4206 = vmax.f32 %v2246, 0.0
        %v4207 = vmax.f32 %v2248, 0.0
        %v4208 = vmax.f32 %v3032, 0.0
        %v4209 = vmax.f32 %v3034, 0.0
        %v4210 = vmax.f32 %v3818, 0.0
        %v4211 = vmax.f32 %v3820, 0.0
        %v4212 = vmax.f32 %v2250, 0.0
        %v4213 = vmax.f32 %v2252, 0.0
        %v4214 = vmax.f32 %v3036, 0.0
        %v4215 = vmax.f32 %v3038, 0.0
        %v4216 = vmax.f32 %v3822, 0.0
        %v4217 = vmax.f32 %v3824, 0.0
        %v4218 = vmax.f32 %v2256, 0.0
        %v4219 = vmax.f32 %v2258, 0.0
        %v4220 = vmax.f32 %v3042, 0.0
        %v4221 = vmax.f32 %v3044, 0.0
        %v4222 = vmax.f32 %v3828, 0.0
        %v4223 = vmax.f32 %v3830, 0.0
        %v4224 = vmax.f32 %v2260, 0.0
        %v4225 = vmax.f32 %v2262, 0.0
        %v4226 = vmax.f32 %v3046, 0.0
        %v4227 = vmax.f32 %v3048, 0.0
        %v4228 = vmax.f32 %v3832, 0.0
        %v4229 = vmax.f32 %v3834, 0.0
        %v4230 = vmax.f32 %v2266, 0.0
        %v4231 = vmax.f32 %v2268, 0.0
        %v4232 = vmax.f32 %v3052, 0.0
        %v4233 = vmax.f32 %v3054, 0.0
        %v4234 = vmax.f32 %v3838, 0.0
        %v4235 = vmax.f32 %v3840, 0.0
        %v4236 = vmax.f32 %v2270, 0.0
        %v4237 = vmax.f32 %v2272, 0.0
        %v4238 = vmax.f32 %v3056, 0.0
        %v4239 = vmax.f32 %v3058, 0.0
        %v4240 = vmax.f32 %v3842, 0.0
        %v4241 = vmax.f32 %v3844, 0.0
        %v4242 = vmax.f32 %v2276, 0.0
        %v4243 = vmax.f32 %v2278, 0.0
        %v4244 = vmax.f32 %v3062, 0.0
        %v4245 = vmax.f32 %v3064, 0.0
        %v4246 = vmax.f32 %v3848, 0.0
        %v4247 = vmax.f32 %v3850, 0.0
        %v4248 = vmax.f32 %v2280, 0.0
        %v4249 = vmax.f32 %v2282, 0.0
        %v4250 = vmax.f32 %v3066, 0.0
        %v4251 = vmax.f32 %v3068, 0.0
        %v4252 = vmax.f32 %v3852, 0.0
        %v4253 = vmax.f32 %v3854, 0.0
        %v4254 = vmax.f32 %v2286, 0.0
        %v4255 = vmax.f32 %v2288, 0.0
        %v4256 = vmax.f32 %v3072, 0.0
        %v4257 = vmax.f32 %v3074, 0.0
        %v4258 = vmax.f32 %v3858, 0.0
        %v4259 = vmax.f32 %v3860, 0.0
        %v4260 = vmax.f32 %v2290, 0.0
        %v4261 = vmax.f32 %v2292, 0.0
        %v4262 = vmax.f32 %v3076, 0.0
        %v4263 = vmax.f32 %v3078, 0.0
        %v4264 = vmax.f32 %v3862, 0.0
        %v4265 = vmax.f32 %v3864, 0.0
        %v4266 = vmax.f32 %v2296, 0.0
        %v4267 = vmax.f32 %v2298, 0.0
        %v4268 = vmax.f32 %v3082, 0.0
        %v4269 = vmax.f32 %v3084, 0.0
        %v4270 = vmax.f32 %v3868, 0.0
        %v4271 = vmax.f32 %v3870, 0.0
        %v4272 = vmax.f32 %v2300, 0.0
        %v4273 = vmax.f32 %v2302, 0.0
        %v4274 = vmax.f32 %v3086, 0.0
        %v4275 = vmax.f32 %v3088, 0.0
        %v4276 = vmax.f32 %v3872, 0.0
        %v4277 = vmax.f32 %v3874, 0.0
        %v4278 = vmax.f32 %v2306, 0.0
        %v4279 = vmax.f32 %v2308, 0.0
        %v4280 = vmax.f32 %v3092, 0.0
        %v4281 = vmax.f32 %v3094, 0.0
        %v4282 = vmax.f32 %v3878, 0.0
        %v4283 = vmax.f32 %v3880, 0.0
        %v4284 = vmax.f32 %v2310, 0.0
        %v4285 = vmax.f32 %v2312, 0.0
        %v4286 = vmax.f32 %v3096, 0.0
        %v4287 = vmax.f32 %v3098, 0.0
        %v4288 = vmax.f32 %v3882, 0.0
        %v4289 = vmax.f32 %v3884, 0.0
        %v4290 = vmax.f32 %v2316, 0.0
        %v4291 = vmax.f32 %v2318, 0.0
        %v4292 = vmax.f32 %v3102, 0.0
        %v4293 = vmax.f32 %v3104, 0.0
        %v4294 = vmax.f32 %v3888, 0.0
        %v4295 = vmax.f32 %v3890, 0.0
        %v4296 = vmax.f32 %v2320, 0.0
        %v4297 = vmax.f32 %v2322, 0.0
        %v4298 = vmax.f32 %v3106, 0.0
        %v4299 = vmax.f32 %v3108, 0.0
        %v4300 = vmax.f32 %v3892, 0.0
        %v4301 = vmax.f32 %v3894, 0.0
        %v4302 = vmax.f32 %v2326, 0.0
        %v4303 = vmax.f32 %v2328, 0.0
        %v4304 = vmax.f32 %v3112, 0.0
        %v4305 = vmax.f32 %v3114, 0.0
        %v4306 = vmax.f32 %v3898, 0.0
        %v4307 = vmax.f32 %v3900, 0.0
        %v4308 = vmax.f32 %v2330, 0.0
        %v4309 = vmax.f32 %v2332, 0.0
        %v4310 = vmax.f32 %v3116, 0.0
        %v4311 = vmax.f32 %v3118, 0.0
        %v4312 = vmax.f32 %v3902, 0.0
        %v4313 = vmax.f32 %v3904, 0.0
        %v4314 = vmax.f32 %v2336, 0.0
        %v4315 = vmax.f32 %v2338, 0.0
        %v4316 = vmax.f32 %v3122, 0.0
        %v4317 = vmax.f32 %v3124, 0.0
        %v4318 = vmax.f32 %v3908, 0.0
        %v4319 = vmax.f32 %v3910, 0.0
        %v4320 = vmax.f32 %v2340, 0.0
        %v4321 = vmax.f32 %v2342, 0.0
        %v4322 = vmax.f32 %v3126, 0.0
        %v4323 = vmax.f32 %v3128, 0.0
        %v4324 = vmax.f32 %v3912, 0.0
        %v4325 = vmax.f32 %v3914, 0.0
        %v4326 = vmax.f32 %v2346, 0.0
        %v4327 = vmax.f32 %v2348, 0.0
        %v4328 = vmax.f32 %v3132, 0.0
        %v4329 = vmax.f32 %v3134, 0.0
        %v4330 = vmax.f32 %v3918, 0.0
        %v4331 = vmax.f32 %v3920, 0.0
        %v4332 = vmax.f32 %v2350, 0.0
        %v4333 = vmax.f32 %v2352, 0.0
        %v4334 = vmax.f32 %v3136, 0.0
        %v4335 = vmax.f32 %v3138, 0.0
        %v4336 = vmax.f32 %v3922, 0.0
        %v4337 = vmax.f32 %v3924, 0.0
        %v4338 = vmax.f32 %v2356, 0.0
        %v4339 = vmax.f32 %v2358, 0.0
        %v4340 = vmax.f32 %v3142, 0.0
        %v4341 = vmax.f32 %v3144, 0.0
        %v4342 = vmax.f32 %v3928, 0.0
        %v4343 = vmax.f32 %v3930, 0.0
        %v4344 = vmax.f32 %v2360, 0.0
        %v4345 = vmax.f32 %v2362, 0.0
        %v4346 = vmax.f32 %v3146, 0.0
        %v4347 = vmax.f32 %v3148, 0.0
        %v4348 = vmax.f32 %v3932, 0.0
        %v4349 = vmax.f32 %v3934, 0.0
        %v4350 = vmax.f32 %v2366, 0.0
        %v4351 = vmax.f32 %v2368, 0.0
        %v4352 = vmax.f32 %v3152, 0.0
        %v4353 = vmax.f32 %v3154, 0.0
        %v4354 = vmax.f32 %v3938, 0.0
        %v4355 = vmax.f32 %v3940, 0.0
        %v4356 = vmax.f32 %v2370, 0.0
        %v4357 = vmax.f32 %v2372, 0.0
        %v4358 = vmax.f32 %v3156, 0.0
        %v4359 = vmax.f32 %v3158, 0.0
        %v4360 = vmax.f32 %v3942, 0.0
        %v4361 = vmax.f32 %v3944, 0.0
        %v4362 = vmax.f32 %v2376, 0.0
        %v4363 = vmax.f32 %v2378, 0.0
        %v4364 = vmax.f32 %v3162, 0.0
        %v4365 = vmax.f32 %v3164, 0.0
        %v4366 = vmax.f32 %v3948, 0.0
        %v4367 = vmax.f32 %v3950, 0.0
        %v4368 = vmax.f32 %v2380, 0.0
        %v4369 = vmax.f32 %v2382, 0.0
        %v4370 = vmax.f32 %v3166, 0.0
        %v4371 = vmax.f32 %v3168, 0.0
        %v4372 = vmax.f32 %v3952, 0.0
        %v4373 = vmax.f32 %v3954, 0.0
        %v4374 = vmax.f32 %v2386, 0.0
        %v4375 = vmax.f32 %v2388, 0.0
        %v4376 = vmax.f32 %v3172, 0.0
        %v4377 = vmax.f32 %v3174, 0.0
        %v4378 = vmax.f32 %v3958, 0.0
        %v4379 = vmax.f32 %v3960, 0.0
        %v4380 = vmax.f32 %v2390, 0.0
        %v4381 = vmax.f32 %v2392, 0.0
        %v4382 = vmax.f32 %v3176, 0.0
        %v4383 = vmax.f32 %v3178, 0.0
        %v4384 = vmax.f32 %v3962, 0.0
        %v4385 = vmax.f32 %v3964, 0.0
        %v4386 = vmax.f32 %v2396, 0.0
        %v4387 = vmax.f32 %v2398, 0.0
        %v4388 = vmax.f32 %v3182, 0.0
        %v4389 = vmax.f32 %v3184, 0.0
        %v4390 = vmax.f32 %v3968, 0.0
        %v4391 = vmax.f32 %v3970, 0.0
        %v4392 = vmax.f32 %v2400, 0.0
        %v4393 = vmax.f32 %v2402, 0.0
        %v4394 = vmax.f32 %v3186, 0.0
        %v4395 = vmax.f32 %v3188, 0.0
        %v4396 = vmax.f32 %v3972, 0.0
        %v4397 = vmax.f32 %v3974, 0.0
        %v4398 = vmax.f32 %v2406, 0.0
        %v4399 = vmax.f32 %v2408, 0.0
        %v4400 = vmax.f32 %v3192, 0.0
        %v4401 = vmax.f32 %v3194, 0.0
        %v4402 = vmax.f32 %v3978, 0.0
        %v4403 = vmax.f32 %v3980, 0.0
        %v4404 = vmax.f32 %v2410, 0.0
        %v4405 = vmax.f32 %v2412, 0.0
        %v4406 = vmax.f32 %v3196, 0.0
        %v4407 = vmax.f32 %v3198, 0.0
        %v4408 = vmax.f32 %v3982, 0.0
        %v4409 = vmax.f32 %v3984, 0.0
        %v4410 = vmax.f32 %v2416, 0.0
        %v4411 = vmax.f32 %v2418, 0.0
        %v4412 = vmax.f32 %v3202, 0.0
        %v4413 = vmax.f32 %v3204, 0.0
        %v4414 = vmax.f32 %v3988, 0.0
        %v4415 = vmax.f32 %v3990, 0.0
        %v4416 = vmax.f32 %v2420, 0.0
        %v4417 = vmax.f32 %v2422, 0.0
        %v4418 = vmax.f32 %v3206, 0.0
        %v4419 = vmax.f32 %v3208, 0.0
        %v4420 = vmax.f32 %v3992, 0.0
        %v4421 = vmax.f32 %v3994, 0.0
        %v4422 = vmax.f32 %v2426, 0.0
        %v4423 = vmax.f32 %v2428, 0.0
        %v4424 = vmax.f32 %v3212, 0.0
        %v4425 = vmax.f32 %v3214, 0.0
        %v4426 = vmax.f32 %v3998, 0.0
        %v4427 = vmax.f32 %v4000, 0.0
        %v4428 = vmax.f32 %v2430, 0.0
        %v4429 = vmax.f32 %v2432, 0.0
        %v4430 = vmax.f32 %v3216, 0.0
        %v4431 = vmax.f32 %v3218, 0.0
        %v4432 = vmax.f32 %v4002, 0.0
        %v4433 = vmax.f32 %v4004, 0.0
        %v4434 = vmax.f32 %v2436, 0.0
        %v4435 = vmax.f32 %v2438, 0.0
        %v4436 = vmax.f32 %v3222, 0.0
        %v4437 = vmax.f32 %v3224, 0.0
        %v4438 = vmax.f32 %v4008, 0.0
        %v4439 = vmax.f32 %v4010, 0.0
        %v4440 = vmax.f32 %v2440, 0.0
        %v4441 = vmax.f32 %v2442, 0.0
        %v4442 = vmax.f32 %v3226, 0.0
        %v4443 = vmax.f32 %v3228, 0.0
        %v4444 = vmax.f32 %v4012, 0.0
        %v4445 = vmax.f32 %v4014, 0.0
        %v4446 = vmax.f32 %v2446, 0.0
        %v4447 = vmax.f32 %v2448, 0.0
        %v4448 = vmax.f32 %v3232, 0.0
        %v4449 = vmax.f32 %v3234, 0.0
        %v4450 = vmax.f32 %v4018, 0.0
        %v4451 = vmax.f32 %v4020, 0.0
        %v4452 = vmax.f32 %v2450, 0.0
        %v4453 = vmax.f32 %v2452, 0.0
        %v4454 = vmax.f32 %v3236, 0.0
        %v4455 = vmax.f32 %v3238, 0.0
        %v4456 = vmax.f32 %v4022, 0.0
        %v4457 = vmax.f32 %v4024, 0.0
        %v4458 = vmax.f32 %v4026, %v4044
        %v4459 = vmax.f32 %v4027, %v4045
        %v4460 = vmax.f32 %v4028, %v4046
        %v4461 = vmax.f32 %v4029, %v4047
        %v4462 = vmax.f32 %v4030, %v4048
        %v4463 = vmax.f32 %v4031, %v4049
        %v4464 = vmax.f32 %v4032, %v4050
        %v4465 = vmax.f32 %v4033, %v4051
        %v4466 = vmax.f32 %v4034, %v4052
        %v4467 = vmax.f32 %v4035, %v4053
        %v4468 = vmax.f32 %v4036, %v4054
        %v4469 = vmax.f32 %v4037, %v4055
        %v4470 = vmax.f32 %v4038, %v4056
        %v4471 = vmax.f32 %v4039, %v4057
        %v4472 = vmax.f32 %v4040, %v4058
        %v4473 = vmax.f32 %v4041, %v4059
        %v4474 = vmax.f32 %v4042, %v4060
        %v4475 = vmax.f32 %v4043, %v4061
        %v4476 = vmax.f32 %v4062, %v4080
        %v4477 = vmax.f32 %v4063, %v4081
        %v4478 = vmax.f32 %v4064, %v4082
        %v4479 = vmax.f32 %v4065, %v4083
        %v4480 = vmax.f32 %v4066, %v4084
        %v4481 = vmax.f32 %v4067, %v4085
        %v4482 = vmax.f32 %v4068, %v4086
        %v4483 = vmax.f32 %v4069, %v4087
        %v4484 = vmax.f32 %v4070, %v4088
        %v4485 = vmax.f32 %v4071, %v4089
        %v4486 = vmax.f32 %v4072, %v4090
        %v4487 = vmax.f32 %v4073, %v4091
        %v4488 = vmax.f32 %v4074, %v4092
        %v4489 = vmax.f32 %v4075, %v4093
        %v4490 = vmax.f32 %v4076, %v4094
        %v4491 = vmax.f32 %v4077, %v4095
        %v4492 = vmax.f32 %v4078, %v4096
        %v4493 = vmax.f32 %v4079, %v4097
        %v4494 = vmax.f32 %v4098, %v4116
        %v4495 = vmax.f32 %v4099, %v4117
        %v4496 = vmax.f32 %v4100, %v4118
        %v4497 = vmax.f32 %v4101, %v4119
        %v4498 = vmax.f32 %v4102, %v4120
        %v4499 = vmax.f32 %v4103, %v4121
        %v4500 = vmax.f32 %v4104, %v4122
        %v4501 = vmax.f32 %v4105, %v4123
        %v4502 = vmax.f32 %v4106, %v4124
        %v4503 = vmax.f32 %v4107, %v4125
        %v4504 = vmax.f32 %v4108, %v4126
        %v4505 = vmax.f32 %v4109, %v4127
        %v4506 = vmax.f32 %v4110, %v4128
        %v4507 = vmax.f32 %v4111, %v4129
        %v4508 = vmax.f32 %v4112, %v4130
        %v4509 = vmax.f32 %v4113, %v4131
        %v4510 = vmax.f32 %v4114, %v4132
        %v4511 = vmax.f32 %v4115, %v4133
        %v4512 = vmax.f32 %v4134, %v4152
        %v4513 = vmax.f32 %v4135, %v4153
        %v4514 = vmax.f32 %v4136, %v4154
        %v4515 = vmax.f32 %v4137, %v4155
        %v4516 = vmax.f32 %v4138, %v4156
        %v4517 = vmax.f32 %v4139, %v4157
        %v4518 = vmax.f32 %v4140, %v4158
        %v4519 = vmax.f32 %v4141, %v4159
        %v4520 = vmax.f32 %v4142, %v4160
        %v4521 = vmax.f32 %v4143, %v4161
        %v4522 = vmax.f32 %v4144, %v4162
        %v4523 = vmax.f32 %v4145, %v4163
        %v4524 = vmax.f32 %v4146, %v4164
        %v4525 = vmax.f32 %v4147, %v4165
        %v4526 = vmax.f32 %v4148, %v4166
        %v4527 = vmax.f32 %v4149, %v4167
        %v4528 = vmax.f32 %v4150, %v4168
        %v4529 = vmax.f32 %v4151, %v4169
        %v4530 = vmax.f32 %v4170, %v4188
        %v4531 = vmax.f32 %v4171, %v4189
        %v4532 = vmax.f32 %v4172, %v4190
        %v4533 = vmax.f32 %v4173, %v4191
        %v4534 = vmax.f32 %v4174, %v4192
        %v4535 = vmax.f32 %v4175, %v4193
        %v4536 = vmax.f32 %v4176, %v4194
        %v4537 = vmax.f32 %v4177, %v4195
        %v4538 = vmax.f32 %v4178, %v4196
        %v4539 = vmax.f32 %v4179, %v4197
        %v4540 = vmax.f32 %v4180, %v4198
        %v4541 = vmax.f32 %v4181, %v4199
        %v4542 = vmax.f32 %v4182, %v4200
        %v4543 = vmax.f32 %v4183, %v4201
        %v4544 = vmax.f32 %v4184, %v4202
        %v4545 = vmax.f32 %v4185, %v4203
        %v4546 = vmax.f32 %v4186, %v4204
        %v4547 = vmax.f32 %v4187, %v4205
        %v4548 = vmax.f32 %v4206, %v4224
        %v4549 = vmax.f32 %v4207, %v4225
        %v4550 = vmax.f32 %v4208, %v4226
        %v4551 = vmax.f32 %v4209, %v4227
        %v4552 = vmax.f32 %v4210, %v4228
        %v4553 = vmax.f32 %v4211, %v4229
        %v4554 = vmax.f32 %v4212, %v4230
        %v4555 = vmax.f32 %v4213, %v4231
        %v4556 = vmax.f32 %v4214, %v4232
        %v4557 = vmax.f32 %v4215, %v4233
        %v4558 = vmax.f32 %v4216, %v4234
        %v4559 = vmax.f32 %v4217, %v4235
        %v4560 = vmax.f32 %v4218, %v4236
        %v4561 = vmax.f32 %v4219, %v4237
        %v4562 = vmax.f32 %v4220, %v4238
        %v4563 = vmax.f32 %v4221, %v4239
        %v4564 = vmax.f32 %v4222, %v4240
        %v4565 = vmax.f32 %v4223, %v4241
        %v4566 = vmax.f32 %v4242, %v4260
        %v4567 = vmax.f32 %v4243, %v4261
        %v4568 = vmax.f32 %v4244, %v4262
        %v4569 = vmax.f32 %v4245, %v4263
        %v4570 = vmax.f32 %v4246, %v4264
        %v4571 = vmax.f32 %v4247, %v4265
        %v4572 = vmax.f32 %v4248, %v4266
        %v4573 = vmax.f32 %v4249, %v4267
        %v4574 = vmax.f32 %v4250, %v4268
        %v4575 = vmax.f32 %v4251, %v4269
        %v4576 = vmax.f32 %v4252, %v4270
        %v4577 = vmax.f32 %v4253, %v4271
        %v4578 = vmax.f32 %v4254, %v4272
        %v4579 = vmax.f32 %v4255, %v4273
        %v4580 = vmax.f32 %v4256, %v4274
        %v4581 = vmax.f32 %v4257, %v4275
        %v4582 = vmax.f32 %v4258, %v4276
        %v4583 = vmax.f32 %v4259, %v4277
        %v4584 = vmax.f32 %v4278, %v4296
        %v4585 = vmax.f32 %v4279, %v4297
        %v4586 = vmax.f32 %v4280, %v4298
        %v4587 = vmax.f32 %v4281, %v4299
        %v4588 = vmax.f32 %v4282, %v4300
        %v4589 = vmax.f32 %v4283, %v4301
        %v4590 = vmax.f32 %v4284, %v4302
        %v4591 = vmax.f32 %v4285, %v4303
        %v4592 = vmax.f32 %v4286, %v4304
        %v4593 = vmax.f32 %v4287, %v4305
        %v4594 = vmax.f32 %v4288, %v4306
        %v4595 = vmax.f32 %v4289, %v4307
        %v4596 = vmax.f32 %v4290, %v4308
        %v4597 = vmax.f32 %v4291, %v4309
        %v4598 = vmax.f32 %v4292, %v4310
        %v4599 = vmax.f32 %v4293, %v4311
        %v4600 = vmax.f32 %v4294, %v4312
        %v4601 = vmax.f32 %v4295, %v4313
        %v4602 = vmax.f32 %v4314, %v4332
        %v4603 = vmax.f32 %v4315, %v4333
        %v4604 = vmax.f32 %v4316, %v4334
        %v4605 = vmax.f32 %v4317, %v4335
        %v4606 = vmax.f32 %v4318, %v4336
        %v4607 = vmax.f32 %v4319, %v4337
        %v4608 = vmax.f32 %v4320, %v4338
        %v4609 = vmax.f32 %v4321, %v4339
        %v4610 = vmax.f32 %v4322, %v4340
        %v4611 = vmax.f32 %v4323, %v4341
        %v4612 = vmax.f32 %v4324, %v4342
        %v4613 = vmax.f32 %v4325, %v4343
        %v4614 = vmax.f32 %v4326, %v4344
        %v4615 = vmax.f32 %v4327, %v4345
        %v4616 = vmax.f32 %v4328, %v4346
        %v4617 = vmax.f32 %v4329, %v4347
        %v4618 = vmax.f32 %v4330, %v4348
        %v4619 = vmax.f32 %v4331, %v4349
        %v4620 = vmax.f32 %v4350, %v4368
        %v4621 = vmax.f32 %v4351, %v4369
        %v4622 = vmax.f32 %v4352, %v4370
        %v4623 = vmax.f32 %v4353, %v4371
        %v4624 = vmax.f32 %v4354, %v4372
        %v4625 = vmax.f32 %v4355, %v4373
        %v4626 = vmax.f32 %v4356, %v4374
        %v4627 = vmax.f32 %v4357, %v4375
        %v4628 = vmax.f32 %v4358, %v4376
        %v4629 = vmax.f32 %v4359, %v4377
        %v4630 = vmax.f32 %v4360, %v4378
        %v4631 = vmax.f32 %v4361, %v4379
        %v4632 = vmax.f32 %v4362, %v4380
        %v4633 = vmax.f32 %v4363, %v4381
        %v4634 = vmax.f32 %v4364, %v4382
        %v4635 = vmax.f32 %v4365, %v4383
        %v4636 = vmax.f32 %v4366, %v4384
        %v4637 = vmax.f32 %v4367, %v4385
        %v4638 = vmax.f32 %v4386, %v4404
        %v4639 = vmax.f32 %v4387, %v4405
        %v4640 = vmax.f32 %v4388, %v4406
        %v4641 = vmax.f32 %v4389, %v4407
        %v4642 = vmax.f32 %v4390, %v4408
        %v4643 = vmax.f32 %v4391, %v4409
        %v4644 = vmax.f32 %v4392, %v4410
        %v4645 = vmax.f32 %v4393, %v4411
        %v4646 = vmax.f32 %v4394, %v4412
        %v4647 = vmax.f32 %v4395, %v4413
        %v4648 = vmax.f32 %v4396, %v4414
        %v4649 = vmax.f32 %v4397, %v4415
        %v4650 = vmax.f32 %v4398, %v4416
        %v4651 = vmax.f32 %v4399, %v4417
        %v4652 = vmax.f32 %v4400, %v4418
        %v4653 = vmax.f32 %v4401, %v4419
        %v4654 = vmax.f32 %v4402, %v4420
        %v4655 = vmax.f32 %v4403, %v4421
        %v4656 = vmax.f32 %v4422, %v4440
        %v4657 = vmax.f32 %v4423, %v4441
        %v4658 = vmax.f32 %v4424, %v4442
        %v4659 = vmax.f32 %v4425, %v4443
        %v4660 = vmax.f32 %v4426, %v4444
        %v4661 = vmax.f32 %v4427, %v4445
        %v4662 = vmax.f32 %v4428, %v4446
        %v4663 = vmax.f32 %v4429, %v4447
        %v4664 = vmax.f32 %v4430, %v4448
        %v4665 = vmax.f32 %v4431, %v4449
        %v4666 = vmax.f32 %v4432, %v4450
        %v4667 = vmax.f32 %v4433, %v4451
        %v4668 = vmax.f32 %v4434, %v4452
        %v4669 = vmax.f32 %v4435, %v4453
        %v4670 = vmax.f32 %v4436, %v4454
        %v4671 = vmax.f32 %v4437, %v4455
        %v4672 = vmax.f32 %v4438, %v4456
        %v4673 = vmax.f32 %v4439, %v4457
        %v4674 = vmax.f32 %v4458, %v4461
        %v4675 = vmax.f32 %v4459, %v4462
        %v4676 = vmax.f32 %v4460, %v4463
        %v4677 = vmax.f32 %v4464, %v4467
        %v4678 = vmax.f32 %v4465, %v4468
        %v4679 = vmax.f32 %v4466, %v4469
        %v4680 = vmax.f32 %v4470, %v4473
        %v4681 = vmax.f32 %v4471, %v4474
        %v4682 = vmax.f32 %v4472, %v4475
        %v4683 = vmax.f32 %v4476, %v4479
        %v4684 = vmax.f32 %v4477, %v4480
        %v4685 = vmax.f32 %v4478, %v4481
        %v4686 = vmax.f32 %v4482, %v4485
        %v4687 = vmax.f32 %v4483, %v4486
        %v4688 = vmax.f32 %v4484, %v4487
        %v4689 = vmax.f32 %v4488, %v4491
        %v4690 = vmax.f32 %v4489, %v4492
        %v4691 = vmax.f32 %v4490, %v4493
        %v4692 = vmax.f32 %v4494, %v4497
        %v4693 = vmax.f32 %v4495, %v4498
        %v4694 = vmax.f32 %v4496, %v4499
        %v4695 = vmax.f32 %v4500, %v4503
        %v4696 = vmax.f32 %v4501, %v4504
        %v4697 = vmax.f32 %v4502, %v4505
        %v4698 = vmax.f32 %v4506, %v4509
        %v4699 = vmax.f32 %v4507, %v4510
        %v4700 = vmax.f32 %v4508, %v4511
        %v4701 = vmax.f32 %v4512, %v4515
        %v4702 = vmax.f32 %v4513, %v4516
        %v4703 = vmax.f32 %v4514, %v4517
        %v4704 = vmax.f32 %v4518, %v4521
        %v4705 = vmax.f32 %v4519, %v4522
        %v4706 = vmax.f32 %v4520, %v4523
        %v4707 = vmax.f32 %v4524, %v4527
        %v4708 = vmax.f32 %v4525, %v4528
        %v4709 = vmax.f32 %v4526, %v4529
        %v4710 = vmax.f32 %v4530, %v4533
        %v4711 = vmax.f32 %v4531, %v4534
        %v4712 = vmax.f32 %v4532, %v4535
        %v4713 = vmax.f32 %v4536, %v4539
        %v4714 = vmax.f32 %v4537, %v4540
        %v4715 = vmax.f32 %v4538, %v4541
        %v4716 = vmax.f32 %v4542, %v4545
        %v4717 = vmax.f32 %v4543, %v4546
        %v4718 = vmax.f32 %v4544, %v4547
        %v4719 = vmax.f32 %v4548, %v4551
        %v4720 = vmax.f32 %v4549, %v4552
        %v4721 = vmax.f32 %v4550, %v4553
        %v4722 = vmax.f32 %v4554, %v4557
        %v4723 = vmax.f32 %v4555, %v4558
        %v4724 = vmax.f32 %v4556, %v4559
        %v4725 = vmax.f32 %v4560, %v4563
        %v4726 = vmax.f32 %v4561, %v4564
        %v4727 = vmax.f32 %v4562, %v4565
        %v4728 = vmax.f32 %v4566, %v4569
        %v4729 = vmax.f32 %v4567, %v4570
        %v4730 = vmax.f32 %v4568, %v4571
        %v4731 = vmax.f32 %v4572, %v4575
        %v4732 = vmax.f32 %v4573, %v4576
        %v4733 = vmax.f32 %v4574, %v4577
        %v4734 = vmax.f32 %v4578, %v4581
        %v4735 = vmax.f32 %v4579, %v4582
        %v4736 = vmax.f32 %v4580, %v4583
        %v4737 = vmax.f32 %v4584, %v4587
        %v4738 = vmax.f32 %v4585, %v4588
        %v4739 = vmax.f32 %v4586, %v4589
        %v4740 = vmax.f32 %v4590, %v4593
        %v4741 = vmax.f32 %v4591, %v4594
        %v4742 = vmax.f32 %v4592, %v4595
        %v4743 = vmax.f32 %v4596, %v4599
        %v4744 = vmax.f32 %v4597, %v4600
        %v4745 = vmax.f32 %v4598, %v4601
        %v4746 = vmax.f32 %v4602, %v4605
        %v4747 = vmax.f32 %v4603, %v4606
        %v4748 = vmax.f32 %v4604, %v4607
        %v4749 = vmax.f32 %v4608, %v4611
        %v4750 = vmax.f32 %v4609, %v4612
        %v4751 = vmax.f32 %v4610, %v4613
        %v4752 = vmax.f32 %v4614, %v4617
        %v4753 = vmax.f32 %v4615, %v4618
        %v4754 = vmax.f32 %v4616, %v4619
        %v4755 = vmax.f32 %v4620, %v4623
        %v4756 = vmax.f32 %v4621, %v4624
        %v4757 = vmax.f32 %v4622, %v4625
        %v4758 = vmax.f32 %v4626, %v4629
        %v4759 = vmax.f32 %v4627, %v4630
        %v4760 = vmax.f32 %v4628, %v4631
        %v4761 = vmax.f32 %v4632, %v4635
        %v4762 = vmax.f32 %v4633, %v4636
        %v4763 = vmax.f32 %v4634, %v4637
        %v4764 = vmax.f32 %v4638, %v4641
        %v4765 = vmax.f32 %v4639, %v4642
        %v4766 = vmax.f32 %v4640, %v4643
        %v4767 = vmax.f32 %v4644, %v4647
        %v4768 = vmax.f32 %v4645, %v4648
        %v4769 = vmax.f32 %v4646, %v4649
        %v4770 = vmax.f32 %v4650, %v4653
        %v4771 = vmax.f32 %v4651, %v4654
        %v4772 = vmax.f32 %v4652, %v4655
        %v4773 = vmax.f32 %v4656, %v4659
        %v4774 = vmax.f32 %v4657, %v4660
        %v4775 = vmax.f32 %v4658, %v4661
        %v4776 = vmax.f32 %v4662, %v4665
        %v4777 = vmax.f32 %v4663, %v4666
        %v4778 = vmax.f32 %v4664, %v4667
        %v4779 = vmax.f32 %v4668, %v4671
        %v4780 = vmax.f32 %v4669, %v4672
        %v4781 = vmax.f32 %v4670, %v4673
        %v4782 = vpack.c.bf16 %v4677, %v4674
        %v4783 = vpack.c.bf16 %v4678, %v4675
        %v4784 = vpack.c.bf16 %v4679, %v4676
        %v4785 = vpack.c.bf16 %v4683, %v4680
        %v4786 = vpack.c.bf16 %v4684, %v4681
        %v4787 = vpack.c.bf16 %v4685, %v4682
        %v4788 = vpack.c.bf16 %v4689, %v4686
        %v4789 = vpack.c.bf16 %v4690, %v4687
        %v4790 = vpack.c.bf16 %v4691, %v4688
        %v4791 = vpack.c.bf16 %v4695, %v4692
        %v4792 = vpack.c.bf16 %v4696, %v4693
        %v4793 = vpack.c.bf16 %v4697, %v4694
        %v4794 = vpack.c.bf16 %v4701, %v4698
        %v4795 = vpack.c.bf16 %v4702, %v4699
        %v4796 = vpack.c.bf16 %v4703, %v4700
        %v4797 = vpack.c.bf16 %v4707, %v4704
        %v4798 = vpack.c.bf16 %v4708, %v4705
        %v4799 = vpack.c.bf16 %v4709, %v4706
        %v4800 = vld [vmem:[#allocation8] sm:$0xf]
        %v4801 = vld [vmem:[#allocation8 + $0x4] sm:$0xf]
        %v4802 = vld [vmem:[#allocation8 + $0x8] sm:$0xf]
        %v4803 = vld [vmem:[#allocation8 + $0xc] sm:$0xf]
        %v4804 = vld [vmem:[#allocation8 + $0x10] sm:$0xf]
        %v4805 = vld [vmem:[#allocation8 + $0x14] sm:$0xf]
        %v4806 = vld [vmem:[#allocation8 + $0x18] sm:$0xf]
        %v4807 = vld [vmem:[#allocation8 + $0x1c] sm:$0xf]
        %v4808 = vld [vmem:[#allocation8 + $0x20] sm:$0xf]
        %v4809 = vld [vmem:[#allocation8 + $0x24] sm:$0xf]
        %v4810 = vld [vmem:[#allocation8 + $0x28] sm:$0xf]
        %v4811 = vld [vmem:[#allocation8 + $0x2c] sm:$0xf]
        %v4812 = vld [vmem:[#allocation8 + $0x30] sm:$0xf]
        %v4813 = vld [vmem:[#allocation8 + $0x34] sm:$0xf]
        %v4814 = vld [vmem:[#allocation8 + $0x38] sm:$0xf]
        %v4815 = vld [vmem:[#allocation8 + $0x3c] sm:$0xf]
        %v4816 = vld [vmem:[#allocation8 + $0x40] sm:$0xf]
        %v4817 = vld [vmem:[#allocation8 + $0x44] sm:$0xf]
        %v4818 = vld [vmem:[#allocation8 + $0x48] sm:$0xf]
        %v4819 = vld [vmem:[#allocation8 + $0x4c] sm:$0xf]
        %v4820 = vld [vmem:[#allocation8 + $0x50] sm:$0xf]
        %v4821 = vld [vmem:[#allocation8 + $0x54] sm:$0xf]
        %v4822 = vld [vmem:[#allocation8 + $0x58] sm:$0xf]
        %v4823 = vld [vmem:[#allocation8 + $0x5c] sm:$0xf]
        %v4824 = vld [vmem:[#allocation8 + $0x60] sm:$0xf]
        %v4825 = vld [vmem:[#allocation8 + $0x64] sm:$0xf]
        %v4826 = vld [vmem:[#allocation8 + $0x68] sm:$0xf]
        %v4827 = vld [vmem:[#allocation8 + $0x6c] sm:$0xf]
        %v4828 = vld [vmem:[#allocation8 + $0x70] sm:$0xf]
        %v4829 = vld [vmem:[#allocation8 + $0x74] sm:$0xf]
        %v4830 = vld [vmem:[#allocation8 + $0x78] sm:$0xf]
        %v4831 = vld [vmem:[#allocation8 + $0x7c] sm:$0xf]
        %v4832 = vld [vmem:[#allocation8 + $0x80] sm:$0xf]
        %v4833 = vld [vmem:[#allocation8 + $0x84] sm:$0xf]
        %v4834 = vld [vmem:[#allocation8 + $0x88] sm:$0xf]
        %v4835 = vld [vmem:[#allocation8 + $0x8c] sm:$0xf]
        %v4836 = vld [vmem:[#allocation8 + $0x90] sm:$0xf]
        %v4837 = vld [vmem:[#allocation8 + $0x94] sm:$0xf]
        %v4838 = vld [vmem:[#allocation8 + $0x98] sm:$0xf]
        %v4839 = vld [vmem:[#allocation8 + $0x9c] sm:$0xf]
        %v4840 = vld [vmem:[#allocation8 + $0xa0] sm:$0xf]
        %v4841 = vld [vmem:[#allocation8 + $0xa4] sm:$0xf]
        %v4842 = vld [vmem:[#allocation8 + $0xa8] sm:$0xf]
        %v4843 = vld [vmem:[#allocation8 + $0xac] sm:$0xf]
        %v4844 = vld [vmem:[#allocation8 + $0xb0] sm:$0xf]
        %v4845 = vld [vmem:[#allocation8 + $0xb4] sm:$0xf]
        %v4846 = vld [vmem:[#allocation8 + $0xb8] sm:$0xf]
        %v4847 = vld [vmem:[#allocation8 + $0xbc] sm:$0xf]
        %v4848 = vpack.c.bf16 %v4686, %v4683
        %v4849 = vpack.c.bf16 %v4687, %v4684
        %v4850 = vpack.c.bf16 %v4688, %v4685
        %v4851 = vpack.c.bf16 %v4692, %v4689
        %v4852 = vpack.c.bf16 %v4693, %v4690
        %v4853 = vpack.c.bf16 %v4694, %v4691
        %v4854 = vpack.c.bf16 %v4698, %v4695
        %v4855 = vpack.c.bf16 %v4699, %v4696
        %v4856 = vpack.c.bf16 %v4700, %v4697
        %v4857 = vpack.c.bf16 %v4704, %v4701
        %v4858 = vpack.c.bf16 %v4705, %v4702
        %v4859 = vpack.c.bf16 %v4706, %v4703
        %v4860 = vpack.c.bf16 %v4710, %v4707
        %v4861 = vpack.c.bf16 %v4711, %v4708
        %v4862 = vpack.c.bf16 %v4712, %v4709
        %v4863 = vpack.c.bf16 %v4716, %v4713
        %v4864 = vpack.c.bf16 %v4717, %v4714
        %v4865 = vpack.c.bf16 %v4718, %v4715
        %s4866 = scalar_lea.vmem [#allocation8], 192
        %v4867 = vld [vmem:[%s4866] sm:$0xf]
        %v4868 = vld [vmem:[%s4866 + $0x4] sm:$0xf]
        %v4869 = vld [vmem:[%s4866 + $0x8] sm:$0xf]
        %v4870 = vld [vmem:[%s4866 + $0xc] sm:$0xf]
        %v4871 = vld [vmem:[%s4866 + $0x10] sm:$0xf]
        %v4872 = vld [vmem:[%s4866 + $0x14] sm:$0xf]
        %v4873 = vld [vmem:[%s4866 + $0x18] sm:$0xf]
        %v4874 = vld [vmem:[%s4866 + $0x1c] sm:$0xf]
        %v4875 = vld [vmem:[%s4866 + $0x20] sm:$0xf]
        %v4876 = vld [vmem:[%s4866 + $0x24] sm:$0xf]
        %v4877 = vld [vmem:[%s4866 + $0x28] sm:$0xf]
        %v4878 = vld [vmem:[%s4866 + $0x2c] sm:$0xf]
        %v4879 = vld [vmem:[%s4866 + $0x30] sm:$0xf]
        %v4880 = vld [vmem:[%s4866 + $0x34] sm:$0xf]
        %v4881 = vld [vmem:[%s4866 + $0x38] sm:$0xf]
        %v4882 = vld [vmem:[%s4866 + $0x3c] sm:$0xf]
        %v4883 = vld [vmem:[%s4866 + $0x40] sm:$0xf]
        %v4884 = vld [vmem:[%s4866 + $0x44] sm:$0xf]
        %v4885 = vld [vmem:[%s4866 + $0x48] sm:$0xf]
        %v4886 = vld [vmem:[%s4866 + $0x4c] sm:$0xf]
        %v4887 = vld [vmem:[%s4866 + $0x50] sm:$0xf]
        %v4888 = vld [vmem:[%s4866 + $0x54] sm:$0xf]
        %v4889 = vld [vmem:[%s4866 + $0x58] sm:$0xf]
        %v4890 = vld [vmem:[%s4866 + $0x5c] sm:$0xf]
        %v4891 = vld [vmem:[%s4866 + $0x60] sm:$0xf]
        %v4892 = vld [vmem:[%s4866 + $0x64] sm:$0xf]
        %v4893 = vld [vmem:[%s4866 + $0x68] sm:$0xf]
        %v4894 = vld [vmem:[%s4866 + $0x6c] sm:$0xf]
        %v4895 = vld [vmem:[%s4866 + $0x70] sm:$0xf]
        %v4896 = vld [vmem:[%s4866 + $0x74] sm:$0xf]
        %v4897 = vld [vmem:[%s4866 + $0x78] sm:$0xf]
        %v4898 = vld [vmem:[%s4866 + $0x7c] sm:$0xf]
        %v4899 = vld [vmem:[%s4866 + $0x80] sm:$0xf]
        %v4900 = vld [vmem:[%s4866 + $0x84] sm:$0xf]
        %v4901 = vld [vmem:[%s4866 + $0x88] sm:$0xf]
        %v4902 = vld [vmem:[%s4866 + $0x8c] sm:$0xf]
        %v4903 = vld [vmem:[%s4866 + $0x90] sm:$0xf]
        %v4904 = vld [vmem:[%s4866 + $0x94] sm:$0xf]
        %v4905 = vld [vmem:[%s4866 + $0x98] sm:$0xf]
        %v4906 = vld [vmem:[%s4866 + $0x9c] sm:$0xf]
        %v4907 = vld [vmem:[%s4866 + $0xa0] sm:$0xf]
        %v4908 = vld [vmem:[%s4866 + $0xa4] sm:$0xf]
        %v4909 = vld [vmem:[%s4866 + $0xa8] sm:$0xf]
        %v4910 = vld [vmem:[%s4866 + $0xac] sm:$0xf]
        %v4911 = vld [vmem:[%s4866 + $0xb0] sm:$0xf]
        %v4912 = vld [vmem:[%s4866 + $0xb4] sm:$0xf]
        %v4913 = vld [vmem:[%s4866 + $0xb8] sm:$0xf]
        %v4914 = vld [vmem:[%s4866 + $0xbc] sm:$0xf]
        %v4963 = vunpack.c.l.b16 %v4867
        %v4964 = vunpack.c.l.b16 %v4868
        %v4965 = vunpack.c.l.b16 %v4869
        %v4966 = vunpack.c.l.b16 %v4870
        %v4967 = vunpack.c.l.b16 %v4871
        %v4968 = vunpack.c.l.b16 %v4872
        %v4969 = vunpack.c.l.b16 %v4873
        %v4970 = vunpack.c.l.b16 %v4874
        %v4971 = vunpack.c.l.b16 %v4875
        %v4972 = vunpack.c.l.b16 %v4876
        %v4973 = vunpack.c.l.b16 %v4877
        %v4974 = vunpack.c.l.b16 %v4878
        %v4975 = vunpack.c.l.b16 %v4879
        %v4976 = vunpack.c.l.b16 %v4880
        %v4977 = vunpack.c.l.b16 %v4881
        %v4978 = vunpack.c.l.b16 %v4882
        %v4979 = vunpack.c.l.b16 %v4883
        %v4980 = vunpack.c.l.b16 %v4884
        %v4981 = vunpack.c.l.b16 %v4885
        %v4982 = vunpack.c.l.b16 %v4886
        %v4983 = vunpack.c.l.b16 %v4887
        %v4984 = vunpack.c.l.b16 %v4888
        %v4985 = vunpack.c.l.b16 %v4889
        %v4986 = vunpack.c.l.b16 %v4890
        %v4987 = vunpack.c.l.b16 %v4891
        %v4988 = vunpack.c.l.b16 %v4892
        %v4989 = vunpack.c.l.b16 %v4893
        %v4990 = vunpack.c.l.b16 %v4894
        %v4991 = vunpack.c.l.b16 %v4895
        %v4992 = vunpack.c.l.b16 %v4896
        %v4993 = vunpack.c.l.b16 %v4897
        %v4994 = vunpack.c.l.b16 %v4898
        %v4995 = vunpack.c.l.b16 %v4899
        %v4996 = vunpack.c.l.b16 %v4900
        %v4997 = vunpack.c.l.b16 %v4901
        %v4998 = vunpack.c.l.b16 %v4902
        %v4999 = vunpack.c.l.b16 %v4903
        %v5000 = vunpack.c.l.b16 %v4904
        %v5001 = vunpack.c.l.b16 %v4905
        %v5002 = vunpack.c.l.b16 %v4906
        %v5003 = vunpack.c.l.b16 %v4907
        %v5004 = vunpack.c.l.b16 %v4908
        %v5005 = vunpack.c.l.b16 %v4909
        %v5006 = vunpack.c.l.b16 %v4910
        %v5007 = vunpack.c.l.b16 %v4911
        %v5008 = vunpack.c.l.b16 %v4912
        %v5009 = vunpack.c.l.b16 %v4913
        %v5010 = vunpack.c.l.b16 %v4914
        %v5011 = vpack.c.b16 %v4964, %v4963
        %v5012 = vpack.c.b16 %v4966, %v4965
        %v5013 = vpack.c.b16 %v4968, %v4967
        %v5014 = vpack.c.b16 %v4970, %v4969
        %v5015 = vpack.c.b16 %v4972, %v4971
        %v5016 = vpack.c.b16 %v4974, %v4973
        %v5017 = vpack.c.b16 %v4976, %v4975
        %v5018 = vpack.c.b16 %v4978, %v4977
        %v5019 = vpack.c.b16 %v4980, %v4979
        %v5020 = vpack.c.b16 %v4982, %v4981
        %v5021 = vpack.c.b16 %v4984, %v4983
        %v5022 = vpack.c.b16 %v4986, %v4985
        %v5023 = vpack.c.b16 %v4988, %v4987
        %v5024 = vpack.c.b16 %v4990, %v4989
        %v5025 = vpack.c.b16 %v4992, %v4991
        %v5026 = vpack.c.b16 %v4994, %v4993
        %v5027 = vpack.c.b16 %v4996, %v4995
        %v5028 = vpack.c.b16 %v4998, %v4997
        %v5029 = vpack.c.b16 %v5000, %v4999
        %v5030 = vpack.c.b16 %v5002, %v5001
        %v5031 = vpack.c.b16 %v5004, %v5003
        %v5032 = vpack.c.b16 %v5006, %v5005
        %v5033 = vpack.c.b16 %v5008, %v5007
        %v5034 = vpack.c.b16 %v5010, %v5009
        %5059 = vmatprep.subr.bf16.mxu0 0
        %5060 = vmatpush1.bf16.msra.mxu0 %v5018
        %5061 = vmatprep.subr.bf16.mxu0 0
        %5062 = vmatpush1.bf16.msra.mxu0 %v5017
        %5063 = vmatprep.subr.bf16.mxu0 0
        %5064 = vmatpush1.bf16.msra.mxu0 %v5016
        %5065 = vmatprep.subr.bf16.mxu0 0
        %5066 = vmatpush1.bf16.msra.mxu0 %v5015
        %5067 = vmatprep.subr.bf16.mxu0 0
        %5068 = vmatpush1.bf16.msra.mxu0 %v5014
        %5069 = vmatprep.subr.bf16.mxu0 0
        %5070 = vmatpush1.bf16.msra.mxu0 %v5013
        %5071 = vmatprep.subr.bf16.mxu0 0
        %5072 = vmatpush1.bf16.msra.mxu0 %v5012
        %5073 = vmatprep.subr.bf16.mxu0 0
        %5074 = vmatpush1.bf16.msra.mxu0 %v5011
        %5075 = vmatprep.subr.bf16.mxu0 0
        %5076 = vmatpush2.bf16.msra.mxu0 %v5026
        %5077 = vmatprep.subr.bf16.mxu0 0
        %5078 = vmatpush2.bf16.msra.mxu0 %v5025
        %5079 = vmatprep.subr.bf16.mxu0 0
        %5080 = vmatpush2.bf16.msra.mxu0 %v5024
        %5081 = vmatprep.subr.bf16.mxu0 0
        %5082 = vmatpush2.bf16.msra.mxu0 %v5023
        %5083 = vmatprep.subr.bf16.mxu0 0
        %5084 = vmatpush2.bf16.msra.mxu0 %v5022
        %5085 = vmatprep.subr.bf16.mxu0 0
        %5086 = vmatpush2.bf16.msra.mxu0 %v5021
        %5087 = vmatprep.subr.bf16.mxu0 0
        %5088 = vmatpush2.bf16.msra.mxu0 %v5020
        %5089 = vmatprep.subr.bf16.mxu0 0
        %5090 = vmatpush2.bf16.msra.mxu0 %v5019
        %5091 = vmatprep.mubr.bf16.mxu0 %v4849
        %5092 = vmatmul.mubr.bf16.gmra.mxu0 %v4848
        %v5093 = vpop.f32.mrf.mxu0
        %v5094 = vadd.f32 0.0, %v5093
        %v5095 = vpop.f32.mrf.mxu0
        %v5096 = vpop.f32.mrf.mxu0
        %v5097 = vadd.f32 0.0, %v5096
        %v5098 = vpop.f32.mrf.mxu0
        %5099 = vmatprep.mubr.bf16.mxu0 %v4852
        %5100 = vmatmul.mubr.bf16.gmra.mxu0 %v4851
        %v5101 = vpop.f32.mrf.mxu0
        %v5102 = vadd.f32 0.0, %v5101
        %v5103 = vpop.f32.mrf.mxu0
        %v5104 = vpop.f32.mrf.mxu0
        %v5105 = vadd.f32 0.0, %v5104
        %v5106 = vpop.f32.mrf.mxu0
        %5107 = vmatprep.mubr.bf16.mxu0 %v4855
        %5108 = vmatmul.mubr.bf16.gmra.mxu0 %v4854
        %v5109 = vpop.f32.mrf.mxu0
        %v5110 = vadd.f32 0.0, %v5109
        %v5111 = vpop.f32.mrf.mxu0
        %v5112 = vpop.f32.mrf.mxu0
        %v5113 = vadd.f32 0.0, %v5112
        %v5114 = vpop.f32.mrf.mxu0
        %5115 = vmatprep.mubr.bf16.mxu0 %v4858
        %5116 = vmatmul.mubr.bf16.gmra.mxu0 %v4857
        %v5117 = vpop.f32.mrf.mxu0
        %v5118 = vadd.f32 0.0, %v5117
        %v5119 = vpop.f32.mrf.mxu0
        %v5120 = vpop.f32.mrf.mxu0
        %v5121 = vadd.f32 0.0, %v5120
        %v5122 = vpop.f32.mrf.mxu0
        %5123 = vmatprep.mubr.bf16.mxu0 %v4861
        %5124 = vmatmul.mubr.bf16.gmra.mxu0 %v4860
        %v5125 = vpop.f32.mrf.mxu0
        %v5126 = vadd.f32 0.0, %v5125
        %v5127 = vpop.f32.mrf.mxu0
        %v5128 = vpop.f32.mrf.mxu0
        %v5129 = vadd.f32 0.0, %v5128
        %v5130 = vpop.f32.mrf.mxu0
        %5131 = vmatprep.mubr.bf16.mxu0 %v4864
        %5132 = vmatmul.mubr.bf16.gmra.mxu0 %v4863
        %v5133 = vpop.f32.mrf.mxu0
        %v5134 = vadd.f32 0.0, %v5133
        %v5135 = vpop.f32.mrf.mxu0
        %v5136 = vpop.f32.mrf.mxu0
        %v5137 = vadd.f32 0.0, %v5136
        %v5138 = vpop.f32.mrf.mxu0
        %5139 = vdwg.mxu0
        %5140 = vmatprep.subr.bf16.mxu0 0
        %5141 = vmatpush1.bf16.msra.mxu0 %v5034
        %5142 = vmatprep.subr.bf16.mxu0 0
        %5143 = vmatpush1.bf16.msra.mxu0 %v5033
        %5144 = vmatprep.subr.bf16.mxu0 0
        %5145 = vmatpush1.bf16.msra.mxu0 %v5032
        %5146 = vmatprep.subr.bf16.mxu0 0
        %5147 = vmatpush1.bf16.msra.mxu0 %v5031
        %5148 = vmatprep.subr.bf16.mxu0 0
        %5149 = vmatpush1.bf16.msra.mxu0 %v5030
        %5150 = vmatprep.subr.bf16.mxu0 0
        %5151 = vmatpush1.bf16.msra.mxu0 %v5029
        %5152 = vmatprep.subr.bf16.mxu0 0
        %5153 = vmatpush1.bf16.msra.mxu0 %v5028
        %5154 = vmatprep.subr.bf16.mxu0 0
        %5155 = vmatpush1.bf16.msra.mxu0 %v5027
        %5156 = vmatprep.subr.bf16.mxu0 0
        %5157 = vmatpush2.bf16.msra.mxu0 0
        %5158 = vmatprep.subr.bf16.mxu0 0
        %5159 = vmatpush2.bf16.msra.mxu0 0
        %5160 = vmatprep.subr.bf16.mxu0 0
        %5161 = vmatpush2.bf16.msra.mxu0 0
        %5162 = vmatprep.subr.bf16.mxu0 0
        %5163 = vmatpush2.bf16.msra.mxu0 0
        %5164 = vmatprep.subr.bf16.mxu0 0
        %5165 = vmatpush2.bf16.msra.mxu0 0
        %5166 = vmatprep.subr.bf16.mxu0 0
        %5167 = vmatpush2.bf16.msra.mxu0 0
        %5168 = vmatprep.subr.bf16.mxu0 0
        %5169 = vmatpush2.bf16.msra.mxu0 0
        %5170 = vmatprep.subr.bf16.mxu0 0
        %5171 = vmatpush2.bf16.msra.mxu0 0
        %5172 = vmatprep.mubr.bf16.mxu0 0
        %5173 = vmatmul.mubr.bf16.gmra.mxu0 %v4850
        %v5174 = vpop.f32.mrf.mxu0
        %v5175 = vadd.f32 %v5094, %v5174
        %v5176 = vpop.f32.mrf.mxu0
        %v5177 = vpop.f32.mrf.mxu0
        %v5178 = vadd.f32 %v5097, %v5177
        %v5179 = vpop.f32.mrf.mxu0
        %5180 = vmatprep.mubr.bf16.mxu0 0
        %5181 = vmatmul.mubr.bf16.gmra.mxu0 %v4853
        %v5182 = vpop.f32.mrf.mxu0
        %v5183 = vadd.f32 %v5102, %v5182
        %v5184 = vpop.f32.mrf.mxu0
        %v5185 = vpop.f32.mrf.mxu0
        %v5186 = vadd.f32 %v5105, %v5185
        %v5187 = vpop.f32.mrf.mxu0
        %5188 = vmatprep.mubr.bf16.mxu0 0
        %5189 = vmatmul.mubr.bf16.gmra.mxu0 %v4856
        %v5190 = vpop.f32.mrf.mxu0
        %v5191 = vadd.f32 %v5110, %v5190
        %v5192 = vpop.f32.mrf.mxu0
        %v5193 = vpop.f32.mrf.mxu0
        %v5194 = vadd.f32 %v5113, %v5193
        %v5195 = vpop.f32.mrf.mxu0
        %5196 = vmatprep.mubr.bf16.mxu0 0
        %5197 = vmatmul.mubr.bf16.gmra.mxu0 %v4859
        %v5198 = vpop.f32.mrf.mxu0
        %v5199 = vadd.f32 %v5118, %v5198
        %v5200 = vpop.f32.mrf.mxu0
        %v5201 = vpop.f32.mrf.mxu0
        %v5202 = vadd.f32 %v5121, %v5201
        %v5203 = vpop.f32.mrf.mxu0
        %5204 = vmatprep.mubr.bf16.mxu0 0
        %5205 = vmatmul.mubr.bf16.gmra.mxu0 %v4862
        %v5206 = vpop.f32.mrf.mxu0
        %v5207 = vadd.f32 %v5126, %v5206
        %v5208 = vpop.f32.mrf.mxu0
        %v5209 = vpop.f32.mrf.mxu0
        %v5210 = vadd.f32 %v5129, %v5209
        %v5211 = vpop.f32.mrf.mxu0
        %5212 = vmatprep.mubr.bf16.mxu0 0
        %5213 = vmatmul.mubr.bf16.gmra.mxu0 %v4865
        %v5214 = vpop.f32.mrf.mxu0
        %v5215 = vadd.f32 %v5134, %v5214
        %v5216 = vpop.f32.mrf.mxu0
        %v5217 = vpop.f32.mrf.mxu0
        %v5218 = vadd.f32 %v5137, %v5217
        %v5219 = vpop.f32.mrf.mxu0
        %5220 = vdwg.mxu0
        %v5269 = vunpack.c.l.b16 %v4800
        %v5270 = vunpack.c.l.b16 %v4801
        %v5271 = vunpack.c.l.b16 %v4802
        %v5272 = vunpack.c.l.b16 %v4803
        %v5273 = vunpack.c.l.b16 %v4804
        %v5274 = vunpack.c.l.b16 %v4805
        %v5275 = vunpack.c.l.b16 %v4806
        %v5276 = vunpack.c.l.b16 %v4807
        %v5277 = vunpack.c.l.b16 %v4808
        %v5278 = vunpack.c.l.b16 %v4809
        %v5279 = vunpack.c.l.b16 %v4810
        %v5280 = vunpack.c.l.b16 %v4811
        %v5281 = vunpack.c.l.b16 %v4812
        %v5282 = vunpack.c.l.b16 %v4813
        %v5283 = vunpack.c.l.b16 %v4814
        %v5284 = vunpack.c.l.b16 %v4815
        %v5285 = vunpack.c.l.b16 %v4816
        %v5286 = vunpack.c.l.b16 %v4817
        %v5287 = vunpack.c.l.b16 %v4818
        %v5288 = vunpack.c.l.b16 %v4819
        %v5289 = vunpack.c.l.b16 %v4820
        %v5290 = vunpack.c.l.b16 %v4821
        %v5291 = vunpack.c.l.b16 %v4822
        %v5292 = vunpack.c.l.b16 %v4823
        %v5293 = vunpack.c.l.b16 %v4824
        %v5294 = vunpack.c.l.b16 %v4825
        %v5295 = vunpack.c.l.b16 %v4826
        %v5296 = vunpack.c.l.b16 %v4827
        %v5297 = vunpack.c.l.b16 %v4828
        %v5298 = vunpack.c.l.b16 %v4829
        %v5299 = vunpack.c.l.b16 %v4830
        %v5300 = vunpack.c.l.b16 %v4831
        %v5301 = vunpack.c.l.b16 %v4832
        %v5302 = vunpack.c.l.b16 %v4833
        %v5303 = vunpack.c.l.b16 %v4834
        %v5304 = vunpack.c.l.b16 %v4835
        %v5305 = vunpack.c.l.b16 %v4836
        %v5306 = vunpack.c.l.b16 %v4837
        %v5307 = vunpack.c.l.b16 %v4838
        %v5308 = vunpack.c.l.b16 %v4839
        %v5309 = vunpack.c.l.b16 %v4840
        %v5310 = vunpack.c.l.b16 %v4841
        %v5311 = vunpack.c.l.b16 %v4842
        %v5312 = vunpack.c.l.b16 %v4843
        %v5313 = vunpack.c.l.b16 %v4844
        %v5314 = vunpack.c.l.b16 %v4845
        %v5315 = vunpack.c.l.b16 %v4846
        %v5316 = vunpack.c.l.b16 %v4847
        %v5317 = vpack.c.b16 %v5270, %v5269
        %v5318 = vpack.c.b16 %v5272, %v5271
        %v5319 = vpack.c.b16 %v5274, %v5273
        %v5320 = vpack.c.b16 %v5276, %v5275
        %v5321 = vpack.c.b16 %v5278, %v5277
        %v5322 = vpack.c.b16 %v5280, %v5279
        %v5323 = vpack.c.b16 %v5282, %v5281
        %v5324 = vpack.c.b16 %v5284, %v5283
        %v5325 = vpack.c.b16 %v5286, %v5285
        %v5326 = vpack.c.b16 %v5288, %v5287
        %v5327 = vpack.c.b16 %v5290, %v5289
        %v5328 = vpack.c.b16 %v5292, %v5291
        %v5329 = vpack.c.b16 %v5294, %v5293
        %v5330 = vpack.c.b16 %v5296, %v5295
        %v5331 = vpack.c.b16 %v5298, %v5297
        %v5332 = vpack.c.b16 %v5300, %v5299
        %v5333 = vpack.c.b16 %v5302, %v5301
        %v5334 = vpack.c.b16 %v5304, %v5303
        %v5335 = vpack.c.b16 %v5306, %v5305
        %v5336 = vpack.c.b16 %v5308, %v5307
        %v5337 = vpack.c.b16 %v5310, %v5309
        %v5338 = vpack.c.b16 %v5312, %v5311
        %v5339 = vpack.c.b16 %v5314, %v5313
        %v5340 = vpack.c.b16 %v5316, %v5315
        %5365 = vmatprep.subr.bf16.mxu0 0
        %5366 = vmatpush1.bf16.msra.mxu0 %v5324
        %5367 = vmatprep.subr.bf16.mxu0 0
        %5368 = vmatpush1.bf16.msra.mxu0 %v5323
        %5369 = vmatprep.subr.bf16.mxu0 0
        %5370 = vmatpush1.bf16.msra.mxu0 %v5322
        %5371 = vmatprep.subr.bf16.mxu0 0
        %5372 = vmatpush1.bf16.msra.mxu0 %v5321
        %5373 = vmatprep.subr.bf16.mxu0 0
        %5374 = vmatpush1.bf16.msra.mxu0 %v5320
        %5375 = vmatprep.subr.bf16.mxu0 0
        %5376 = vmatpush1.bf16.msra.mxu0 %v5319
        %5377 = vmatprep.subr.bf16.mxu0 0
        %5378 = vmatpush1.bf16.msra.mxu0 %v5318
        %5379 = vmatprep.subr.bf16.mxu0 0
        %5380 = vmatpush1.bf16.msra.mxu0 %v5317
        %5381 = vmatprep.subr.bf16.mxu0 0
        %5382 = vmatpush2.bf16.msra.mxu0 %v5332
        %5383 = vmatprep.subr.bf16.mxu0 0
        %5384 = vmatpush2.bf16.msra.mxu0 %v5331
        %5385 = vmatprep.subr.bf16.mxu0 0
        %5386 = vmatpush2.bf16.msra.mxu0 %v5330
        %5387 = vmatprep.subr.bf16.mxu0 0
        %5388 = vmatpush2.bf16.msra.mxu0 %v5329
        %5389 = vmatprep.subr.bf16.mxu0 0
        %5390 = vmatpush2.bf16.msra.mxu0 %v5328
        %5391 = vmatprep.subr.bf16.mxu0 0
        %5392 = vmatpush2.bf16.msra.mxu0 %v5327
        %5393 = vmatprep.subr.bf16.mxu0 0
        %5394 = vmatpush2.bf16.msra.mxu0 %v5326
        %5395 = vmatprep.subr.bf16.mxu0 0
        %5396 = vmatpush2.bf16.msra.mxu0 %v5325
        %5397 = vmatprep.mubr.bf16.mxu0 %v4783
        %5398 = vmatmul.mubr.bf16.gmra.mxu0 %v4782
        %v5399 = vpop.f32.mrf.mxu0
        %v5400 = vadd.f32 %v5175, %v5399
        %v5401 = vpop.f32.mrf.mxu0
        %v5402 = vpop.f32.mrf.mxu0
        %v5403 = vadd.f32 %v5178, %v5402
        %v5404 = vpop.f32.mrf.mxu0
        %5405 = vmatprep.mubr.bf16.mxu0 %v4786
        %5406 = vmatmul.mubr.bf16.gmra.mxu0 %v4785
        %v5407 = vpop.f32.mrf.mxu0
        %v5408 = vadd.f32 %v5183, %v5407
        %v5409 = vpop.f32.mrf.mxu0
        %v5410 = vpop.f32.mrf.mxu0
        %v5411 = vadd.f32 %v5186, %v5410
        %v5412 = vpop.f32.mrf.mxu0
        %5413 = vmatprep.mubr.bf16.mxu0 %v4789
        %5414 = vmatmul.mubr.bf16.gmra.mxu0 %v4788
        %v5415 = vpop.f32.mrf.mxu0
        %v5416 = vadd.f32 %v5191, %v5415
        %v5417 = vpop.f32.mrf.mxu0
        %v5418 = vpop.f32.mrf.mxu0
        %v5419 = vadd.f32 %v5194, %v5418
        %v5420 = vpop.f32.mrf.mxu0
        %5421 = vmatprep.mubr.bf16.mxu0 %v4792
        %5422 = vmatmul.mubr.bf16.gmra.mxu0 %v4791
        %v5423 = vpop.f32.mrf.mxu0
        %v5424 = vadd.f32 %v5199, %v5423
        %v5425 = vpop.f32.mrf.mxu0
        %v5426 = vpop.f32.mrf.mxu0
        %v5427 = vadd.f32 %v5202, %v5426
        %v5428 = vpop.f32.mrf.mxu0
        %5429 = vmatprep.mubr.bf16.mxu0 %v4795
        %5430 = vmatmul.mubr.bf16.gmra.mxu0 %v4794
        %v5431 = vpop.f32.mrf.mxu0
        %v5432 = vadd.f32 %v5207, %v5431
        %v5433 = vpop.f32.mrf.mxu0
        %v5434 = vpop.f32.mrf.mxu0
        %v5435 = vadd.f32 %v5210, %v5434
        %v5436 = vpop.f32.mrf.mxu0
        %5437 = vmatprep.mubr.bf16.mxu0 %v4798
        %5438 = vmatmul.mubr.bf16.gmra.mxu0 %v4797
        %v5439 = vpop.f32.mrf.mxu0
        %v5440 = vadd.f32 %v5215, %v5439
        %v5441 = vpop.f32.mrf.mxu0
        %v5442 = vpop.f32.mrf.mxu0
        %v5443 = vadd.f32 %v5218, %v5442
        %v5444 = vpop.f32.mrf.mxu0
        %5445 = vdwg.mxu0
        %5446 = vmatprep.subr.bf16.mxu0 0
        %5447 = vmatpush1.bf16.msra.mxu0 %v5340
        %5448 = vmatprep.subr.bf16.mxu0 0
        %5449 = vmatpush1.bf16.msra.mxu0 %v5339
        %5450 = vmatprep.subr.bf16.mxu0 0
        %5451 = vmatpush1.bf16.msra.mxu0 %v5338
        %5452 = vmatprep.subr.bf16.mxu0 0
        %5453 = vmatpush1.bf16.msra.mxu0 %v5337
        %5454 = vmatprep.subr.bf16.mxu0 0
        %5455 = vmatpush1.bf16.msra.mxu0 %v5336
        %5456 = vmatprep.subr.bf16.mxu0 0
        %5457 = vmatpush1.bf16.msra.mxu0 %v5335
        %5458 = vmatprep.subr.bf16.mxu0 0
        %5459 = vmatpush1.bf16.msra.mxu0 %v5334
        %5460 = vmatprep.subr.bf16.mxu0 0
        %5461 = vmatpush1.bf16.msra.mxu0 %v5333
        %5462 = vmatprep.subr.bf16.mxu0 0
        %5463 = vmatpush2.bf16.msra.mxu0 0
        %5464 = vmatprep.subr.bf16.mxu0 0
        %5465 = vmatpush2.bf16.msra.mxu0 0
        %5466 = vmatprep.subr.bf16.mxu0 0
        %5467 = vmatpush2.bf16.msra.mxu0 0
        %5468 = vmatprep.subr.bf16.mxu0 0
        %5469 = vmatpush2.bf16.msra.mxu0 0
        %5470 = vmatprep.subr.bf16.mxu0 0
        %5471 = vmatpush2.bf16.msra.mxu0 0
        %5472 = vmatprep.subr.bf16.mxu0 0
        %5473 = vmatpush2.bf16.msra.mxu0 0
        %5474 = vmatprep.subr.bf16.mxu0 0
        %5475 = vmatpush2.bf16.msra.mxu0 0
        %5476 = vmatprep.subr.bf16.mxu0 0
        %5477 = vmatpush2.bf16.msra.mxu0 0
        %5478 = vmatprep.mubr.bf16.mxu0 0
        %5479 = vmatmul.mubr.bf16.gmra.mxu0 %v4784
        %v5480 = vpop.f32.mrf.mxu0
        %v5481 = vadd.f32 %v5400, %v5480
        %v5482 = vpop.f32.mrf.mxu0
        %v5483 = vpop.f32.mrf.mxu0
        %v5484 = vadd.f32 %v5403, %v5483
        %v5485 = vpop.f32.mrf.mxu0
        %5486 = vmatprep.mubr.bf16.mxu0 0
        %5487 = vmatmul.mubr.bf16.gmra.mxu0 %v4787
        %v5488 = vpop.f32.mrf.mxu0
        %v5489 = vadd.f32 %v5408, %v5488
        %v5490 = vpop.f32.mrf.mxu0
        %v5491 = vpop.f32.mrf.mxu0
        %v5492 = vadd.f32 %v5411, %v5491
        %v5493 = vpop.f32.mrf.mxu0
        %5494 = vmatprep.mubr.bf16.mxu0 0
        %5495 = vmatmul.mubr.bf16.gmra.mxu0 %v4790
        %v5496 = vpop.f32.mrf.mxu0
        %v5497 = vadd.f32 %v5416, %v5496
        %v5498 = vpop.f32.mrf.mxu0
        %v5499 = vpop.f32.mrf.mxu0
        %v5500 = vadd.f32 %v5419, %v5499
        %v5501 = vpop.f32.mrf.mxu0
        %5502 = vmatprep.mubr.bf16.mxu0 0
        %5503 = vmatmul.mubr.bf16.gmra.mxu0 %v4793
        %v5504 = vpop.f32.mrf.mxu0
        %v5505 = vadd.f32 %v5424, %v5504
        %v5506 = vpop.f32.mrf.mxu0
        %v5507 = vpop.f32.mrf.mxu0
        %v5508 = vadd.f32 %v5427, %v5507
        %v5509 = vpop.f32.mrf.mxu0
        %5510 = vmatprep.mubr.bf16.mxu0 0
        %5511 = vmatmul.mubr.bf16.gmra.mxu0 %v4796
        %v5512 = vpop.f32.mrf.mxu0
        %v5513 = vadd.f32 %v5432, %v5512
        %v5514 = vpop.f32.mrf.mxu0
        %v5515 = vpop.f32.mrf.mxu0
        %v5516 = vadd.f32 %v5435, %v5515
        %v5517 = vpop.f32.mrf.mxu0
        %5518 = vmatprep.mubr.bf16.mxu0 0
        %5519 = vmatmul.mubr.bf16.gmra.mxu0 %v4799
        %v5520 = vpop.f32.mrf.mxu0
        %v5521 = vadd.f32 %v5440, %v5520
        %v5522 = vpop.f32.mrf.mxu0
        %v5523 = vpop.f32.mrf.mxu0
        %v5524 = vadd.f32 %v5443, %v5523
        %v5525 = vpop.f32.mrf.mxu0
        %5526 = vdwg.mxu0
        %v5527 = vpack.c.bf16 %v4713, %v4710
        %v5528 = vpack.c.bf16 %v4714, %v4711
        %v5529 = vpack.c.bf16 %v4715, %v4712
        %v5530 = vpack.c.bf16 %v4719, %v4716
        %v5531 = vpack.c.bf16 %v4720, %v4717
        %v5532 = vpack.c.bf16 %v4721, %v4718
        %v5533 = vpack.c.bf16 %v4725, %v4722
        %v5534 = vpack.c.bf16 %v4726, %v4723
        %v5535 = vpack.c.bf16 %v4727, %v4724
        %s5536 = scalar_lea.vmem [#allocation8], 384
        %v5537 = vld [vmem:[%s5536] sm:$0xf]
        %v5538 = vld [vmem:[%s5536 + $0x4] sm:$0xf]
        %v5539 = vld [vmem:[%s5536 + $0x8] sm:$0xf]
        %v5540 = vld [vmem:[%s5536 + $0xc] sm:$0xf]
        %v5541 = vld [vmem:[%s5536 + $0x10] sm:$0xf]
        %v5542 = vld [vmem:[%s5536 + $0x14] sm:$0xf]
        %v5543 = vld [vmem:[%s5536 + $0x18] sm:$0xf]
        %v5544 = vld [vmem:[%s5536 + $0x1c] sm:$0xf]
        %v5545 = vld [vmem:[%s5536 + $0x20] sm:$0xf]
        %v5546 = vld [vmem:[%s5536 + $0x24] sm:$0xf]
        %v5547 = vld [vmem:[%s5536 + $0x28] sm:$0xf]
        %v5548 = vld [vmem:[%s5536 + $0x2c] sm:$0xf]
        %v5549 = vld [vmem:[%s5536 + $0x30] sm:$0xf]
        %v5550 = vld [vmem:[%s5536 + $0x34] sm:$0xf]
        %v5551 = vld [vmem:[%s5536 + $0x38] sm:$0xf]
        %v5552 = vld [vmem:[%s5536 + $0x3c] sm:$0xf]
        %v5553 = vld [vmem:[%s5536 + $0x40] sm:$0xf]
        %v5554 = vld [vmem:[%s5536 + $0x44] sm:$0xf]
        %v5555 = vld [vmem:[%s5536 + $0x48] sm:$0xf]
        %v5556 = vld [vmem:[%s5536 + $0x4c] sm:$0xf]
        %v5557 = vld [vmem:[%s5536 + $0x50] sm:$0xf]
        %v5558 = vld [vmem:[%s5536 + $0x54] sm:$0xf]
        %v5559 = vld [vmem:[%s5536 + $0x58] sm:$0xf]
        %v5560 = vld [vmem:[%s5536 + $0x5c] sm:$0xf]
        %v5561 = vld [vmem:[%s5536 + $0x60] sm:$0xf]
        %v5562 = vld [vmem:[%s5536 + $0x64] sm:$0xf]
        %v5563 = vld [vmem:[%s5536 + $0x68] sm:$0xf]
        %v5564 = vld [vmem:[%s5536 + $0x6c] sm:$0xf]
        %v5565 = vld [vmem:[%s5536 + $0x70] sm:$0xf]
        %v5566 = vld [vmem:[%s5536 + $0x74] sm:$0xf]
        %v5567 = vld [vmem:[%s5536 + $0x78] sm:$0xf]
        %v5568 = vld [vmem:[%s5536 + $0x7c] sm:$0xf]
        %v5569 = vld [vmem:[%s5536 + $0x80] sm:$0xf]
        %v5570 = vld [vmem:[%s5536 + $0x84] sm:$0xf]
        %v5571 = vld [vmem:[%s5536 + $0x88] sm:$0xf]
        %v5572 = vld [vmem:[%s5536 + $0x8c] sm:$0xf]
        %v5573 = vld [vmem:[%s5536 + $0x90] sm:$0xf]
        %v5574 = vld [vmem:[%s5536 + $0x94] sm:$0xf]
        %v5575 = vld [vmem:[%s5536 + $0x98] sm:$0xf]
        %v5576 = vld [vmem:[%s5536 + $0x9c] sm:$0xf]
        %v5577 = vld [vmem:[%s5536 + $0xa0] sm:$0xf]
        %v5578 = vld [vmem:[%s5536 + $0xa4] sm:$0xf]
        %v5579 = vld [vmem:[%s5536 + $0xa8] sm:$0xf]
        %v5580 = vld [vmem:[%s5536 + $0xac] sm:$0xf]
        %v5581 = vld [vmem:[%s5536 + $0xb0] sm:$0xf]
        %v5582 = vld [vmem:[%s5536 + $0xb4] sm:$0xf]
        %v5583 = vld [vmem:[%s5536 + $0xb8] sm:$0xf]
        %v5584 = vld [vmem:[%s5536 + $0xbc] sm:$0xf]
        %v5633 = vunpack.c.l.b16 %v5537
        %v5634 = vunpack.c.l.b16 %v5538
        %v5635 = vunpack.c.l.b16 %v5539
        %v5636 = vunpack.c.l.b16 %v5540
        %v5637 = vunpack.c.l.b16 %v5541
        %v5638 = vunpack.c.l.b16 %v5542
        %v5639 = vunpack.c.l.b16 %v5543
        %v5640 = vunpack.c.l.b16 %v5544
        %v5641 = vunpack.c.l.b16 %v5545
        %v5642 = vunpack.c.l.b16 %v5546
        %v5643 = vunpack.c.l.b16 %v5547
        %v5644 = vunpack.c.l.b16 %v5548
        %v5645 = vunpack.c.l.b16 %v5549
        %v5646 = vunpack.c.l.b16 %v5550
        %v5647 = vunpack.c.l.b16 %v5551
        %v5648 = vunpack.c.l.b16 %v5552
        %v5649 = vunpack.c.l.b16 %v5553
        %v5650 = vunpack.c.l.b16 %v5554
        %v5651 = vunpack.c.l.b16 %v5555
        %v5652 = vunpack.c.l.b16 %v5556
        %v5653 = vunpack.c.l.b16 %v5557
        %v5654 = vunpack.c.l.b16 %v5558
        %v5655 = vunpack.c.l.b16 %v5559
        %v5656 = vunpack.c.l.b16 %v5560
        %v5657 = vunpack.c.l.b16 %v5561
        %v5658 = vunpack.c.l.b16 %v5562
        %v5659 = vunpack.c.l.b16 %v5563
        %v5660 = vunpack.c.l.b16 %v5564
        %v5661 = vunpack.c.l.b16 %v5565
        %v5662 = vunpack.c.l.b16 %v5566
        %v5663 = vunpack.c.l.b16 %v5567
        %v5664 = vunpack.c.l.b16 %v5568
        %v5665 = vunpack.c.l.b16 %v5569
        %v5666 = vunpack.c.l.b16 %v5570
        %v5667 = vunpack.c.l.b16 %v5571
        %v5668 = vunpack.c.l.b16 %v5572
        %v5669 = vunpack.c.l.b16 %v5573
        %v5670 = vunpack.c.l.b16 %v5574
        %v5671 = vunpack.c.l.b16 %v5575
        %v5672 = vunpack.c.l.b16 %v5576
        %v5673 = vunpack.c.l.b16 %v5577
        %v5674 = vunpack.c.l.b16 %v5578
        %v5675 = vunpack.c.l.b16 %v5579
        %v5676 = vunpack.c.l.b16 %v5580
        %v5677 = vunpack.c.l.b16 %v5581
        %v5678 = vunpack.c.l.b16 %v5582
        %v5679 = vunpack.c.l.b16 %v5583
        %v5680 = vunpack.c.l.b16 %v5584
        %v5681 = vpack.c.b16 %v5634, %v5633
        %v5682 = vpack.c.b16 %v5636, %v5635
        %v5683 = vpack.c.b16 %v5638, %v5637
        %v5684 = vpack.c.b16 %v5640, %v5639
        %v5685 = vpack.c.b16 %v5642, %v5641
        %v5686 = vpack.c.b16 %v5644, %v5643
        %v5687 = vpack.c.b16 %v5646, %v5645
        %v5688 = vpack.c.b16 %v5648, %v5647
        %v5689 = vpack.c.b16 %v5650, %v5649
        %v5690 = vpack.c.b16 %v5652, %v5651
        %v5691 = vpack.c.b16 %v5654, %v5653
        %v5692 = vpack.c.b16 %v5656, %v5655
        %v5693 = vpack.c.b16 %v5658, %v5657
        %v5694 = vpack.c.b16 %v5660, %v5659
        %v5695 = vpack.c.b16 %v5662, %v5661
        %v5696 = vpack.c.b16 %v5664, %v5663
        %v5697 = vpack.c.b16 %v5666, %v5665
        %v5698 = vpack.c.b16 %v5668, %v5667
        %v5699 = vpack.c.b16 %v5670, %v5669
        %v5700 = vpack.c.b16 %v5672, %v5671
        %v5701 = vpack.c.b16 %v5674, %v5673
        %v5702 = vpack.c.b16 %v5676, %v5675
        %v5703 = vpack.c.b16 %v5678, %v5677
        %v5704 = vpack.c.b16 %v5680, %v5679
        %5729 = vmatprep.subr.bf16.mxu0 0
        %5730 = vmatpush1.bf16.msra.mxu0 %v5688
        %5731 = vmatprep.subr.bf16.mxu0 0
        %5732 = vmatpush1.bf16.msra.mxu0 %v5687
        %5733 = vmatprep.subr.bf16.mxu0 0
        %5734 = vmatpush1.bf16.msra.mxu0 %v5686
        %5735 = vmatprep.subr.bf16.mxu0 0
        %5736 = vmatpush1.bf16.msra.mxu0 %v5685
        %5737 = vmatprep.subr.bf16.mxu0 0
        %5738 = vmatpush1.bf16.msra.mxu0 %v5684
        %5739 = vmatprep.subr.bf16.mxu0 0
        %5740 = vmatpush1.bf16.msra.mxu0 %v5683
        %5741 = vmatprep.subr.bf16.mxu0 0
        %5742 = vmatpush1.bf16.msra.mxu0 %v5682
        %5743 = vmatprep.subr.bf16.mxu0 0
        %5744 = vmatpush1.bf16.msra.mxu0 %v5681
        %5745 = vmatprep.subr.bf16.mxu0 0
        %5746 = vmatpush2.bf16.msra.mxu0 %v5696
        %5747 = vmatprep.subr.bf16.mxu0 0
        %5748 = vmatpush2.bf16.msra.mxu0 %v5695
        %5749 = vmatprep.subr.bf16.mxu0 0
        %5750 = vmatpush2.bf16.msra.mxu0 %v5694
        %5751 = vmatprep.subr.bf16.mxu0 0
        %5752 = vmatpush2.bf16.msra.mxu0 %v5693
        %5753 = vmatprep.subr.bf16.mxu0 0
        %5754 = vmatpush2.bf16.msra.mxu0 %v5692
        %5755 = vmatprep.subr.bf16.mxu0 0
        %5756 = vmatpush2.bf16.msra.mxu0 %v5691
        %5757 = vmatprep.subr.bf16.mxu0 0
        %5758 = vmatpush2.bf16.msra.mxu0 %v5690
        %5759 = vmatprep.subr.bf16.mxu0 0
        %5760 = vmatpush2.bf16.msra.mxu0 %v5689
        %5761 = vmatprep.mubr.bf16.mxu0 %v4792
        %5762 = vmatmul.mubr.bf16.gmra.mxu0 %v4791
        %v5763 = vpop.f32.mrf.mxu0
        %v5764 = vadd.f32 0.0, %v5763
        %v5765 = vpop.f32.mrf.mxu0
        %v5766 = vpop.f32.mrf.mxu0
        %v5767 = vadd.f32 0.0, %v5766
        %v5768 = vpop.f32.mrf.mxu0
        %5769 = vmatprep.mubr.bf16.mxu0 %v4795
        %5770 = vmatmul.mubr.bf16.gmra.mxu0 %v4794
        %v5771 = vpop.f32.mrf.mxu0
        %v5772 = vadd.f32 0.0, %v5771
        %v5773 = vpop.f32.mrf.mxu0
        %v5774 = vpop.f32.mrf.mxu0
        %v5775 = vadd.f32 0.0, %v5774
        %v5776 = vpop.f32.mrf.mxu0
        %5777 = vmatprep.mubr.bf16.mxu0 %v4798
        %5778 = vmatmul.mubr.bf16.gmra.mxu0 %v4797
        %v5779 = vpop.f32.mrf.mxu0
        %v5780 = vadd.f32 0.0, %v5779
        %v5781 = vpop.f32.mrf.mxu0
        %v5782 = vpop.f32.mrf.mxu0
        %v5783 = vadd.f32 0.0, %v5782
        %v5784 = vpop.f32.mrf.mxu0
        %5785 = vmatprep.mubr.bf16.mxu0 %v5528
        %5786 = vmatmul.mubr.bf16.gmra.mxu0 %v5527
        %v5787 = vpop.f32.mrf.mxu0
        %v5788 = vadd.f32 0.0, %v5787
        %v5789 = vpop.f32.mrf.mxu0
        %v5790 = vpop.f32.mrf.mxu0
        %v5791 = vadd.f32 0.0, %v5790
        %v5792 = vpop.f32.mrf.mxu0
        %5793 = vmatprep.mubr.bf16.mxu0 %v5531
        %5794 = vmatmul.mubr.bf16.gmra.mxu0 %v5530
        %v5795 = vpop.f32.mrf.mxu0
        %v5796 = vadd.f32 0.0, %v5795
        %v5797 = vpop.f32.mrf.mxu0
        %v5798 = vpop.f32.mrf.mxu0
        %v5799 = vadd.f32 0.0, %v5798
        %v5800 = vpop.f32.mrf.mxu0
        %5801 = vmatprep.mubr.bf16.mxu0 %v5534
        %5802 = vmatmul.mubr.bf16.gmra.mxu0 %v5533
        %v5803 = vpop.f32.mrf.mxu0
        %v5804 = vadd.f32 0.0, %v5803
        %v5805 = vpop.f32.mrf.mxu0
        %v5806 = vpop.f32.mrf.mxu0
        %v5807 = vadd.f32 0.0, %v5806
        %v5808 = vpop.f32.mrf.mxu0
        %5809 = vdwg.mxu0
        %5810 = vmatprep.subr.bf16.mxu0 0
        %5811 = vmatpush1.bf16.msra.mxu0 %v5704
        %5812 = vmatprep.subr.bf16.mxu0 0
        %5813 = vmatpush1.bf16.msra.mxu0 %v5703
        %5814 = vmatprep.subr.bf16.mxu0 0
        %5815 = vmatpush1.bf16.msra.mxu0 %v5702
        %5816 = vmatprep.subr.bf16.mxu0 0
        %5817 = vmatpush1.bf16.msra.mxu0 %v5701
        %5818 = vmatprep.subr.bf16.mxu0 0
        %5819 = vmatpush1.bf16.msra.mxu0 %v5700
        %5820 = vmatprep.subr.bf16.mxu0 0
        %5821 = vmatpush1.bf16.msra.mxu0 %v5699
        %5822 = vmatprep.subr.bf16.mxu0 0
        %5823 = vmatpush1.bf16.msra.mxu0 %v5698
        %5824 = vmatprep.subr.bf16.mxu0 0
        %5825 = vmatpush1.bf16.msra.mxu0 %v5697
        %5826 = vmatprep.subr.bf16.mxu0 0
        %5827 = vmatpush2.bf16.msra.mxu0 0
        %5828 = vmatprep.subr.bf16.mxu0 0
        %5829 = vmatpush2.bf16.msra.mxu0 0
        %5830 = vmatprep.subr.bf16.mxu0 0
        %5831 = vmatpush2.bf16.msra.mxu0 0
        %5832 = vmatprep.subr.bf16.mxu0 0
        %5833 = vmatpush2.bf16.msra.mxu0 0
        %5834 = vmatprep.subr.bf16.mxu0 0
        %5835 = vmatpush2.bf16.msra.mxu0 0
        %5836 = vmatprep.subr.bf16.mxu0 0
        %5837 = vmatpush2.bf16.msra.mxu0 0
        %5838 = vmatprep.subr.bf16.mxu0 0
        %5839 = vmatpush2.bf16.msra.mxu0 0
        %5840 = vmatprep.subr.bf16.mxu0 0
        %5841 = vmatpush2.bf16.msra.mxu0 0
        %5842 = vmatprep.mubr.bf16.mxu0 0
        %5843 = vmatmul.mubr.bf16.gmra.mxu0 %v4793
        %v5844 = vpop.f32.mrf.mxu0
        %v5845 = vadd.f32 %v5764, %v5844
        %v5846 = vpop.f32.mrf.mxu0
        %v5847 = vpop.f32.mrf.mxu0
        %v5848 = vadd.f32 %v5767, %v5847
        %v5849 = vpop.f32.mrf.mxu0
        %5850 = vmatprep.mubr.bf16.mxu0 0
        %5851 = vmatmul.mubr.bf16.gmra.mxu0 %v4796
        %v5852 = vpop.f32.mrf.mxu0
        %v5853 = vadd.f32 %v5772, %v5852
        %v5854 = vpop.f32.mrf.mxu0
        %v5855 = vpop.f32.mrf.mxu0
        %v5856 = vadd.f32 %v5775, %v5855
        %v5857 = vpop.f32.mrf.mxu0
        %5858 = vmatprep.mubr.bf16.mxu0 0
        %5859 = vmatmul.mubr.bf16.gmra.mxu0 %v4799
        %v5860 = vpop.f32.mrf.mxu0
        %v5861 = vadd.f32 %v5780, %v5860
        %v5862 = vpop.f32.mrf.mxu0
        %v5863 = vpop.f32.mrf.mxu0
        %v5864 = vadd.f32 %v5783, %v5863
        %v5865 = vpop.f32.mrf.mxu0
        %5866 = vmatprep.mubr.bf16.mxu0 0
        %5867 = vmatmul.mubr.bf16.gmra.mxu0 %v5529
        %v5868 = vpop.f32.mrf.mxu0
        %v5869 = vadd.f32 %v5788, %v5868
        %v5870 = vpop.f32.mrf.mxu0
        %v5871 = vpop.f32.mrf.mxu0
        %v5872 = vadd.f32 %v5791, %v5871
        %v5873 = vpop.f32.mrf.mxu0
        %5874 = vmatprep.mubr.bf16.mxu0 0
        %5875 = vmatmul.mubr.bf16.gmra.mxu0 %v5532
        %v5876 = vpop.f32.mrf.mxu0
        %v5877 = vadd.f32 %v5796, %v5876
        %v5878 = vpop.f32.mrf.mxu0
        %v5879 = vpop.f32.mrf.mxu0
        %v5880 = vadd.f32 %v5799, %v5879
        %v5881 = vpop.f32.mrf.mxu0
        %5882 = vmatprep.mubr.bf16.mxu0 0
        %5883 = vmatmul.mubr.bf16.gmra.mxu0 %v5535
        %v5884 = vpop.f32.mrf.mxu0
        %v5885 = vadd.f32 %v5804, %v5884
        %v5886 = vpop.f32.mrf.mxu0
        %v5887 = vpop.f32.mrf.mxu0
        %v5888 = vadd.f32 %v5807, %v5887
        %v5889 = vpop.f32.mrf.mxu0
        %5890 = vdwg.mxu0
        %v5891 = vadd.f32 %v5481, %v5845
        %v5892 = vadd.f32 %v5484, %v5848
        %v5893 = vadd.f32 %v5489, %v5853
        %v5894 = vadd.f32 %v5492, %v5856
        %v5895 = vadd.f32 %v5497, %v5861
        %v5896 = vadd.f32 %v5500, %v5864
        %v5897 = vadd.f32 %v5505, %v5869
        %v5898 = vadd.f32 %v5508, %v5872
        %v5899 = vadd.f32 %v5513, %v5877
        %v5900 = vadd.f32 %v5516, %v5880
        %v5901 = vadd.f32 %v5521, %v5885
        %v5902 = vadd.f32 %v5524, %v5888
        %v5903 = vpack.c.bf16 %v4722, %v4719
        %v5904 = vpack.c.bf16 %v4723, %v4720
        %v5905 = vpack.c.bf16 %v4724, %v4721
        %v5906 = vpack.c.bf16 %v4728, %v4725
        %v5907 = vpack.c.bf16 %v4729, %v4726
        %v5908 = vpack.c.bf16 %v4730, %v4727
        %v5909 = vpack.c.bf16 %v4734, %v4731
        %v5910 = vpack.c.bf16 %v4735, %v4732
        %v5911 = vpack.c.bf16 %v4736, %v4733
        %s5912 = scalar_lea.vmem [#allocation8], 576
        %v5913 = vld [vmem:[%s5912] sm:$0xf]
        %v5914 = vld [vmem:[%s5912 + $0x4] sm:$0xf]
        %v5915 = vld [vmem:[%s5912 + $0x8] sm:$0xf]
        %v5916 = vld [vmem:[%s5912 + $0xc] sm:$0xf]
        %v5917 = vld [vmem:[%s5912 + $0x10] sm:$0xf]
        %v5918 = vld [vmem:[%s5912 + $0x14] sm:$0xf]
        %v5919 = vld [vmem:[%s5912 + $0x18] sm:$0xf]
        %v5920 = vld [vmem:[%s5912 + $0x1c] sm:$0xf]
        %v5921 = vld [vmem:[%s5912 + $0x20] sm:$0xf]
        %v5922 = vld [vmem:[%s5912 + $0x24] sm:$0xf]
        %v5923 = vld [vmem:[%s5912 + $0x28] sm:$0xf]
        %v5924 = vld [vmem:[%s5912 + $0x2c] sm:$0xf]
        %v5925 = vld [vmem:[%s5912 + $0x30] sm:$0xf]
        %v5926 = vld [vmem:[%s5912 + $0x34] sm:$0xf]
        %v5927 = vld [vmem:[%s5912 + $0x38] sm:$0xf]
        %v5928 = vld [vmem:[%s5912 + $0x3c] sm:$0xf]
        %v5929 = vld [vmem:[%s5912 + $0x40] sm:$0xf]
        %v5930 = vld [vmem:[%s5912 + $0x44] sm:$0xf]
        %v5931 = vld [vmem:[%s5912 + $0x48] sm:$0xf]
        %v5932 = vld [vmem:[%s5912 + $0x4c] sm:$0xf]
        %v5933 = vld [vmem:[%s5912 + $0x50] sm:$0xf]
        %v5934 = vld [vmem:[%s5912 + $0x54] sm:$0xf]
        %v5935 = vld [vmem:[%s5912 + $0x58] sm:$0xf]
        %v5936 = vld [vmem:[%s5912 + $0x5c] sm:$0xf]
        %v5937 = vld [vmem:[%s5912 + $0x60] sm:$0xf]
        %v5938 = vld [vmem:[%s5912 + $0x64] sm:$0xf]
        %v5939 = vld [vmem:[%s5912 + $0x68] sm:$0xf]
        %v5940 = vld [vmem:[%s5912 + $0x6c] sm:$0xf]
        %v5941 = vld [vmem:[%s5912 + $0x70] sm:$0xf]
        %v5942 = vld [vmem:[%s5912 + $0x74] sm:$0xf]
        %v5943 = vld [vmem:[%s5912 + $0x78] sm:$0xf]
        %v5944 = vld [vmem:[%s5912 + $0x7c] sm:$0xf]
        %v5945 = vld [vmem:[%s5912 + $0x80] sm:$0xf]
        %v5946 = vld [vmem:[%s5912 + $0x84] sm:$0xf]
        %v5947 = vld [vmem:[%s5912 + $0x88] sm:$0xf]
        %v5948 = vld [vmem:[%s5912 + $0x8c] sm:$0xf]
        %v5949 = vld [vmem:[%s5912 + $0x90] sm:$0xf]
        %v5950 = vld [vmem:[%s5912 + $0x94] sm:$0xf]
        %v5951 = vld [vmem:[%s5912 + $0x98] sm:$0xf]
        %v5952 = vld [vmem:[%s5912 + $0x9c] sm:$0xf]
        %v5953 = vld [vmem:[%s5912 + $0xa0] sm:$0xf]
        %v5954 = vld [vmem:[%s5912 + $0xa4] sm:$0xf]
        %v5955 = vld [vmem:[%s5912 + $0xa8] sm:$0xf]
        %v5956 = vld [vmem:[%s5912 + $0xac] sm:$0xf]
        %v5957 = vld [vmem:[%s5912 + $0xb0] sm:$0xf]
        %v5958 = vld [vmem:[%s5912 + $0xb4] sm:$0xf]
        %v5959 = vld [vmem:[%s5912 + $0xb8] sm:$0xf]
        %v5960 = vld [vmem:[%s5912 + $0xbc] sm:$0xf]
        %v6009 = vunpack.c.l.b16 %v5913
        %v6010 = vunpack.c.l.b16 %v5914
        %v6011 = vunpack.c.l.b16 %v5915
        %v6012 = vunpack.c.l.b16 %v5916
        %v6013 = vunpack.c.l.b16 %v5917
        %v6014 = vunpack.c.l.b16 %v5918
        %v6015 = vunpack.c.l.b16 %v5919
        %v6016 = vunpack.c.l.b16 %v5920
        %v6017 = vunpack.c.l.b16 %v5921
        %v6018 = vunpack.c.l.b16 %v5922
        %v6019 = vunpack.c.l.b16 %v5923
        %v6020 = vunpack.c.l.b16 %v5924
        %v6021 = vunpack.c.l.b16 %v5925
        %v6022 = vunpack.c.l.b16 %v5926
        %v6023 = vunpack.c.l.b16 %v5927
        %v6024 = vunpack.c.l.b16 %v5928
        %v6025 = vunpack.c.l.b16 %v5929
        %v6026 = vunpack.c.l.b16 %v5930
        %v6027 = vunpack.c.l.b16 %v5931
        %v6028 = vunpack.c.l.b16 %v5932
        %v6029 = vunpack.c.l.b16 %v5933
        %v6030 = vunpack.c.l.b16 %v5934
        %v6031 = vunpack.c.l.b16 %v5935
        %v6032 = vunpack.c.l.b16 %v5936
        %v6033 = vunpack.c.l.b16 %v5937
        %v6034 = vunpack.c.l.b16 %v5938
        %v6035 = vunpack.c.l.b16 %v5939
        %v6036 = vunpack.c.l.b16 %v5940
        %v6037 = vunpack.c.l.b16 %v5941
        %v6038 = vunpack.c.l.b16 %v5942
        %v6039 = vunpack.c.l.b16 %v5943
        %v6040 = vunpack.c.l.b16 %v5944
        %v6041 = vunpack.c.l.b16 %v5945
        %v6042 = vunpack.c.l.b16 %v5946
        %v6043 = vunpack.c.l.b16 %v5947
        %v6044 = vunpack.c.l.b16 %v5948
        %v6045 = vunpack.c.l.b16 %v5949
        %v6046 = vunpack.c.l.b16 %v5950
        %v6047 = vunpack.c.l.b16 %v5951
        %v6048 = vunpack.c.l.b16 %v5952
        %v6049 = vunpack.c.l.b16 %v5953
        %v6050 = vunpack.c.l.b16 %v5954
        %v6051 = vunpack.c.l.b16 %v5955
        %v6052 = vunpack.c.l.b16 %v5956
        %v6053 = vunpack.c.l.b16 %v5957
        %v6054 = vunpack.c.l.b16 %v5958
        %v6055 = vunpack.c.l.b16 %v5959
        %v6056 = vunpack.c.l.b16 %v5960
        %v6057 = vpack.c.b16 %v6010, %v6009
        %v6058 = vpack.c.b16 %v6012, %v6011
        %v6059 = vpack.c.b16 %v6014, %v6013
        %v6060 = vpack.c.b16 %v6016, %v6015
        %v6061 = vpack.c.b16 %v6018, %v6017
        %v6062 = vpack.c.b16 %v6020, %v6019
        %v6063 = vpack.c.b16 %v6022, %v6021
        %v6064 = vpack.c.b16 %v6024, %v6023
        %v6065 = vpack.c.b16 %v6026, %v6025
        %v6066 = vpack.c.b16 %v6028, %v6027
        %v6067 = vpack.c.b16 %v6030, %v6029
        %v6068 = vpack.c.b16 %v6032, %v6031
        %v6069 = vpack.c.b16 %v6034, %v6033
        %v6070 = vpack.c.b16 %v6036, %v6035
        %v6071 = vpack.c.b16 %v6038, %v6037
        %v6072 = vpack.c.b16 %v6040, %v6039
        %v6073 = vpack.c.b16 %v6042, %v6041
        %v6074 = vpack.c.b16 %v6044, %v6043
        %v6075 = vpack.c.b16 %v6046, %v6045
        %v6076 = vpack.c.b16 %v6048, %v6047
        %v6077 = vpack.c.b16 %v6050, %v6049
        %v6078 = vpack.c.b16 %v6052, %v6051
        %v6079 = vpack.c.b16 %v6054, %v6053
        %v6080 = vpack.c.b16 %v6056, %v6055
        %6105 = vmatprep.subr.bf16.mxu0 0
        %6106 = vmatpush1.bf16.msra.mxu0 %v6064
        %6107 = vmatprep.subr.bf16.mxu0 0
        %6108 = vmatpush1.bf16.msra.mxu0 %v6063
        %6109 = vmatprep.subr.bf16.mxu0 0
        %6110 = vmatpush1.bf16.msra.mxu0 %v6062
        %6111 = vmatprep.subr.bf16.mxu0 0
        %6112 = vmatpush1.bf16.msra.mxu0 %v6061
        %6113 = vmatprep.subr.bf16.mxu0 0
        %6114 = vmatpush1.bf16.msra.mxu0 %v6060
        %6115 = vmatprep.subr.bf16.mxu0 0
        %6116 = vmatpush1.bf16.msra.mxu0 %v6059
        %6117 = vmatprep.subr.bf16.mxu0 0
        %6118 = vmatpush1.bf16.msra.mxu0 %v6058
        %6119 = vmatprep.subr.bf16.mxu0 0
        %6120 = vmatpush1.bf16.msra.mxu0 %v6057
        %6121 = vmatprep.subr.bf16.mxu0 0
        %6122 = vmatpush2.bf16.msra.mxu0 %v6072
        %6123 = vmatprep.subr.bf16.mxu0 0
        %6124 = vmatpush2.bf16.msra.mxu0 %v6071
        %6125 = vmatprep.subr.bf16.mxu0 0
        %6126 = vmatpush2.bf16.msra.mxu0 %v6070
        %6127 = vmatprep.subr.bf16.mxu0 0
        %6128 = vmatpush2.bf16.msra.mxu0 %v6069
        %6129 = vmatprep.subr.bf16.mxu0 0
        %6130 = vmatpush2.bf16.msra.mxu0 %v6068
        %6131 = vmatprep.subr.bf16.mxu0 0
        %6132 = vmatpush2.bf16.msra.mxu0 %v6067
        %6133 = vmatprep.subr.bf16.mxu0 0
        %6134 = vmatpush2.bf16.msra.mxu0 %v6066
        %6135 = vmatprep.subr.bf16.mxu0 0
        %6136 = vmatpush2.bf16.msra.mxu0 %v6065
        %6137 = vmatprep.mubr.bf16.mxu0 %v4858
        %6138 = vmatmul.mubr.bf16.gmra.mxu0 %v4857
        %v6139 = vpop.f32.mrf.mxu0
        %v6140 = vadd.f32 0.0, %v6139
        %v6141 = vpop.f32.mrf.mxu0
        %v6142 = vpop.f32.mrf.mxu0
        %v6143 = vadd.f32 0.0, %v6142
        %v6144 = vpop.f32.mrf.mxu0
        %6145 = vmatprep.mubr.bf16.mxu0 %v4861
        %6146 = vmatmul.mubr.bf16.gmra.mxu0 %v4860
        %v6147 = vpop.f32.mrf.mxu0
        %v6148 = vadd.f32 0.0, %v6147
        %v6149 = vpop.f32.mrf.mxu0
        %v6150 = vpop.f32.mrf.mxu0
        %v6151 = vadd.f32 0.0, %v6150
        %v6152 = vpop.f32.mrf.mxu0
        %6153 = vmatprep.mubr.bf16.mxu0 %v4864
        %6154 = vmatmul.mubr.bf16.gmra.mxu0 %v4863
        %v6155 = vpop.f32.mrf.mxu0
        %v6156 = vadd.f32 0.0, %v6155
        %v6157 = vpop.f32.mrf.mxu0
        %v6158 = vpop.f32.mrf.mxu0
        %v6159 = vadd.f32 0.0, %v6158
        %v6160 = vpop.f32.mrf.mxu0
        %6161 = vmatprep.mubr.bf16.mxu0 %v5904
        %6162 = vmatmul.mubr.bf16.gmra.mxu0 %v5903
        %v6163 = vpop.f32.mrf.mxu0
        %v6164 = vadd.f32 0.0, %v6163
        %v6165 = vpop.f32.mrf.mxu0
        %v6166 = vpop.f32.mrf.mxu0
        %v6167 = vadd.f32 0.0, %v6166
        %v6168 = vpop.f32.mrf.mxu0
        %6169 = vmatprep.mubr.bf16.mxu0 %v5907
        %6170 = vmatmul.mubr.bf16.gmra.mxu0 %v5906
        %v6171 = vpop.f32.mrf.mxu0
        %v6172 = vadd.f32 0.0, %v6171
        %v6173 = vpop.f32.mrf.mxu0
        %v6174 = vpop.f32.mrf.mxu0
        %v6175 = vadd.f32 0.0, %v6174
        %v6176 = vpop.f32.mrf.mxu0
        %6177 = vmatprep.mubr.bf16.mxu0 %v5910
        %6178 = vmatmul.mubr.bf16.gmra.mxu0 %v5909
        %v6179 = vpop.f32.mrf.mxu0
        %v6180 = vadd.f32 0.0, %v6179
        %v6181 = vpop.f32.mrf.mxu0
        %v6182 = vpop.f32.mrf.mxu0
        %v6183 = vadd.f32 0.0, %v6182
        %v6184 = vpop.f32.mrf.mxu0
        %6185 = vdwg.mxu0
        %6186 = vmatprep.subr.bf16.mxu0 0
        %6187 = vmatpush1.bf16.msra.mxu0 %v6080
        %6188 = vmatprep.subr.bf16.mxu0 0
        %6189 = vmatpush1.bf16.msra.mxu0 %v6079
        %6190 = vmatprep.subr.bf16.mxu0 0
        %6191 = vmatpush1.bf16.msra.mxu0 %v6078
        %6192 = vmatprep.subr.bf16.mxu0 0
        %6193 = vmatpush1.bf16.msra.mxu0 %v6077
        %6194 = vmatprep.subr.bf16.mxu0 0
        %6195 = vmatpush1.bf16.msra.mxu0 %v6076
        %6196 = vmatprep.subr.bf16.mxu0 0
        %6197 = vmatpush1.bf16.msra.mxu0 %v6075
        %6198 = vmatprep.subr.bf16.mxu0 0
        %6199 = vmatpush1.bf16.msra.mxu0 %v6074
        %6200 = vmatprep.subr.bf16.mxu0 0
        %6201 = vmatpush1.bf16.msra.mxu0 %v6073
        %6202 = vmatprep.subr.bf16.mxu0 0
        %6203 = vmatpush2.bf16.msra.mxu0 0
        %6204 = vmatprep.subr.bf16.mxu0 0
        %6205 = vmatpush2.bf16.msra.mxu0 0
        %6206 = vmatprep.subr.bf16.mxu0 0
        %6207 = vmatpush2.bf16.msra.mxu0 0
        %6208 = vmatprep.subr.bf16.mxu0 0
        %6209 = vmatpush2.bf16.msra.mxu0 0
        %6210 = vmatprep.subr.bf16.mxu0 0
        %6211 = vmatpush2.bf16.msra.mxu0 0
        %6212 = vmatprep.subr.bf16.mxu0 0
        %6213 = vmatpush2.bf16.msra.mxu0 0
        %6214 = vmatprep.subr.bf16.mxu0 0
        %6215 = vmatpush2.bf16.msra.mxu0 0
        %6216 = vmatprep.subr.bf16.mxu0 0
        %6217 = vmatpush2.bf16.msra.mxu0 0
        %6218 = vmatprep.mubr.bf16.mxu0 0
        %6219 = vmatmul.mubr.bf16.gmra.mxu0 %v4859
        %v6220 = vpop.f32.mrf.mxu0
        %v6221 = vadd.f32 %v6140, %v6220
        %v6222 = vpop.f32.mrf.mxu0
        %v6223 = vpop.f32.mrf.mxu0
        %v6224 = vadd.f32 %v6143, %v6223
        %v6225 = vpop.f32.mrf.mxu0
        %6226 = vmatprep.mubr.bf16.mxu0 0
        %6227 = vmatmul.mubr.bf16.gmra.mxu0 %v4862
        %v6228 = vpop.f32.mrf.mxu0
        %v6229 = vadd.f32 %v6148, %v6228
        %v6230 = vpop.f32.mrf.mxu0
        %v6231 = vpop.f32.mrf.mxu0
        %v6232 = vadd.f32 %v6151, %v6231
        %v6233 = vpop.f32.mrf.mxu0
        %6234 = vmatprep.mubr.bf16.mxu0 0
        %6235 = vmatmul.mubr.bf16.gmra.mxu0 %v4865
        %v6236 = vpop.f32.mrf.mxu0
        %v6237 = vadd.f32 %v6156, %v6236
        %v6238 = vpop.f32.mrf.mxu0
        %v6239 = vpop.f32.mrf.mxu0
        %v6240 = vadd.f32 %v6159, %v6239
        %v6241 = vpop.f32.mrf.mxu0
        %6242 = vmatprep.mubr.bf16.mxu0 0
        %6243 = vmatmul.mubr.bf16.gmra.mxu0 %v5905
        %v6244 = vpop.f32.mrf.mxu0
        %v6245 = vadd.f32 %v6164, %v6244
        %v6246 = vpop.f32.mrf.mxu0
        %v6247 = vpop.f32.mrf.mxu0
        %v6248 = vadd.f32 %v6167, %v6247
        %v6249 = vpop.f32.mrf.mxu0
        %6250 = vmatprep.mubr.bf16.mxu0 0
        %6251 = vmatmul.mubr.bf16.gmra.mxu0 %v5908
        %v6252 = vpop.f32.mrf.mxu0
        %v6253 = vadd.f32 %v6172, %v6252
        %v6254 = vpop.f32.mrf.mxu0
        %v6255 = vpop.f32.mrf.mxu0
        %v6256 = vadd.f32 %v6175, %v6255
        %v6257 = vpop.f32.mrf.mxu0
        %6258 = vmatprep.mubr.bf16.mxu0 0
        %6259 = vmatmul.mubr.bf16.gmra.mxu0 %v5911
        %v6260 = vpop.f32.mrf.mxu0
        %v6261 = vadd.f32 %v6180, %v6260
        %v6262 = vpop.f32.mrf.mxu0
        %v6263 = vpop.f32.mrf.mxu0
        %v6264 = vadd.f32 %v6183, %v6263
        %v6265 = vpop.f32.mrf.mxu0
        %6266 = vdwg.mxu0
        %v6267 = vadd.f32 %v5891, %v6221
        %v6268 = vadd.f32 %v5892, %v6224
        %v6269 = vadd.f32 %v5893, %v6229
        %v6270 = vadd.f32 %v5894, %v6232
        %v6271 = vadd.f32 %v5895, %v6237
        %v6272 = vadd.f32 %v5896, %v6240
        %v6273 = vadd.f32 %v5897, %v6245
        %v6274 = vadd.f32 %v5898, %v6248
        %v6275 = vadd.f32 %v5899, %v6253
        %v6276 = vadd.f32 %v5900, %v6256
        %v6277 = vadd.f32 %v5901, %v6261
        %v6278 = vadd.f32 %v5902, %v6264
        %v6279 = vpack.c.bf16 %v4731, %v4728
        %v6280 = vpack.c.bf16 %v4732, %v4729
        %v6281 = vpack.c.bf16 %v4733, %v4730
        %v6282 = vpack.c.bf16 %v4737, %v4734
        %v6283 = vpack.c.bf16 %v4738, %v4735
        %v6284 = vpack.c.bf16 %v4739, %v4736
        %v6285 = vpack.c.bf16 %v4743, %v4740
        %v6286 = vpack.c.bf16 %v4744, %v4741
        %v6287 = vpack.c.bf16 %v4745, %v4742
        %s6288 = scalar_lea.vmem [#allocation8], 768
        %v6289 = vld [vmem:[%s6288] sm:$0xf]
        %v6290 = vld [vmem:[%s6288 + $0x4] sm:$0xf]
        %v6291 = vld [vmem:[%s6288 + $0x8] sm:$0xf]
        %v6292 = vld [vmem:[%s6288 + $0xc] sm:$0xf]
        %v6293 = vld [vmem:[%s6288 + $0x10] sm:$0xf]
        %v6294 = vld [vmem:[%s6288 + $0x14] sm:$0xf]
        %v6295 = vld [vmem:[%s6288 + $0x18] sm:$0xf]
        %v6296 = vld [vmem:[%s6288 + $0x1c] sm:$0xf]
        %v6297 = vld [vmem:[%s6288 + $0x20] sm:$0xf]
        %v6298 = vld [vmem:[%s6288 + $0x24] sm:$0xf]
        %v6299 = vld [vmem:[%s6288 + $0x28] sm:$0xf]
        %v6300 = vld [vmem:[%s6288 + $0x2c] sm:$0xf]
        %v6301 = vld [vmem:[%s6288 + $0x30] sm:$0xf]
        %v6302 = vld [vmem:[%s6288 + $0x34] sm:$0xf]
        %v6303 = vld [vmem:[%s6288 + $0x38] sm:$0xf]
        %v6304 = vld [vmem:[%s6288 + $0x3c] sm:$0xf]
        %v6305 = vld [vmem:[%s6288 + $0x40] sm:$0xf]
        %v6306 = vld [vmem:[%s6288 + $0x44] sm:$0xf]
        %v6307 = vld [vmem:[%s6288 + $0x48] sm:$0xf]
        %v6308 = vld [vmem:[%s6288 + $0x4c] sm:$0xf]
        %v6309 = vld [vmem:[%s6288 + $0x50] sm:$0xf]
        %v6310 = vld [vmem:[%s6288 + $0x54] sm:$0xf]
        %v6311 = vld [vmem:[%s6288 + $0x58] sm:$0xf]
        %v6312 = vld [vmem:[%s6288 + $0x5c] sm:$0xf]
        %v6313 = vld [vmem:[%s6288 + $0x60] sm:$0xf]
        %v6314 = vld [vmem:[%s6288 + $0x64] sm:$0xf]
        %v6315 = vld [vmem:[%s6288 + $0x68] sm:$0xf]
        %v6316 = vld [vmem:[%s6288 + $0x6c] sm:$0xf]
        %v6317 = vld [vmem:[%s6288 + $0x70] sm:$0xf]
        %v6318 = vld [vmem:[%s6288 + $0x74] sm:$0xf]
        %v6319 = vld [vmem:[%s6288 + $0x78] sm:$0xf]
        %v6320 = vld [vmem:[%s6288 + $0x7c] sm:$0xf]
        %v6321 = vld [vmem:[%s6288 + $0x80] sm:$0xf]
        %v6322 = vld [vmem:[%s6288 + $0x84] sm:$0xf]
        %v6323 = vld [vmem:[%s6288 + $0x88] sm:$0xf]
        %v6324 = vld [vmem:[%s6288 + $0x8c] sm:$0xf]
        %v6325 = vld [vmem:[%s6288 + $0x90] sm:$0xf]
        %v6326 = vld [vmem:[%s6288 + $0x94] sm:$0xf]
        %v6327 = vld [vmem:[%s6288 + $0x98] sm:$0xf]
        %v6328 = vld [vmem:[%s6288 + $0x9c] sm:$0xf]
        %v6329 = vld [vmem:[%s6288 + $0xa0] sm:$0xf]
        %v6330 = vld [vmem:[%s6288 + $0xa4] sm:$0xf]
        %v6331 = vld [vmem:[%s6288 + $0xa8] sm:$0xf]
        %v6332 = vld [vmem:[%s6288 + $0xac] sm:$0xf]
        %v6333 = vld [vmem:[%s6288 + $0xb0] sm:$0xf]
        %v6334 = vld [vmem:[%s6288 + $0xb4] sm:$0xf]
        %v6335 = vld [vmem:[%s6288 + $0xb8] sm:$0xf]
        %v6336 = vld [vmem:[%s6288 + $0xbc] sm:$0xf]
        %v6385 = vunpack.c.l.b16 %v6289
        %v6386 = vunpack.c.l.b16 %v6290
        %v6387 = vunpack.c.l.b16 %v6291
        %v6388 = vunpack.c.l.b16 %v6292
        %v6389 = vunpack.c.l.b16 %v6293
        %v6390 = vunpack.c.l.b16 %v6294
        %v6391 = vunpack.c.l.b16 %v6295
        %v6392 = vunpack.c.l.b16 %v6296
        %v6393 = vunpack.c.l.b16 %v6297
        %v6394 = vunpack.c.l.b16 %v6298
        %v6395 = vunpack.c.l.b16 %v6299
        %v6396 = vunpack.c.l.b16 %v6300
        %v6397 = vunpack.c.l.b16 %v6301
        %v6398 = vunpack.c.l.b16 %v6302
        %v6399 = vunpack.c.l.b16 %v6303
        %v6400 = vunpack.c.l.b16 %v6304
        %v6401 = vunpack.c.l.b16 %v6305
        %v6402 = vunpack.c.l.b16 %v6306
        %v6403 = vunpack.c.l.b16 %v6307
        %v6404 = vunpack.c.l.b16 %v6308
        %v6405 = vunpack.c.l.b16 %v6309
        %v6406 = vunpack.c.l.b16 %v6310
        %v6407 = vunpack.c.l.b16 %v6311
        %v6408 = vunpack.c.l.b16 %v6312
        %v6409 = vunpack.c.l.b16 %v6313
        %v6410 = vunpack.c.l.b16 %v6314
        %v6411 = vunpack.c.l.b16 %v6315
        %v6412 = vunpack.c.l.b16 %v6316
        %v6413 = vunpack.c.l.b16 %v6317
        %v6414 = vunpack.c.l.b16 %v6318
        %v6415 = vunpack.c.l.b16 %v6319
        %v6416 = vunpack.c.l.b16 %v6320
        %v6417 = vunpack.c.l.b16 %v6321
        %v6418 = vunpack.c.l.b16 %v6322
        %v6419 = vunpack.c.l.b16 %v6323
        %v6420 = vunpack.c.l.b16 %v6324
        %v6421 = vunpack.c.l.b16 %v6325
        %v6422 = vunpack.c.l.b16 %v6326
        %v6423 = vunpack.c.l.b16 %v6327
        %v6424 = vunpack.c.l.b16 %v6328
        %v6425 = vunpack.c.l.b16 %v6329
        %v6426 = vunpack.c.l.b16 %v6330
        %v6427 = vunpack.c.l.b16 %v6331
        %v6428 = vunpack.c.l.b16 %v6332
        %v6429 = vunpack.c.l.b16 %v6333
        %v6430 = vunpack.c.l.b16 %v6334
        %v6431 = vunpack.c.l.b16 %v6335
        %v6432 = vunpack.c.l.b16 %v6336
        %v6433 = vpack.c.b16 %v6386, %v6385
        %v6434 = vpack.c.b16 %v6388, %v6387
        %v6435 = vpack.c.b16 %v6390, %v6389
        %v6436 = vpack.c.b16 %v6392, %v6391
        %v6437 = vpack.c.b16 %v6394, %v6393
        %v6438 = vpack.c.b16 %v6396, %v6395
        %v6439 = vpack.c.b16 %v6398, %v6397
        %v6440 = vpack.c.b16 %v6400, %v6399
        %v6441 = vpack.c.b16 %v6402, %v6401
        %v6442 = vpack.c.b16 %v6404, %v6403
        %v6443 = vpack.c.b16 %v6406, %v6405
        %v6444 = vpack.c.b16 %v6408, %v6407
        %v6445 = vpack.c.b16 %v6410, %v6409
        %v6446 = vpack.c.b16 %v6412, %v6411
        %v6447 = vpack.c.b16 %v6414, %v6413
        %v6448 = vpack.c.b16 %v6416, %v6415
        %v6449 = vpack.c.b16 %v6418, %v6417
        %v6450 = vpack.c.b16 %v6420, %v6419
        %v6451 = vpack.c.b16 %v6422, %v6421
        %v6452 = vpack.c.b16 %v6424, %v6423
        %v6453 = vpack.c.b16 %v6426, %v6425
        %v6454 = vpack.c.b16 %v6428, %v6427
        %v6455 = vpack.c.b16 %v6430, %v6429
        %v6456 = vpack.c.b16 %v6432, %v6431
        %6481 = vmatprep.subr.bf16.mxu0 0
        %6482 = vmatpush1.bf16.msra.mxu0 %v6440
        %6483 = vmatprep.subr.bf16.mxu0 0
        %6484 = vmatpush1.bf16.msra.mxu0 %v6439
        %6485 = vmatprep.subr.bf16.mxu0 0
        %6486 = vmatpush1.bf16.msra.mxu0 %v6438
        %6487 = vmatprep.subr.bf16.mxu0 0
        %6488 = vmatpush1.bf16.msra.mxu0 %v6437
        %6489 = vmatprep.subr.bf16.mxu0 0
        %6490 = vmatpush1.bf16.msra.mxu0 %v6436
        %6491 = vmatprep.subr.bf16.mxu0 0
        %6492 = vmatpush1.bf16.msra.mxu0 %v6435
        %6493 = vmatprep.subr.bf16.mxu0 0
        %6494 = vmatpush1.bf16.msra.mxu0 %v6434
        %6495 = vmatprep.subr.bf16.mxu0 0
        %6496 = vmatpush1.bf16.msra.mxu0 %v6433
        %6497 = vmatprep.subr.bf16.mxu0 0
        %6498 = vmatpush2.bf16.msra.mxu0 %v6448
        %6499 = vmatprep.subr.bf16.mxu0 0
        %6500 = vmatpush2.bf16.msra.mxu0 %v6447
        %6501 = vmatprep.subr.bf16.mxu0 0
        %6502 = vmatpush2.bf16.msra.mxu0 %v6446
        %6503 = vmatprep.subr.bf16.mxu0 0
        %6504 = vmatpush2.bf16.msra.mxu0 %v6445
        %6505 = vmatprep.subr.bf16.mxu0 0
        %6506 = vmatpush2.bf16.msra.mxu0 %v6444
        %6507 = vmatprep.subr.bf16.mxu0 0
        %6508 = vmatpush2.bf16.msra.mxu0 %v6443
        %6509 = vmatprep.subr.bf16.mxu0 0
        %6510 = vmatpush2.bf16.msra.mxu0 %v6442
        %6511 = vmatprep.subr.bf16.mxu0 0
        %6512 = vmatpush2.bf16.msra.mxu0 %v6441
        %6513 = vmatprep.mubr.bf16.mxu0 %v5528
        %6514 = vmatmul.mubr.bf16.gmra.mxu0 %v5527
        %v6515 = vpop.f32.mrf.mxu0
        %v6516 = vadd.f32 0.0, %v6515
        %v6517 = vpop.f32.mrf.mxu0
        %v6518 = vpop.f32.mrf.mxu0
        %v6519 = vadd.f32 0.0, %v6518
        %v6520 = vpop.f32.mrf.mxu0
        %6521 = vmatprep.mubr.bf16.mxu0 %v5531
        %6522 = vmatmul.mubr.bf16.gmra.mxu0 %v5530
        %v6523 = vpop.f32.mrf.mxu0
        %v6524 = vadd.f32 0.0, %v6523
        %v6525 = vpop.f32.mrf.mxu0
        %v6526 = vpop.f32.mrf.mxu0
        %v6527 = vadd.f32 0.0, %v6526
        %v6528 = vpop.f32.mrf.mxu0
        %6529 = vmatprep.mubr.bf16.mxu0 %v5534
        %6530 = vmatmul.mubr.bf16.gmra.mxu0 %v5533
        %v6531 = vpop.f32.mrf.mxu0
        %v6532 = vadd.f32 0.0, %v6531
        %v6533 = vpop.f32.mrf.mxu0
        %v6534 = vpop.f32.mrf.mxu0
        %v6535 = vadd.f32 0.0, %v6534
        %v6536 = vpop.f32.mrf.mxu0
        %6537 = vmatprep.mubr.bf16.mxu0 %v6280
        %6538 = vmatmul.mubr.bf16.gmra.mxu0 %v6279
        %v6539 = vpop.f32.mrf.mxu0
        %v6540 = vadd.f32 0.0, %v6539
        %v6541 = vpop.f32.mrf.mxu0
        %v6542 = vpop.f32.mrf.mxu0
        %v6543 = vadd.f32 0.0, %v6542
        %v6544 = vpop.f32.mrf.mxu0
        %6545 = vmatprep.mubr.bf16.mxu0 %v6283
        %6546 = vmatmul.mubr.bf16.gmra.mxu0 %v6282
        %v6547 = vpop.f32.mrf.mxu0
        %v6548 = vadd.f32 0.0, %v6547
        %v6549 = vpop.f32.mrf.mxu0
        %v6550 = vpop.f32.mrf.mxu0
        %v6551 = vadd.f32 0.0, %v6550
        %v6552 = vpop.f32.mrf.mxu0
        %6553 = vmatprep.mubr.bf16.mxu0 %v6286
        %6554 = vmatmul.mubr.bf16.gmra.mxu0 %v6285
        %v6555 = vpop.f32.mrf.mxu0
        %v6556 = vadd.f32 0.0, %v6555
        %v6557 = vpop.f32.mrf.mxu0
        %v6558 = vpop.f32.mrf.mxu0
        %v6559 = vadd.f32 0.0, %v6558
        %v6560 = vpop.f32.mrf.mxu0
        %6561 = vdwg.mxu0
        %6562 = vmatprep.subr.bf16.mxu0 0
        %6563 = vmatpush1.bf16.msra.mxu0 %v6456
        %6564 = vmatprep.subr.bf16.mxu0 0
        %6565 = vmatpush1.bf16.msra.mxu0 %v6455
        %6566 = vmatprep.subr.bf16.mxu0 0
        %6567 = vmatpush1.bf16.msra.mxu0 %v6454
        %6568 = vmatprep.subr.bf16.mxu0 0
        %6569 = vmatpush1.bf16.msra.mxu0 %v6453
        %6570 = vmatprep.subr.bf16.mxu0 0
        %6571 = vmatpush1.bf16.msra.mxu0 %v6452
        %6572 = vmatprep.subr.bf16.mxu0 0
        %6573 = vmatpush1.bf16.msra.mxu0 %v6451
        %6574 = vmatprep.subr.bf16.mxu0 0
        %6575 = vmatpush1.bf16.msra.mxu0 %v6450
        %6576 = vmatprep.subr.bf16.mxu0 0
        %6577 = vmatpush1.bf16.msra.mxu0 %v6449
        %6578 = vmatprep.subr.bf16.mxu0 0
        %6579 = vmatpush2.bf16.msra.mxu0 0
        %6580 = vmatprep.subr.bf16.mxu0 0
        %6581 = vmatpush2.bf16.msra.mxu0 0
        %6582 = vmatprep.subr.bf16.mxu0 0
        %6583 = vmatpush2.bf16.msra.mxu0 0
        %6584 = vmatprep.subr.bf16.mxu0 0
        %6585 = vmatpush2.bf16.msra.mxu0 0
        %6586 = vmatprep.subr.bf16.mxu0 0
        %6587 = vmatpush2.bf16.msra.mxu0 0
        %6588 = vmatprep.subr.bf16.mxu0 0
        %6589 = vmatpush2.bf16.msra.mxu0 0
        %6590 = vmatprep.subr.bf16.mxu0 0
        %6591 = vmatpush2.bf16.msra.mxu0 0
        %6592 = vmatprep.subr.bf16.mxu0 0
        %6593 = vmatpush2.bf16.msra.mxu0 0
        %6594 = vmatprep.mubr.bf16.mxu0 0
        %6595 = vmatmul.mubr.bf16.gmra.mxu0 %v5529
        %v6596 = vpop.f32.mrf.mxu0
        %v6597 = vadd.f32 %v6516, %v6596
        %v6598 = vpop.f32.mrf.mxu0
        %v6599 = vpop.f32.mrf.mxu0
        %v6600 = vadd.f32 %v6519, %v6599
        %v6601 = vpop.f32.mrf.mxu0
        %6602 = vmatprep.mubr.bf16.mxu0 0
        %6603 = vmatmul.mubr.bf16.gmra.mxu0 %v5532
        %v6604 = vpop.f32.mrf.mxu0
        %v6605 = vadd.f32 %v6524, %v6604
        %v6606 = vpop.f32.mrf.mxu0
        %v6607 = vpop.f32.mrf.mxu0
        %v6608 = vadd.f32 %v6527, %v6607
        %v6609 = vpop.f32.mrf.mxu0
        %6610 = vmatprep.mubr.bf16.mxu0 0
        %6611 = vmatmul.mubr.bf16.gmra.mxu0 %v5535
        %v6612 = vpop.f32.mrf.mxu0
        %v6613 = vadd.f32 %v6532, %v6612
        %v6614 = vpop.f32.mrf.mxu0
        %v6615 = vpop.f32.mrf.mxu0
        %v6616 = vadd.f32 %v6535, %v6615
        %v6617 = vpop.f32.mrf.mxu0
        %6618 = vmatprep.mubr.bf16.mxu0 0
        %6619 = vmatmul.mubr.bf16.gmra.mxu0 %v6281
        %v6620 = vpop.f32.mrf.mxu0
        %v6621 = vadd.f32 %v6540, %v6620
        %v6622 = vpop.f32.mrf.mxu0
        %v6623 = vpop.f32.mrf.mxu0
        %v6624 = vadd.f32 %v6543, %v6623
        %v6625 = vpop.f32.mrf.mxu0
        %6626 = vmatprep.mubr.bf16.mxu0 0
        %6627 = vmatmul.mubr.bf16.gmra.mxu0 %v6284
        %v6628 = vpop.f32.mrf.mxu0
        %v6629 = vadd.f32 %v6548, %v6628
        %v6630 = vpop.f32.mrf.mxu0
        %v6631 = vpop.f32.mrf.mxu0
        %v6632 = vadd.f32 %v6551, %v6631
        %v6633 = vpop.f32.mrf.mxu0
        %6634 = vmatprep.mubr.bf16.mxu0 0
        %6635 = vmatmul.mubr.bf16.gmra.mxu0 %v6287
        %v6636 = vpop.f32.mrf.mxu0
        %v6637 = vadd.f32 %v6556, %v6636
        %v6638 = vpop.f32.mrf.mxu0
        %v6639 = vpop.f32.mrf.mxu0
        %v6640 = vadd.f32 %v6559, %v6639
        %v6641 = vpop.f32.mrf.mxu0
        %6642 = vdwg.mxu0
        %v6643 = vadd.f32 %v6267, %v6597
        %v6644 = vadd.f32 %v6268, %v6600
        %v6645 = vadd.f32 %v6269, %v6605
        %v6646 = vadd.f32 %v6270, %v6608
        %v6647 = vadd.f32 %v6271, %v6613
        %v6648 = vadd.f32 %v6272, %v6616
        %v6649 = vadd.f32 %v6273, %v6621
        %v6650 = vadd.f32 %v6274, %v6624
        %v6651 = vadd.f32 %v6275, %v6629
        %v6652 = vadd.f32 %v6276, %v6632
        %v6653 = vadd.f32 %v6277, %v6637
        %v6654 = vadd.f32 %v6278, %v6640
        %v6655 = vpack.c.bf16 %v4740, %v4737
        %v6656 = vpack.c.bf16 %v4741, %v4738
        %v6657 = vpack.c.bf16 %v4742, %v4739
        %v6658 = vpack.c.bf16 %v4746, %v4743
        %v6659 = vpack.c.bf16 %v4747, %v4744
        %v6660 = vpack.c.bf16 %v4748, %v4745
        %v6661 = vpack.c.bf16 %v4752, %v4749
        %v6662 = vpack.c.bf16 %v4753, %v4750
        %v6663 = vpack.c.bf16 %v4754, %v4751
        %s6664 = scalar_lea.vmem [#allocation8], 960
        %v6665 = vld [vmem:[%s6664] sm:$0xf]
        %v6666 = vld [vmem:[%s6664 + $0x4] sm:$0xf]
        %v6667 = vld [vmem:[%s6664 + $0x8] sm:$0xf]
        %v6668 = vld [vmem:[%s6664 + $0xc] sm:$0xf]
        %v6669 = vld [vmem:[%s6664 + $0x10] sm:$0xf]
        %v6670 = vld [vmem:[%s6664 + $0x14] sm:$0xf]
        %v6671 = vld [vmem:[%s6664 + $0x18] sm:$0xf]
        %v6672 = vld [vmem:[%s6664 + $0x1c] sm:$0xf]
        %v6673 = vld [vmem:[%s6664 + $0x20] sm:$0xf]
        %v6674 = vld [vmem:[%s6664 + $0x24] sm:$0xf]
        %v6675 = vld [vmem:[%s6664 + $0x28] sm:$0xf]
        %v6676 = vld [vmem:[%s6664 + $0x2c] sm:$0xf]
        %v6677 = vld [vmem:[%s6664 + $0x30] sm:$0xf]
        %v6678 = vld [vmem:[%s6664 + $0x34] sm:$0xf]
        %v6679 = vld [vmem:[%s6664 + $0x38] sm:$0xf]
        %v6680 = vld [vmem:[%s6664 + $0x3c] sm:$0xf]
        %v6681 = vld [vmem:[%s6664 + $0x40] sm:$0xf]
        %v6682 = vld [vmem:[%s6664 + $0x44] sm:$0xf]
        %v6683 = vld [vmem:[%s6664 + $0x48] sm:$0xf]
        %v6684 = vld [vmem:[%s6664 + $0x4c] sm:$0xf]
        %v6685 = vld [vmem:[%s6664 + $0x50] sm:$0xf]
        %v6686 = vld [vmem:[%s6664 + $0x54] sm:$0xf]
        %v6687 = vld [vmem:[%s6664 + $0x58] sm:$0xf]
        %v6688 = vld [vmem:[%s6664 + $0x5c] sm:$0xf]
        %v6689 = vld [vmem:[%s6664 + $0x60] sm:$0xf]
        %v6690 = vld [vmem:[%s6664 + $0x64] sm:$0xf]
        %v6691 = vld [vmem:[%s6664 + $0x68] sm:$0xf]
        %v6692 = vld [vmem:[%s6664 + $0x6c] sm:$0xf]
        %v6693 = vld [vmem:[%s6664 + $0x70] sm:$0xf]
        %v6694 = vld [vmem:[%s6664 + $0x74] sm:$0xf]
        %v6695 = vld [vmem:[%s6664 + $0x78] sm:$0xf]
        %v6696 = vld [vmem:[%s6664 + $0x7c] sm:$0xf]
        %v6697 = vld [vmem:[%s6664 + $0x80] sm:$0xf]
        %v6698 = vld [vmem:[%s6664 + $0x84] sm:$0xf]
        %v6699 = vld [vmem:[%s6664 + $0x88] sm:$0xf]
        %v6700 = vld [vmem:[%s6664 + $0x8c] sm:$0xf]
        %v6701 = vld [vmem:[%s6664 + $0x90] sm:$0xf]
        %v6702 = vld [vmem:[%s6664 + $0x94] sm:$0xf]
        %v6703 = vld [vmem:[%s6664 + $0x98] sm:$0xf]
        %v6704 = vld [vmem:[%s6664 + $0x9c] sm:$0xf]
        %v6705 = vld [vmem:[%s6664 + $0xa0] sm:$0xf]
        %v6706 = vld [vmem:[%s6664 + $0xa4] sm:$0xf]
        %v6707 = vld [vmem:[%s6664 + $0xa8] sm:$0xf]
        %v6708 = vld [vmem:[%s6664 + $0xac] sm:$0xf]
        %v6709 = vld [vmem:[%s6664 + $0xb0] sm:$0xf]
        %v6710 = vld [vmem:[%s6664 + $0xb4] sm:$0xf]
        %v6711 = vld [vmem:[%s6664 + $0xb8] sm:$0xf]
        %v6712 = vld [vmem:[%s6664 + $0xbc] sm:$0xf]
        %v6761 = vunpack.c.l.b16 %v6665
        %v6762 = vunpack.c.l.b16 %v6666
        %v6763 = vunpack.c.l.b16 %v6667
        %v6764 = vunpack.c.l.b16 %v6668
        %v6765 = vunpack.c.l.b16 %v6669
        %v6766 = vunpack.c.l.b16 %v6670
        %v6767 = vunpack.c.l.b16 %v6671
        %v6768 = vunpack.c.l.b16 %v6672
        %v6769 = vunpack.c.l.b16 %v6673
        %v6770 = vunpack.c.l.b16 %v6674
        %v6771 = vunpack.c.l.b16 %v6675
        %v6772 = vunpack.c.l.b16 %v6676
        %v6773 = vunpack.c.l.b16 %v6677
        %v6774 = vunpack.c.l.b16 %v6678
        %v6775 = vunpack.c.l.b16 %v6679
        %v6776 = vunpack.c.l.b16 %v6680
        %v6777 = vunpack.c.l.b16 %v6681
        %v6778 = vunpack.c.l.b16 %v6682
        %v6779 = vunpack.c.l.b16 %v6683
        %v6780 = vunpack.c.l.b16 %v6684
        %v6781 = vunpack.c.l.b16 %v6685
        %v6782 = vunpack.c.l.b16 %v6686
        %v6783 = vunpack.c.l.b16 %v6687
        %v6784 = vunpack.c.l.b16 %v6688
        %v6785 = vunpack.c.l.b16 %v6689
        %v6786 = vunpack.c.l.b16 %v6690
        %v6787 = vunpack.c.l.b16 %v6691
        %v6788 = vunpack.c.l.b16 %v6692
        %v6789 = vunpack.c.l.b16 %v6693
        %v6790 = vunpack.c.l.b16 %v6694
        %v6791 = vunpack.c.l.b16 %v6695
        %v6792 = vunpack.c.l.b16 %v6696
        %v6793 = vunpack.c.l.b16 %v6697
        %v6794 = vunpack.c.l.b16 %v6698
        %v6795 = vunpack.c.l.b16 %v6699
        %v6796 = vunpack.c.l.b16 %v6700
        %v6797 = vunpack.c.l.b16 %v6701
        %v6798 = vunpack.c.l.b16 %v6702
        %v6799 = vunpack.c.l.b16 %v6703
        %v6800 = vunpack.c.l.b16 %v6704
        %v6801 = vunpack.c.l.b16 %v6705
        %v6802 = vunpack.c.l.b16 %v6706
        %v6803 = vunpack.c.l.b16 %v6707
        %v6804 = vunpack.c.l.b16 %v6708
        %v6805 = vunpack.c.l.b16 %v6709
        %v6806 = vunpack.c.l.b16 %v6710
        %v6807 = vunpack.c.l.b16 %v6711
        %v6808 = vunpack.c.l.b16 %v6712
        %v6809 = vpack.c.b16 %v6762, %v6761
        %v6810 = vpack.c.b16 %v6764, %v6763
        %v6811 = vpack.c.b16 %v6766, %v6765
        %v6812 = vpack.c.b16 %v6768, %v6767
        %v6813 = vpack.c.b16 %v6770, %v6769
        %v6814 = vpack.c.b16 %v6772, %v6771
        %v6815 = vpack.c.b16 %v6774, %v6773
        %v6816 = vpack.c.b16 %v6776, %v6775
        %v6817 = vpack.c.b16 %v6778, %v6777
        %v6818 = vpack.c.b16 %v6780, %v6779
        %v6819 = vpack.c.b16 %v6782, %v6781
        %v6820 = vpack.c.b16 %v6784, %v6783
        %v6821 = vpack.c.b16 %v6786, %v6785
        %v6822 = vpack.c.b16 %v6788, %v6787
        %v6823 = vpack.c.b16 %v6790, %v6789
        %v6824 = vpack.c.b16 %v6792, %v6791
        %v6825 = vpack.c.b16 %v6794, %v6793
        %v6826 = vpack.c.b16 %v6796, %v6795
        %v6827 = vpack.c.b16 %v6798, %v6797
        %v6828 = vpack.c.b16 %v6800, %v6799
        %v6829 = vpack.c.b16 %v6802, %v6801
        %v6830 = vpack.c.b16 %v6804, %v6803
        %v6831 = vpack.c.b16 %v6806, %v6805
        %v6832 = vpack.c.b16 %v6808, %v6807
        %6857 = vmatprep.subr.bf16.mxu0 0
        %6858 = vmatpush1.bf16.msra.mxu0 %v6816
        %6859 = vmatprep.subr.bf16.mxu0 0
        %6860 = vmatpush1.bf16.msra.mxu0 %v6815
        %6861 = vmatprep.subr.bf16.mxu0 0
        %6862 = vmatpush1.bf16.msra.mxu0 %v6814
        %6863 = vmatprep.subr.bf16.mxu0 0
        %6864 = vmatpush1.bf16.msra.mxu0 %v6813
        %6865 = vmatprep.subr.bf16.mxu0 0
        %6866 = vmatpush1.bf16.msra.mxu0 %v6812
        %6867 = vmatprep.subr.bf16.mxu0 0
        %6868 = vmatpush1.bf16.msra.mxu0 %v6811
        %6869 = vmatprep.subr.bf16.mxu0 0
        %6870 = vmatpush1.bf16.msra.mxu0 %v6810
        %6871 = vmatprep.subr.bf16.mxu0 0
        %6872 = vmatpush1.bf16.msra.mxu0 %v6809
        %6873 = vmatprep.subr.bf16.mxu0 0
        %6874 = vmatpush2.bf16.msra.mxu0 %v6824
        %6875 = vmatprep.subr.bf16.mxu0 0
        %6876 = vmatpush2.bf16.msra.mxu0 %v6823
        %6877 = vmatprep.subr.bf16.mxu0 0
        %6878 = vmatpush2.bf16.msra.mxu0 %v6822
        %6879 = vmatprep.subr.bf16.mxu0 0
        %6880 = vmatpush2.bf16.msra.mxu0 %v6821
        %6881 = vmatprep.subr.bf16.mxu0 0
        %6882 = vmatpush2.bf16.msra.mxu0 %v6820
        %6883 = vmatprep.subr.bf16.mxu0 0
        %6884 = vmatpush2.bf16.msra.mxu0 %v6819
        %6885 = vmatprep.subr.bf16.mxu0 0
        %6886 = vmatpush2.bf16.msra.mxu0 %v6818
        %6887 = vmatprep.subr.bf16.mxu0 0
        %6888 = vmatpush2.bf16.msra.mxu0 %v6817
        %6889 = vmatprep.mubr.bf16.mxu0 %v5904
        %6890 = vmatmul.mubr.bf16.gmra.mxu0 %v5903
        %v6891 = vpop.f32.mrf.mxu0
        %v6892 = vadd.f32 0.0, %v6891
        %v6893 = vpop.f32.mrf.mxu0
        %v6894 = vpop.f32.mrf.mxu0
        %v6895 = vadd.f32 0.0, %v6894
        %v6896 = vpop.f32.mrf.mxu0
        %6897 = vmatprep.mubr.bf16.mxu0 %v5907
        %6898 = vmatmul.mubr.bf16.gmra.mxu0 %v5906
        %v6899 = vpop.f32.mrf.mxu0
        %v6900 = vadd.f32 0.0, %v6899
        %v6901 = vpop.f32.mrf.mxu0
        %v6902 = vpop.f32.mrf.mxu0
        %v6903 = vadd.f32 0.0, %v6902
        %v6904 = vpop.f32.mrf.mxu0
        %6905 = vmatprep.mubr.bf16.mxu0 %v5910
        %6906 = vmatmul.mubr.bf16.gmra.mxu0 %v5909
        %v6907 = vpop.f32.mrf.mxu0
        %v6908 = vadd.f32 0.0, %v6907
        %v6909 = vpop.f32.mrf.mxu0
        %v6910 = vpop.f32.mrf.mxu0
        %v6911 = vadd.f32 0.0, %v6910
        %v6912 = vpop.f32.mrf.mxu0
        %6913 = vmatprep.mubr.bf16.mxu0 %v6656
        %6914 = vmatmul.mubr.bf16.gmra.mxu0 %v6655
        %v6915 = vpop.f32.mrf.mxu0
        %v6916 = vadd.f32 0.0, %v6915
        %v6917 = vpop.f32.mrf.mxu0
        %v6918 = vpop.f32.mrf.mxu0
        %v6919 = vadd.f32 0.0, %v6918
        %v6920 = vpop.f32.mrf.mxu0
        %6921 = vmatprep.mubr.bf16.mxu0 %v6659
        %6922 = vmatmul.mubr.bf16.gmra.mxu0 %v6658
        %v6923 = vpop.f32.mrf.mxu0
        %v6924 = vadd.f32 0.0, %v6923
        %v6925 = vpop.f32.mrf.mxu0
        %v6926 = vpop.f32.mrf.mxu0
        %v6927 = vadd.f32 0.0, %v6926
        %v6928 = vpop.f32.mrf.mxu0
        %6929 = vmatprep.mubr.bf16.mxu0 %v6662
        %6930 = vmatmul.mubr.bf16.gmra.mxu0 %v6661
        %v6931 = vpop.f32.mrf.mxu0
        %v6932 = vadd.f32 0.0, %v6931
        %v6933 = vpop.f32.mrf.mxu0
        %v6934 = vpop.f32.mrf.mxu0
        %v6935 = vadd.f32 0.0, %v6934
        %v6936 = vpop.f32.mrf.mxu0
        %6937 = vdwg.mxu0
        %6938 = vmatprep.subr.bf16.mxu0 0
        %6939 = vmatpush1.bf16.msra.mxu0 %v6832
        %6940 = vmatprep.subr.bf16.mxu0 0
        %6941 = vmatpush1.bf16.msra.mxu0 %v6831
        %6942 = vmatprep.subr.bf16.mxu0 0
        %6943 = vmatpush1.bf16.msra.mxu0 %v6830
        %6944 = vmatprep.subr.bf16.mxu0 0
        %6945 = vmatpush1.bf16.msra.mxu0 %v6829
        %6946 = vmatprep.subr.bf16.mxu0 0
        %6947 = vmatpush1.bf16.msra.mxu0 %v6828
        %6948 = vmatprep.subr.bf16.mxu0 0
        %6949 = vmatpush1.bf16.msra.mxu0 %v6827
        %6950 = vmatprep.subr.bf16.mxu0 0
        %6951 = vmatpush1.bf16.msra.mxu0 %v6826
        %6952 = vmatprep.subr.bf16.mxu0 0
        %6953 = vmatpush1.bf16.msra.mxu0 %v6825
        %6954 = vmatprep.subr.bf16.mxu0 0
        %6955 = vmatpush2.bf16.msra.mxu0 0
        %6956 = vmatprep.subr.bf16.mxu0 0
        %6957 = vmatpush2.bf16.msra.mxu0 0
        %6958 = vmatprep.subr.bf16.mxu0 0
        %6959 = vmatpush2.bf16.msra.mxu0 0
        %6960 = vmatprep.subr.bf16.mxu0 0
        %6961 = vmatpush2.bf16.msra.mxu0 0
        %6962 = vmatprep.subr.bf16.mxu0 0
        %6963 = vmatpush2.bf16.msra.mxu0 0
        %6964 = vmatprep.subr.bf16.mxu0 0
        %6965 = vmatpush2.bf16.msra.mxu0 0
        %6966 = vmatprep.subr.bf16.mxu0 0
        %6967 = vmatpush2.bf16.msra.mxu0 0
        %6968 = vmatprep.subr.bf16.mxu0 0
        %6969 = vmatpush2.bf16.msra.mxu0 0
        %6970 = vmatprep.mubr.bf16.mxu0 0
        %6971 = vmatmul.mubr.bf16.gmra.mxu0 %v5905
        %v6972 = vpop.f32.mrf.mxu0
        %v6973 = vadd.f32 %v6892, %v6972
        %v6974 = vpop.f32.mrf.mxu0
        %v6975 = vpop.f32.mrf.mxu0
        %v6976 = vadd.f32 %v6895, %v6975
        %v6977 = vpop.f32.mrf.mxu0
        %6978 = vmatprep.mubr.bf16.mxu0 0
        %6979 = vmatmul.mubr.bf16.gmra.mxu0 %v5908
        %v6980 = vpop.f32.mrf.mxu0
        %v6981 = vadd.f32 %v6900, %v6980
        %v6982 = vpop.f32.mrf.mxu0
        %v6983 = vpop.f32.mrf.mxu0
        %v6984 = vadd.f32 %v6903, %v6983
        %v6985 = vpop.f32.mrf.mxu0
        %6986 = vmatprep.mubr.bf16.mxu0 0
        %6987 = vmatmul.mubr.bf16.gmra.mxu0 %v5911
        %v6988 = vpop.f32.mrf.mxu0
        %v6989 = vadd.f32 %v6908, %v6988
        %v6990 = vpop.f32.mrf.mxu0
        %v6991 = vpop.f32.mrf.mxu0
        %v6992 = vadd.f32 %v6911, %v6991
        %v6993 = vpop.f32.mrf.mxu0
        %6994 = vmatprep.mubr.bf16.mxu0 0
        %6995 = vmatmul.mubr.bf16.gmra.mxu0 %v6657
        %v6996 = vpop.f32.mrf.mxu0
        %v6997 = vadd.f32 %v6916, %v6996
        %v6998 = vpop.f32.mrf.mxu0
        %v6999 = vpop.f32.mrf.mxu0
        %v7000 = vadd.f32 %v6919, %v6999
        %v7001 = vpop.f32.mrf.mxu0
        %7002 = vmatprep.mubr.bf16.mxu0 0
        %7003 = vmatmul.mubr.bf16.gmra.mxu0 %v6660
        %v7004 = vpop.f32.mrf.mxu0
        %v7005 = vadd.f32 %v6924, %v7004
        %v7006 = vpop.f32.mrf.mxu0
        %v7007 = vpop.f32.mrf.mxu0
        %v7008 = vadd.f32 %v6927, %v7007
        %v7009 = vpop.f32.mrf.mxu0
        %7010 = vmatprep.mubr.bf16.mxu0 0
        %7011 = vmatmul.mubr.bf16.gmra.mxu0 %v6663
        %v7012 = vpop.f32.mrf.mxu0
        %v7013 = vadd.f32 %v6932, %v7012
        %v7014 = vpop.f32.mrf.mxu0
        %v7015 = vpop.f32.mrf.mxu0
        %v7016 = vadd.f32 %v6935, %v7015
        %v7017 = vpop.f32.mrf.mxu0
        %7018 = vdwg.mxu0
        %v7019 = vadd.f32 %v6643, %v6973
        %v7020 = vadd.f32 %v6644, %v6976
        %v7021 = vadd.f32 %v6645, %v6981
        %v7022 = vadd.f32 %v6646, %v6984
        %v7023 = vadd.f32 %v6647, %v6989
        %v7024 = vadd.f32 %v6648, %v6992
        %v7025 = vadd.f32 %v6649, %v6997
        %v7026 = vadd.f32 %v6650, %v7000
        %v7027 = vadd.f32 %v6651, %v7005
        %v7028 = vadd.f32 %v6652, %v7008
        %v7029 = vadd.f32 %v6653, %v7013
        %v7030 = vadd.f32 %v6654, %v7016
        %v7031 = vpack.c.bf16 %v4749, %v4746
        %v7032 = vpack.c.bf16 %v4750, %v4747
        %v7033 = vpack.c.bf16 %v4751, %v4748
        %v7034 = vpack.c.bf16 %v4755, %v4752
        %v7035 = vpack.c.bf16 %v4756, %v4753
        %v7036 = vpack.c.bf16 %v4757, %v4754
        %v7037 = vpack.c.bf16 %v4761, %v4758
        %v7038 = vpack.c.bf16 %v4762, %v4759
        %v7039 = vpack.c.bf16 %v4763, %v4760
        %s7040 = scalar_lea.vmem [#allocation8], 1152
        %v7041 = vld [vmem:[%s7040] sm:$0xf]
        %v7042 = vld [vmem:[%s7040 + $0x4] sm:$0xf]
        %v7043 = vld [vmem:[%s7040 + $0x8] sm:$0xf]
        %v7044 = vld [vmem:[%s7040 + $0xc] sm:$0xf]
        %v7045 = vld [vmem:[%s7040 + $0x10] sm:$0xf]
        %v7046 = vld [vmem:[%s7040 + $0x14] sm:$0xf]
        %v7047 = vld [vmem:[%s7040 + $0x18] sm:$0xf]
        %v7048 = vld [vmem:[%s7040 + $0x1c] sm:$0xf]
        %v7049 = vld [vmem:[%s7040 + $0x20] sm:$0xf]
        %v7050 = vld [vmem:[%s7040 + $0x24] sm:$0xf]
        %v7051 = vld [vmem:[%s7040 + $0x28] sm:$0xf]
        %v7052 = vld [vmem:[%s7040 + $0x2c] sm:$0xf]
        %v7053 = vld [vmem:[%s7040 + $0x30] sm:$0xf]
        %v7054 = vld [vmem:[%s7040 + $0x34] sm:$0xf]
        %v7055 = vld [vmem:[%s7040 + $0x38] sm:$0xf]
        %v7056 = vld [vmem:[%s7040 + $0x3c] sm:$0xf]
        %v7057 = vld [vmem:[%s7040 + $0x40] sm:$0xf]
        %v7058 = vld [vmem:[%s7040 + $0x44] sm:$0xf]
        %v7059 = vld [vmem:[%s7040 + $0x48] sm:$0xf]
        %v7060 = vld [vmem:[%s7040 + $0x4c] sm:$0xf]
        %v7061 = vld [vmem:[%s7040 + $0x50] sm:$0xf]
        %v7062 = vld [vmem:[%s7040 + $0x54] sm:$0xf]
        %v7063 = vld [vmem:[%s7040 + $0x58] sm:$0xf]
        %v7064 = vld [vmem:[%s7040 + $0x5c] sm:$0xf]
        %v7065 = vld [vmem:[%s7040 + $0x60] sm:$0xf]
        %v7066 = vld [vmem:[%s7040 + $0x64] sm:$0xf]
        %v7067 = vld [vmem:[%s7040 + $0x68] sm:$0xf]
        %v7068 = vld [vmem:[%s7040 + $0x6c] sm:$0xf]
        %v7069 = vld [vmem:[%s7040 + $0x70] sm:$0xf]
        %v7070 = vld [vmem:[%s7040 + $0x74] sm:$0xf]
        %v7071 = vld [vmem:[%s7040 + $0x78] sm:$0xf]
        %v7072 = vld [vmem:[%s7040 + $0x7c] sm:$0xf]
        %v7073 = vld [vmem:[%s7040 + $0x80] sm:$0xf]
        %v7074 = vld [vmem:[%s7040 + $0x84] sm:$0xf]
        %v7075 = vld [vmem:[%s7040 + $0x88] sm:$0xf]
        %v7076 = vld [vmem:[%s7040 + $0x8c] sm:$0xf]
        %v7077 = vld [vmem:[%s7040 + $0x90] sm:$0xf]
        %v7078 = vld [vmem:[%s7040 + $0x94] sm:$0xf]
        %v7079 = vld [vmem:[%s7040 + $0x98] sm:$0xf]
        %v7080 = vld [vmem:[%s7040 + $0x9c] sm:$0xf]
        %v7081 = vld [vmem:[%s7040 + $0xa0] sm:$0xf]
        %v7082 = vld [vmem:[%s7040 + $0xa4] sm:$0xf]
        %v7083 = vld [vmem:[%s7040 + $0xa8] sm:$0xf]
        %v7084 = vld [vmem:[%s7040 + $0xac] sm:$0xf]
        %v7085 = vld [vmem:[%s7040 + $0xb0] sm:$0xf]
        %v7086 = vld [vmem:[%s7040 + $0xb4] sm:$0xf]
        %v7087 = vld [vmem:[%s7040 + $0xb8] sm:$0xf]
        %v7088 = vld [vmem:[%s7040 + $0xbc] sm:$0xf]
        %v7137 = vunpack.c.l.b16 %v7041
        %v7138 = vunpack.c.l.b16 %v7042
        %v7139 = vunpack.c.l.b16 %v7043
        %v7140 = vunpack.c.l.b16 %v7044
        %v7141 = vunpack.c.l.b16 %v7045
        %v7142 = vunpack.c.l.b16 %v7046
        %v7143 = vunpack.c.l.b16 %v7047
        %v7144 = vunpack.c.l.b16 %v7048
        %v7145 = vunpack.c.l.b16 %v7049
        %v7146 = vunpack.c.l.b16 %v7050
        %v7147 = vunpack.c.l.b16 %v7051
        %v7148 = vunpack.c.l.b16 %v7052
        %v7149 = vunpack.c.l.b16 %v7053
        %v7150 = vunpack.c.l.b16 %v7054
        %v7151 = vunpack.c.l.b16 %v7055
        %v7152 = vunpack.c.l.b16 %v7056
        %v7153 = vunpack.c.l.b16 %v7057
        %v7154 = vunpack.c.l.b16 %v7058
        %v7155 = vunpack.c.l.b16 %v7059
        %v7156 = vunpack.c.l.b16 %v7060
        %v7157 = vunpack.c.l.b16 %v7061
        %v7158 = vunpack.c.l.b16 %v7062
        %v7159 = vunpack.c.l.b16 %v7063
        %v7160 = vunpack.c.l.b16 %v7064
        %v7161 = vunpack.c.l.b16 %v7065
        %v7162 = vunpack.c.l.b16 %v7066
        %v7163 = vunpack.c.l.b16 %v7067
        %v7164 = vunpack.c.l.b16 %v7068
        %v7165 = vunpack.c.l.b16 %v7069
        %v7166 = vunpack.c.l.b16 %v7070
        %v7167 = vunpack.c.l.b16 %v7071
        %v7168 = vunpack.c.l.b16 %v7072
        %v7169 = vunpack.c.l.b16 %v7073
        %v7170 = vunpack.c.l.b16 %v7074
        %v7171 = vunpack.c.l.b16 %v7075
        %v7172 = vunpack.c.l.b16 %v7076
        %v7173 = vunpack.c.l.b16 %v7077
        %v7174 = vunpack.c.l.b16 %v7078
        %v7175 = vunpack.c.l.b16 %v7079
        %v7176 = vunpack.c.l.b16 %v7080
        %v7177 = vunpack.c.l.b16 %v7081
        %v7178 = vunpack.c.l.b16 %v7082
        %v7179 = vunpack.c.l.b16 %v7083
        %v7180 = vunpack.c.l.b16 %v7084
        %v7181 = vunpack.c.l.b16 %v7085
        %v7182 = vunpack.c.l.b16 %v7086
        %v7183 = vunpack.c.l.b16 %v7087
        %v7184 = vunpack.c.l.b16 %v7088
        %v7185 = vpack.c.b16 %v7138, %v7137
        %v7186 = vpack.c.b16 %v7140, %v7139
        %v7187 = vpack.c.b16 %v7142, %v7141
        %v7188 = vpack.c.b16 %v7144, %v7143
        %v7189 = vpack.c.b16 %v7146, %v7145
        %v7190 = vpack.c.b16 %v7148, %v7147
        %v7191 = vpack.c.b16 %v7150, %v7149
        %v7192 = vpack.c.b16 %v7152, %v7151
        %v7193 = vpack.c.b16 %v7154, %v7153
        %v7194 = vpack.c.b16 %v7156, %v7155
        %v7195 = vpack.c.b16 %v7158, %v7157
        %v7196 = vpack.c.b16 %v7160, %v7159
        %v7197 = vpack.c.b16 %v7162, %v7161
        %v7198 = vpack.c.b16 %v7164, %v7163
        %v7199 = vpack.c.b16 %v7166, %v7165
        %v7200 = vpack.c.b16 %v7168, %v7167
        %v7201 = vpack.c.b16 %v7170, %v7169
        %v7202 = vpack.c.b16 %v7172, %v7171
        %v7203 = vpack.c.b16 %v7174, %v7173
        %v7204 = vpack.c.b16 %v7176, %v7175
        %v7205 = vpack.c.b16 %v7178, %v7177
        %v7206 = vpack.c.b16 %v7180, %v7179
        %v7207 = vpack.c.b16 %v7182, %v7181
        %v7208 = vpack.c.b16 %v7184, %v7183
        %7233 = vmatprep.subr.bf16.mxu0 0
        %7234 = vmatpush1.bf16.msra.mxu0 %v7192
        %7235 = vmatprep.subr.bf16.mxu0 0
        %7236 = vmatpush1.bf16.msra.mxu0 %v7191
        %7237 = vmatprep.subr.bf16.mxu0 0
        %7238 = vmatpush1.bf16.msra.mxu0 %v7190
        %7239 = vmatprep.subr.bf16.mxu0 0
        %7240 = vmatpush1.bf16.msra.mxu0 %v7189
        %7241 = vmatprep.subr.bf16.mxu0 0
        %7242 = vmatpush1.bf16.msra.mxu0 %v7188
        %7243 = vmatprep.subr.bf16.mxu0 0
        %7244 = vmatpush1.bf16.msra.mxu0 %v7187
        %7245 = vmatprep.subr.bf16.mxu0 0
        %7246 = vmatpush1.bf16.msra.mxu0 %v7186
        %7247 = vmatprep.subr.bf16.mxu0 0
        %7248 = vmatpush1.bf16.msra.mxu0 %v7185
        %7249 = vmatprep.subr.bf16.mxu0 0
        %7250 = vmatpush2.bf16.msra.mxu0 %v7200
        %7251 = vmatprep.subr.bf16.mxu0 0
        %7252 = vmatpush2.bf16.msra.mxu0 %v7199
        %7253 = vmatprep.subr.bf16.mxu0 0
        %7254 = vmatpush2.bf16.msra.mxu0 %v7198
        %7255 = vmatprep.subr.bf16.mxu0 0
        %7256 = vmatpush2.bf16.msra.mxu0 %v7197
        %7257 = vmatprep.subr.bf16.mxu0 0
        %7258 = vmatpush2.bf16.msra.mxu0 %v7196
        %7259 = vmatprep.subr.bf16.mxu0 0
        %7260 = vmatpush2.bf16.msra.mxu0 %v7195
        %7261 = vmatprep.subr.bf16.mxu0 0
        %7262 = vmatpush2.bf16.msra.mxu0 %v7194
        %7263 = vmatprep.subr.bf16.mxu0 0
        %7264 = vmatpush2.bf16.msra.mxu0 %v7193
        %7265 = vmatprep.mubr.bf16.mxu0 %v6280
        %7266 = vmatmul.mubr.bf16.gmra.mxu0 %v6279
        %v7267 = vpop.f32.mrf.mxu0
        %v7268 = vadd.f32 0.0, %v7267
        %v7269 = vpop.f32.mrf.mxu0
        %v7270 = vpop.f32.mrf.mxu0
        %v7271 = vadd.f32 0.0, %v7270
        %v7272 = vpop.f32.mrf.mxu0
        %7273 = vmatprep.mubr.bf16.mxu0 %v6283
        %7274 = vmatmul.mubr.bf16.gmra.mxu0 %v6282
        %v7275 = vpop.f32.mrf.mxu0
        %v7276 = vadd.f32 0.0, %v7275
        %v7277 = vpop.f32.mrf.mxu0
        %v7278 = vpop.f32.mrf.mxu0
        %v7279 = vadd.f32 0.0, %v7278
        %v7280 = vpop.f32.mrf.mxu0
        %7281 = vmatprep.mubr.bf16.mxu0 %v6286
        %7282 = vmatmul.mubr.bf16.gmra.mxu0 %v6285
        %v7283 = vpop.f32.mrf.mxu0
        %v7284 = vadd.f32 0.0, %v7283
        %v7285 = vpop.f32.mrf.mxu0
        %v7286 = vpop.f32.mrf.mxu0
        %v7287 = vadd.f32 0.0, %v7286
        %v7288 = vpop.f32.mrf.mxu0
        %7289 = vmatprep.mubr.bf16.mxu0 %v7032
        %7290 = vmatmul.mubr.bf16.gmra.mxu0 %v7031
        %v7291 = vpop.f32.mrf.mxu0
        %v7292 = vadd.f32 0.0, %v7291
        %v7293 = vpop.f32.mrf.mxu0
        %v7294 = vpop.f32.mrf.mxu0
        %v7295 = vadd.f32 0.0, %v7294
        %v7296 = vpop.f32.mrf.mxu0
        %7297 = vmatprep.mubr.bf16.mxu0 %v7035
        %7298 = vmatmul.mubr.bf16.gmra.mxu0 %v7034
        %v7299 = vpop.f32.mrf.mxu0
        %v7300 = vadd.f32 0.0, %v7299
        %v7301 = vpop.f32.mrf.mxu0
        %v7302 = vpop.f32.mrf.mxu0
        %v7303 = vadd.f32 0.0, %v7302
        %v7304 = vpop.f32.mrf.mxu0
        %7305 = vmatprep.mubr.bf16.mxu0 %v7038
        %7306 = vmatmul.mubr.bf16.gmra.mxu0 %v7037
        %v7307 = vpop.f32.mrf.mxu0
        %v7308 = vadd.f32 0.0, %v7307
        %v7309 = vpop.f32.mrf.mxu0
        %v7310 = vpop.f32.mrf.mxu0
        %v7311 = vadd.f32 0.0, %v7310
        %v7312 = vpop.f32.mrf.mxu0
        %7313 = vdwg.mxu0
        %7314 = vmatprep.subr.bf16.mxu0 0
        %7315 = vmatpush1.bf16.msra.mxu0 %v7208
        %7316 = vmatprep.subr.bf16.mxu0 0
        %7317 = vmatpush1.bf16.msra.mxu0 %v7207
        %7318 = vmatprep.subr.bf16.mxu0 0
        %7319 = vmatpush1.bf16.msra.mxu0 %v7206
        %7320 = vmatprep.subr.bf16.mxu0 0
        %7321 = vmatpush1.bf16.msra.mxu0 %v7205
        %7322 = vmatprep.subr.bf16.mxu0 0
        %7323 = vmatpush1.bf16.msra.mxu0 %v7204
        %7324 = vmatprep.subr.bf16.mxu0 0
        %7325 = vmatpush1.bf16.msra.mxu0 %v7203
        %7326 = vmatprep.subr.bf16.mxu0 0
        %7327 = vmatpush1.bf16.msra.mxu0 %v7202
        %7328 = vmatprep.subr.bf16.mxu0 0
        %7329 = vmatpush1.bf16.msra.mxu0 %v7201
        %7330 = vmatprep.subr.bf16.mxu0 0
        %7331 = vmatpush2.bf16.msra.mxu0 0
        %7332 = vmatprep.subr.bf16.mxu0 0
        %7333 = vmatpush2.bf16.msra.mxu0 0
        %7334 = vmatprep.subr.bf16.mxu0 0
        %7335 = vmatpush2.bf16.msra.mxu0 0
        %7336 = vmatprep.subr.bf16.mxu0 0
        %7337 = vmatpush2.bf16.msra.mxu0 0
        %7338 = vmatprep.subr.bf16.mxu0 0
        %7339 = vmatpush2.bf16.msra.mxu0 0
        %7340 = vmatprep.subr.bf16.mxu0 0
        %7341 = vmatpush2.bf16.msra.mxu0 0
        %7342 = vmatprep.subr.bf16.mxu0 0
        %7343 = vmatpush2.bf16.msra.mxu0 0
        %7344 = vmatprep.subr.bf16.mxu0 0
        %7345 = vmatpush2.bf16.msra.mxu0 0
        %7346 = vmatprep.mubr.bf16.mxu0 0
        %7347 = vmatmul.mubr.bf16.gmra.mxu0 %v6281
        %v7348 = vpop.f32.mrf.mxu0
        %v7349 = vadd.f32 %v7268, %v7348
        %v7350 = vpop.f32.mrf.mxu0
        %v7351 = vpop.f32.mrf.mxu0
        %v7352 = vadd.f32 %v7271, %v7351
        %v7353 = vpop.f32.mrf.mxu0
        %7354 = vmatprep.mubr.bf16.mxu0 0
        %7355 = vmatmul.mubr.bf16.gmra.mxu0 %v6284
        %v7356 = vpop.f32.mrf.mxu0
        %v7357 = vadd.f32 %v7276, %v7356
        %v7358 = vpop.f32.mrf.mxu0
        %v7359 = vpop.f32.mrf.mxu0
        %v7360 = vadd.f32 %v7279, %v7359
        %v7361 = vpop.f32.mrf.mxu0
        %7362 = vmatprep.mubr.bf16.mxu0 0
        %7363 = vmatmul.mubr.bf16.gmra.mxu0 %v6287
        %v7364 = vpop.f32.mrf.mxu0
        %v7365 = vadd.f32 %v7284, %v7364
        %v7366 = vpop.f32.mrf.mxu0
        %v7367 = vpop.f32.mrf.mxu0
        %v7368 = vadd.f32 %v7287, %v7367
        %v7369 = vpop.f32.mrf.mxu0
        %7370 = vmatprep.mubr.bf16.mxu0 0
        %7371 = vmatmul.mubr.bf16.gmra.mxu0 %v7033
        %v7372 = vpop.f32.mrf.mxu0
        %v7373 = vadd.f32 %v7292, %v7372
        %v7374 = vpop.f32.mrf.mxu0
        %v7375 = vpop.f32.mrf.mxu0
        %v7376 = vadd.f32 %v7295, %v7375
        %v7377 = vpop.f32.mrf.mxu0
        %7378 = vmatprep.mubr.bf16.mxu0 0
        %7379 = vmatmul.mubr.bf16.gmra.mxu0 %v7036
        %v7380 = vpop.f32.mrf.mxu0
        %v7381 = vadd.f32 %v7300, %v7380
        %v7382 = vpop.f32.mrf.mxu0
        %v7383 = vpop.f32.mrf.mxu0
        %v7384 = vadd.f32 %v7303, %v7383
        %v7385 = vpop.f32.mrf.mxu0
        %7386 = vmatprep.mubr.bf16.mxu0 0
        %7387 = vmatmul.mubr.bf16.gmra.mxu0 %v7039
        %v7388 = vpop.f32.mrf.mxu0
        %v7389 = vadd.f32 %v7308, %v7388
        %v7390 = vpop.f32.mrf.mxu0
        %v7391 = vpop.f32.mrf.mxu0
        %v7392 = vadd.f32 %v7311, %v7391
        %v7393 = vpop.f32.mrf.mxu0
        %7394 = vdwg.mxu0
        %v7395 = vadd.f32 %v7019, %v7349
        %v7396 = vadd.f32 %v7020, %v7352
        %v7397 = vadd.f32 %v7021, %v7357
        %v7398 = vadd.f32 %v7022, %v7360
        %v7399 = vadd.f32 %v7023, %v7365
        %v7400 = vadd.f32 %v7024, %v7368
        %v7401 = vadd.f32 %v7025, %v7373
        %v7402 = vadd.f32 %v7026, %v7376
        %v7403 = vadd.f32 %v7027, %v7381
        %v7404 = vadd.f32 %v7028, %v7384
        %v7405 = vadd.f32 %v7029, %v7389
        %v7406 = vadd.f32 %v7030, %v7392
        %v7407 = vpack.c.bf16 %v4758, %v4755
        %v7408 = vpack.c.bf16 %v4759, %v4756
        %v7409 = vpack.c.bf16 %v4760, %v4757
        %v7410 = vpack.c.bf16 %v4764, %v4761
        %v7411 = vpack.c.bf16 %v4765, %v4762
        %v7412 = vpack.c.bf16 %v4766, %v4763
        %v7413 = vpack.c.bf16 %v4770, %v4767
        %v7414 = vpack.c.bf16 %v4771, %v4768
        %v7415 = vpack.c.bf16 %v4772, %v4769
        %s7416 = scalar_lea.vmem [#allocation8], 1344
        %v7417 = vld [vmem:[%s7416] sm:$0xf]
        %v7418 = vld [vmem:[%s7416 + $0x4] sm:$0xf]
        %v7419 = vld [vmem:[%s7416 + $0x8] sm:$0xf]
        %v7420 = vld [vmem:[%s7416 + $0xc] sm:$0xf]
        %v7421 = vld [vmem:[%s7416 + $0x10] sm:$0xf]
        %v7422 = vld [vmem:[%s7416 + $0x14] sm:$0xf]
        %v7423 = vld [vmem:[%s7416 + $0x18] sm:$0xf]
        %v7424 = vld [vmem:[%s7416 + $0x1c] sm:$0xf]
        %v7425 = vld [vmem:[%s7416 + $0x20] sm:$0xf]
        %v7426 = vld [vmem:[%s7416 + $0x24] sm:$0xf]
        %v7427 = vld [vmem:[%s7416 + $0x28] sm:$0xf]
        %v7428 = vld [vmem:[%s7416 + $0x2c] sm:$0xf]
        %v7429 = vld [vmem:[%s7416 + $0x30] sm:$0xf]
        %v7430 = vld [vmem:[%s7416 + $0x34] sm:$0xf]
        %v7431 = vld [vmem:[%s7416 + $0x38] sm:$0xf]
        %v7432 = vld [vmem:[%s7416 + $0x3c] sm:$0xf]
        %v7433 = vld [vmem:[%s7416 + $0x40] sm:$0xf]
        %v7434 = vld [vmem:[%s7416 + $0x44] sm:$0xf]
        %v7435 = vld [vmem:[%s7416 + $0x48] sm:$0xf]
        %v7436 = vld [vmem:[%s7416 + $0x4c] sm:$0xf]
        %v7437 = vld [vmem:[%s7416 + $0x50] sm:$0xf]
        %v7438 = vld [vmem:[%s7416 + $0x54] sm:$0xf]
        %v7439 = vld [vmem:[%s7416 + $0x58] sm:$0xf]
        %v7440 = vld [vmem:[%s7416 + $0x5c] sm:$0xf]
        %v7441 = vld [vmem:[%s7416 + $0x60] sm:$0xf]
        %v7442 = vld [vmem:[%s7416 + $0x64] sm:$0xf]
        %v7443 = vld [vmem:[%s7416 + $0x68] sm:$0xf]
        %v7444 = vld [vmem:[%s7416 + $0x6c] sm:$0xf]
        %v7445 = vld [vmem:[%s7416 + $0x70] sm:$0xf]
        %v7446 = vld [vmem:[%s7416 + $0x74] sm:$0xf]
        %v7447 = vld [vmem:[%s7416 + $0x78] sm:$0xf]
        %v7448 = vld [vmem:[%s7416 + $0x7c] sm:$0xf]
        %v7449 = vld [vmem:[%s7416 + $0x80] sm:$0xf]
        %v7450 = vld [vmem:[%s7416 + $0x84] sm:$0xf]
        %v7451 = vld [vmem:[%s7416 + $0x88] sm:$0xf]
        %v7452 = vld [vmem:[%s7416 + $0x8c] sm:$0xf]
        %v7453 = vld [vmem:[%s7416 + $0x90] sm:$0xf]
        %v7454 = vld [vmem:[%s7416 + $0x94] sm:$0xf]
        %v7455 = vld [vmem:[%s7416 + $0x98] sm:$0xf]
        %v7456 = vld [vmem:[%s7416 + $0x9c] sm:$0xf]
        %v7457 = vld [vmem:[%s7416 + $0xa0] sm:$0xf]
        %v7458 = vld [vmem:[%s7416 + $0xa4] sm:$0xf]
        %v7459 = vld [vmem:[%s7416 + $0xa8] sm:$0xf]
        %v7460 = vld [vmem:[%s7416 + $0xac] sm:$0xf]
        %v7461 = vld [vmem:[%s7416 + $0xb0] sm:$0xf]
        %v7462 = vld [vmem:[%s7416 + $0xb4] sm:$0xf]
        %v7463 = vld [vmem:[%s7416 + $0xb8] sm:$0xf]
        %v7464 = vld [vmem:[%s7416 + $0xbc] sm:$0xf]
        %v7513 = vunpack.c.l.b16 %v7417
        %v7514 = vunpack.c.l.b16 %v7418
        %v7515 = vunpack.c.l.b16 %v7419
        %v7516 = vunpack.c.l.b16 %v7420
        %v7517 = vunpack.c.l.b16 %v7421
        %v7518 = vunpack.c.l.b16 %v7422
        %v7519 = vunpack.c.l.b16 %v7423
        %v7520 = vunpack.c.l.b16 %v7424
        %v7521 = vunpack.c.l.b16 %v7425
        %v7522 = vunpack.c.l.b16 %v7426
        %v7523 = vunpack.c.l.b16 %v7427
        %v7524 = vunpack.c.l.b16 %v7428
        %v7525 = vunpack.c.l.b16 %v7429
        %v7526 = vunpack.c.l.b16 %v7430
        %v7527 = vunpack.c.l.b16 %v7431
        %v7528 = vunpack.c.l.b16 %v7432
        %v7529 = vunpack.c.l.b16 %v7433
        %v7530 = vunpack.c.l.b16 %v7434
        %v7531 = vunpack.c.l.b16 %v7435
        %v7532 = vunpack.c.l.b16 %v7436
        %v7533 = vunpack.c.l.b16 %v7437
        %v7534 = vunpack.c.l.b16 %v7438
        %v7535 = vunpack.c.l.b16 %v7439
        %v7536 = vunpack.c.l.b16 %v7440
        %v7537 = vunpack.c.l.b16 %v7441
        %v7538 = vunpack.c.l.b16 %v7442
        %v7539 = vunpack.c.l.b16 %v7443
        %v7540 = vunpack.c.l.b16 %v7444
        %v7541 = vunpack.c.l.b16 %v7445
        %v7542 = vunpack.c.l.b16 %v7446
        %v7543 = vunpack.c.l.b16 %v7447
        %v7544 = vunpack.c.l.b16 %v7448
        %v7545 = vunpack.c.l.b16 %v7449
        %v7546 = vunpack.c.l.b16 %v7450
        %v7547 = vunpack.c.l.b16 %v7451
        %v7548 = vunpack.c.l.b16 %v7452
        %v7549 = vunpack.c.l.b16 %v7453
        %v7550 = vunpack.c.l.b16 %v7454
        %v7551 = vunpack.c.l.b16 %v7455
        %v7552 = vunpack.c.l.b16 %v7456
        %v7553 = vunpack.c.l.b16 %v7457
        %v7554 = vunpack.c.l.b16 %v7458
        %v7555 = vunpack.c.l.b16 %v7459
        %v7556 = vunpack.c.l.b16 %v7460
        %v7557 = vunpack.c.l.b16 %v7461
        %v7558 = vunpack.c.l.b16 %v7462
        %v7559 = vunpack.c.l.b16 %v7463
        %v7560 = vunpack.c.l.b16 %v7464
        %v7561 = vpack.c.b16 %v7514, %v7513
        %v7562 = vpack.c.b16 %v7516, %v7515
        %v7563 = vpack.c.b16 %v7518, %v7517
        %v7564 = vpack.c.b16 %v7520, %v7519
        %v7565 = vpack.c.b16 %v7522, %v7521
        %v7566 = vpack.c.b16 %v7524, %v7523
        %v7567 = vpack.c.b16 %v7526, %v7525
        %v7568 = vpack.c.b16 %v7528, %v7527
        %v7569 = vpack.c.b16 %v7530, %v7529
        %v7570 = vpack.c.b16 %v7532, %v7531
        %v7571 = vpack.c.b16 %v7534, %v7533
        %v7572 = vpack.c.b16 %v7536, %v7535
        %v7573 = vpack.c.b16 %v7538, %v7537
        %v7574 = vpack.c.b16 %v7540, %v7539
        %v7575 = vpack.c.b16 %v7542, %v7541
        %v7576 = vpack.c.b16 %v7544, %v7543
        %v7577 = vpack.c.b16 %v7546, %v7545
        %v7578 = vpack.c.b16 %v7548, %v7547
        %v7579 = vpack.c.b16 %v7550, %v7549
        %v7580 = vpack.c.b16 %v7552, %v7551
        %v7581 = vpack.c.b16 %v7554, %v7553
        %v7582 = vpack.c.b16 %v7556, %v7555
        %v7583 = vpack.c.b16 %v7558, %v7557
        %v7584 = vpack.c.b16 %v7560, %v7559
        %7609 = vmatprep.subr.bf16.mxu0 0
        %7610 = vmatpush1.bf16.msra.mxu0 %v7568
        %7611 = vmatprep.subr.bf16.mxu0 0
        %7612 = vmatpush1.bf16.msra.mxu0 %v7567
        %7613 = vmatprep.subr.bf16.mxu0 0
        %7614 = vmatpush1.bf16.msra.mxu0 %v7566
        %7615 = vmatprep.subr.bf16.mxu0 0
        %7616 = vmatpush1.bf16.msra.mxu0 %v7565
        %7617 = vmatprep.subr.bf16.mxu0 0
        %7618 = vmatpush1.bf16.msra.mxu0 %v7564
        %7619 = vmatprep.subr.bf16.mxu0 0
        %7620 = vmatpush1.bf16.msra.mxu0 %v7563
        %7621 = vmatprep.subr.bf16.mxu0 0
        %7622 = vmatpush1.bf16.msra.mxu0 %v7562
        %7623 = vmatprep.subr.bf16.mxu0 0
        %7624 = vmatpush1.bf16.msra.mxu0 %v7561
        %7625 = vmatprep.subr.bf16.mxu0 0
        %7626 = vmatpush2.bf16.msra.mxu0 %v7576
        %7627 = vmatprep.subr.bf16.mxu0 0
        %7628 = vmatpush2.bf16.msra.mxu0 %v7575
        %7629 = vmatprep.subr.bf16.mxu0 0
        %7630 = vmatpush2.bf16.msra.mxu0 %v7574
        %7631 = vmatprep.subr.bf16.mxu0 0
        %7632 = vmatpush2.bf16.msra.mxu0 %v7573
        %7633 = vmatprep.subr.bf16.mxu0 0
        %7634 = vmatpush2.bf16.msra.mxu0 %v7572
        %7635 = vmatprep.subr.bf16.mxu0 0
        %7636 = vmatpush2.bf16.msra.mxu0 %v7571
        %7637 = vmatprep.subr.bf16.mxu0 0
        %7638 = vmatpush2.bf16.msra.mxu0 %v7570
        %7639 = vmatprep.subr.bf16.mxu0 0
        %7640 = vmatpush2.bf16.msra.mxu0 %v7569
        %7641 = vmatprep.mubr.bf16.mxu0 %v6656
        %7642 = vmatmul.mubr.bf16.gmra.mxu0 %v6655
        %v7643 = vpop.f32.mrf.mxu0
        %v7644 = vadd.f32 0.0, %v7643
        %v7645 = vpop.f32.mrf.mxu0
        %v7646 = vpop.f32.mrf.mxu0
        %v7647 = vadd.f32 0.0, %v7646
        %v7648 = vpop.f32.mrf.mxu0
        %7649 = vmatprep.mubr.bf16.mxu0 %v6659
        %7650 = vmatmul.mubr.bf16.gmra.mxu0 %v6658
        %v7651 = vpop.f32.mrf.mxu0
        %v7652 = vadd.f32 0.0, %v7651
        %v7653 = vpop.f32.mrf.mxu0
        %v7654 = vpop.f32.mrf.mxu0
        %v7655 = vadd.f32 0.0, %v7654
        %v7656 = vpop.f32.mrf.mxu0
        %7657 = vmatprep.mubr.bf16.mxu0 %v6662
        %7658 = vmatmul.mubr.bf16.gmra.mxu0 %v6661
        %v7659 = vpop.f32.mrf.mxu0
        %v7660 = vadd.f32 0.0, %v7659
        %v7661 = vpop.f32.mrf.mxu0
        %v7662 = vpop.f32.mrf.mxu0
        %v7663 = vadd.f32 0.0, %v7662
        %v7664 = vpop.f32.mrf.mxu0
        %7665 = vmatprep.mubr.bf16.mxu0 %v7408
        %7666 = vmatmul.mubr.bf16.gmra.mxu0 %v7407
        %v7667 = vpop.f32.mrf.mxu0
        %v7668 = vadd.f32 0.0, %v7667
        %v7669 = vpop.f32.mrf.mxu0
        %v7670 = vpop.f32.mrf.mxu0
        %v7671 = vadd.f32 0.0, %v7670
        %v7672 = vpop.f32.mrf.mxu0
        %7673 = vmatprep.mubr.bf16.mxu0 %v7411
        %7674 = vmatmul.mubr.bf16.gmra.mxu0 %v7410
        %v7675 = vpop.f32.mrf.mxu0
        %v7676 = vadd.f32 0.0, %v7675
        %v7677 = vpop.f32.mrf.mxu0
        %v7678 = vpop.f32.mrf.mxu0
        %v7679 = vadd.f32 0.0, %v7678
        %v7680 = vpop.f32.mrf.mxu0
        %7681 = vmatprep.mubr.bf16.mxu0 %v7414
        %7682 = vmatmul.mubr.bf16.gmra.mxu0 %v7413
        %v7683 = vpop.f32.mrf.mxu0
        %v7684 = vadd.f32 0.0, %v7683
        %v7685 = vpop.f32.mrf.mxu0
        %v7686 = vpop.f32.mrf.mxu0
        %v7687 = vadd.f32 0.0, %v7686
        %v7688 = vpop.f32.mrf.mxu0
        %7689 = vdwg.mxu0
        %7690 = vmatprep.subr.bf16.mxu0 0
        %7691 = vmatpush1.bf16.msra.mxu0 %v7584
        %7692 = vmatprep.subr.bf16.mxu0 0
        %7693 = vmatpush1.bf16.msra.mxu0 %v7583
        %7694 = vmatprep.subr.bf16.mxu0 0
        %7695 = vmatpush1.bf16.msra.mxu0 %v7582
        %7696 = vmatprep.subr.bf16.mxu0 0
        %7697 = vmatpush1.bf16.msra.mxu0 %v7581
        %7698 = vmatprep.subr.bf16.mxu0 0
        %7699 = vmatpush1.bf16.msra.mxu0 %v7580
        %7700 = vmatprep.subr.bf16.mxu0 0
        %7701 = vmatpush1.bf16.msra.mxu0 %v7579
        %7702 = vmatprep.subr.bf16.mxu0 0
        %7703 = vmatpush1.bf16.msra.mxu0 %v7578
        %7704 = vmatprep.subr.bf16.mxu0 0
        %7705 = vmatpush1.bf16.msra.mxu0 %v7577
        %7706 = vmatprep.subr.bf16.mxu0 0
        %7707 = vmatpush2.bf16.msra.mxu0 0
        %7708 = vmatprep.subr.bf16.mxu0 0
        %7709 = vmatpush2.bf16.msra.mxu0 0
        %7710 = vmatprep.subr.bf16.mxu0 0
        %7711 = vmatpush2.bf16.msra.mxu0 0
        %7712 = vmatprep.subr.bf16.mxu0 0
        %7713 = vmatpush2.bf16.msra.mxu0 0
        %7714 = vmatprep.subr.bf16.mxu0 0
        %7715 = vmatpush2.bf16.msra.mxu0 0
        %7716 = vmatprep.subr.bf16.mxu0 0
        %7717 = vmatpush2.bf16.msra.mxu0 0
        %7718 = vmatprep.subr.bf16.mxu0 0
        %7719 = vmatpush2.bf16.msra.mxu0 0
        %7720 = vmatprep.subr.bf16.mxu0 0
        %7721 = vmatpush2.bf16.msra.mxu0 0
        %7722 = vmatprep.mubr.bf16.mxu0 0
        %7723 = vmatmul.mubr.bf16.gmra.mxu0 %v6657
        %v7724 = vpop.f32.mrf.mxu0
        %v7725 = vadd.f32 %v7644, %v7724
        %v7726 = vpop.f32.mrf.mxu0
        %v7727 = vpop.f32.mrf.mxu0
        %v7728 = vadd.f32 %v7647, %v7727
        %v7729 = vpop.f32.mrf.mxu0
        %7730 = vmatprep.mubr.bf16.mxu0 0
        %7731 = vmatmul.mubr.bf16.gmra.mxu0 %v6660
        %v7732 = vpop.f32.mrf.mxu0
        %v7733 = vadd.f32 %v7652, %v7732
        %v7734 = vpop.f32.mrf.mxu0
        %v7735 = vpop.f32.mrf.mxu0
        %v7736 = vadd.f32 %v7655, %v7735
        %v7737 = vpop.f32.mrf.mxu0
        %7738 = vmatprep.mubr.bf16.mxu0 0
        %7739 = vmatmul.mubr.bf16.gmra.mxu0 %v6663
        %v7740 = vpop.f32.mrf.mxu0
        %v7741 = vadd.f32 %v7660, %v7740
        %v7742 = vpop.f32.mrf.mxu0
        %v7743 = vpop.f32.mrf.mxu0
        %v7744 = vadd.f32 %v7663, %v7743
        %v7745 = vpop.f32.mrf.mxu0
        %7746 = vmatprep.mubr.bf16.mxu0 0
        %7747 = vmatmul.mubr.bf16.gmra.mxu0 %v7409
        %v7748 = vpop.f32.mrf.mxu0
        %v7749 = vadd.f32 %v7668, %v7748
        %v7750 = vpop.f32.mrf.mxu0
        %v7751 = vpop.f32.mrf.mxu0
        %v7752 = vadd.f32 %v7671, %v7751
        %v7753 = vpop.f32.mrf.mxu0
        %7754 = vmatprep.mubr.bf16.mxu0 0
        %7755 = vmatmul.mubr.bf16.gmra.mxu0 %v7412
        %v7756 = vpop.f32.mrf.mxu0
        %v7757 = vadd.f32 %v7676, %v7756
        %v7758 = vpop.f32.mrf.mxu0
        %v7759 = vpop.f32.mrf.mxu0
        %v7760 = vadd.f32 %v7679, %v7759
        %v7761 = vpop.f32.mrf.mxu0
        %7762 = vmatprep.mubr.bf16.mxu0 0
        %7763 = vmatmul.mubr.bf16.gmra.mxu0 %v7415
        %v7764 = vpop.f32.mrf.mxu0
        %v7765 = vadd.f32 %v7684, %v7764
        %v7766 = vpop.f32.mrf.mxu0
        %v7767 = vpop.f32.mrf.mxu0
        %v7768 = vadd.f32 %v7687, %v7767
        %v7769 = vpop.f32.mrf.mxu0
        %7770 = vdwg.mxu0
        %v7771 = vadd.f32 %v7395, %v7725
        %v7772 = vadd.f32 %v7396, %v7728
        %v7773 = vadd.f32 %v7397, %v7733
        %v7774 = vadd.f32 %v7398, %v7736
        %v7775 = vadd.f32 %v7399, %v7741
        %v7776 = vadd.f32 %v7400, %v7744
        %v7777 = vadd.f32 %v7401, %v7749
        %v7778 = vadd.f32 %v7402, %v7752
        %v7779 = vadd.f32 %v7403, %v7757
        %v7780 = vadd.f32 %v7404, %v7760
        %v7781 = vadd.f32 %v7405, %v7765
        %v7782 = vadd.f32 %v7406, %v7768
        %v7783 = vpack.c.bf16 %v4767, %v4764
        %v7784 = vpack.c.bf16 %v4768, %v4765
        %v7785 = vpack.c.bf16 %v4769, %v4766
        %v7786 = vpack.c.bf16 %v4773, %v4770
        %v7787 = vpack.c.bf16 %v4774, %v4771
        %v7788 = vpack.c.bf16 %v4775, %v4772
        %v7789 = vpack.c.bf16 %v4779, %v4776
        %v7790 = vpack.c.bf16 %v4780, %v4777
        %v7791 = vpack.c.bf16 %v4781, %v4778
        %s7792 = scalar_lea.vmem [#allocation8], 1536
        %v7793 = vld [vmem:[%s7792] sm:$0xf]
        %v7794 = vld [vmem:[%s7792 + $0x4] sm:$0xf]
        %v7795 = vld [vmem:[%s7792 + $0x8] sm:$0xf]
        %v7796 = vld [vmem:[%s7792 + $0xc] sm:$0xf]
        %v7797 = vld [vmem:[%s7792 + $0x10] sm:$0xf]
        %v7798 = vld [vmem:[%s7792 + $0x14] sm:$0xf]
        %v7799 = vld [vmem:[%s7792 + $0x18] sm:$0xf]
        %v7800 = vld [vmem:[%s7792 + $0x1c] sm:$0xf]
        %v7801 = vld [vmem:[%s7792 + $0x20] sm:$0xf]
        %v7802 = vld [vmem:[%s7792 + $0x24] sm:$0xf]
        %v7803 = vld [vmem:[%s7792 + $0x28] sm:$0xf]
        %v7804 = vld [vmem:[%s7792 + $0x2c] sm:$0xf]
        %v7805 = vld [vmem:[%s7792 + $0x30] sm:$0xf]
        %v7806 = vld [vmem:[%s7792 + $0x34] sm:$0xf]
        %v7807 = vld [vmem:[%s7792 + $0x38] sm:$0xf]
        %v7808 = vld [vmem:[%s7792 + $0x3c] sm:$0xf]
        %v7809 = vld [vmem:[%s7792 + $0x40] sm:$0xf]
        %v7810 = vld [vmem:[%s7792 + $0x44] sm:$0xf]
        %v7811 = vld [vmem:[%s7792 + $0x48] sm:$0xf]
        %v7812 = vld [vmem:[%s7792 + $0x4c] sm:$0xf]
        %v7813 = vld [vmem:[%s7792 + $0x50] sm:$0xf]
        %v7814 = vld [vmem:[%s7792 + $0x54] sm:$0xf]
        %v7815 = vld [vmem:[%s7792 + $0x58] sm:$0xf]
        %v7816 = vld [vmem:[%s7792 + $0x5c] sm:$0xf]
        %v7817 = vld [vmem:[%s7792 + $0x60] sm:$0xf]
        %v7818 = vld [vmem:[%s7792 + $0x64] sm:$0xf]
        %v7819 = vld [vmem:[%s7792 + $0x68] sm:$0xf]
        %v7820 = vld [vmem:[%s7792 + $0x6c] sm:$0xf]
        %v7821 = vld [vmem:[%s7792 + $0x70] sm:$0xf]
        %v7822 = vld [vmem:[%s7792 + $0x74] sm:$0xf]
        %v7823 = vld [vmem:[%s7792 + $0x78] sm:$0xf]
        %v7824 = vld [vmem:[%s7792 + $0x7c] sm:$0xf]
        %v7825 = vld [vmem:[%s7792 + $0x80] sm:$0xf]
        %v7826 = vld [vmem:[%s7792 + $0x84] sm:$0xf]
        %v7827 = vld [vmem:[%s7792 + $0x88] sm:$0xf]
        %v7828 = vld [vmem:[%s7792 + $0x8c] sm:$0xf]
        %v7829 = vld [vmem:[%s7792 + $0x90] sm:$0xf]
        %v7830 = vld [vmem:[%s7792 + $0x94] sm:$0xf]
        %v7831 = vld [vmem:[%s7792 + $0x98] sm:$0xf]
        %v7832 = vld [vmem:[%s7792 + $0x9c] sm:$0xf]
        %v7833 = vld [vmem:[%s7792 + $0xa0] sm:$0xf]
        %v7834 = vld [vmem:[%s7792 + $0xa4] sm:$0xf]
        %v7835 = vld [vmem:[%s7792 + $0xa8] sm:$0xf]
        %v7836 = vld [vmem:[%s7792 + $0xac] sm:$0xf]
        %v7837 = vld [vmem:[%s7792 + $0xb0] sm:$0xf]
        %v7838 = vld [vmem:[%s7792 + $0xb4] sm:$0xf]
        %v7839 = vld [vmem:[%s7792 + $0xb8] sm:$0xf]
        %v7840 = vld [vmem:[%s7792 + $0xbc] sm:$0xf]
        %v7889 = vunpack.c.l.b16 %v7793
        %v7890 = vunpack.c.l.b16 %v7794
        %v7891 = vunpack.c.l.b16 %v7795
        %v7892 = vunpack.c.l.b16 %v7796
        %v7893 = vunpack.c.l.b16 %v7797
        %v7894 = vunpack.c.l.b16 %v7798
        %v7895 = vunpack.c.l.b16 %v7799
        %v7896 = vunpack.c.l.b16 %v7800
        %v7897 = vunpack.c.l.b16 %v7801
        %v7898 = vunpack.c.l.b16 %v7802
        %v7899 = vunpack.c.l.b16 %v7803
        %v7900 = vunpack.c.l.b16 %v7804
        %v7901 = vunpack.c.l.b16 %v7805
        %v7902 = vunpack.c.l.b16 %v7806
        %v7903 = vunpack.c.l.b16 %v7807
        %v7904 = vunpack.c.l.b16 %v7808
        %v7905 = vunpack.c.l.b16 %v7809
        %v7906 = vunpack.c.l.b16 %v7810
        %v7907 = vunpack.c.l.b16 %v7811
        %v7908 = vunpack.c.l.b16 %v7812
        %v7909 = vunpack.c.l.b16 %v7813
        %v7910 = vunpack.c.l.b16 %v7814
        %v7911 = vunpack.c.l.b16 %v7815
        %v7912 = vunpack.c.l.b16 %v7816
        %v7913 = vunpack.c.l.b16 %v7817
        %v7914 = vunpack.c.l.b16 %v7818
        %v7915 = vunpack.c.l.b16 %v7819
        %v7916 = vunpack.c.l.b16 %v7820
        %v7917 = vunpack.c.l.b16 %v7821
        %v7918 = vunpack.c.l.b16 %v7822
        %v7919 = vunpack.c.l.b16 %v7823
        %v7920 = vunpack.c.l.b16 %v7824
        %v7921 = vunpack.c.l.b16 %v7825
        %v7922 = vunpack.c.l.b16 %v7826
        %v7923 = vunpack.c.l.b16 %v7827
        %v7924 = vunpack.c.l.b16 %v7828
        %v7925 = vunpack.c.l.b16 %v7829
        %v7926 = vunpack.c.l.b16 %v7830
        %v7927 = vunpack.c.l.b16 %v7831
        %v7928 = vunpack.c.l.b16 %v7832
        %v7929 = vunpack.c.l.b16 %v7833
        %v7930 = vunpack.c.l.b16 %v7834
        %v7931 = vunpack.c.l.b16 %v7835
        %v7932 = vunpack.c.l.b16 %v7836
        %v7933 = vunpack.c.l.b16 %v7837
        %v7934 = vunpack.c.l.b16 %v7838
        %v7935 = vunpack.c.l.b16 %v7839
        %v7936 = vunpack.c.l.b16 %v7840
        %v7937 = vpack.c.b16 %v7890, %v7889
        %v7938 = vpack.c.b16 %v7892, %v7891
        %v7939 = vpack.c.b16 %v7894, %v7893
        %v7940 = vpack.c.b16 %v7896, %v7895
        %v7941 = vpack.c.b16 %v7898, %v7897
        %v7942 = vpack.c.b16 %v7900, %v7899
        %v7943 = vpack.c.b16 %v7902, %v7901
        %v7944 = vpack.c.b16 %v7904, %v7903
        %v7945 = vpack.c.b16 %v7906, %v7905
        %v7946 = vpack.c.b16 %v7908, %v7907
        %v7947 = vpack.c.b16 %v7910, %v7909
        %v7948 = vpack.c.b16 %v7912, %v7911
        %v7949 = vpack.c.b16 %v7914, %v7913
        %v7950 = vpack.c.b16 %v7916, %v7915
        %v7951 = vpack.c.b16 %v7918, %v7917
        %v7952 = vpack.c.b16 %v7920, %v7919
        %v7953 = vpack.c.b16 %v7922, %v7921
        %v7954 = vpack.c.b16 %v7924, %v7923
        %v7955 = vpack.c.b16 %v7926, %v7925
        %v7956 = vpack.c.b16 %v7928, %v7927
        %v7957 = vpack.c.b16 %v7930, %v7929
        %v7958 = vpack.c.b16 %v7932, %v7931
        %v7959 = vpack.c.b16 %v7934, %v7933
        %v7960 = vpack.c.b16 %v7936, %v7935
        %7985 = vmatprep.subr.bf16.mxu0 0
        %7986 = vmatpush1.bf16.msra.mxu0 %v7944
        %7987 = vmatprep.subr.bf16.mxu0 0
        %7988 = vmatpush1.bf16.msra.mxu0 %v7943
        %7989 = vmatprep.subr.bf16.mxu0 0
        %7990 = vmatpush1.bf16.msra.mxu0 %v7942
        %7991 = vmatprep.subr.bf16.mxu0 0
        %7992 = vmatpush1.bf16.msra.mxu0 %v7941
        %7993 = vmatprep.subr.bf16.mxu0 0
        %7994 = vmatpush1.bf16.msra.mxu0 %v7940
        %7995 = vmatprep.subr.bf16.mxu0 0
        %7996 = vmatpush1.bf16.msra.mxu0 %v7939
        %7997 = vmatprep.subr.bf16.mxu0 0
        %7998 = vmatpush1.bf16.msra.mxu0 %v7938
        %7999 = vmatprep.subr.bf16.mxu0 0
        %8000 = vmatpush1.bf16.msra.mxu0 %v7937
        %8001 = vmatprep.subr.bf16.mxu0 0
        %8002 = vmatpush2.bf16.msra.mxu0 %v7952
        %8003 = vmatprep.subr.bf16.mxu0 0
        %8004 = vmatpush2.bf16.msra.mxu0 %v7951
        %8005 = vmatprep.subr.bf16.mxu0 0
        %8006 = vmatpush2.bf16.msra.mxu0 %v7950
        %8007 = vmatprep.subr.bf16.mxu0 0
        %8008 = vmatpush2.bf16.msra.mxu0 %v7949
        %8009 = vmatprep.subr.bf16.mxu0 0
        %8010 = vmatpush2.bf16.msra.mxu0 %v7948
        %8011 = vmatprep.subr.bf16.mxu0 0
        %8012 = vmatpush2.bf16.msra.mxu0 %v7947
        %8013 = vmatprep.subr.bf16.mxu0 0
        %8014 = vmatpush2.bf16.msra.mxu0 %v7946
        %8015 = vmatprep.subr.bf16.mxu0 0
        %8016 = vmatpush2.bf16.msra.mxu0 %v7945
        %8017 = vmatprep.mubr.bf16.mxu0 %v7032
        %8018 = vmatmul.mubr.bf16.gmra.mxu0 %v7031
        %v8019 = vpop.f32.mrf.mxu0
        %v8020 = vadd.f32 0.0, %v8019
        %v8021 = vpop.f32.mrf.mxu0
        %v8022 = vpop.f32.mrf.mxu0
        %v8023 = vadd.f32 0.0, %v8022
        %v8024 = vpop.f32.mrf.mxu0
        %8025 = vmatprep.mubr.bf16.mxu0 %v7035
        %8026 = vmatmul.mubr.bf16.gmra.mxu0 %v7034
        %v8027 = vpop.f32.mrf.mxu0
        %v8028 = vadd.f32 0.0, %v8027
        %v8029 = vpop.f32.mrf.mxu0
        %v8030 = vpop.f32.mrf.mxu0
        %v8031 = vadd.f32 0.0, %v8030
        %v8032 = vpop.f32.mrf.mxu0
        %8033 = vmatprep.mubr.bf16.mxu0 %v7038
        %8034 = vmatmul.mubr.bf16.gmra.mxu0 %v7037
        %v8035 = vpop.f32.mrf.mxu0
        %v8036 = vadd.f32 0.0, %v8035
        %v8037 = vpop.f32.mrf.mxu0
        %v8038 = vpop.f32.mrf.mxu0
        %v8039 = vadd.f32 0.0, %v8038
        %v8040 = vpop.f32.mrf.mxu0
        %8041 = vmatprep.mubr.bf16.mxu0 %v7784
        %8042 = vmatmul.mubr.bf16.gmra.mxu0 %v7783
        %v8043 = vpop.f32.mrf.mxu0
        %v8044 = vadd.f32 0.0, %v8043
        %v8045 = vpop.f32.mrf.mxu0
        %v8046 = vpop.f32.mrf.mxu0
        %v8047 = vadd.f32 0.0, %v8046
        %v8048 = vpop.f32.mrf.mxu0
        %8049 = vmatprep.mubr.bf16.mxu0 %v7787
        %8050 = vmatmul.mubr.bf16.gmra.mxu0 %v7786
        %v8051 = vpop.f32.mrf.mxu0
        %v8052 = vadd.f32 0.0, %v8051
        %v8053 = vpop.f32.mrf.mxu0
        %v8054 = vpop.f32.mrf.mxu0
        %v8055 = vadd.f32 0.0, %v8054
        %v8056 = vpop.f32.mrf.mxu0
        %8057 = vmatprep.mubr.bf16.mxu0 %v7790
        %8058 = vmatmul.mubr.bf16.gmra.mxu0 %v7789
        %v8059 = vpop.f32.mrf.mxu0
        %v8060 = vadd.f32 0.0, %v8059
        %v8061 = vpop.f32.mrf.mxu0
        %v8062 = vpop.f32.mrf.mxu0
        %v8063 = vadd.f32 0.0, %v8062
        %v8064 = vpop.f32.mrf.mxu0
        %8065 = vdwg.mxu0
        %8066 = vmatprep.subr.bf16.mxu0 0
        %8067 = vmatpush1.bf16.msra.mxu0 %v7960
        %8068 = vmatprep.subr.bf16.mxu0 0
        %8069 = vmatpush1.bf16.msra.mxu0 %v7959
        %8070 = vmatprep.subr.bf16.mxu0 0
        %8071 = vmatpush1.bf16.msra.mxu0 %v7958
        %8072 = vmatprep.subr.bf16.mxu0 0
        %8073 = vmatpush1.bf16.msra.mxu0 %v7957
        %8074 = vmatprep.subr.bf16.mxu0 0
        %8075 = vmatpush1.bf16.msra.mxu0 %v7956
        %8076 = vmatprep.subr.bf16.mxu0 0
        %8077 = vmatpush1.bf16.msra.mxu0 %v7955
        %8078 = vmatprep.subr.bf16.mxu0 0
        %8079 = vmatpush1.bf16.msra.mxu0 %v7954
        %8080 = vmatprep.subr.bf16.mxu0 0
        %8081 = vmatpush1.bf16.msra.mxu0 %v7953
        %8082 = vmatprep.subr.bf16.mxu0 0
        %8083 = vmatpush2.bf16.msra.mxu0 0
        %8084 = vmatprep.subr.bf16.mxu0 0
        %8085 = vmatpush2.bf16.msra.mxu0 0
        %8086 = vmatprep.subr.bf16.mxu0 0
        %8087 = vmatpush2.bf16.msra.mxu0 0
        %8088 = vmatprep.subr.bf16.mxu0 0
        %8089 = vmatpush2.bf16.msra.mxu0 0
        %8090 = vmatprep.subr.bf16.mxu0 0
        %8091 = vmatpush2.bf16.msra.mxu0 0
        %8092 = vmatprep.subr.bf16.mxu0 0
        %8093 = vmatpush2.bf16.msra.mxu0 0
        %8094 = vmatprep.subr.bf16.mxu0 0
        %8095 = vmatpush2.bf16.msra.mxu0 0
        %8096 = vmatprep.subr.bf16.mxu0 0
        %8097 = vmatpush2.bf16.msra.mxu0 0
        %8098 = vmatprep.mubr.bf16.mxu0 0
        %8099 = vmatmul.mubr.bf16.gmra.mxu0 %v7033
        %v8100 = vpop.f32.mrf.mxu0
        %v8101 = vadd.f32 %v8020, %v8100
        %v8102 = vpop.f32.mrf.mxu0
        %v8103 = vpop.f32.mrf.mxu0
        %v8104 = vadd.f32 %v8023, %v8103
        %v8105 = vpop.f32.mrf.mxu0
        %8106 = vmatprep.mubr.bf16.mxu0 0
        %8107 = vmatmul.mubr.bf16.gmra.mxu0 %v7036
        %v8108 = vpop.f32.mrf.mxu0
        %v8109 = vadd.f32 %v8028, %v8108
        %v8110 = vpop.f32.mrf.mxu0
        %v8111 = vpop.f32.mrf.mxu0
        %v8112 = vadd.f32 %v8031, %v8111
        %v8113 = vpop.f32.mrf.mxu0
        %8114 = vmatprep.mubr.bf16.mxu0 0
        %8115 = vmatmul.mubr.bf16.gmra.mxu0 %v7039
        %v8116 = vpop.f32.mrf.mxu0
        %v8117 = vadd.f32 %v8036, %v8116
        %v8118 = vpop.f32.mrf.mxu0
        %v8119 = vpop.f32.mrf.mxu0
        %v8120 = vadd.f32 %v8039, %v8119
        %v8121 = vpop.f32.mrf.mxu0
        %8122 = vmatprep.mubr.bf16.mxu0 0
        %8123 = vmatmul.mubr.bf16.gmra.mxu0 %v7785
        %v8124 = vpop.f32.mrf.mxu0
        %v8125 = vadd.f32 %v8044, %v8124
        %v8126 = vpop.f32.mrf.mxu0
        %v8127 = vpop.f32.mrf.mxu0
        %v8128 = vadd.f32 %v8047, %v8127
        %v8129 = vpop.f32.mrf.mxu0
        %8130 = vmatprep.mubr.bf16.mxu0 0
        %8131 = vmatmul.mubr.bf16.gmra.mxu0 %v7788
        %v8132 = vpop.f32.mrf.mxu0
        %v8133 = vadd.f32 %v8052, %v8132
        %v8134 = vpop.f32.mrf.mxu0
        %v8135 = vpop.f32.mrf.mxu0
        %v8136 = vadd.f32 %v8055, %v8135
        %v8137 = vpop.f32.mrf.mxu0
        %8138 = vmatprep.mubr.bf16.mxu0 0
        %8139 = vmatmul.mubr.bf16.gmra.mxu0 %v7791
        %v8140 = vpop.f32.mrf.mxu0
        %v8141 = vadd.f32 %v8060, %v8140
        %v8142 = vpop.f32.mrf.mxu0
        %v8143 = vpop.f32.mrf.mxu0
        %v8144 = vadd.f32 %v8063, %v8143
        %v8145 = vpop.f32.mrf.mxu0
        %8146 = vdwg.mxu0
        %v8147 = vadd.f32 %v7771, %v8101
        %v8148 = vadd.f32 %v7772, %v8104
        %v8149 = vadd.f32 %v7773, %v8109
        %v8150 = vadd.f32 %v7774, %v8112
        %v8151 = vadd.f32 %v7775, %v8117
        %v8152 = vadd.f32 %v7776, %v8120
        %v8153 = vadd.f32 %v7777, %v8125
        %v8154 = vadd.f32 %v7778, %v8128
        %v8155 = vadd.f32 %v7779, %v8133
        %v8156 = vadd.f32 %v7780, %v8136
        %v8157 = vadd.f32 %v7781, %v8141
        %v8158 = vadd.f32 %v7782, %v8144
        %v8159 = vld [vmem:[#allocation10] sm:$0x1]
        %v8161 = vlaneseq
        %v8162 = vshrl.u32 %v8161, 7
        %v8163 = vsub.s32 0, %v8162
        %v8164 = vrot.slane %v8159, %v8163
        %v8166 = vadd.f32 %v8147, %v8164
        %v8167 = vadd.f32 %v8148, %v8164
        %v8168 = vadd.f32 %v8149, %v8164
        %v8169 = vadd.f32 %v8150, %v8164
        %v8170 = vadd.f32 %v8151, %v8164
        %v8171 = vadd.f32 %v8152, %v8164
        %v8172 = vadd.f32 %v8153, %v8164
        %v8173 = vadd.f32 %v8154, %v8164
        %v8174 = vadd.f32 %v8155, %v8164
        %v8175 = vadd.f32 %v8156, %v8164
        %v8176 = vadd.f32 %v8157, %v8164
        %v8177 = vadd.f32 %v8158, %v8164
        %v8178 = vmax.f32 %v8166, 0.0
        %v8179 = vmax.f32 %v8167, 0.0
        %v8180 = vmax.f32 %v8168, 0.0
        %v8181 = vmax.f32 %v8169, 0.0
        %v8182 = vmax.f32 %v8170, 0.0
        %v8183 = vmax.f32 %v8171, 0.0
        %v8184 = vmax.f32 %v8172, 0.0
        %v8185 = vmax.f32 %v8173, 0.0
        %v8186 = vmax.f32 %v8174, 0.0
        %v8187 = vmax.f32 %v8175, 0.0
        %v8188 = vmax.f32 %v8176, 0.0
        %v8189 = vmax.f32 %v8177, 0.0
        %v8190 = vmax.f32 %v8178, %v8181
        %v8191 = vmax.f32 %v8179, %v8182
        %v8192 = vmax.f32 %v8180, %v8183
        %v8193 = vmax.f32 %v8184, %v8187
        %v8194 = vmax.f32 %v8185, %v8188
        %v8195 = vmax.f32 %v8186, %v8189
        %8202 = vrot.lane.b32.xlu0 %v8190, 96
        %v8203 = vpop.permute.xlu0 %8202
        %8204 = vrot.lane.b32.xlu0 %v8191, 96
        %v8205 = vpop.permute.xlu0 %8204
        %8206 = vrot.lane.b32.xlu0 %v8192, 96
        %v8207 = vpop.permute.xlu0 %8206
        %8208 = vrot.lane.b32.xlu0 %v8193, 96
        %v8209 = vpop.permute.xlu0 %8208
        %8210 = vrot.lane.b32.xlu0 %v8194, 96
        %v8211 = vpop.permute.xlu0 %8210
        %8212 = vrot.lane.b32.xlu0 %v8195, 96
        %v8213 = vpop.permute.xlu0 %8212
        %v8220 = vmax.f32 %v8190, %v8203
        %v8221 = vmax.f32 %v8191, %v8205
        %v8222 = vmax.f32 %v8192, %v8207
        %v8223 = vmax.f32 %v8193, %v8209
        %v8224 = vmax.f32 %v8194, %v8211
        %v8225 = vmax.f32 %v8195, %v8213
        %v8226 = vpack.c.bf16 %v8221, %v8220
        %v8227 = vpack.c.bf16 %v8222, %v8222
        %v8228 = vld [vmem:[%s5] sm:$0xf]
        %v8229 = vld [vmem:[%s5 + $0x4] sm:$0xf]
        %v8230 = vld [vmem:[%s5 + $0x8] sm:$0xf]
        %v8231 = vld [vmem:[%s5 + $0xc] sm:$0xf]
        %v8232 = vld [vmem:[%s5 + $0x10] sm:$0xf]
        %v8233 = vld [vmem:[%s5 + $0x14] sm:$0xf]
        %v8234 = vld [vmem:[%s5 + $0x18] sm:$0xf]
        %v8235 = vld [vmem:[%s5 + $0x1c] sm:$0xf]
        %v8236 = vld [vmem:[%s5 + $0x20] sm:$0xf]
        %v8237 = vld [vmem:[%s5 + $0x24] sm:$0xf]
        %v8238 = vld [vmem:[%s5 + $0x28] sm:$0xf]
        %v8239 = vld [vmem:[%s5 + $0x2c] sm:$0xf]
        %v8240 = vpack.c.bf16 %v8224, %v8223
        %v8241 = vpack.c.bf16 %v8225, %v8225
        %s8242 = scalar_lea.vmem %s5, 48
        %v8243 = vld [vmem:[%s8242] sm:$0xf]
        %v8244 = vld [vmem:[%s8242 + $0x4] sm:$0xf]
        %v8245 = vld [vmem:[%s8242 + $0x8] sm:$0xf]
        %v8246 = vld [vmem:[%s8242 + $0xc] sm:$0xf]
        %v8247 = vld [vmem:[%s8242 + $0x10] sm:$0xf]
        %v8248 = vld [vmem:[%s8242 + $0x14] sm:$0xf]
        %v8249 = vld [vmem:[%s8242 + $0x18] sm:$0xf]
        %v8250 = vld [vmem:[%s8242 + $0x1c] sm:$0xf]
        %v8251 = vld [vmem:[%s8242 + $0x20] sm:$0xf]
        %v8252 = vld [vmem:[%s8242 + $0x24] sm:$0xf]
        %v8253 = vld [vmem:[%s8242 + $0x28] sm:$0xf]
        %v8254 = vld [vmem:[%s8242 + $0x2c] sm:$0xf]
        %v8267 = vunpack.c.l.b16 %v8243
        %v8268 = vunpack.c.l.b16 %v8244
        %v8269 = vunpack.c.l.b16 %v8245
        %v8270 = vunpack.c.l.b16 %v8246
        %v8271 = vunpack.c.l.b16 %v8247
        %v8272 = vunpack.c.l.b16 %v8248
        %v8273 = vunpack.c.l.b16 %v8249
        %v8274 = vunpack.c.l.b16 %v8250
        %v8275 = vunpack.c.l.b16 %v8251
        %v8276 = vunpack.c.l.b16 %v8252
        %v8277 = vunpack.c.l.b16 %v8253
        %v8278 = vunpack.c.l.b16 %v8254
        %v8279 = vpack.c.b16 %v8268, %v8267
        %v8280 = vpack.c.b16 %v8270, %v8269
        %v8281 = vpack.c.b16 %v8272, %v8271
        %v8282 = vpack.c.b16 %v8274, %v8273
        %v8283 = vpack.c.b16 %v8276, %v8275
        %v8284 = vpack.c.b16 %v8278, %v8277
        %vm8291 = vcmask 785408
        %v8293 = vsel %vm8291, %v8240, 0
        %v8296 = vsel %vm8291, %v8241, 0
        %8298 = vmatprep.subr.bf16.mxu0 0
        %8299 = vmatpush1.bf16.msra.mxu0 0
        %8300 = vmatprep.subr.bf16.mxu0 0
        %8301 = vmatpush1.bf16.msra.mxu0 0
        %8302 = vmatprep.subr.bf16.mxu0 0
        %8303 = vmatpush1.bf16.msra.mxu0 %v8284
        %8304 = vmatprep.subr.bf16.mxu0 0
        %8305 = vmatpush1.bf16.msra.mxu0 %v8283
        %8306 = vmatprep.subr.bf16.mxu0 0
        %8307 = vmatpush1.bf16.msra.mxu0 %v8282
        %8308 = vmatprep.subr.bf16.mxu0 0
        %8309 = vmatpush1.bf16.msra.mxu0 %v8281
        %8310 = vmatprep.subr.bf16.mxu0 0
        %8311 = vmatpush1.bf16.msra.mxu0 %v8280
        %8312 = vmatprep.subr.bf16.mxu0 0
        %8313 = vmatpush1.bf16.msra.mxu0 %v8279
        %8314 = vmatprep.subr.bf16.mxu0 0
        %8315 = vmatpush2.bf16.msra.mxu0 0
        %8316 = vmatprep.subr.bf16.mxu0 0
        %8317 = vmatpush2.bf16.msra.mxu0 0
        %8318 = vmatprep.subr.bf16.mxu0 0
        %8319 = vmatpush2.bf16.msra.mxu0 0
        %8320 = vmatprep.subr.bf16.mxu0 0
        %8321 = vmatpush2.bf16.msra.mxu0 0
        %8322 = vmatprep.subr.bf16.mxu0 0
        %8323 = vmatpush2.bf16.msra.mxu0 0
        %8324 = vmatprep.subr.bf16.mxu0 0
        %8325 = vmatpush2.bf16.msra.mxu0 0
        %8326 = vmatprep.subr.bf16.mxu0 0
        %8327 = vmatpush2.bf16.msra.mxu0 0
        %8328 = vmatprep.subr.bf16.mxu0 0
        %8329 = vmatpush2.bf16.msra.mxu0 0
        %8330 = vmatprep.mubr.bf16.mxu0 0
        %8331 = vmatmul.mubr.bf16.gmra.mxu0 %v8293
        %v8332 = vpop.f32.mrf.mxu0
        %v8333 = vadd.f32 0.0, %v8332
        %v8334 = vpop.f32.mrf.mxu0
        %v8335 = vpop.f32.mrf.mxu0
        %v8336 = vadd.f32 0.0, %v8335
        %v8337 = vpop.f32.mrf.mxu0
        %8338 = vmatprep.mubr.bf16.mxu0 0
        %8339 = vmatmul.mubr.bf16.gmra.mxu0 %v8296
        %v8340 = vpop.f32.mrf.mxu0
        %v8341 = vadd.f32 0.0, %v8340
        %v8342 = vpop.f32.mrf.mxu0
        %v8343 = vpop.f32.mrf.mxu0
        %v8344 = vpop.f32.mrf.mxu0
        %8345 = vdwg.mxu0
        %v8358 = vunpack.c.l.b16 %v8228
        %v8359 = vunpack.c.l.b16 %v8229
        %v8360 = vunpack.c.l.b16 %v8230
        %v8361 = vunpack.c.l.b16 %v8231
        %v8362 = vunpack.c.l.b16 %v8232
        %v8363 = vunpack.c.l.b16 %v8233
        %v8364 = vunpack.c.l.b16 %v8234
        %v8365 = vunpack.c.l.b16 %v8235
        %v8366 = vunpack.c.l.b16 %v8236
        %v8367 = vunpack.c.l.b16 %v8237
        %v8368 = vunpack.c.l.b16 %v8238
        %v8369 = vunpack.c.l.b16 %v8239
        %v8370 = vpack.c.b16 %v8359, %v8358
        %v8371 = vpack.c.b16 %v8361, %v8360
        %v8372 = vpack.c.b16 %v8363, %v8362
        %v8373 = vpack.c.b16 %v8365, %v8364
        %v8374 = vpack.c.b16 %v8367, %v8366
        %v8375 = vpack.c.b16 %v8369, %v8368
        %v8383 = vsel %vm8291, %v8226, 0
        %v8386 = vsel %vm8291, %v8227, 0
        %8388 = vmatprep.subr.bf16.mxu0 0
        %8389 = vmatpush1.bf16.msra.mxu0 0
        %8390 = vmatprep.subr.bf16.mxu0 0
        %8391 = vmatpush1.bf16.msra.mxu0 0
        %8392 = vmatprep.subr.bf16.mxu0 0
        %8393 = vmatpush1.bf16.msra.mxu0 %v8375
        %8394 = vmatprep.subr.bf16.mxu0 0
        %8395 = vmatpush1.bf16.msra.mxu0 %v8374
        %8396 = vmatprep.subr.bf16.mxu0 0
        %8397 = vmatpush1.bf16.msra.mxu0 %v8373
        %8398 = vmatprep.subr.bf16.mxu0 0
        %8399 = vmatpush1.bf16.msra.mxu0 %v8372
        %8400 = vmatprep.subr.bf16.mxu0 0
        %8401 = vmatpush1.bf16.msra.mxu0 %v8371
        %8402 = vmatprep.subr.bf16.mxu0 0
        %8403 = vmatpush1.bf16.msra.mxu0 %v8370
        %8404 = vmatprep.subr.bf16.mxu0 0
        %8405 = vmatpush2.bf16.msra.mxu0 0
        %8406 = vmatprep.subr.bf16.mxu0 0
        %8407 = vmatpush2.bf16.msra.mxu0 0
        %8408 = vmatprep.subr.bf16.mxu0 0
        %8409 = vmatpush2.bf16.msra.mxu0 0
        %8410 = vmatprep.subr.bf16.mxu0 0
        %8411 = vmatpush2.bf16.msra.mxu0 0
        %8412 = vmatprep.subr.bf16.mxu0 0
        %8413 = vmatpush2.bf16.msra.mxu0 0
        %8414 = vmatprep.subr.bf16.mxu0 0
        %8415 = vmatpush2.bf16.msra.mxu0 0
        %8416 = vmatprep.subr.bf16.mxu0 0
        %8417 = vmatpush2.bf16.msra.mxu0 0
        %8418 = vmatprep.subr.bf16.mxu0 0
        %8419 = vmatpush2.bf16.msra.mxu0 0
        %8420 = vmatprep.mubr.bf16.mxu0 0
        %8421 = vmatmul.mubr.bf16.gmra.mxu0 %v8383
        %v8422 = vpop.f32.mrf.mxu0
        %v8423 = vadd.f32 %v8333, %v8422
        %v8424 = vpop.f32.mrf.mxu0
        %v8425 = vpop.f32.mrf.mxu0
        %v8426 = vadd.f32 %v8336, %v8425
        %v8427 = vpop.f32.mrf.mxu0
        %8428 = vmatprep.mubr.bf16.mxu0 0
        %8429 = vmatmul.mubr.bf16.gmra.mxu0 %v8386
        %v8430 = vpop.f32.mrf.mxu0
        %v8431 = vadd.f32 %v8341, %v8430
        %v8432 = vpop.f32.mrf.mxu0
        %v8433 = vpop.f32.mrf.mxu0
        %v8434 = vpop.f32.mrf.mxu0
        %8435 = vdwg.mxu0
        %v8436 = vld [vmem:[#allocation11] sm:$0x1]
        %v8438 = vlaneseq
        %v8439 = vshrl.u32 %v8438, 7
        %v8440 = vsub.s32 0, %v8439
        %v8441 = vrot.slane %v8436, %v8440
        %v8443 = vadd.f32 %v8423, %v8441
        %v8444 = vadd.f32 %v8426, %v8441
        %v8445 = vadd.f32 %v8431, %v8441
        %v8446 = vpack.c.bf16 %v8444, %v8443
        %v8447 = vpack.c.bf16 %v8445, %v8445
        %v8448 = vld [vmem:[#allocation13] sm:$0xf]
        %v8449 = vld [vmem:[#allocation13 + $0x4] sm:$0xf]
        %v8450 = vld [vmem:[#allocation13 + $0x8] sm:$0xf]
        %v8451 = vld [vmem:[#allocation13 + $0xc] sm:$0xf]
        %v8452 = vld [vmem:[#allocation13 + $0x10] sm:$0xf]
        %v8453 = vld [vmem:[#allocation13 + $0x14] sm:$0xf]
        %v8454 = vld [vmem:[#allocation13 + $0x18] sm:$0xf]
        %v8455 = vld [vmem:[#allocation13 + $0x1c] sm:$0xf]
        %v8456 = vld [vmem:[#allocation14] sm:$0x1]
        %v8458 = vlaneseq
        %v8459 = vshrl.u32 %v8458, 7
        %v8460 = vsub.s32 0, %v8459
        %v8461 = vrot.slane %v8456, %v8460
        %v8471 = vunpack.c.l.b16 %v8448
        %v8472 = vunpack.c.l.b16 %v8449
        %v8473 = vunpack.c.l.b16 %v8450
        %v8474 = vunpack.c.l.b16 %v8451
        %v8475 = vunpack.c.l.b16 %v8452
        %v8476 = vunpack.c.l.b16 %v8453
        %v8477 = vunpack.c.l.b16 %v8454
        %v8478 = vunpack.c.l.b16 %v8455
        %v8479 = vpack.c.b16 %v8472, %v8471
        %v8480 = vpack.c.b16 %v8474, %v8473
        %v8481 = vpack.c.b16 %v8476, %v8475
        %v8482 = vpack.c.b16 %v8478, %v8477
        %vm8487 = vcmask 523264
        %v8489 = vsel %vm8487, %v8446, 0
        %v8492 = vsel %vm8487, %v8447, 0
        %8494 = vmatprep.subr.bf16.mxu0 0
        %8495 = vmatpush1.bf16.msra.mxu0 0
        %8496 = vmatprep.subr.bf16.mxu0 0
        %8497 = vmatpush1.bf16.msra.mxu0 0
        %8498 = vmatprep.subr.bf16.mxu0 0
        %8499 = vmatpush1.bf16.msra.mxu0 0
        %8500 = vmatprep.subr.bf16.mxu0 0
        %8501 = vmatpush1.bf16.msra.mxu0 0
        %8502 = vmatprep.subr.bf16.mxu0 0
        %8503 = vmatpush1.bf16.msra.mxu0 %v8482
        %8504 = vmatprep.subr.bf16.mxu0 0
        %8505 = vmatpush1.bf16.msra.mxu0 %v8481
        %8506 = vmatprep.subr.bf16.mxu0 0
        %8507 = vmatpush1.bf16.msra.mxu0 %v8480
        %8508 = vmatprep.subr.bf16.mxu0 0
        %8509 = vmatpush1.bf16.msra.mxu0 %v8479
        %8510 = vmatprep.subr.bf16.mxu0 0
        %8511 = vmatpush2.bf16.msra.mxu0 0
        %8512 = vmatprep.subr.bf16.mxu0 0
        %8513 = vmatpush2.bf16.msra.mxu0 0
        %8514 = vmatprep.subr.bf16.mxu0 0
        %8515 = vmatpush2.bf16.msra.mxu0 0
        %8516 = vmatprep.subr.bf16.mxu0 0
        %8517 = vmatpush2.bf16.msra.mxu0 0
        %8518 = vmatprep.subr.bf16.mxu0 0
        %8519 = vmatpush2.bf16.msra.mxu0 0
        %8520 = vmatprep.subr.bf16.mxu0 0
        %8521 = vmatpush2.bf16.msra.mxu0 0
        %8522 = vmatprep.subr.bf16.mxu0 0
        %8523 = vmatpush2.bf16.msra.mxu0 0
        %8524 = vmatprep.subr.bf16.mxu0 0
        %8525 = vmatpush2.bf16.msra.mxu0 0
        %8526 = vmatprep.mubr.bf16.mxu0 0
        %8527 = vmatmul.mubr.bf16.gmra.mxu0 %v8489
        %v8528 = vpop.f32.mrf.mxu0
        %v8529 = vadd.f32 %v8461, %v8528
        %v8530 = vpop.f32.mrf.mxu0
        %v8531 = vpop.f32.mrf.mxu0
        %v8532 = vadd.f32 %v8461, %v8531
        %v8533 = vpop.f32.mrf.mxu0
        %8534 = vmatprep.mubr.bf16.mxu0 0
        %8535 = vmatmul.mubr.bf16.gmra.mxu0 %v8492
        %v8536 = vpop.f32.mrf.mxu0
        %v8537 = vadd.f32 %v8461, %v8536
        %v8538 = vpop.f32.mrf.mxu0
        %v8539 = vpop.f32.mrf.mxu0
        %v8540 = vpop.f32.mrf.mxu0
        %8541 = vdwg.mxu0
        %v8542 = vpack.c.bf16 %v8532, %v8529
        %v8543 = vpack.c.bf16 %v8537, %v8537
        %v8544 = vld [vmem:[#allocation16] sm:$0xf]
        %v8545 = vld [vmem:[#allocation16 + $0x4] sm:$0xf]
        %v8546 = vld [vmem:[#allocation16 + $0x8] sm:$0xf]
        %v8547 = vld [vmem:[#allocation16 + $0xc] sm:$0xf]
        %v8548 = vld [vmem:[#allocation16 + $0x10] sm:$0xf]
        %v8549 = vld [vmem:[#allocation16 + $0x14] sm:$0xf]
        %v8550 = vld [vmem:[#allocation16 + $0x18] sm:$0xf]
        %v8551 = vld [vmem:[#allocation16 + $0x1c] sm:$0xf]
        %v8552 = vld [vmem:[#allocation16 + $0x20] sm:$0xf]
        %v8553 = vld [vmem:[#allocation16 + $0x24] sm:$0xf]
        %v8554 = vld [vmem:[#allocation16 + $0x28] sm:$0xf]
        %v8555 = vld [vmem:[#allocation16 + $0x2c] sm:$0xf]
        %v8556 = vld [vmem:[#allocation17] sm:$0x1]
        %v8558 = vlaneseq
        %v8559 = vshrl.u32 %v8558, 7
        %v8560 = vsub.s32 0, %v8559
        %v8561 = vrot.slane %v8556, %v8560
        %v8575 = vunpack.c.l.b16 %v8544
        %v8576 = vunpack.c.l.b16 %v8545
        %v8577 = vunpack.c.l.b16 %v8546
        %v8578 = vunpack.c.l.b16 %v8547
        %v8579 = vunpack.c.l.b16 %v8548
        %v8580 = vunpack.c.l.b16 %v8549
        %v8581 = vunpack.c.l.b16 %v8550
        %v8582 = vunpack.c.l.b16 %v8551
        %v8583 = vunpack.c.l.b16 %v8552
        %v8584 = vunpack.c.l.b16 %v8553
        %v8585 = vunpack.c.l.b16 %v8554
        %v8586 = vunpack.c.l.b16 %v8555
        %v8587 = vpack.c.b16 %v8576, %v8575
        %v8588 = vpack.c.b16 %v8578, %v8577
        %v8589 = vpack.c.b16 %v8580, %v8579
        %v8590 = vpack.c.b16 %v8582, %v8581
        %v8591 = vpack.c.b16 %v8584, %v8583
        %v8592 = vpack.c.b16 %v8586, %v8585
        %v8600 = vsel %vm8291, %v8542, 0
        %v8603 = vsel %vm8291, %v8543, 0
        %8605 = vmatprep.subr.bf16.mxu0 0
        %8606 = vmatpush1.bf16.msra.mxu0 0
        %8607 = vmatprep.subr.bf16.mxu0 0
        %8608 = vmatpush1.bf16.msra.mxu0 0
        %8609 = vmatprep.subr.bf16.mxu0 0
        %8610 = vmatpush1.bf16.msra.mxu0 %v8592
        %8611 = vmatprep.subr.bf16.mxu0 0
        %8612 = vmatpush1.bf16.msra.mxu0 %v8591
        %8613 = vmatprep.subr.bf16.mxu0 0
        %8614 = vmatpush1.bf16.msra.mxu0 %v8590
        %8615 = vmatprep.subr.bf16.mxu0 0
        %8616 = vmatpush1.bf16.msra.mxu0 %v8589
        %8617 = vmatprep.subr.bf16.mxu0 0
        %8618 = vmatpush1.bf16.msra.mxu0 %v8588
        %8619 = vmatprep.subr.bf16.mxu0 0
        %8620 = vmatpush1.bf16.msra.mxu0 %v8587
        %8621 = vmatprep.subr.bf16.mxu0 0
        %8622 = vmatpush2.bf16.msra.mxu0 0
        %8623 = vmatprep.subr.bf16.mxu0 0
        %8624 = vmatpush2.bf16.msra.mxu0 0
        %8625 = vmatprep.subr.bf16.mxu0 0
        %8626 = vmatpush2.bf16.msra.mxu0 0
        %8627 = vmatprep.subr.bf16.mxu0 0
        %8628 = vmatpush2.bf16.msra.mxu0 0
        %8629 = vmatprep.subr.bf16.mxu0 0
        %8630 = vmatpush2.bf16.msra.mxu0 0
        %8631 = vmatprep.subr.bf16.mxu0 0
        %8632 = vmatpush2.bf16.msra.mxu0 0
        %8633 = vmatprep.subr.bf16.mxu0 0
        %8634 = vmatpush2.bf16.msra.mxu0 0
        %8635 = vmatprep.subr.bf16.mxu0 0
        %8636 = vmatpush2.bf16.msra.mxu0 0
        %8637 = vmatprep.mubr.bf16.mxu0 0
        %8638 = vmatmul.mubr.bf16.gmra.mxu0 %v8600
        %v8639 = vpop.f32.mrf.mxu0
        %v8640 = vadd.f32 %v8561, %v8639
        %v8641 = vpop.f32.mrf.mxu0
        %v8642 = vpop.f32.mrf.mxu0
        %v8643 = vadd.f32 %v8561, %v8642
        %v8644 = vpop.f32.mrf.mxu0
        %8645 = vmatprep.mubr.bf16.mxu0 0
        %8646 = vmatmul.mubr.bf16.gmra.mxu0 %v8603
        %v8647 = vpop.f32.mrf.mxu0
        %v8648 = vadd.f32 %v8561, %v8647
        %v8649 = vpop.f32.mrf.mxu0
        %v8650 = vpop.f32.mrf.mxu0
        %v8651 = vpop.f32.mrf.mxu0
        %8652 = vdwg.mxu0
        %8653 = vst [vmem:[%s551] sm:$0xff] %v8640
        %8654 = vst [vmem:[%s551 + $0x8] sm:$0xff] %v8643
        %8655 = vst [vmem:[%s551 + $0x10] sm:$0xff] %v8648
        %s8656 = sand.u32 %s277, 1
        %s8657 = scalar_lea.sflag [#allocation4], %s8656
        %s8658 = sand.u32 %s277, 1
        %s8659 = smul.addr %s8658, 24
        %s8660 = scalar_lea.vmem [#allocation19], %s8659
        // Predicated region
        $region105: #{tpu_custom_call.1} parent=63 // pred_check
          %p8661 = pneg %p287
        $region106: #{tpu_custom_call.1} parent=63 // pred_check_branch
          %8663 = sbr.rel (%p8661) target = $region108
        $region107: #{tpu_custom_call.1} parent=63 // pred_region
          %s8664 = smul.u32 3, %s33
          %s8666 = ssub.s32 384, 384
          %8667 = vsyncadd %s8657, %s8666
          %s8668 = smul.addr %s8664, 128
          %s8669 = scalar_lea.hbm %s11, %s8668
          %s8670 = sshll.u32 %s8660, 4
          %s8671 = int_to_ptr.vmem [resolvable:$true] %s8670
          %8676 = dma.vmem_to_hbm [thread:$0]  %s8671, 384, %s8669, %s8657, 128, 128, 8
        $region108: #{tpu_custom_call.1} parent=63 // pred_fallthru
          _
      $region64: #{tpu_custom_call.1} parent=5 // pred_fallthru
        _
      %p8677 = scmp.le.s32.totalorder 2, %s28
      // Predicated region
      $region109: #{tpu_custom_call.1} parent=5 // pred_check
        %p8678 = pneg %p8677
      $region110: #{tpu_custom_call.1} parent=5 // pred_check_branch
        %8680 = sbr.rel (%p8678) target = $region112
      $region111: #{tpu_custom_call.1} parent=5 // pred_region
        %s8681 = ssub.s32 %s28, 2
        // Predicated region
        $region113: #{tpu_custom_call.1} parent=111 // pred_check
          %p8682 = pneg %p293
        $region114: #{tpu_custom_call.1} parent=111 // pred_check_branch
          %8684 = sbr.rel (%p8682) target = $region116
        $region115: #{tpu_custom_call.1} parent=111 // pred_region
          %s8685 = sand.u32 %s278, 1
          %s8686 = scalar_lea.sflag [#allocation4], %s8685
          %s8687 = sand.u32 %s278, 1
          %s8688 = smul.addr %s8687, 24
          %s8689 = scalar_lea.vmem [#allocation19], %s8688
          %8690 = dma.done %s8686, 384
        $region116: #{tpu_custom_call.1} parent=111 // pred_fallthru
          _
      $region112: #{tpu_custom_call.1} parent=5 // pred_fallthru
        _
    $region6: #{tpu_custom_call.1} parent=1 // loop_footer
      %s32 = sadd.s32 1, %s28
    $region7: #{tpu_custom_call.1} parent=1 // loop_footer_branch
      %27 = sbr.rel target = $region3
    $region8: #{tpu_custom_call.1} parent=1 // loop_exit
      _
    %8691 = vsyncpa [#allocation3], 1
    %s8692 = scalar_lea.sflag [#allocation3], 1
    %8693 = vsyncpa %s8692, 1
    %8694 = vsyncpa [#allocation6], 1
    %8695 = vsyncpa [#allocation9], 1
    %8696 = vsyncpa [#allocation12], 1
    %8697 = vsyncpa [#allocation15], 1
    %8698 = vsyncpa [#allocation18], 1
    %8699 = vsyncpa [#allocation4], 1
    %s8700 = scalar_lea.sflag [#allocation4], 1
    %8701 = vsyncpa %s8700, 1

</llo_original>
